<compile_context>
chip_gen: v7x
topology: tpu7x:2x2x1
jax: 0.10.0
libtpu: 0.0.40
codegen_flags: <defaults>
</compile_context>

<pallas_src>
import functools

import jax
import jax.numpy as jnp
from jax.experimental import pallas as pl
from jax.experimental.pallas import tpu as pltpu

NEG_SLOPE = 0.01   # nn.LeakyReLU default
LANE = 128         # TPU lane width; channel-padding target


def _leaky_relu(x):
    return jnp.where(x >= 0, x, NEG_SLOPE * x)


def fused_convlayer_kernel(x_ref, w1_ref, b1_ref, w2_ref, b2_ref, o_ref,
                           xpad_ref, hpad_ref, *, pool_h, pool_w, conv2_mode):
    # x_ref : (1, H, W, Cin)        bf16   (one batch image per grid step)
    # w1_ref: (9*Cin_pad, Cp) bf16   b1_ref: (1, Cp) f32
    # w2_ref: (9*Cp, Cp)      bf16   b2_ref: (1, Cp) f32
    # o_ref : (1, Hp, Wp, Cp) bf16   (Cp = 128 lane-dense, sliced in wrapper)
    _, H, W, Cin = x_ref.shape
    _, Hp, Wp, Cp = o_ref.shape
    Cin_pad = xpad_ref.shape[-1]
    M = H * W
    bf16 = xpad_ref.dtype

    # ---- 'same' zero padding of this image's input: zero ONLY the 1-elem halo ----
    xpad_ref[:, 0:1, :, :] = jnp.zeros((1, 1, W + 2, Cin_pad), bf16)
    xpad_ref[:, H + 1:H + 2, :, :] = jnp.zeros((1, 1, W + 2, Cin_pad), bf16)
    xpad_ref[:, :, 0:1, :] = jnp.zeros((1, H + 2, 1, Cin_pad), bf16)
    xpad_ref[:, :, W + 1:W + 2, :] = jnp.zeros((1, H + 2, 1, Cin_pad), bf16)
    xv = x_ref[...]
    if Cin < Cin_pad:   # static: lane-pad channels so conv1's K is sublane-aligned
        xv = jnp.concatenate(
            [xv, jnp.zeros((1, H, W, Cin_pad - Cin), bf16)], axis=-1)
    xpad_ref[:, 1:H + 1, 1:W + 1, :] = xv

    # ---- conv1: one im2col matmul, K = 9*Cin_pad, bf16 in -> f32 accumulate ----
    cols1 = [xpad_ref[:, kh:kh + H, kw:kw + W, :].reshape(M, Cin_pad)
             for kh in range(3) for kw in range(3)]
    p1 = jnp.concatenate(cols1, axis=1)                        # (M, 9*Cin_pad)
    a1 = jnp.dot(p1, w1_ref[...], preferred_element_type=jnp.float32)
    a1 = _leaky_relu(a1 + b1_ref[...])                         # bias + LReLU in f32

    # ---- conv1 -> conv2 handoff stays in VMEM; zero only the halo, write interior --
    hpad_ref[:, 0:1, :, :] = jnp.zeros((1, 1, W + 2, Cp), bf16)
    hpad_ref[:, H + 1:H + 2, :, :] = jnp.zeros((1, 1, W + 2, Cp), bf16)
    hpad_ref[:, :, 0:1, :] = jnp.zeros((1, H + 2, 1, Cp), bf16)
    hpad_ref[:, :, W + 1:W + 2, :] = jnp.zeros((1, H + 2, 1, Cp), bf16)
    hpad_ref[:, 1:H + 1, 1:W + 1, :] = a1.reshape(1, H, W, Cp).astype(bf16)

    # ---- conv2: accumulating matmuls (no single K=1152 patch materialization) ----
    acc2 = None
    if conv2_mode == "per_tap":
        # v5e: 4x128 MXU — K=128 per dot already fills it; no lane-concat at all.
        for t in range(9):
            kh, kw = t // 3, t % 3
            lhs = hpad_ref[:, kh:kh + H, kw:kw + W, :].reshape(M, Cp)
            d = jnp.dot(lhs, w2_ref[t * Cp:(t + 1) * Cp, :],
                        preferred_element_type=jnp.float32)
            acc2 = d if acc2 is None else acc2 + d
    else:
        # v6e / v7x: 2x256 MXU — kh-grouped K = 3*Cp = 384 keeps it filled with
        # 3x less patch-matrix / concat traffic than a K=1152 im2col.
        for kh in range(3):
            cols = [hpad_ref[:, kh:kh + H, kw:kw + W, :].reshape(M, Cp)
                    for kw in range(3)]
            lhs = jnp.concatenate(cols, axis=1)                # (M, 3*Cp)
            d = jnp.dot(lhs, w2_ref[kh * 3 * Cp:(kh + 1) * 3 * Cp, :],
                        preferred_element_type=jnp.float32)
            acc2 = d if acc2 is None else acc2 + d
    a2 = _leaky_relu(acc2 + b2_ref[...])

    # ---- MaxPool2d(kernel=(3,2)), stride = kernel, floor mode ----
    y = a2.reshape(H, W, Cp)
    # H pooling: reduce over a major (non-sublane) axis.
    yh = jnp.max(y[:Hp * pool_h].reshape(Hp, pool_h, W, Cp), axis=1)   # (Hp, W, Cp)
    # W pooling: maximum of the extracted kw slices (no size-2 sublane reduce).
    yw = yh[:, :Wp * pool_w].reshape(Hp, Wp, pool_w, Cp)
    yp = yw[:, :, 0, :]
    for j in range(1, pool_w):
        yp = jnp.maximum(yp, yw[:, :, j, :])

    # Dropout(p=0.5): identity in inference.
    o_ref[...] = yp.reshape(1, Hp, Wp, Cp).astype(o_ref.dtype)


def init_params(key, in_channels, filters=50):
    """Deterministic xavier_uniform (gain=1) weights + zero bias, like __init__."""
    k1, k2 = jax.random.split(key)

    def xavier(k, cin, cout):
        fan_in, fan_out = cin * 9, cout * 9
        bound = (6.0 / (fan_in + fan_out)) ** 0.5
        # stored in HWIO layout (kh, kw, cin, cout)
        return jax.random.uniform(k, (3, 3, cin, cout), jnp.float32,
                                  minval=-bound, maxval=bound)

    return (xavier(k1, in_channels, filters), jnp.zeros((filters,), jnp.float32),
            xavier(k2, filters, filters), jnp.zeros((filters,), jnp.float32))


def prepare_params(params, cpad=LANE):
    """One-time host-side prep: pad channel axes (out channels to the 128-lane
    width, conv1 in-channels to a multiple of 16 so K1 is bf16-sublane aligned),
    reshape to im2col weight matrices and cast to bf16 for the MXU."""
    w1, b1, w2, b2 = params
    cin, c1 = w1.shape[2], w1.shape[3]
    c2in, c2 = w2.shape[2], w2.shape[3]
    cin_pad = ((cin + 15) // 16) * 16
    assert cpad % LANE == 0 and cpad >= max(c1, c2)
    w1m = jnp.pad(w1, ((0, 0), (0, 0), (0, cin_pad - cin), (0, cpad - c1)))
    w1m = w1m.reshape(9 * cin_pad, cpad).astype(jnp.bfloat16)
    b1m = jnp.pad(b1, (0, cpad - c1)).reshape(1, cpad).astype(jnp.float32)
    w2m = jnp.pad(w2, ((0, 0), (0, 0), (0, cpad - c2in), (0, cpad - c2)))
    w2m = w2m.reshape(9 * cpad, cpad).astype(jnp.bfloat16)
    b2m = jnp.pad(b2, (0, cpad - c2)).reshape(1, cpad).astype(jnp.float32)
    return {"w1": w1m, "b1": b1m, "w2": w2m, "b2": b2m,
            "out_channels": c2, "cin": cin, "cin_pad": cin_pad}


def _pick_conv2_mode():
    """v5e (4x128 MXU): per-tap K=128 dots; v6e/v7x (2x256 MXU): kh-grouped K=384."""
    try:
        kind = jax.devices()[0].device_kind.lower()
    except Exception:
        return "kh_group"
    if "v5e" in kind or "v5 lite" in kind or "v5lite" in kind:
        return "per_tap"
    return "kh_group"


def conv_layer_forward_nhwc(x_nhwc, prep, conv2_mode=None):
    """Fused ConvLayer forward, NHWC in -> NHWC out (bf16, lane-padded channels)."""
    w1m, b1m, w2m, b2m = prep["w1"], prep["b1"], prep["w2"], prep["b2"]
    N, H, W, Cin = x_nhwc.shape
    assert Cin == prep["cin"], (Cin, prep["cin"])
    assert H >= 3 and W >= 2, "MaxPool2d((3,2)) needs H>=3 and W>=2"
    K1, Cp = w1m.shape
    K2 = w2m.shape[0]
    Hp, Wp = H // 3, W // 2                      # MaxPool(3,2), floor mode
    cin_pad = prep["cin_pad"]
    if conv2_mode is None:
        conv2_mode = _pick_conv2_mode()
    x_bf16 = x_nhwc.astype(jnp.bfloat16)         # bf16 activations for the MXU

    flops = 2 * N * H * W * Cp * (K1 + K2)
    bytes_accessed = (N * H * W * Cin * 2 + K1 * Cp * 2 + K2 * Cp * 2
                      + 2 * Cp * 4 + N * Hp * Wp * Cp * 2)

    kernel = functools.partial(fused_convlayer_kernel, pool_h=3, pool_w=2,
                               conv2_mode=conv2_mode)
    out = pl.pallas_call(
        kernel,
        out_shape=jax.ShapeDtypeStruct((N, Hp, Wp, Cp), jnp.bfloat16),
        grid_spec=pltpu.PrefetchScalarGridSpec(
            num_scalar_prefetch=0,
            grid=(N,),   # one image per step: streamed tiles, megacore-parallel
            in_specs=[
                pl.BlockSpec((1, H, W, Cin), lambda i: (i, 0, 0, 0)),
                # weights/biases: constant block index -> stay VMEM-resident
                pl.BlockSpec((K1, Cp), lambda i: (0, 0)),
                pl.BlockSpec((1, Cp), lambda i: (0, 0)),
                pl.BlockSpec((K2, Cp), lambda i: (0, 0)),
                pl.BlockSpec((1, Cp), lambda i: (0, 0)),
            ],
            out_specs=pl.BlockSpec((1, Hp, Wp, Cp), lambda i: (i, 0, 0, 0)),
            scratch_shapes=[
                pltpu.VMEM((1, H + 2, W + 2, cin_pad), jnp.bfloat16),  # padded input
                pltpu.VMEM((1, H + 2, W + 2, Cp), jnp.bfloat16),       # padded conv1
            ],
        ),
        compiler_params=pltpu.CompilerParams(
            dimension_semantics=("parallel",),
            vmem_limit_bytes=32 * 1024 * 1024,
        ),
        cost_estimate=pl.CostEstimate(flops=flops, transcendentals=0,
                                      bytes_accessed=bytes_accessed),
    )(x_bf16, w1m, b1m, w2m, b2m)
    return out[..., :prep["out_channels"]]       # drop the (all-zero) lane padding


def conv_layer_forward(x_nchw, prep, conv2_mode=None):
    """NCHW f32 wrapper for drop-in parity with the PyTorch module."""
    x_nhwc = jnp.transpose(x_nchw, (0, 2, 3, 1)).astype(jnp.float32)
    y = conv_layer_forward_nhwc(x_nhwc, prep, conv2_mode=conv2_mode)
    return jnp.transpose(y, (0, 3, 1, 2)).astype(jnp.float32)


if __name__ == "__main__":
    key = jax.random.PRNGKey(0)
    kx, kp = jax.random.split(key)

    N, C, H, W = 2, 4, 16, 16                    # small NCHW input
    x = jax.random.normal(kx, (N, C, H, W), jnp.float32)
    params = init_params(kp, in_channels=C, filters=50)
    prep = prepare_params(params)

    out = jax.block_until_ready(conv_layer_forward(x, prep))

    expected_shape = (N, 50, H // 3, W // 2)     # (2, 50, 5, 8)
    assert out.shape == expected_shape, (out.shape, expected_shape)
    assert out.dtype == jnp.float32

    # pure-JAX f32 reference of the module's forward (eval mode)
    def ref_forward(x_nchw, raw_params):
        w1, b1, w2, b2 = raw_params
        dn = ("NHWC", "HWIO", "NHWC")
        y = jnp.transpose(x_nchw, (0, 2, 3, 1))
        y = jax.lax.conv_general_dilated(y, w1, (1, 1), "SAME",
                                         dimension_numbers=dn) + b1
        y = jnp.where(y >= 0, y, NEG_SLOPE * y)
        y = jax.lax.conv_general_dilated(y, w2, (1, 1), "SAME",
                                         dimension_numbers=dn) + b2
        y = jnp.where(y >= 0, y, NEG_SLOPE * y)
        y = jax.lax.reduce_window(y, -jnp.inf, jax.lax.max,
                                  (1, 3, 2, 1), (1, 3, 2, 1), "VALID")
        return jnp.transpose(y, (0, 3, 1, 2))

    ref = ref_forward(x, params)
    max_err = float(jnp.max(jnp.abs(out - ref)))
    assert max_err < 5e-2, max_err               # bf16 MXU path vs f32 reference

    print("KERNEL_OK")
</pallas_src>

<mosaic_0001>
module attributes {stable_mosaic.version = 11 : i64} {
  func.func @fused_convlayer_kernel(%arg0: i32, %arg1: memref<1x16x16x4xbf16, #tpu.memory_space<vmem>>, %arg2: memref<144x128xbf16, #tpu.memory_space<vmem>>, %arg3: memref<1x128xf32, #tpu.memory_space<vmem>>, %arg4: memref<1152x128xbf16, #tpu.memory_space<vmem>>, %arg5: memref<1x128xf32, #tpu.memory_space<vmem>>, %arg6: memref<1x5x8x128xbf16, #tpu.memory_space<vmem>>, %arg7: memref<1x18x18x16xbf16, #tpu.memory_space<vmem>>, %arg8: memref<1x18x18x128xbf16, #tpu.memory_space<vmem>>) attributes {dimension_semantics = [#tpu.dimension_semantics<parallel>], iteration_bounds = array<i64: 2>, scalar_prefetch = 0 : i64, scratch_operands = 2 : i64, tpu.core_type = #tpu.core_type<tc>, window_params = [{transform_indices = @transform_0, window_bounds = array<i64: 1, 16, 16, 4>}, {pipeline_mode = #tpu.pipeline_mode<synchronous>, transform_indices = @transform_1, window_bounds = array<i64: 144, 128>}, {pipeline_mode = #tpu.pipeline_mode<synchronous>, transform_indices = @transform_2, window_bounds = array<i64: 1, 128>}, {pipeline_mode = #tpu.pipeline_mode<synchronous>, transform_indices = @transform_3, window_bounds = array<i64: 1152, 128>}, {pipeline_mode = #tpu.pipeline_mode<synchronous>, transform_indices = @transform_4, window_bounds = array<i64: 1, 128>}, {transform_indices = @transform_5, window_bounds = array<i64: 1, 5, 8, 128>}]} {
    %cst = arith.constant 0.000000e+00 : bf16
    %0 = vector.broadcast %cst : bf16 to vector<1x1x18x16xbf16>
    %c0 = arith.constant 0 : index
    %c0_0 = arith.constant 0 : index
    %c0_1 = arith.constant 0 : index
    %c0_2 = arith.constant 0 : index
    %1 = vector.load %arg7[%c0, %c0_0, %c0_1, %c0_2] : memref<1x18x18x16xbf16, #tpu.memory_space<vmem>>, vector<1x1x18x16xbf16>
    tpu.vector_store %arg7[%c0, %c0_0, %c0_1, %c0_2], %0 {strides = array<i32>} : memref<1x18x18x16xbf16, #tpu.memory_space<vmem>>, vector<1x1x18x16xbf16>,
    %cst_3 = arith.constant 0.000000e+00 : bf16
    %2 = vector.broadcast %cst_3 : bf16 to vector<1x1x18x16xbf16>
    %c0_4 = arith.constant 0 : index
    %c17 = arith.constant 17 : index
    %c0_5 = arith.constant 0 : index
    %c0_6 = arith.constant 0 : index
    %3 = vector.load %arg7[%c0_4, %c17, %c0_5, %c0_6] : memref<1x18x18x16xbf16, #tpu.memory_space<vmem>>, vector<1x1x18x16xbf16>
    tpu.vector_store %arg7[%c0_4, %c17, %c0_5, %c0_6], %2 {strides = array<i32>} : memref<1x18x18x16xbf16, #tpu.memory_space<vmem>>, vector<1x1x18x16xbf16>,
    %cst_7 = arith.constant 0.000000e+00 : bf16
    %4 = vector.broadcast %cst_7 : bf16 to vector<1x18x1x16xbf16>
    %c0_8 = arith.constant 0 : index
    %c0_9 = arith.constant 0 : index
    %c0_10 = arith.constant 0 : index
    %c0_11 = arith.constant 0 : index
    %5 = vector.load %arg7[%c0_8, %c0_9, %c0_10, %c0_11] : memref<1x18x18x16xbf16, #tpu.memory_space<vmem>>, vector<1x18x1x16xbf16>
    tpu.vector_store %arg7[%c0_8, %c0_9, %c0_10, %c0_11], %4 {strides = array<i32>} : memref<1x18x18x16xbf16, #tpu.memory_space<vmem>>, vector<1x18x1x16xbf16>,
    %cst_12 = arith.constant 0.000000e+00 : bf16
    %6 = vector.broadcast %cst_12 : bf16 to vector<1x18x1x16xbf16>
    %c0_13 = arith.constant 0 : index
    %c0_14 = arith.constant 0 : index
    %c17_15 = arith.constant 17 : index
    %c0_16 = arith.constant 0 : index
    %7 = vector.load %arg7[%c0_13, %c0_14, %c17_15, %c0_16] : memref<1x18x18x16xbf16, #tpu.memory_space<vmem>>, vector<1x18x1x16xbf16>
    tpu.vector_store %arg7[%c0_13, %c0_14, %c17_15, %c0_16], %6 {strides = array<i32>} : memref<1x18x18x16xbf16, #tpu.memory_space<vmem>>, vector<1x18x1x16xbf16>,
    %c0_17 = arith.constant 0 : index
    %c0_18 = arith.constant 0 : index
    %c0_19 = arith.constant 0 : index
    %c0_20 = arith.constant 0 : index
    %8 = vector.load %arg1[%c0_17, %c0_18, %c0_19, %c0_20] : memref<1x16x16x4xbf16, #tpu.memory_space<vmem>>, vector<1x16x16x4xbf16>
    %cst_21 = arith.constant 0.000000e+00 : bf16
    %9 = vector.broadcast %cst_21 : bf16 to vector<1x16x16x12xbf16>
    %10 = tpu.concatenate %8, %9 in 3 : vector<1x16x16x4xbf16>, vector<1x16x16x12xbf16> -> vector<1x16x16x16xbf16>
    %c0_22 = arith.constant 0 : index
    %c1 = arith.constant 1 : index
    %c1_23 = arith.constant 1 : index
    %c0_24 = arith.constant 0 : index
    %11 = vector.load %arg7[%c0_22, %c1, %c1_23, %c0_24] : memref<1x18x18x16xbf16, #tpu.memory_space<vmem>>, vector<1x16x16x16xbf16>
    tpu.vector_store %arg7[%c0_22, %c1, %c1_23, %c0_24], %10 {strides = array<i32>} : memref<1x18x18x16xbf16, #tpu.memory_space<vmem>>, vector<1x16x16x16xbf16>,
    %c0_25 = arith.constant 0 : index
    %c0_26 = arith.constant 0 : index
    %c0_27 = arith.constant 0 : index
    %c0_28 = arith.constant 0 : index
    %12 = vector.load %arg7[%c0_25, %c0_26, %c0_27, %c0_28] : memref<1x18x18x16xbf16, #tpu.memory_space<vmem>>, vector<1x16x16x16xbf16>
    %13 = vector.shape_cast %12 : vector<1x16x16x16xbf16> to vector<256x16xbf16>
    %c0_29 = arith.constant 0 : index
    %c0_30 = arith.constant 0 : index
    %c1_31 = arith.constant 1 : index
    %c0_32 = arith.constant 0 : index
    %14 = vector.load %arg7[%c0_29, %c0_30, %c1_31, %c0_32] : memref<1x18x18x16xbf16, #tpu.memory_space<vmem>>, vector<1x16x16x16xbf16>
    %15 = vector.shape_cast %14 : vector<1x16x16x16xbf16> to vector<256x16xbf16>
    %c0_33 = arith.constant 0 : index
    %c0_34 = arith.constant 0 : index
    %c2 = arith.constant 2 : index
    %c0_35 = arith.constant 0 : index
    %16 = vector.load %arg7[%c0_33, %c0_34, %c2, %c0_35] : memref<1x18x18x16xbf16, #tpu.memory_space<vmem>>, vector<1x16x16x16xbf16>
    %17 = vector.shape_cast %16 : vector<1x16x16x16xbf16> to vector<256x16xbf16>
    %c0_36 = arith.constant 0 : index
    %c1_37 = arith.constant 1 : index
    %c0_38 = arith.constant 0 : index
    %c0_39 = arith.constant 0 : index
    %18 = vector.load %arg7[%c0_36, %c1_37, %c0_38, %c0_39] : memref<1x18x18x16xbf16, #tpu.memory_space<vmem>>, vector<1x16x16x16xbf16>
    %19 = vector.shape_cast %18 : vector<1x16x16x16xbf16> to vector<256x16xbf16>
    %c0_40 = arith.constant 0 : index
    %c1_41 = arith.constant 1 : index
    %c1_42 = arith.constant 1 : index
    %c0_43 = arith.constant 0 : index
    %20 = vector.load %arg7[%c0_40, %c1_41, %c1_42, %c0_43] : memref<1x18x18x16xbf16, #tpu.memory_space<vmem>>, vector<1x16x16x16xbf16>
    %21 = vector.shape_cast %20 : vector<1x16x16x16xbf16> to vector<256x16xbf16>
    %c0_44 = arith.constant 0 : index
    %c1_45 = arith.constant 1 : index
    %c2_46 = arith.constant 2 : index
    %c0_47 = arith.constant 0 : index
    %22 = vector.load %arg7[%c0_44, %c1_45, %c2_46, %c0_47] : memref<1x18x18x16xbf16, #tpu.memory_space<vmem>>, vector<1x16x16x16xbf16>
    %23 = vector.shape_cast %22 : vector<1x16x16x16xbf16> to vector<256x16xbf16>
    %c0_48 = arith.constant 0 : index
    %c2_49 = arith.constant 2 : index
    %c0_50 = arith.constant 0 : index
    %c0_51 = arith.constant 0 : index
    %24 = vector.load %arg7[%c0_48, %c2_49, %c0_50, %c0_51] : memref<1x18x18x16xbf16, #tpu.memory_space<vmem>>, vector<1x16x16x16xbf16>
    %25 = vector.shape_cast %24 : vector<1x16x16x16xbf16> to vector<256x16xbf16>
    %c0_52 = arith.constant 0 : index
    %c2_53 = arith.constant 2 : index
    %c1_54 = arith.constant 1 : index
    %c0_55 = arith.constant 0 : index
    %26 = vector.load %arg7[%c0_52, %c2_53, %c1_54, %c0_55] : memref<1x18x18x16xbf16, #tpu.memory_space<vmem>>, vector<1x16x16x16xbf16>
    %27 = vector.shape_cast %26 : vector<1x16x16x16xbf16> to vector<256x16xbf16>
    %c0_56 = arith.constant 0 : index
    %c2_57 = arith.constant 2 : index
    %c2_58 = arith.constant 2 : index
    %c0_59 = arith.constant 0 : index
    %28 = vector.load %arg7[%c0_56, %c2_57, %c2_58, %c0_59] : memref<1x18x18x16xbf16, #tpu.memory_space<vmem>>, vector<1x16x16x16xbf16>
    %29 = vector.shape_cast %28 : vector<1x16x16x16xbf16> to vector<256x16xbf16>
    %30 = tpu.concatenate %13, %15, %17, %19, %21, %23, %25, %27, %29 in 1 : vector<256x16xbf16>, vector<256x16xbf16>, vector<256x16xbf16>, vector<256x16xbf16>, vector<256x16xbf16>, vector<256x16xbf16>, vector<256x16xbf16>, vector<256x16xbf16>, vector<256x16xbf16> -> vector<256x144xbf16>
    %c0_60 = arith.constant 0 : index
    %c0_61 = arith.constant 0 : index
    %31 = vector.load %arg2[%c0_60, %c0_61] : memref<144x128xbf16, #tpu.memory_space<vmem>>, vector<144x128xbf16>
    %cst_62 = arith.constant dense<0.000000e+00> : vector<256x128xf32>
    %32 = tpu.matmul %30, %31, %cst_62 {dimension_numbers = #tpu.dot_dimension_numbers<[1], [0], [0], [1], [0, 0, 1, 1], [], []>} : vector<256x144xbf16>, vector<144x128xbf16>, vector<256x128xf32> -> vector<256x128xf32>
    %c0_63 = arith.constant 0 : index
    %c0_64 = arith.constant 0 : index
    %33 = vector.load %arg3[%c0_63, %c0_64] : memref<1x128xf32, #tpu.memory_space<vmem>>, vector<1x128xf32>
    %34 = vector.broadcast %33 : vector<1x128xf32> to vector<256x128xf32>
    %35 = arith.addf %32, %34 : vector<256x128xf32>
    %cst_65 = arith.constant 0.000000e+00 : f32
    %36 = vector.broadcast %cst_65 : f32 to vector<256x128xf32>
    %37 = arith.cmpf oge, %35, %36 : vector<256x128xf32>
    %cst_66 = arith.constant 0.00999999977 : f32
    %38 = vector.broadcast %cst_66 : f32 to vector<256x128xf32>
    %39 = arith.mulf %38, %35 : vector<256x128xf32>
    %40 = arith.select %37, %35, %39 : vector<256x128xi1>, vector<256x128xf32>
    %cst_67 = arith.constant 0.000000e+00 : bf16
    %41 = vector.broadcast %cst_67 : bf16 to vector<1x1x18x128xbf16>
    %c0_68 = arith.constant 0 : index
    %c0_69 = arith.constant 0 : index
    %c0_70 = arith.constant 0 : index
    %c0_71 = arith.constant 0 : index
    %42 = vector.load %arg8[%c0_68, %c0_69, %c0_70, %c0_71] : memref<1x18x18x128xbf16, #tpu.memory_space<vmem>>, vector<1x1x18x128xbf16>
    tpu.vector_store %arg8[%c0_68, %c0_69, %c0_70, %c0_71], %41 {strides = array<i32>} : memref<1x18x18x128xbf16, #tpu.memory_space<vmem>>, vector<1x1x18x128xbf16>,
    %cst_72 = arith.constant 0.000000e+00 : bf16
    %43 = vector.broadcast %cst_72 : bf16 to vector<1x1x18x128xbf16>
    %c0_73 = arith.constant 0 : index
    %c17_74 = arith.constant 17 : index
    %c0_75 = arith.constant 0 : index
    %c0_76 = arith.constant 0 : index
    %44 = vector.load %arg8[%c0_73, %c17_74, %c0_75, %c0_76] : memref<1x18x18x128xbf16, #tpu.memory_space<vmem>>, vector<1x1x18x128xbf16>
    tpu.vector_store %arg8[%c0_73, %c17_74, %c0_75, %c0_76], %43 {strides = array<i32>} : memref<1x18x18x128xbf16, #tpu.memory_space<vmem>>, vector<1x1x18x128xbf16>,
    %cst_77 = arith.constant 0.000000e+00 : bf16
    %45 = vector.broadcast %cst_77 : bf16 to vector<1x18x1x128xbf16>
    %c0_78 = arith.constant 0 : index
    %c0_79 = arith.constant 0 : index
    %c0_80 = arith.constant 0 : index
    %c0_81 = arith.constant 0 : index
    %46 = vector.load %arg8[%c0_78, %c0_79, %c0_80, %c0_81] : memref<1x18x18x128xbf16, #tpu.memory_space<vmem>>, vector<1x18x1x128xbf16>
    tpu.vector_store %arg8[%c0_78, %c0_79, %c0_80, %c0_81], %45 {strides = array<i32>} : memref<1x18x18x128xbf16, #tpu.memory_space<vmem>>, vector<1x18x1x128xbf16>,
    %cst_82 = arith.constant 0.000000e+00 : bf16
    %47 = vector.broadcast %cst_82 : bf16 to vector<1x18x1x128xbf16>
    %c0_83 = arith.constant 0 : index
    %c0_84 = arith.constant 0 : index
    %c17_85 = arith.constant 17 : index
    %c0_86 = arith.constant 0 : index
    %48 = vector.load %arg8[%c0_83, %c0_84, %c17_85, %c0_86] : memref<1x18x18x128xbf16, #tpu.memory_space<vmem>>, vector<1x18x1x128xbf16>
    tpu.vector_store %arg8[%c0_83, %c0_84, %c17_85, %c0_86], %47 {strides = array<i32>} : memref<1x18x18x128xbf16, #tpu.memory_space<vmem>>, vector<1x18x1x128xbf16>,
    %49 = vector.shape_cast %40 : vector<256x128xf32> to vector<1x16x16x128xf32>
    %50 = arith.truncf %49 : vector<1x16x16x128xf32> to vector<1x16x16x128xbf16>
    %c0_87 = arith.constant 0 : index
    %c1_88 = arith.constant 1 : index
    %c1_89 = arith.constant 1 : index
    %c0_90 = arith.constant 0 : index
    %51 = vector.load %arg8[%c0_87, %c1_88, %c1_89, %c0_90] : memref<1x18x18x128xbf16, #tpu.memory_space<vmem>>, vector<1x16x16x128xbf16>
    tpu.vector_store %arg8[%c0_87, %c1_88, %c1_89, %c0_90], %50 {strides = array<i32>} : memref<1x18x18x128xbf16, #tpu.memory_space<vmem>>, vector<1x16x16x128xbf16>,
    %c0_91 = arith.constant 0 : index
    %c0_92 = arith.constant 0 : index
    %c0_93 = arith.constant 0 : index
    %c0_94 = arith.constant 0 : index
    %52 = vector.load %arg8[%c0_91, %c0_92, %c0_93, %c0_94] : memref<1x18x18x128xbf16, #tpu.memory_space<vmem>>, vector<1x16x16x128xbf16>
    %53 = vector.shape_cast %52 : vector<1x16x16x128xbf16> to vector<256x128xbf16>
    %c0_95 = arith.constant 0 : index
    %c0_96 = arith.constant 0 : index
    %c1_97 = arith.constant 1 : index
    %c0_98 = arith.constant 0 : index
    %54 = vector.load %arg8[%c0_95, %c0_96, %c1_97, %c0_98] : memref<1x18x18x128xbf16, #tpu.memory_space<vmem>>, vector<1x16x16x128xbf16>
    %55 = vector.shape_cast %54 : vector<1x16x16x128xbf16> to vector<256x128xbf16>
    %c0_99 = arith.constant 0 : index
    %c0_100 = arith.constant 0 : index
    %c2_101 = arith.constant 2 : index
    %c0_102 = arith.constant 0 : index
    %56 = vector.load %arg8[%c0_99, %c0_100, %c2_101, %c0_102] : memref<1x18x18x128xbf16, #tpu.memory_space<vmem>>, vector<1x16x16x128xbf16>
    %57 = vector.shape_cast %56 : vector<1x16x16x128xbf16> to vector<256x128xbf16>
    %58 = tpu.concatenate %53, %55, %57 in 1 : vector<256x128xbf16>, vector<256x128xbf16>, vector<256x128xbf16> -> vector<256x384xbf16>
    %c0_103 = arith.constant 0 : index
    %c0_104 = arith.constant 0 : index
    %59 = vector.load %arg4[%c0_103, %c0_104] : memref<1152x128xbf16, #tpu.memory_space<vmem>>, vector<384x128xbf16>
    %cst_105 = arith.constant dense<0.000000e+00> : vector<256x128xf32>
    %60 = tpu.matmul %58, %59, %cst_105 {dimension_numbers = #tpu.dot_dimension_numbers<[1], [0], [0], [1], [0, 0, 1, 1], [], []>} : vector<256x384xbf16>, vector<384x128xbf16>, vector<256x128xf32> -> vector<256x128xf32>
    %c0_106 = arith.constant 0 : index
    %c1_107 = arith.constant 1 : index
    %c0_108 = arith.constant 0 : index
    %c0_109 = arith.constant 0 : index
    %61 = vector.load %arg8[%c0_106, %c1_107, %c0_108, %c0_109] : memref<1x18x18x128xbf16, #tpu.memory_space<vmem>>, vector<1x16x16x128xbf16>
    %62 = vector.shape_cast %61 : vector<1x16x16x128xbf16> to vector<256x128xbf16>
    %c0_110 = arith.constant 0 : index
    %c1_111 = arith.constant 1 : index
    %c1_112 = arith.constant 1 : index
    %c0_113 = arith.constant 0 : index
    %63 = vector.load %arg8[%c0_110, %c1_111, %c1_112, %c0_113] : memref<1x18x18x128xbf16, #tpu.memory_space<vmem>>, vector<1x16x16x128xbf16>
    %64 = vector.shape_cast %63 : vector<1x16x16x128xbf16> to vector<256x128xbf16>
    %c0_114 = arith.constant 0 : index
    %c1_115 = arith.constant 1 : index
    %c2_116 = arith.constant 2 : index
    %c0_117 = arith.constant 0 : index
    %65 = vector.load %arg8[%c0_114, %c1_115, %c2_116, %c0_117] : memref<1x18x18x128xbf16, #tpu.memory_space<vmem>>, vector<1x16x16x128xbf16>
    %66 = vector.shape_cast %65 : vector<1x16x16x128xbf16> to vector<256x128xbf16>
    %67 = tpu.concatenate %62, %64, %66 in 1 : vector<256x128xbf16>, vector<256x128xbf16>, vector<256x128xbf16> -> vector<256x384xbf16>
    %c384 = arith.constant 384 : index
    %c0_118 = arith.constant 0 : index
    %68 = vector.load %arg4[%c384, %c0_118] : memref<1152x128xbf16, #tpu.memory_space<vmem>>, vector<384x128xbf16>
    %cst_119 = arith.constant dense<0.000000e+00> : vector<256x128xf32>
    %69 = tpu.matmul %67, %68, %cst_119 {dimension_numbers = #tpu.dot_dimension_numbers<[1], [0], [0], [1], [0, 0, 1, 1], [], []>} : vector<256x384xbf16>, vector<384x128xbf16>, vector<256x128xf32> -> vector<256x128xf32>
    %70 = arith.addf %60, %69 : vector<256x128xf32>
    %c0_120 = arith.constant 0 : index
    %c2_121 = arith.constant 2 : index
    %c0_122 = arith.constant 0 : index
    %c0_123 = arith.constant 0 : index
    %71 = vector.load %arg8[%c0_120, %c2_121, %c0_122, %c0_123] : memref<1x18x18x128xbf16, #tpu.memory_space<vmem>>, vector<1x16x16x128xbf16>
    %72 = vector.shape_cast %71 : vector<1x16x16x128xbf16> to vector<256x128xbf16>
    %c0_124 = arith.constant 0 : index
    %c2_125 = arith.constant 2 : index
    %c1_126 = arith.constant 1 : index
    %c0_127 = arith.constant 0 : index
    %73 = vector.load %arg8[%c0_124, %c2_125, %c1_126, %c0_127] : memref<1x18x18x128xbf16, #tpu.memory_space<vmem>>, vector<1x16x16x128xbf16>
    %74 = vector.shape_cast %73 : vector<1x16x16x128xbf16> to vector<256x128xbf16>
    %c0_128 = arith.constant 0 : index
    %c2_129 = arith.constant 2 : index
    %c2_130 = arith.constant 2 : index
    %c0_131 = arith.constant 0 : index
    %75 = vector.load %arg8[%c0_128, %c2_129, %c2_130, %c0_131] : memref<1x18x18x128xbf16, #tpu.memory_space<vmem>>, vector<1x16x16x128xbf16>
    %76 = vector.shape_cast %75 : vector<1x16x16x128xbf16> to vector<256x128xbf16>
    %77 = tpu.concatenate %72, %74, %76 in 1 : vector<256x128xbf16>, vector<256x128xbf16>, vector<256x128xbf16> -> vector<256x384xbf16>
    %c768 = arith.constant 768 : index
    %c0_132 = arith.constant 0 : index
    %78 = vector.load %arg4[%c768, %c0_132] : memref<1152x128xbf16, #tpu.memory_space<vmem>>, vector<384x128xbf16>
    %cst_133 = arith.constant dense<0.000000e+00> : vector<256x128xf32>
    %79 = tpu.matmul %77, %78, %cst_133 {dimension_numbers = #tpu.dot_dimension_numbers<[1], [0], [0], [1], [0, 0, 1, 1], [], []>} : vector<256x384xbf16>, vector<384x128xbf16>, vector<256x128xf32> -> vector<256x128xf32>
    %80 = arith.addf %70, %79 : vector<256x128xf32>
    %c0_134 = arith.constant 0 : index
    %c0_135 = arith.constant 0 : index
    %81 = vector.load %arg5[%c0_134, %c0_135] : memref<1x128xf32, #tpu.memory_space<vmem>>, vector<1x128xf32>
    %82 = vector.broadcast %81 : vector<1x128xf32> to vector<256x128xf32>
    %83 = arith.addf %80, %82 : vector<256x128xf32>
    %cst_136 = arith.constant 0.000000e+00 : f32
    %84 = vector.broadcast %cst_136 : f32 to vector<256x128xf32>
    %85 = arith.cmpf oge, %83, %84 : vector<256x128xf32>
    %cst_137 = arith.constant 0.00999999977 : f32
    %86 = vector.broadcast %cst_137 : f32 to vector<256x128xf32>
    %87 = arith.mulf %86, %83 : vector<256x128xf32>
    %88 = arith.select %85, %83, %87 : vector<256x128xi1>, vector<256x128xf32>
    %89 = vector.shape_cast %88 : vector<256x128xf32> to vector<16x16x128xf32>
    %90 = vector.extract_strided_slice %89 {offsets = [0, 0, 0], sizes = [15, 16, 128], strides = [1, 1, 1]} : vector<16x16x128xf32> to vector<15x16x128xf32>
    %91 = vector.shape_cast %90 : vector<15x16x128xf32> to vector<5x3x16x128xf32>
    %cst_138 = arith.constant dense<0xFF800000> : vector<5x16x128xf32>
    %92 = vector.multi_reduction <maximumf>, %91, %cst_138 [1] : vector<5x3x16x128xf32> to vector<5x16x128xf32>
    %93 = vector.shape_cast %92 : vector<5x16x128xf32> to vector<5x8x2x128xf32>
    %94 = vector.extract_strided_slice %93 {offsets = [0, 0, 0, 0], sizes = [5, 8, 1, 128], strides = [1, 1, 1, 1]} : vector<5x8x2x128xf32> to vector<5x8x1x128xf32>
    %95 = vector.shape_cast %94 : vector<5x8x1x128xf32> to vector<5x8x128xf32>
    %96 = vector.extract_strided_slice %93 {offsets = [0, 0, 1, 0], sizes = [5, 8, 1, 128], strides = [1, 1, 1, 1]} : vector<5x8x2x128xf32> to vector<5x8x1x128xf32>
    %97 = vector.shape_cast %96 : vector<5x8x1x128xf32> to vector<5x8x128xf32>
    %98 = arith.maximumf %95, %97 : vector<5x8x128xf32>
    %99 = vector.shape_cast %98 : vector<5x8x128xf32> to vector<1x5x8x128xf32>
    %100 = arith.truncf %99 : vector<1x5x8x128xf32> to vector<1x5x8x128xbf16>
    %c0_139 = arith.constant 0 : index
    %c0_140 = arith.constant 0 : index
    %c0_141 = arith.constant 0 : index
    %c0_142 = arith.constant 0 : index
    %101 = vector.load %arg6[%c0_139, %c0_140, %c0_141, %c0_142] : memref<1x5x8x128xbf16, #tpu.memory_space<vmem>>, vector<1x5x8x128xbf16>
    tpu.vector_store %arg6[%c0_139, %c0_140, %c0_141, %c0_142], %100 {strides = array<i32>} : memref<1x5x8x128xbf16, #tpu.memory_space<vmem>>, vector<1x5x8x128xbf16>,
    return
  }
  func.func @transform_0(%arg0: i32) -> (i32, i32, i32, i32) {
    %c0_i32 = arith.constant 0 : i32
    %c0_i32_0 = arith.constant 0 : i32
    %c0_i32_1 = arith.constant 0 : i32
    %c0_i32_2 = arith.constant 0 : i32
    return %arg0, %c0_i32, %c0_i32_0, %c0_i32_1 : i32, i32, i32, i32
  }
  func.func @transform_1(%arg0: i32) -> (i32, i32) {
    %c0_i32 = arith.constant 0 : i32
    %c0_i32_0 = arith.constant 0 : i32
    %c0_i32_1 = arith.constant 0 : i32
    return %c0_i32, %c0_i32_0 : i32, i32
  }
  func.func @transform_2(%arg0: i32) -> (i32, i32) {
    %c0_i32 = arith.constant 0 : i32
    %c0_i32_0 = arith.constant 0 : i32
    %c0_i32_1 = arith.constant 0 : i32
    return %c0_i32, %c0_i32_0 : i32, i32
  }
  func.func @transform_3(%arg0: i32) -> (i32, i32) {
    %c0_i32 = arith.constant 0 : i32
    %c0_i32_0 = arith.constant 0 : i32
    %c0_i32_1 = arith.constant 0 : i32
    return %c0_i32, %c0_i32_0 : i32, i32
  }
  func.func @transform_4(%arg0: i32) -> (i32, i32) {
    %c0_i32 = arith.constant 0 : i32
    %c0_i32_0 = arith.constant 0 : i32
    %c0_i32_1 = arith.constant 0 : i32
    return %c0_i32, %c0_i32_0 : i32, i32
  }
  func.func @transform_5(%arg0: i32) -> (i32, i32, i32, i32) {
    %c0_i32 = arith.constant 0 : i32
    %c0_i32_0 = arith.constant 0 : i32
    %c0_i32_1 = arith.constant 0 : i32
    %c0_i32_2 = arith.constant 0 : i32
    return %arg0, %c0_i32, %c0_i32_0, %c0_i32_1 : i32, i32, i32, i32
  }
}

</mosaic_0001>

<llo_original>
// kernel: tpu_custom_call.1
$region0: #{tpu_custom_call.1}
  #allocation0 [shape = 'u32[]', space=smem, size = 0x4, offset = 0x4, fixed_abs, tag = 'smem constant byte address 0x4 - core index']
  #allocation1 [shape = 'u32[144,128]{1,0:T(1,128)}', space=vmem, size = 0x12000, scoped, tag = 'internal scratch']
  #allocation2 [shape = 'bf16[1,18,18,16]{3,2,1,0:T(8,128)(2,1)}', space=vmem, size = 0x1b000, scoped, tag = 'scratch operand']
  #allocation3 [shape = 'bf16[1,18,18,128]{3,2,1,0:T(8,128)(2,1)}', space=vmem, size = 0x1b000, scoped, tag = 'scratch operand']
  %s0 = inlined_call_operand.vmem [shape: bf16[2,16,16,4], index: 0, kind: input, shape index: {}]
  %s1 = inlined_call_operand.vmem [shape: bf16[144,128], index: 1, kind: input, shape index: {}]
  %s2 = inlined_call_operand.vmem [shape: f32[1,128], index: 2, kind: input, shape index: {}]
  %s3 = inlined_call_operand.hbm [shape: bf16[1152,128], index: 3, kind: input, shape index: {}]
  %s4 = inlined_call_operand.vmem [shape: f32[1,128], index: 4, kind: input, shape index: {}]
  %s5 = inlined_call_operand.hbm [shape: bf16[2,5,8,128], index: 5, kind: output, shape index: {}]
  %s6 = sld [smem:[#allocation0]]
  $region57: #{tpu_custom_call.1} parent=0
    _
  %s8 = ssub.s32 1, %s6
  %s9 = scalar_select 0, %s8, %s6
  $region1: #{tpu_custom_call.1} parent=0
    #allocation4 [shape = 'u8[294912]{0}', space=vmem, size = 0x48000, scoped, tag = 'input window, operand 3, single buffered']
    #allocation5 [shape = 's32[2]{0}', space=sflag, size = 0x8, scoped, tag = 'scoped memory for tpu_custom_call.1']
    #allocation6 [shape = 's32[2]{0}', space=sflag, size = 0x8, scoped, tag = 'scoped memory for tpu_custom_call.1']
    #allocation7 [shape = 'u8[20480]{0}', space=vmem, size = 0x5000, scoped, tag = 'output window, operand 0']
    %10 = vsyncpa [#allocation5], 0
    %11 = vsyncpa [#allocation6], 0
    %s12 = scalar_lea.sflag [#allocation6], 1
    %13 = vsyncpa %s12, 0
    loop: start=0, step=1, limit=4
    $region2: #{tpu_custom_call.1} parent=1 // loop_pre_header
      _
    $region3: #{tpu_custom_call.1} parent=1 // loop_header
      %s15 = sphi 0, %s19
      %p16 = scmp.ge.s32.totalorder %s15, 4
      %s25 = sphi 0, %s27
      %s28 = sphi 0, %s25
      %s29 = sphi 0, %s28
      %s45 = sphi 0, %s29
      %s49 = sphi 0, %s49
      %s51 = sphi 0, %s49
      %s52 = sphi 0, %s51
      %s66 = sphi 0, %s52
      %s70 = sphi 0, %s70
      %s72 = sphi 0, %s70
      %s73 = sphi 0, %s72
      %s87 = sphi 0, %s73
      %s91 = sphi 0, %s91
      %s93 = sphi 0, %s91
      %s94 = sphi 0, %s93
      %s108 = sphi 0, %s94
      %s112 = sphi 0, %s112
      %s114 = sphi 0, %s112
      %s115 = sphi 0, %s114
      %s129 = sphi 0, %s115
      %s135 = sphi 0, %s137
      %s138 = sphi 0, %s135
      %s139 = sphi 0, %s138
      %s155 = sphi 0, %s139
    $region4: #{tpu_custom_call.1} parent=1 // loop_header_branch
      %18 = sbr.rel (%p16) target = $region8
    $region5: #{tpu_custom_call.1} parent=1 // loop_body
      %s20 = ssub.s32 %s15, 1
      %s21 = ssub.s32 %s15, 2
      %s22 = sadd.s32 %s15, 1
      %s23 = ssub.s32 %s15, %s22
      %p24 = scmp.eq.s32.totalorder %s23, 0
      %s26 = sadd.s32 %s25, 1
      %s27 = scalar_select %p24, %s25, %s26
      %p30 = pneg %p24
      %p31 = scmp.eq.s32.totalorder %s15, 1
      %p32 = por %p30, %p31
      %p33 = scmp.ne.s32.totalorder %s25, %s28
      %p34 = scmp.eq.s32.totalorder %s15, 0
      %p35 = por %p33, %p34
      %p36 = scmp.ne.s32.totalorder %s25, %s28
      %p37 = scmp.eq.s32.totalorder %s20, 1
      %p38 = por %p36, %p37
      %p39 = scmp.ne.s32.totalorder %s28, %s29
      %p40 = scmp.eq.s32.totalorder %s20, 0
      %p41 = por %p39, %p40
      %p42 = scmp.ne.s32.totalorder %s28, %s29
      %p43 = scmp.eq.s32.totalorder %s21, 1
      %p44 = por %p42, %p43
      %p46 = scmp.ne.s32.totalorder %s29, %s45
      %p47 = scmp.eq.s32.totalorder %s21, 0
      %p48 = por %p46, %p47
      %s50 = sadd.s32 %s49, 1
      %p53 = scmp.eq.s32.totalorder %s15, 1
      %p54 = scmp.ne.s32.totalorder %s49, %s51
      %p55 = scmp.eq.s32.totalorder %s15, 0
      %p56 = por %p54, %p55
      %p57 = scmp.ne.s32.totalorder %s49, %s51
      %p58 = scmp.eq.s32.totalorder %s20, 1
      %p59 = por %p57, %p58
      %p60 = scmp.ne.s32.totalorder %s51, %s52
      %p61 = scmp.eq.s32.totalorder %s20, 0
      %p62 = por %p60, %p61
      %p63 = scmp.ne.s32.totalorder %s51, %s52
      %p64 = scmp.eq.s32.totalorder %s21, 1
      %p65 = por %p63, %p64
      %p67 = scmp.ne.s32.totalorder %s52, %s66
      %p68 = scmp.eq.s32.totalorder %s21, 0
      %p69 = por %p67, %p68
      %s71 = sadd.s32 %s70, 1
      %p74 = scmp.eq.s32.totalorder %s15, 1
      %p75 = scmp.ne.s32.totalorder %s70, %s72
      %p76 = scmp.eq.s32.totalorder %s15, 0
      %p77 = por %p75, %p76
      %p78 = scmp.ne.s32.totalorder %s70, %s72
      %p79 = scmp.eq.s32.totalorder %s20, 1
      %p80 = por %p78, %p79
      %p81 = scmp.ne.s32.totalorder %s72, %s73
      %p82 = scmp.eq.s32.totalorder %s20, 0
      %p83 = por %p81, %p82
      %p84 = scmp.ne.s32.totalorder %s72, %s73
      %p85 = scmp.eq.s32.totalorder %s21, 1
      %p86 = por %p84, %p85
      %p88 = scmp.ne.s32.totalorder %s73, %s87
      %p89 = scmp.eq.s32.totalorder %s21, 0
      %p90 = por %p88, %p89
      %s92 = sadd.s32 %s91, 1
      %p95 = scmp.eq.s32.totalorder %s15, 1
      %p96 = scmp.ne.s32.totalorder %s91, %s93
      %p97 = scmp.eq.s32.totalorder %s15, 0
      %p98 = por %p96, %p97
      %p99 = scmp.ne.s32.totalorder %s91, %s93
      %p100 = scmp.eq.s32.totalorder %s20, 1
      %p101 = por %p99, %p100
      %p102 = scmp.ne.s32.totalorder %s93, %s94
      %p103 = scmp.eq.s32.totalorder %s20, 0
      %p104 = por %p102, %p103
      %p105 = scmp.ne.s32.totalorder %s93, %s94
      %p106 = scmp.eq.s32.totalorder %s21, 1
      %p107 = por %p105, %p106
      %p109 = scmp.ne.s32.totalorder %s94, %s108
      %p110 = scmp.eq.s32.totalorder %s21, 0
      %p111 = por %p109, %p110
      %s113 = sadd.s32 %s112, 1
      %p116 = scmp.eq.s32.totalorder %s15, 1
      %p117 = scmp.ne.s32.totalorder %s112, %s114
      %p118 = scmp.eq.s32.totalorder %s15, 0
      %p119 = por %p117, %p118
      %p120 = scmp.ne.s32.totalorder %s112, %s114
      %p121 = scmp.eq.s32.totalorder %s20, 1
      %p122 = por %p120, %p121
      %p123 = scmp.ne.s32.totalorder %s114, %s115
      %p124 = scmp.eq.s32.totalorder %s20, 0
      %p125 = por %p123, %p124
      %p126 = scmp.ne.s32.totalorder %s114, %s115
      %p127 = scmp.eq.s32.totalorder %s21, 1
      %p128 = por %p126, %p127
      %p130 = scmp.ne.s32.totalorder %s115, %s129
      %p131 = scmp.eq.s32.totalorder %s21, 0
      %p132 = por %p130, %p131
      %s133 = ssub.s32 %s15, %s22
      %p134 = scmp.eq.s32.totalorder %s133, 0
      %s136 = sadd.s32 %s135, 1
      %s137 = scalar_select %p134, %s135, %s136
      %p140 = pneg %p134
      %p141 = scmp.eq.s32.totalorder %s15, 1
      %p142 = por %p140, %p141
      %p143 = scmp.ne.s32.totalorder %s135, %s138
      %p144 = scmp.eq.s32.totalorder %s15, 0
      %p145 = por %p143, %p144
      %p146 = scmp.ne.s32.totalorder %s135, %s138
      %p147 = scmp.eq.s32.totalorder %s20, 1
      %p148 = por %p146, %p147
      %p149 = scmp.ne.s32.totalorder %s138, %s139
      %p150 = scmp.eq.s32.totalorder %s20, 0
      %p151 = por %p149, %p150
      %p152 = scmp.ne.s32.totalorder %s138, %s139
      %p153 = scmp.eq.s32.totalorder %s21, 1
      %p154 = por %p152, %p153
      %p156 = scmp.ne.s32.totalorder %s139, %s155
      %p157 = scmp.eq.s32.totalorder %s21, 0
      %p158 = por %p156, %p157
      %p159 = scmp.le.s32.totalorder 1, %s15
      %p160 = scmp.lt.s32.totalorder %s15, 3
      %p161 = pnand %p159, %p160
      %p162 = pneg %p161
      // Predicated region
      $region9: #{tpu_custom_call.1} parent=5 // pred_check
        _
      $region10: #{tpu_custom_call.1} parent=5 // pred_check_branch
        %164 = sbr.rel (%p161) target = $region12
      $region11: #{tpu_custom_call.1} parent=5 // pred_region
        %s165 = ssub.s32 %s15, 1
        // Predicated region
        $region13: #{tpu_custom_call.1} parent=11 // pred_check
          %p166 = pneg %p62
        $region14: #{tpu_custom_call.1} parent=11 // pred_check_branch
          %168 = sbr.rel (%p166) target = $region16
        $region15: #{tpu_custom_call.1} parent=11 // pred_region
          _
        $region16: #{tpu_custom_call.1} parent=11 // pred_fallthru
          _
        // Predicated region
        $region17: #{tpu_custom_call.1} parent=11 // pred_check
          %p169 = pneg %p83
        $region18: #{tpu_custom_call.1} parent=11 // pred_check_branch
          %171 = sbr.rel (%p169) target = $region20
        $region19: #{tpu_custom_call.1} parent=11 // pred_region
          _
        $region20: #{tpu_custom_call.1} parent=11 // pred_fallthru
          _
        // Predicated region
        $region21: #{tpu_custom_call.1} parent=11 // pred_check
          %p172 = pneg %p104
        $region22: #{tpu_custom_call.1} parent=11 // pred_check_branch
          %174 = sbr.rel (%p172) target = $region24
        $region23: #{tpu_custom_call.1} parent=11 // pred_region
          %s176 = ssub.s32 9216, 9216
          %177 = vsyncadd [#allocation5], %s176
          %s178 = sshll.u32 [#allocation4], 4
          %s179 = int_to_ptr.vmem [resolvable:$true] %s178
          %184 = dma.hbm_to_vmem [thread:$0]  %s3, 9216, %s179, [#allocation5], 64, 64, 4
        $region24: #{tpu_custom_call.1} parent=11 // pred_fallthru
          _
        // Predicated region
        $region25: #{tpu_custom_call.1} parent=11 // pred_check
          %p185 = pneg %p125
        $region26: #{tpu_custom_call.1} parent=11 // pred_check_branch
          %187 = sbr.rel (%p185) target = $region28
        $region27: #{tpu_custom_call.1} parent=11 // pred_region
          _
        $region28: #{tpu_custom_call.1} parent=11 // pred_fallthru
          _
      $region12: #{tpu_custom_call.1} parent=5 // pred_fallthru
        _
      %p188 = scmp.lt.s32.totalorder %s15, 2
      // Predicated region
      $region29: #{tpu_custom_call.1} parent=5 // pred_check
        %p189 = pneg %p188
      $region30: #{tpu_custom_call.1} parent=5 // pred_check_branch
        %191 = sbr.rel (%p189) target = $region32
      $region31: #{tpu_custom_call.1} parent=5 // pred_region
        // Predicated region
        $region33: #{tpu_custom_call.1} parent=31 // pred_check
          %p192 = pneg %p35
        $region34: #{tpu_custom_call.1} parent=31 // pred_check_branch
          %194 = sbr.rel (%p192) target = $region36
        $region35: #{tpu_custom_call.1} parent=31 // pred_region
          %p195 = scmp.lt.s32.totalorder %s15, 1
          %s196 = scalar_select %p195, %s15, 1
          %s197 = smul.addr %s196, 32
          %s198 = smul.addr %s197, 4
          %s199 = scalar_lea.vmem %s0, %s198
        $region36: #{tpu_custom_call.1} parent=31 // pred_fallthru
          _
      $region32: #{tpu_custom_call.1} parent=5 // pred_fallthru
        _
      %p200 = scmp.le.s32.totalorder 1, %s15
      %p201 = scmp.lt.s32.totalorder %s15, 3
      %p202 = pnand %p200, %p201
      %p203 = pneg %p202
      // Predicated region
      $region37: #{tpu_custom_call.1} parent=5 // pred_check
        _
      $region38: #{tpu_custom_call.1} parent=5 // pred_check_branch
        %205 = sbr.rel (%p202) target = $region40
      $region39: #{tpu_custom_call.1} parent=5 // pred_region
        %s206 = ssub.s32 %s15, 1
        // Predicated region
        $region41: #{tpu_custom_call.1} parent=39 // pred_check
          %p207 = pneg %p104
        $region42: #{tpu_custom_call.1} parent=39 // pred_check_branch
          %209 = sbr.rel (%p207) target = $region44
        $region43: #{tpu_custom_call.1} parent=39 // pred_region
          %210 = dma.done [#allocation5], 9216
        $region44: #{tpu_custom_call.1} parent=39 // pred_fallthru
          _
        %p211 = scmp.lt.s32.totalorder %s20, 1
        %s212 = scalar_select %p211, %s20, 1
        %s213 = smul.addr %s212, 32
        %s214 = smul.addr %s213, 4
        %s215 = scalar_lea.vmem %s0, %s214
        %p216 = pneg %p41
        %p217 = pneg %p38
        %p218 = pneg %p62
        %p219 = pneg %p59
        %p220 = pneg %p83
        %p221 = pneg %p80
        %p222 = pneg %p104
        %p223 = pneg %p101
        %p224 = pneg %p125
        %p225 = pneg %p122
        %p226 = pneg %p151
        %p227 = pneg %p148
        %s228 = sand.u32 %s138, 1
        %s229 = scalar_lea.sflag [#allocation6], %s228
        %s230 = sand.u32 %s138, 1
        %s231 = smul.addr %s230, 20
        %s232 = scalar_lea.vmem [#allocation7], %s231
        %p233 = scmp.lt.s32.totalorder %s20, 1
        %s234 = scalar_select %p233, %s20, 1
        %s235 = smul.addr %s234, 32
        %s236 = smul.addr %s235, 4
        %s237 = scalar_lea.vmem %s0, %s236
        %vm239 = vcmask 125952
        %240 = vst.msk [vmem:[#allocation2] sm:$0xf] %vm239, 0
        %241 = vst.msk [vmem:[#allocation2 + $0x4] sm:$0xf] %vm239, 0
        %vm242 = vcmask 122880
        %243 = vst.msk [vmem:[#allocation2 + $0x8] sm:$0x1] %vm242, 0
        %s244 = scalar_lea.vmem [#allocation2], 204
        %245 = vst.msk [vmem:[%s244] sm:$0xf] %vm239, 0
        %246 = vst.msk [vmem:[%s244 + $0x4] sm:$0xf] %vm239, 0
        %247 = vst.msk [vmem:[%s244 + $0x8] sm:$0x1] %vm242, 0
        %vm248 = vcmask 122880
        %vm249 = vsmask.f32 256
        %vm250 = vmand %vm248, %vm249
        %v251 = vld [vmem:[#allocation2] sm:$0x1]
        %v252 = vsel %vm250, 0, %v251
        %253 = vst [vmem:[#allocation2] sm:$0x1] %v252
        %v254 = vld [vmem:[#allocation2 + $0xc] sm:$0x1]
        %v255 = vsel %vm250, 0, %v254
        %256 = vst [vmem:[#allocation2 + $0xc] sm:$0x1] %v255
        %v257 = vld [vmem:[#allocation2 + $0x18] sm:$0x1]
        %v258 = vsel %vm250, 0, %v257
        %259 = vst [vmem:[#allocation2 + $0x18] sm:$0x1] %v258
        %v260 = vld [vmem:[#allocation2 + $0x24] sm:$0x1]
        %v261 = vsel %vm250, 0, %v260
        %262 = vst [vmem:[#allocation2 + $0x24] sm:$0x1] %v261
        %v263 = vld [vmem:[#allocation2 + $0x30] sm:$0x1]
        %v264 = vsel %vm250, 0, %v263
        %265 = vst [vmem:[#allocation2 + $0x30] sm:$0x1] %v264
        %v266 = vld [vmem:[#allocation2 + $0x3c] sm:$0x1]
        %v267 = vsel %vm250, 0, %v266
        %268 = vst [vmem:[#allocation2 + $0x3c] sm:$0x1] %v267
        %v269 = vld [vmem:[#allocation2 + $0x48] sm:$0x1]
        %v270 = vsel %vm250, 0, %v269
        %271 = vst [vmem:[#allocation2 + $0x48] sm:$0x1] %v270
        %v272 = vld [vmem:[#allocation2 + $0x54] sm:$0x1]
        %v273 = vsel %vm250, 0, %v272
        %274 = vst [vmem:[#allocation2 + $0x54] sm:$0x1] %v273
        %v275 = vld [vmem:[#allocation2 + $0x60] sm:$0x1]
        %v276 = vsel %vm250, 0, %v275
        %277 = vst [vmem:[#allocation2 + $0x60] sm:$0x1] %v276
        %v278 = vld [vmem:[#allocation2 + $0x6c] sm:$0x1]
        %v279 = vsel %vm250, 0, %v278
        %280 = vst [vmem:[#allocation2 + $0x6c] sm:$0x1] %v279
        %v281 = vld [vmem:[#allocation2 + $0x78] sm:$0x1]
        %v282 = vsel %vm250, 0, %v281
        %283 = vst [vmem:[#allocation2 + $0x78] sm:$0x1] %v282
        %v284 = vld [vmem:[#allocation2 + $0x84] sm:$0x1]
        %v285 = vsel %vm250, 0, %v284
        %286 = vst [vmem:[#allocation2 + $0x84] sm:$0x1] %v285
        %v287 = vld [vmem:[#allocation2 + $0x90] sm:$0x1]
        %v288 = vsel %vm250, 0, %v287
        %289 = vst [vmem:[#allocation2 + $0x90] sm:$0x1] %v288
        %v290 = vld [vmem:[#allocation2 + $0x9c] sm:$0x1]
        %v291 = vsel %vm250, 0, %v290
        %292 = vst [vmem:[#allocation2 + $0x9c] sm:$0x1] %v291
        %v293 = vld [vmem:[#allocation2 + $0xa8] sm:$0x1]
        %v294 = vsel %vm250, 0, %v293
        %295 = vst [vmem:[#allocation2 + $0xa8] sm:$0x1] %v294
        %v296 = vld [vmem:[#allocation2 + $0xb4] sm:$0x1]
        %v297 = vsel %vm250, 0, %v296
        %298 = vst [vmem:[#allocation2 + $0xb4] sm:$0x1] %v297
        %v299 = vld [vmem:[#allocation2 + $0xc0] sm:$0x1]
        %v300 = vsel %vm250, 0, %v299
        %301 = vst [vmem:[#allocation2 + $0xc0] sm:$0x1] %v300
        %v302 = vld [vmem:[#allocation2 + $0xcc] sm:$0x1]
        %v303 = vsel %vm250, 0, %v302
        %304 = vst [vmem:[#allocation2 + $0xcc] sm:$0x1] %v303
        %vm305 = vsmask.f32 7938
        %vm306 = vmand %vm248, %vm305
        %v307 = vld [vmem:[#allocation2 + $0x8] sm:$0x1]
        %v308 = vsel %vm306, 0, %v307
        %309 = vst [vmem:[#allocation2 + $0x8] sm:$0x1] %v308
        %v310 = vld [vmem:[#allocation2 + $0x14] sm:$0x1]
        %v311 = vsel %vm306, 0, %v310
        %312 = vst [vmem:[#allocation2 + $0x14] sm:$0x1] %v311
        %v313 = vld [vmem:[#allocation2 + $0x20] sm:$0x1]
        %v314 = vsel %vm306, 0, %v313
        %315 = vst [vmem:[#allocation2 + $0x20] sm:$0x1] %v314
        %v316 = vld [vmem:[#allocation2 + $0x2c] sm:$0x1]
        %v317 = vsel %vm306, 0, %v316
        %318 = vst [vmem:[#allocation2 + $0x2c] sm:$0x1] %v317
        %v319 = vld [vmem:[#allocation2 + $0x38] sm:$0x1]
        %v320 = vsel %vm306, 0, %v319
        %321 = vst [vmem:[#allocation2 + $0x38] sm:$0x1] %v320
        %v322 = vld [vmem:[#allocation2 + $0x44] sm:$0x1]
        %v323 = vsel %vm306, 0, %v322
        %324 = vst [vmem:[#allocation2 + $0x44] sm:$0x1] %v323
        %v325 = vld [vmem:[#allocation2 + $0x50] sm:$0x1]
        %v326 = vsel %vm306, 0, %v325
        %327 = vst [vmem:[#allocation2 + $0x50] sm:$0x1] %v326
        %v328 = vld [vmem:[#allocation2 + $0x5c] sm:$0x1]
        %v329 = vsel %vm306, 0, %v328
        %330 = vst [vmem:[#allocation2 + $0x5c] sm:$0x1] %v329
        %v331 = vld [vmem:[#allocation2 + $0x68] sm:$0x1]
        %v332 = vsel %vm306, 0, %v331
        %333 = vst [vmem:[#allocation2 + $0x68] sm:$0x1] %v332
        %v334 = vld [vmem:[#allocation2 + $0x74] sm:$0x1]
        %v335 = vsel %vm306, 0, %v334
        %336 = vst [vmem:[#allocation2 + $0x74] sm:$0x1] %v335
        %v337 = vld [vmem:[#allocation2 + $0x80] sm:$0x1]
        %v338 = vsel %vm306, 0, %v337
        %339 = vst [vmem:[#allocation2 + $0x80] sm:$0x1] %v338
        %v340 = vld [vmem:[#allocation2 + $0x8c] sm:$0x1]
        %v341 = vsel %vm306, 0, %v340
        %342 = vst [vmem:[#allocation2 + $0x8c] sm:$0x1] %v341
        %v343 = vld [vmem:[#allocation2 + $0x98] sm:$0x1]
        %v344 = vsel %vm306, 0, %v343
        %345 = vst [vmem:[#allocation2 + $0x98] sm:$0x1] %v344
        %v346 = vld [vmem:[#allocation2 + $0xa4] sm:$0x1]
        %v347 = vsel %vm306, 0, %v346
        %348 = vst [vmem:[#allocation2 + $0xa4] sm:$0x1] %v347
        %v349 = vld [vmem:[#allocation2 + $0xb0] sm:$0x1]
        %v350 = vsel %vm306, 0, %v349
        %351 = vst [vmem:[#allocation2 + $0xb0] sm:$0x1] %v350
        %v352 = vld [vmem:[#allocation2 + $0xbc] sm:$0x1]
        %v353 = vsel %vm306, 0, %v352
        %354 = vst [vmem:[#allocation2 + $0xbc] sm:$0x1] %v353
        %v355 = vld [vmem:[#allocation2 + $0xc8] sm:$0x1]
        %v356 = vsel %vm306, 0, %v355
        %357 = vst [vmem:[#allocation2 + $0xc8] sm:$0x1] %v356
        %v358 = vld [vmem:[#allocation2 + $0xd4] sm:$0x1]
        %v359 = vsel %vm306, 0, %v358
        %360 = vst [vmem:[#allocation2 + $0xd4] sm:$0x1] %v359
        %v361 = vld [vmem:[%s237] sm:$0xf]
        %v362 = vld [vmem:[%s237 + $0x4] sm:$0xf]
        %v363 = vld [vmem:[%s237 + $0x8] sm:$0xf]
        %v364 = vld [vmem:[%s237 + $0xc] sm:$0xf]
        %v365 = vld [vmem:[%s237 + $0x10] sm:$0xf]
        %v366 = vld [vmem:[%s237 + $0x14] sm:$0xf]
        %v367 = vld [vmem:[%s237 + $0x18] sm:$0xf]
        %v368 = vld [vmem:[%s237 + $0x1c] sm:$0xf]
        %v369 = vld [vmem:[%s237 + $0x20] sm:$0xf]
        %v370 = vld [vmem:[%s237 + $0x24] sm:$0xf]
        %v371 = vld [vmem:[%s237 + $0x28] sm:$0xf]
        %v372 = vld [vmem:[%s237 + $0x2c] sm:$0xf]
        %v373 = vld [vmem:[%s237 + $0x30] sm:$0xf]
        %v374 = vld [vmem:[%s237 + $0x34] sm:$0xf]
        %v375 = vld [vmem:[%s237 + $0x38] sm:$0xf]
        %v376 = vld [vmem:[%s237 + $0x3c] sm:$0xf]
        %v377 = vld [vmem:[%s237 + $0x40] sm:$0xf]
        %v378 = vld [vmem:[%s237 + $0x44] sm:$0xf]
        %v379 = vld [vmem:[%s237 + $0x48] sm:$0xf]
        %v380 = vld [vmem:[%s237 + $0x4c] sm:$0xf]
        %v381 = vld [vmem:[%s237 + $0x50] sm:$0xf]
        %v382 = vld [vmem:[%s237 + $0x54] sm:$0xf]
        %v383 = vld [vmem:[%s237 + $0x58] sm:$0xf]
        %v384 = vld [vmem:[%s237 + $0x5c] sm:$0xf]
        %v385 = vld [vmem:[%s237 + $0x60] sm:$0xf]
        %v386 = vld [vmem:[%s237 + $0x64] sm:$0xf]
        %v387 = vld [vmem:[%s237 + $0x68] sm:$0xf]
        %v388 = vld [vmem:[%s237 + $0x6c] sm:$0xf]
        %v389 = vld [vmem:[%s237 + $0x70] sm:$0xf]
        %v390 = vld [vmem:[%s237 + $0x74] sm:$0xf]
        %v391 = vld [vmem:[%s237 + $0x78] sm:$0xf]
        %v392 = vld [vmem:[%s237 + $0x7c] sm:$0xf]
        %v425 = vunpack.c.l.b16 %v361
        %v426 = vunpack.c.l.b16 %v362
        %v427 = vunpack.c.l.b16 %v363
        %v428 = vunpack.c.l.b16 %v364
        %v429 = vunpack.c.l.b16 %v365
        %v430 = vunpack.c.l.b16 %v366
        %v431 = vunpack.c.l.b16 %v367
        %v432 = vunpack.c.l.b16 %v368
        %v433 = vunpack.c.l.b16 %v369
        %v434 = vunpack.c.l.b16 %v370
        %v435 = vunpack.c.l.b16 %v371
        %v436 = vunpack.c.l.b16 %v372
        %v437 = vunpack.c.l.b16 %v373
        %v438 = vunpack.c.l.b16 %v374
        %v439 = vunpack.c.l.b16 %v375
        %v440 = vunpack.c.l.b16 %v376
        %v441 = vunpack.c.l.b16 %v377
        %v442 = vunpack.c.l.b16 %v378
        %v443 = vunpack.c.l.b16 %v379
        %v444 = vunpack.c.l.b16 %v380
        %v445 = vunpack.c.l.b16 %v381
        %v446 = vunpack.c.l.b16 %v382
        %v447 = vunpack.c.l.b16 %v383
        %v448 = vunpack.c.l.b16 %v384
        %v449 = vunpack.c.l.b16 %v385
        %v450 = vunpack.c.l.b16 %v386
        %v451 = vunpack.c.l.b16 %v387
        %v452 = vunpack.c.l.b16 %v388
        %v453 = vunpack.c.l.b16 %v389
        %v454 = vunpack.c.l.b16 %v390
        %v455 = vunpack.c.l.b16 %v391
        %v456 = vunpack.c.l.b16 %v392
        %v457 = vpack.c.b16 %v426, %v425
        %v458 = vpack.c.b16 %v428, %v427
        %v459 = vpack.c.b16 %v430, %v429
        %v460 = vpack.c.b16 %v432, %v431
        %v461 = vpack.c.b16 %v434, %v433
        %v462 = vpack.c.b16 %v436, %v435
        %v463 = vpack.c.b16 %v438, %v437
        %v464 = vpack.c.b16 %v440, %v439
        %v465 = vpack.c.b16 %v442, %v441
        %v466 = vpack.c.b16 %v444, %v443
        %v467 = vpack.c.b16 %v446, %v445
        %v468 = vpack.c.b16 %v448, %v447
        %v469 = vpack.c.b16 %v450, %v449
        %v470 = vpack.c.b16 %v452, %v451
        %v471 = vpack.c.b16 %v454, %v453
        %v472 = vpack.c.b16 %v456, %v455
        %vm473 = vcmask 31744
        %v476 = vsel %vm473, %v457, 0
        %v478 = vsel %vm473, %v458, 0
        %v480 = vsel %vm473, %v459, 0
        %v482 = vsel %vm473, %v460, 0
        %v484 = vsel %vm473, %v461, 0
        %v486 = vsel %vm473, %v462, 0
        %v488 = vsel %vm473, %v463, 0
        %v490 = vsel %vm473, %v464, 0
        %v492 = vsel %vm473, %v465, 0
        %v494 = vsel %vm473, %v466, 0
        %v496 = vsel %vm473, %v467, 0
        %v498 = vsel %vm473, %v468, 0
        %v500 = vsel %vm473, %v469, 0
        %v502 = vsel %vm473, %v470, 0
        %v504 = vsel %vm473, %v471, 0
        %v506 = vsel %vm473, %v472, 0
        %v523 = vunpack.c.l.b16 %v476
        %v524 = vunpack.c.h.b16 %v476
        %v525 = vunpack.c.l.b16 %v478
        %v526 = vunpack.c.h.b16 %v478
        %v527 = vunpack.c.l.b16 %v480
        %v528 = vunpack.c.h.b16 %v480
        %v529 = vunpack.c.l.b16 %v482
        %v530 = vunpack.c.h.b16 %v482
        %v531 = vunpack.c.l.b16 %v484
        %v532 = vunpack.c.h.b16 %v484
        %v533 = vunpack.c.l.b16 %v486
        %v534 = vunpack.c.h.b16 %v486
        %v535 = vunpack.c.l.b16 %v488
        %v536 = vunpack.c.h.b16 %v488
        %v537 = vunpack.c.l.b16 %v490
        %v538 = vunpack.c.h.b16 %v490
        %v539 = vunpack.c.l.b16 %v492
        %v540 = vunpack.c.h.b16 %v492
        %v541 = vunpack.c.l.b16 %v494
        %v542 = vunpack.c.h.b16 %v494
        %v543 = vunpack.c.l.b16 %v496
        %v544 = vunpack.c.h.b16 %v496
        %v545 = vunpack.c.l.b16 %v498
        %v546 = vunpack.c.h.b16 %v498
        %v547 = vunpack.c.l.b16 %v500
        %v548 = vunpack.c.h.b16 %v500
        %v549 = vunpack.c.l.b16 %v502
        %v550 = vunpack.c.h.b16 %v502
        %v551 = vunpack.c.l.b16 %v504
        %v552 = vunpack.c.h.b16 %v504
        %v553 = vunpack.c.l.b16 %v506
        %v554 = vunpack.c.h.b16 %v506
        %v555 = vpack.c.b16 %v523, %v523
        %v556 = vpack.c.b16 %v524, %v524
        %v557 = vpack.c.b16 %v525, %v525
        %v558 = vpack.c.b16 %v526, %v526
        %v559 = vpack.c.b16 %v527, %v527
        %v560 = vpack.c.b16 %v528, %v528
        %v561 = vpack.c.b16 %v529, %v529
        %v562 = vpack.c.b16 %v530, %v530
        %v563 = vpack.c.b16 %v531, %v531
        %v564 = vpack.c.b16 %v532, %v532
        %v565 = vpack.c.b16 %v533, %v533
        %v566 = vpack.c.b16 %v534, %v534
        %v567 = vpack.c.b16 %v535, %v535
        %v568 = vpack.c.b16 %v536, %v536
        %v569 = vpack.c.b16 %v537, %v537
        %v570 = vpack.c.b16 %v538, %v538
        %v571 = vpack.c.b16 %v539, %v539
        %v572 = vpack.c.b16 %v540, %v540
        %v573 = vpack.c.b16 %v541, %v541
        %v574 = vpack.c.b16 %v542, %v542
        %v575 = vpack.c.b16 %v543, %v543
        %v576 = vpack.c.b16 %v544, %v544
        %v577 = vpack.c.b16 %v545, %v545
        %v578 = vpack.c.b16 %v546, %v546
        %v579 = vpack.c.b16 %v547, %v547
        %v580 = vpack.c.b16 %v548, %v548
        %v581 = vpack.c.b16 %v549, %v549
        %v582 = vpack.c.b16 %v550, %v550
        %v583 = vpack.c.b16 %v551, %v551
        %v584 = vpack.c.b16 %v552, %v552
        %v585 = vpack.c.b16 %v553, %v553
        %v586 = vpack.c.b16 %v554, %v554
        %vm587 = vsmask.f32 4368
        %vm588 = vmor %vm249, %vm587
        %v590 = vshrl.u32 %v555, 16
        %v592 = vrot.slane %v590, 7
        %v593 = vshll.u32 %v555, 16
        %v595 = vor.u32 %v592, %v593
        %v596 = vrot.slane %v592, 4
        %v598 = vshrl.u32 %v556, 16
        %v600 = vrot.slane %v598, 7
        %v601 = vshll.u32 %v556, 16
        %v603 = vor.u32 %v600, %v601
        %v604 = vsel %vm588, %v596, %v603
        %v605 = vrot.slane %v600, 4
        %v607 = vshrl.u32 %v557, 16
        %v609 = vrot.slane %v607, 7
        %v610 = vshll.u32 %v557, 16
        %v612 = vor.u32 %v609, %v610
        %v613 = vrot.slane %v609, 4
        %v615 = vshrl.u32 %v558, 16
        %v617 = vrot.slane %v615, 7
        %v618 = vshll.u32 %v558, 16
        %v620 = vor.u32 %v617, %v618
        %v621 = vsel %vm588, %v613, %v620
        %v622 = vrot.slane %v617, 4
        %v624 = vshrl.u32 %v559, 16
        %v626 = vrot.slane %v624, 7
        %v627 = vshll.u32 %v559, 16
        %v629 = vor.u32 %v626, %v627
        %v630 = vrot.slane %v626, 4
        %v632 = vshrl.u32 %v560, 16
        %v634 = vrot.slane %v632, 7
        %v635 = vshll.u32 %v560, 16
        %v637 = vor.u32 %v634, %v635
        %v638 = vsel %vm588, %v630, %v637
        %v639 = vrot.slane %v634, 4
        %v641 = vshrl.u32 %v561, 16
        %v643 = vrot.slane %v641, 7
        %v644 = vshll.u32 %v561, 16
        %v646 = vor.u32 %v643, %v644
        %v647 = vrot.slane %v643, 4
        %v649 = vshrl.u32 %v562, 16
        %v651 = vrot.slane %v649, 7
        %v652 = vshll.u32 %v562, 16
        %v654 = vor.u32 %v651, %v652
        %v655 = vsel %vm588, %v647, %v654
        %v656 = vrot.slane %v651, 4
        %v658 = vshrl.u32 %v563, 16
        %v660 = vrot.slane %v658, 7
        %v661 = vshll.u32 %v563, 16
        %v663 = vor.u32 %v660, %v661
        %v664 = vrot.slane %v660, 4
        %v666 = vshrl.u32 %v564, 16
        %v668 = vrot.slane %v666, 7
        %v669 = vshll.u32 %v564, 16
        %v671 = vor.u32 %v668, %v669
        %v672 = vsel %vm588, %v664, %v671
        %v673 = vrot.slane %v668, 4
        %v675 = vshrl.u32 %v565, 16
        %v677 = vrot.slane %v675, 7
        %v678 = vshll.u32 %v565, 16
        %v680 = vor.u32 %v677, %v678
        %v681 = vrot.slane %v677, 4
        %v683 = vshrl.u32 %v566, 16
        %v685 = vrot.slane %v683, 7
        %v686 = vshll.u32 %v566, 16
        %v688 = vor.u32 %v685, %v686
        %v689 = vsel %vm588, %v681, %v688
        %v690 = vrot.slane %v685, 4
        %v692 = vshrl.u32 %v567, 16
        %v694 = vrot.slane %v692, 7
        %v695 = vshll.u32 %v567, 16
        %v697 = vor.u32 %v694, %v695
        %v698 = vrot.slane %v694, 4
        %v700 = vshrl.u32 %v568, 16
        %v702 = vrot.slane %v700, 7
        %v703 = vshll.u32 %v568, 16
        %v705 = vor.u32 %v702, %v703
        %v706 = vsel %vm588, %v698, %v705
        %v707 = vrot.slane %v702, 4
        %v709 = vshrl.u32 %v569, 16
        %v711 = vrot.slane %v709, 7
        %v712 = vshll.u32 %v569, 16
        %v714 = vor.u32 %v711, %v712
        %v715 = vrot.slane %v711, 4
        %v717 = vshrl.u32 %v570, 16
        %v719 = vrot.slane %v717, 7
        %v720 = vshll.u32 %v570, 16
        %v722 = vor.u32 %v719, %v720
        %v723 = vsel %vm588, %v715, %v722
        %v724 = vrot.slane %v719, 4
        %v726 = vshrl.u32 %v571, 16
        %v728 = vrot.slane %v726, 7
        %v729 = vshll.u32 %v571, 16
        %v731 = vor.u32 %v728, %v729
        %v732 = vrot.slane %v728, 4
        %v734 = vshrl.u32 %v572, 16
        %v736 = vrot.slane %v734, 7
        %v737 = vshll.u32 %v572, 16
        %v739 = vor.u32 %v736, %v737
        %v740 = vsel %vm588, %v732, %v739
        %v741 = vrot.slane %v736, 4
        %v743 = vshrl.u32 %v573, 16
        %v745 = vrot.slane %v743, 7
        %v746 = vshll.u32 %v573, 16
        %v748 = vor.u32 %v745, %v746
        %v749 = vrot.slane %v745, 4
        %v751 = vshrl.u32 %v574, 16
        %v753 = vrot.slane %v751, 7
        %v754 = vshll.u32 %v574, 16
        %v756 = vor.u32 %v753, %v754
        %v757 = vsel %vm588, %v749, %v756
        %v758 = vrot.slane %v753, 4
        %v760 = vshrl.u32 %v575, 16
        %v762 = vrot.slane %v760, 7
        %v763 = vshll.u32 %v575, 16
        %v765 = vor.u32 %v762, %v763
        %v766 = vrot.slane %v762, 4
        %v768 = vshrl.u32 %v576, 16
        %v770 = vrot.slane %v768, 7
        %v771 = vshll.u32 %v576, 16
        %v773 = vor.u32 %v770, %v771
        %v774 = vsel %vm588, %v766, %v773
        %v775 = vrot.slane %v770, 4
        %v777 = vshrl.u32 %v577, 16
        %v779 = vrot.slane %v777, 7
        %v780 = vshll.u32 %v577, 16
        %v782 = vor.u32 %v779, %v780
        %v783 = vrot.slane %v779, 4
        %v785 = vshrl.u32 %v578, 16
        %v787 = vrot.slane %v785, 7
        %v788 = vshll.u32 %v578, 16
        %v790 = vor.u32 %v787, %v788
        %v791 = vsel %vm588, %v783, %v790
        %v792 = vrot.slane %v787, 4
        %v794 = vshrl.u32 %v579, 16
        %v796 = vrot.slane %v794, 7
        %v797 = vshll.u32 %v579, 16
        %v799 = vor.u32 %v796, %v797
        %v800 = vrot.slane %v796, 4
        %v802 = vshrl.u32 %v580, 16
        %v804 = vrot.slane %v802, 7
        %v805 = vshll.u32 %v580, 16
        %v807 = vor.u32 %v804, %v805
        %v808 = vsel %vm588, %v800, %v807
        %v809 = vrot.slane %v804, 4
        %v811 = vshrl.u32 %v581, 16
        %v813 = vrot.slane %v811, 7
        %v814 = vshll.u32 %v581, 16
        %v816 = vor.u32 %v813, %v814
        %v817 = vrot.slane %v813, 4
        %v819 = vshrl.u32 %v582, 16
        %v821 = vrot.slane %v819, 7
        %v822 = vshll.u32 %v582, 16
        %v824 = vor.u32 %v821, %v822
        %v825 = vsel %vm588, %v817, %v824
        %v826 = vrot.slane %v821, 4
        %v828 = vshrl.u32 %v583, 16
        %v830 = vrot.slane %v828, 7
        %v831 = vshll.u32 %v583, 16
        %v833 = vor.u32 %v830, %v831
        %v834 = vrot.slane %v830, 4
        %v836 = vshrl.u32 %v584, 16
        %v838 = vrot.slane %v836, 7
        %v839 = vshll.u32 %v584, 16
        %v841 = vor.u32 %v838, %v839
        %v842 = vsel %vm588, %v834, %v841
        %v843 = vrot.slane %v838, 4
        %v845 = vshrl.u32 %v585, 16
        %v847 = vrot.slane %v845, 7
        %v848 = vshll.u32 %v585, 16
        %v850 = vor.u32 %v847, %v848
        %v851 = vrot.slane %v847, 4
        %v853 = vshrl.u32 %v586, 16
        %v855 = vrot.slane %v853, 7
        %v856 = vshll.u32 %v586, 16
        %v858 = vor.u32 %v855, %v856
        %v859 = vsel %vm588, %v851, %v858
        %v860 = vrot.slane %v855, 4
        %s909 = scalar_lea.vmem [#allocation2], 12
        %vm910 = vcmask 125952
        %vm911 = vmand %vm910, %vm305
        %v912 = vld [vmem:[%s909] sm:$0xf]
        %v913 = vsel %vm911, %v595, %v912
        %914 = vst [vmem:[%s909] sm:$0xf] %v913
        %915 = vst.msk [vmem:[%s909 + $0x4] sm:$0xf] %vm239, %v604
        %v916 = vld [vmem:[%s909 + $0x8] sm:$0x1]
        %v917 = vsel %vm250, %v605, %v916
        %918 = vst [vmem:[%s909 + $0x8] sm:$0x1] %v917
        %v919 = vld [vmem:[%s909 + $0xc] sm:$0xf]
        %v920 = vsel %vm911, %v612, %v919
        %921 = vst [vmem:[%s909 + $0xc] sm:$0xf] %v920
        %922 = vst.msk [vmem:[%s909 + $0x10] sm:$0xf] %vm239, %v621
        %v923 = vld [vmem:[%s909 + $0x14] sm:$0x1]
        %v924 = vsel %vm250, %v622, %v923
        %925 = vst [vmem:[%s909 + $0x14] sm:$0x1] %v924
        %v926 = vld [vmem:[%s909 + $0x18] sm:$0xf]
        %v927 = vsel %vm911, %v629, %v926
        %928 = vst [vmem:[%s909 + $0x18] sm:$0xf] %v927
        %929 = vst.msk [vmem:[%s909 + $0x1c] sm:$0xf] %vm239, %v638
        %v930 = vld [vmem:[%s909 + $0x20] sm:$0x1]
        %v931 = vsel %vm250, %v639, %v930
        %932 = vst [vmem:[%s909 + $0x20] sm:$0x1] %v931
        %v933 = vld [vmem:[%s909 + $0x24] sm:$0xf]
        %v934 = vsel %vm911, %v646, %v933
        %935 = vst [vmem:[%s909 + $0x24] sm:$0xf] %v934
        %936 = vst.msk [vmem:[%s909 + $0x28] sm:$0xf] %vm239, %v655
        %v937 = vld [vmem:[%s909 + $0x2c] sm:$0x1]
        %v938 = vsel %vm250, %v656, %v937
        %939 = vst [vmem:[%s909 + $0x2c] sm:$0x1] %v938
        %v940 = vld [vmem:[%s909 + $0x30] sm:$0xf]
        %v941 = vsel %vm911, %v663, %v940
        %942 = vst [vmem:[%s909 + $0x30] sm:$0xf] %v941
        %943 = vst.msk [vmem:[%s909 + $0x34] sm:$0xf] %vm239, %v672
        %v944 = vld [vmem:[%s909 + $0x38] sm:$0x1]
        %v945 = vsel %vm250, %v673, %v944
        %946 = vst [vmem:[%s909 + $0x38] sm:$0x1] %v945
        %v947 = vld [vmem:[%s909 + $0x3c] sm:$0xf]
        %v948 = vsel %vm911, %v680, %v947
        %949 = vst [vmem:[%s909 + $0x3c] sm:$0xf] %v948
        %950 = vst.msk [vmem:[%s909 + $0x40] sm:$0xf] %vm239, %v689
        %v951 = vld [vmem:[%s909 + $0x44] sm:$0x1]
        %v952 = vsel %vm250, %v690, %v951
        %953 = vst [vmem:[%s909 + $0x44] sm:$0x1] %v952
        %v954 = vld [vmem:[%s909 + $0x48] sm:$0xf]
        %v955 = vsel %vm911, %v697, %v954
        %956 = vst [vmem:[%s909 + $0x48] sm:$0xf] %v955
        %957 = vst.msk [vmem:[%s909 + $0x4c] sm:$0xf] %vm239, %v706
        %v958 = vld [vmem:[%s909 + $0x50] sm:$0x1]
        %v959 = vsel %vm250, %v707, %v958
        %960 = vst [vmem:[%s909 + $0x50] sm:$0x1] %v959
        %v961 = vld [vmem:[%s909 + $0x54] sm:$0xf]
        %v962 = vsel %vm911, %v714, %v961
        %963 = vst [vmem:[%s909 + $0x54] sm:$0xf] %v962
        %964 = vst.msk [vmem:[%s909 + $0x58] sm:$0xf] %vm239, %v723
        %v965 = vld [vmem:[%s909 + $0x5c] sm:$0x1]
        %v966 = vsel %vm250, %v724, %v965
        %967 = vst [vmem:[%s909 + $0x5c] sm:$0x1] %v966
        %v968 = vld [vmem:[%s909 + $0x60] sm:$0xf]
        %v969 = vsel %vm911, %v731, %v968
        %970 = vst [vmem:[%s909 + $0x60] sm:$0xf] %v969
        %971 = vst.msk [vmem:[%s909 + $0x64] sm:$0xf] %vm239, %v740
        %v972 = vld [vmem:[%s909 + $0x68] sm:$0x1]
        %v973 = vsel %vm250, %v741, %v972
        %974 = vst [vmem:[%s909 + $0x68] sm:$0x1] %v973
        %v975 = vld [vmem:[%s909 + $0x6c] sm:$0xf]
        %v976 = vsel %vm911, %v748, %v975
        %977 = vst [vmem:[%s909 + $0x6c] sm:$0xf] %v976
        %978 = vst.msk [vmem:[%s909 + $0x70] sm:$0xf] %vm239, %v757
        %v979 = vld [vmem:[%s909 + $0x74] sm:$0x1]
        %v980 = vsel %vm250, %v758, %v979
        %981 = vst [vmem:[%s909 + $0x74] sm:$0x1] %v980
        %v982 = vld [vmem:[%s909 + $0x78] sm:$0xf]
        %v983 = vsel %vm911, %v765, %v982
        %984 = vst [vmem:[%s909 + $0x78] sm:$0xf] %v983
        %985 = vst.msk [vmem:[%s909 + $0x7c] sm:$0xf] %vm239, %v774
        %v986 = vld [vmem:[%s909 + $0x80] sm:$0x1]
        %v987 = vsel %vm250, %v775, %v986
        %988 = vst [vmem:[%s909 + $0x80] sm:$0x1] %v987
        %v989 = vld [vmem:[%s909 + $0x84] sm:$0xf]
        %v990 = vsel %vm911, %v782, %v989
        %991 = vst [vmem:[%s909 + $0x84] sm:$0xf] %v990
        %992 = vst.msk [vmem:[%s909 + $0x88] sm:$0xf] %vm239, %v791
        %v993 = vld [vmem:[%s909 + $0x8c] sm:$0x1]
        %v994 = vsel %vm250, %v792, %v993
        %995 = vst [vmem:[%s909 + $0x8c] sm:$0x1] %v994
        %v996 = vld [vmem:[%s909 + $0x90] sm:$0xf]
        %v997 = vsel %vm911, %v799, %v996
        %998 = vst [vmem:[%s909 + $0x90] sm:$0xf] %v997
        %999 = vst.msk [vmem:[%s909 + $0x94] sm:$0xf] %vm239, %v808
        %v1000 = vld [vmem:[%s909 + $0x98] sm:$0x1]
        %v1001 = vsel %vm250, %v809, %v1000
        %1002 = vst [vmem:[%s909 + $0x98] sm:$0x1] %v1001
        %v1003 = vld [vmem:[%s909 + $0x9c] sm:$0xf]
        %v1004 = vsel %vm911, %v816, %v1003
        %1005 = vst [vmem:[%s909 + $0x9c] sm:$0xf] %v1004
        %1006 = vst.msk [vmem:[%s909 + $0xa0] sm:$0xf] %vm239, %v825
        %v1007 = vld [vmem:[%s909 + $0xa4] sm:$0x1]
        %v1008 = vsel %vm250, %v826, %v1007
        %1009 = vst [vmem:[%s909 + $0xa4] sm:$0x1] %v1008
        %v1010 = vld [vmem:[%s909 + $0xa8] sm:$0xf]
        %v1011 = vsel %vm911, %v833, %v1010
        %1012 = vst [vmem:[%s909 + $0xa8] sm:$0xf] %v1011
        %1013 = vst.msk [vmem:[%s909 + $0xac] sm:$0xf] %vm239, %v842
        %v1014 = vld [vmem:[%s909 + $0xb0] sm:$0x1]
        %v1015 = vsel %vm250, %v843, %v1014
        %1016 = vst [vmem:[%s909 + $0xb0] sm:$0x1] %v1015
        %v1017 = vld [vmem:[%s909 + $0xb4] sm:$0xf]
        %v1018 = vsel %vm911, %v850, %v1017
        %1019 = vst [vmem:[%s909 + $0xb4] sm:$0xf] %v1018
        %1020 = vst.msk [vmem:[%s909 + $0xb8] sm:$0xf] %vm239, %v859
        %v1021 = vld [vmem:[%s909 + $0xbc] sm:$0x1]
        %v1022 = vsel %vm250, %v860, %v1021
        %1023 = vst [vmem:[%s909 + $0xbc] sm:$0x1] %v1022
        %v1024 = vld [vmem:[#allocation2] sm:$0xf]
        %v1025 = vld [vmem:[#allocation2 + $0x4] sm:$0xf]
        %v1026 = vld [vmem:[#allocation2 + $0xc] sm:$0xf]
        %v1027 = vld [vmem:[#allocation2 + $0x10] sm:$0xf]
        %v1028 = vld [vmem:[#allocation2 + $0x18] sm:$0xf]
        %v1029 = vld [vmem:[#allocation2 + $0x1c] sm:$0xf]
        %v1030 = vld [vmem:[#allocation2 + $0x24] sm:$0xf]
        %v1031 = vld [vmem:[#allocation2 + $0x28] sm:$0xf]
        %v1032 = vld [vmem:[#allocation2 + $0x30] sm:$0xf]
        %v1033 = vld [vmem:[#allocation2 + $0x34] sm:$0xf]
        %v1034 = vld [vmem:[#allocation2 + $0x3c] sm:$0xf]
        %v1035 = vld [vmem:[#allocation2 + $0x40] sm:$0xf]
        %v1036 = vld [vmem:[#allocation2 + $0x48] sm:$0xf]
        %v1037 = vld [vmem:[#allocation2 + $0x4c] sm:$0xf]
        %v1038 = vld [vmem:[#allocation2 + $0x54] sm:$0xf]
        %v1039 = vld [vmem:[#allocation2 + $0x58] sm:$0xf]
        %v1040 = vld [vmem:[#allocation2 + $0x60] sm:$0xf]
        %v1041 = vld [vmem:[#allocation2 + $0x64] sm:$0xf]
        %v1042 = vld [vmem:[#allocation2 + $0x6c] sm:$0xf]
        %v1043 = vld [vmem:[#allocation2 + $0x70] sm:$0xf]
        %v1044 = vld [vmem:[#allocation2 + $0x78] sm:$0xf]
        %v1045 = vld [vmem:[#allocation2 + $0x7c] sm:$0xf]
        %v1046 = vld [vmem:[#allocation2 + $0x84] sm:$0xf]
        %v1047 = vld [vmem:[#allocation2 + $0x88] sm:$0xf]
        %v1048 = vld [vmem:[#allocation2 + $0x90] sm:$0xf]
        %v1049 = vld [vmem:[#allocation2 + $0x94] sm:$0xf]
        %v1050 = vld [vmem:[#allocation2 + $0x9c] sm:$0xf]
        %v1051 = vld [vmem:[#allocation2 + $0xa0] sm:$0xf]
        %v1052 = vld [vmem:[#allocation2 + $0xa8] sm:$0xf]
        %v1053 = vld [vmem:[#allocation2 + $0xac] sm:$0xf]
        %v1054 = vld [vmem:[#allocation2 + $0xb4] sm:$0xf]
        %v1055 = vld [vmem:[#allocation2 + $0xb8] sm:$0xf]
        %v1056 = vld [vmem:[#allocation2 + $0x8] sm:$0x1]
        %v1057 = vld [vmem:[#allocation2 + $0x14] sm:$0x1]
        %v1058 = vld [vmem:[#allocation2 + $0x20] sm:$0x1]
        %v1059 = vld [vmem:[#allocation2 + $0x2c] sm:$0x1]
        %v1060 = vld [vmem:[#allocation2 + $0x38] sm:$0x1]
        %v1061 = vld [vmem:[#allocation2 + $0x44] sm:$0x1]
        %v1062 = vld [vmem:[#allocation2 + $0x50] sm:$0x1]
        %v1063 = vld [vmem:[#allocation2 + $0x5c] sm:$0x1]
        %v1064 = vld [vmem:[#allocation2 + $0x68] sm:$0x1]
        %v1065 = vld [vmem:[#allocation2 + $0x74] sm:$0x1]
        %v1066 = vld [vmem:[#allocation2 + $0x80] sm:$0x1]
        %v1067 = vld [vmem:[#allocation2 + $0x8c] sm:$0x1]
        %v1068 = vld [vmem:[#allocation2 + $0x98] sm:$0x1]
        %v1069 = vld [vmem:[#allocation2 + $0xa4] sm:$0x1]
        %v1070 = vld [vmem:[#allocation2 + $0xb0] sm:$0x1]
        %v1071 = vld [vmem:[#allocation2 + $0xbc] sm:$0x1]
        %vm1072 = vsmask.f32 3328
        %vm1073 = vsmask.f32 7440
        %vm1074 = vmor %vm1072, %vm1073
        %v1076 = vshrl.u32 %v1024, 16
        %v1078 = vrot.slane %v1076, 4
        %v1079 = vshll.u32 %v1024, 16
        %v1081 = vrot.slane %v1079, 5
        %v1082 = vor.u32 %v1078, %v1081
        %v1083 = vrot.slane %v1082, 4
        %v1085 = vshll.u32 %v1025, 16
        %v1087 = vrot.slane %v1085, 5
        %v1088 = vsel %vm1074, %v1083, %v1087
        %v1089 = vshrl.u32 %v1025, 16
        %v1091 = vrot.slane %v1089, 4
        %v1092 = vor.u32 %v1091, %v1087
        %v1093 = vrot.slane %v1092, 4
        %v1095 = vshll.u32 %v1056, 16
        %v1097 = vrot.slane %v1095, 5
        %v1098 = vsel %vm1074, %v1093, %v1097
        %v1100 = vshrl.u32 %v1026, 16
        %v1102 = vrot.slane %v1100, 4
        %v1103 = vshll.u32 %v1026, 16
        %v1105 = vrot.slane %v1103, 5
        %v1106 = vor.u32 %v1102, %v1105
        %v1107 = vrot.slane %v1106, 4
        %v1109 = vshll.u32 %v1027, 16
        %v1111 = vrot.slane %v1109, 5
        %v1112 = vsel %vm1074, %v1107, %v1111
        %v1113 = vshrl.u32 %v1027, 16
        %v1115 = vrot.slane %v1113, 4
        %v1116 = vor.u32 %v1115, %v1111
        %v1117 = vrot.slane %v1116, 4
        %v1119 = vshll.u32 %v1057, 16
        %v1121 = vrot.slane %v1119, 5
        %v1122 = vsel %vm1074, %v1117, %v1121
        %v1124 = vshrl.u32 %v1028, 16
        %v1126 = vrot.slane %v1124, 4
        %v1127 = vshll.u32 %v1028, 16
        %v1129 = vrot.slane %v1127, 5
        %v1130 = vor.u32 %v1126, %v1129
        %v1131 = vrot.slane %v1130, 4
        %v1133 = vshll.u32 %v1029, 16
        %v1135 = vrot.slane %v1133, 5
        %v1136 = vsel %vm1074, %v1131, %v1135
        %v1137 = vshrl.u32 %v1029, 16
        %v1139 = vrot.slane %v1137, 4
        %v1140 = vor.u32 %v1139, %v1135
        %v1141 = vrot.slane %v1140, 4
        %v1143 = vshll.u32 %v1058, 16
        %v1145 = vrot.slane %v1143, 5
        %v1146 = vsel %vm1074, %v1141, %v1145
        %v1148 = vshrl.u32 %v1030, 16
        %v1150 = vrot.slane %v1148, 4
        %v1151 = vshll.u32 %v1030, 16
        %v1153 = vrot.slane %v1151, 5
        %v1154 = vor.u32 %v1150, %v1153
        %v1155 = vrot.slane %v1154, 4
        %v1157 = vshll.u32 %v1031, 16
        %v1159 = vrot.slane %v1157, 5
        %v1160 = vsel %vm1074, %v1155, %v1159
        %v1161 = vshrl.u32 %v1031, 16
        %v1163 = vrot.slane %v1161, 4
        %v1164 = vor.u32 %v1163, %v1159
        %v1165 = vrot.slane %v1164, 4
        %v1167 = vshll.u32 %v1059, 16
        %v1169 = vrot.slane %v1167, 5
        %v1170 = vsel %vm1074, %v1165, %v1169
        %v1172 = vshrl.u32 %v1032, 16
        %v1174 = vrot.slane %v1172, 4
        %v1175 = vshll.u32 %v1032, 16
        %v1177 = vrot.slane %v1175, 5
        %v1178 = vor.u32 %v1174, %v1177
        %v1179 = vrot.slane %v1178, 4
        %v1181 = vshll.u32 %v1033, 16
        %v1183 = vrot.slane %v1181, 5
        %v1184 = vsel %vm1074, %v1179, %v1183
        %v1185 = vshrl.u32 %v1033, 16
        %v1187 = vrot.slane %v1185, 4
        %v1188 = vor.u32 %v1187, %v1183
        %v1189 = vrot.slane %v1188, 4
        %v1191 = vshll.u32 %v1060, 16
        %v1193 = vrot.slane %v1191, 5
        %v1194 = vsel %vm1074, %v1189, %v1193
        %v1196 = vshrl.u32 %v1034, 16
        %v1198 = vrot.slane %v1196, 4
        %v1199 = vshll.u32 %v1034, 16
        %v1201 = vrot.slane %v1199, 5
        %v1202 = vor.u32 %v1198, %v1201
        %v1203 = vrot.slane %v1202, 4
        %v1205 = vshll.u32 %v1035, 16
        %v1207 = vrot.slane %v1205, 5
        %v1208 = vsel %vm1074, %v1203, %v1207
        %v1209 = vshrl.u32 %v1035, 16
        %v1211 = vrot.slane %v1209, 4
        %v1212 = vor.u32 %v1211, %v1207
        %v1213 = vrot.slane %v1212, 4
        %v1215 = vshll.u32 %v1061, 16
        %v1217 = vrot.slane %v1215, 5
        %v1218 = vsel %vm1074, %v1213, %v1217
        %v1220 = vshrl.u32 %v1036, 16
        %v1222 = vrot.slane %v1220, 4
        %v1223 = vshll.u32 %v1036, 16
        %v1225 = vrot.slane %v1223, 5
        %v1226 = vor.u32 %v1222, %v1225
        %v1227 = vrot.slane %v1226, 4
        %v1229 = vshll.u32 %v1037, 16
        %v1231 = vrot.slane %v1229, 5
        %v1232 = vsel %vm1074, %v1227, %v1231
        %v1233 = vshrl.u32 %v1037, 16
        %v1235 = vrot.slane %v1233, 4
        %v1236 = vor.u32 %v1235, %v1231
        %v1237 = vrot.slane %v1236, 4
        %v1239 = vshll.u32 %v1062, 16
        %v1241 = vrot.slane %v1239, 5
        %v1242 = vsel %vm1074, %v1237, %v1241
        %v1244 = vshrl.u32 %v1038, 16
        %v1246 = vrot.slane %v1244, 4
        %v1247 = vshll.u32 %v1038, 16
        %v1249 = vrot.slane %v1247, 5
        %v1250 = vor.u32 %v1246, %v1249
        %v1251 = vrot.slane %v1250, 4
        %v1253 = vshll.u32 %v1039, 16
        %v1255 = vrot.slane %v1253, 5
        %v1256 = vsel %vm1074, %v1251, %v1255
        %v1257 = vshrl.u32 %v1039, 16
        %v1259 = vrot.slane %v1257, 4
        %v1260 = vor.u32 %v1259, %v1255
        %v1261 = vrot.slane %v1260, 4
        %v1263 = vshll.u32 %v1063, 16
        %v1265 = vrot.slane %v1263, 5
        %v1266 = vsel %vm1074, %v1261, %v1265
        %v1268 = vshrl.u32 %v1040, 16
        %v1270 = vrot.slane %v1268, 4
        %v1271 = vshll.u32 %v1040, 16
        %v1273 = vrot.slane %v1271, 5
        %v1274 = vor.u32 %v1270, %v1273
        %v1275 = vrot.slane %v1274, 4
        %v1277 = vshll.u32 %v1041, 16
        %v1279 = vrot.slane %v1277, 5
        %v1280 = vsel %vm1074, %v1275, %v1279
        %v1281 = vshrl.u32 %v1041, 16
        %v1283 = vrot.slane %v1281, 4
        %v1284 = vor.u32 %v1283, %v1279
        %v1285 = vrot.slane %v1284, 4
        %v1287 = vshll.u32 %v1064, 16
        %v1289 = vrot.slane %v1287, 5
        %v1290 = vsel %vm1074, %v1285, %v1289
        %v1292 = vshrl.u32 %v1042, 16
        %v1294 = vrot.slane %v1292, 4
        %v1295 = vshll.u32 %v1042, 16
        %v1297 = vrot.slane %v1295, 5
        %v1298 = vor.u32 %v1294, %v1297
        %v1299 = vrot.slane %v1298, 4
        %v1301 = vshll.u32 %v1043, 16
        %v1303 = vrot.slane %v1301, 5
        %v1304 = vsel %vm1074, %v1299, %v1303
        %v1305 = vshrl.u32 %v1043, 16
        %v1307 = vrot.slane %v1305, 4
        %v1308 = vor.u32 %v1307, %v1303
        %v1309 = vrot.slane %v1308, 4
        %v1311 = vshll.u32 %v1065, 16
        %v1313 = vrot.slane %v1311, 5
        %v1314 = vsel %vm1074, %v1309, %v1313
        %v1316 = vshrl.u32 %v1044, 16
        %v1318 = vrot.slane %v1316, 4
        %v1319 = vshll.u32 %v1044, 16
        %v1321 = vrot.slane %v1319, 5
        %v1322 = vor.u32 %v1318, %v1321
        %v1323 = vrot.slane %v1322, 4
        %v1325 = vshll.u32 %v1045, 16
        %v1327 = vrot.slane %v1325, 5
        %v1328 = vsel %vm1074, %v1323, %v1327
        %v1329 = vshrl.u32 %v1045, 16
        %v1331 = vrot.slane %v1329, 4
        %v1332 = vor.u32 %v1331, %v1327
        %v1333 = vrot.slane %v1332, 4
        %v1335 = vshll.u32 %v1066, 16
        %v1337 = vrot.slane %v1335, 5
        %v1338 = vsel %vm1074, %v1333, %v1337
        %v1340 = vshrl.u32 %v1046, 16
        %v1342 = vrot.slane %v1340, 4
        %v1343 = vshll.u32 %v1046, 16
        %v1345 = vrot.slane %v1343, 5
        %v1346 = vor.u32 %v1342, %v1345
        %v1347 = vrot.slane %v1346, 4
        %v1349 = vshll.u32 %v1047, 16
        %v1351 = vrot.slane %v1349, 5
        %v1352 = vsel %vm1074, %v1347, %v1351
        %v1353 = vshrl.u32 %v1047, 16
        %v1355 = vrot.slane %v1353, 4
        %v1356 = vor.u32 %v1355, %v1351
        %v1357 = vrot.slane %v1356, 4
        %v1359 = vshll.u32 %v1067, 16
        %v1361 = vrot.slane %v1359, 5
        %v1362 = vsel %vm1074, %v1357, %v1361
        %v1364 = vshrl.u32 %v1048, 16
        %v1366 = vrot.slane %v1364, 4
        %v1367 = vshll.u32 %v1048, 16
        %v1369 = vrot.slane %v1367, 5
        %v1370 = vor.u32 %v1366, %v1369
        %v1371 = vrot.slane %v1370, 4
        %v1373 = vshll.u32 %v1049, 16
        %v1375 = vrot.slane %v1373, 5
        %v1376 = vsel %vm1074, %v1371, %v1375
        %v1377 = vshrl.u32 %v1049, 16
        %v1379 = vrot.slane %v1377, 4
        %v1380 = vor.u32 %v1379, %v1375
        %v1381 = vrot.slane %v1380, 4
        %v1383 = vshll.u32 %v1068, 16
        %v1385 = vrot.slane %v1383, 5
        %v1386 = vsel %vm1074, %v1381, %v1385
        %v1388 = vshrl.u32 %v1050, 16
        %v1390 = vrot.slane %v1388, 4
        %v1391 = vshll.u32 %v1050, 16
        %v1393 = vrot.slane %v1391, 5
        %v1394 = vor.u32 %v1390, %v1393
        %v1395 = vrot.slane %v1394, 4
        %v1397 = vshll.u32 %v1051, 16
        %v1399 = vrot.slane %v1397, 5
        %v1400 = vsel %vm1074, %v1395, %v1399
        %v1401 = vshrl.u32 %v1051, 16
        %v1403 = vrot.slane %v1401, 4
        %v1404 = vor.u32 %v1403, %v1399
        %v1405 = vrot.slane %v1404, 4
        %v1407 = vshll.u32 %v1069, 16
        %v1409 = vrot.slane %v1407, 5
        %v1410 = vsel %vm1074, %v1405, %v1409
        %v1412 = vshrl.u32 %v1052, 16
        %v1414 = vrot.slane %v1412, 4
        %v1415 = vshll.u32 %v1052, 16
        %v1417 = vrot.slane %v1415, 5
        %v1418 = vor.u32 %v1414, %v1417
        %v1419 = vrot.slane %v1418, 4
        %v1421 = vshll.u32 %v1053, 16
        %v1423 = vrot.slane %v1421, 5
        %v1424 = vsel %vm1074, %v1419, %v1423
        %v1425 = vshrl.u32 %v1053, 16
        %v1427 = vrot.slane %v1425, 4
        %v1428 = vor.u32 %v1427, %v1423
        %v1429 = vrot.slane %v1428, 4
        %v1431 = vshll.u32 %v1070, 16
        %v1433 = vrot.slane %v1431, 5
        %v1434 = vsel %vm1074, %v1429, %v1433
        %v1436 = vshrl.u32 %v1054, 16
        %v1438 = vrot.slane %v1436, 4
        %v1439 = vshll.u32 %v1054, 16
        %v1441 = vrot.slane %v1439, 5
        %v1442 = vor.u32 %v1438, %v1441
        %v1443 = vrot.slane %v1442, 4
        %v1445 = vshll.u32 %v1055, 16
        %v1447 = vrot.slane %v1445, 5
        %v1448 = vsel %vm1074, %v1443, %v1447
        %v1449 = vshrl.u32 %v1055, 16
        %v1451 = vrot.slane %v1449, 4
        %v1452 = vor.u32 %v1451, %v1447
        %v1453 = vrot.slane %v1452, 4
        %v1455 = vshll.u32 %v1071, 16
        %v1457 = vrot.slane %v1455, 5
        %v1458 = vsel %vm1074, %v1453, %v1457
        %v1459 = vld [vmem:[#allocation2] sm:$0xe]
        %v1460 = vld [vmem:[#allocation2 + $0xc] sm:$0xe]
        %v1461 = vld [vmem:[#allocation2 + $0x18] sm:$0xe]
        %v1462 = vld [vmem:[#allocation2 + $0x24] sm:$0xe]
        %v1463 = vld [vmem:[#allocation2 + $0x30] sm:$0xe]
        %v1464 = vld [vmem:[#allocation2 + $0x3c] sm:$0xe]
        %v1465 = vld [vmem:[#allocation2 + $0x48] sm:$0xe]
        %v1466 = vld [vmem:[#allocation2 + $0x54] sm:$0xe]
        %v1467 = vld [vmem:[#allocation2 + $0x60] sm:$0xe]
        %v1468 = vld [vmem:[#allocation2 + $0x6c] sm:$0xe]
        %v1469 = vld [vmem:[#allocation2 + $0x78] sm:$0xe]
        %v1470 = vld [vmem:[#allocation2 + $0x84] sm:$0xe]
        %v1471 = vld [vmem:[#allocation2 + $0x90] sm:$0xe]
        %v1472 = vld [vmem:[#allocation2 + $0x9c] sm:$0xe]
        %v1473 = vld [vmem:[#allocation2 + $0xa8] sm:$0xe]
        %v1474 = vld [vmem:[#allocation2 + $0xb4] sm:$0xe]
        %vm1523 = vcmask 1042432
        %vm1524 = vcmask 1046532
        %vm1525 = vmor %vm1523, %vm1524
        %v1526 = vrot.slane %v1459, 5
        %v1527 = vrot.slane %v1526, 4
        %v1528 = vrot.slane %v1025, 5
        %v1529 = vsel %vm1525, %v1527, %v1528
        %v1530 = vrot.slane %v1528, 4
        %v1531 = vrot.slane %v1056, 5
        %v1532 = vsel %vm1525, %v1530, %v1531
        %v1533 = vrot.slane %v1460, 5
        %v1534 = vrot.slane %v1533, 4
        %v1535 = vrot.slane %v1027, 5
        %v1536 = vsel %vm1525, %v1534, %v1535
        %v1537 = vrot.slane %v1535, 4
        %v1538 = vrot.slane %v1057, 5
        %v1539 = vsel %vm1525, %v1537, %v1538
        %v1540 = vrot.slane %v1461, 5
        %v1541 = vrot.slane %v1540, 4
        %v1542 = vrot.slane %v1029, 5
        %v1543 = vsel %vm1525, %v1541, %v1542
        %v1544 = vrot.slane %v1542, 4
        %v1545 = vrot.slane %v1058, 5
        %v1546 = vsel %vm1525, %v1544, %v1545
        %v1547 = vrot.slane %v1462, 5
        %v1548 = vrot.slane %v1547, 4
        %v1549 = vrot.slane %v1031, 5
        %v1550 = vsel %vm1525, %v1548, %v1549
        %v1551 = vrot.slane %v1549, 4
        %v1552 = vrot.slane %v1059, 5
        %v1553 = vsel %vm1525, %v1551, %v1552
        %v1554 = vrot.slane %v1463, 5
        %v1555 = vrot.slane %v1554, 4
        %v1556 = vrot.slane %v1033, 5
        %v1557 = vsel %vm1525, %v1555, %v1556
        %v1558 = vrot.slane %v1556, 4
        %v1559 = vrot.slane %v1060, 5
        %v1560 = vsel %vm1525, %v1558, %v1559
        %v1561 = vrot.slane %v1464, 5
        %v1562 = vrot.slane %v1561, 4
        %v1563 = vrot.slane %v1035, 5
        %v1564 = vsel %vm1525, %v1562, %v1563
        %v1565 = vrot.slane %v1563, 4
        %v1566 = vrot.slane %v1061, 5
        %v1567 = vsel %vm1525, %v1565, %v1566
        %v1568 = vrot.slane %v1465, 5
        %v1569 = vrot.slane %v1568, 4
        %v1570 = vrot.slane %v1037, 5
        %v1571 = vsel %vm1525, %v1569, %v1570
        %v1572 = vrot.slane %v1570, 4
        %v1573 = vrot.slane %v1062, 5
        %v1574 = vsel %vm1525, %v1572, %v1573
        %v1575 = vrot.slane %v1466, 5
        %v1576 = vrot.slane %v1575, 4
        %v1577 = vrot.slane %v1039, 5
        %v1578 = vsel %vm1525, %v1576, %v1577
        %v1579 = vrot.slane %v1577, 4
        %v1580 = vrot.slane %v1063, 5
        %v1581 = vsel %vm1525, %v1579, %v1580
        %v1582 = vrot.slane %v1467, 5
        %v1583 = vrot.slane %v1582, 4
        %v1584 = vrot.slane %v1041, 5
        %v1585 = vsel %vm1525, %v1583, %v1584
        %v1586 = vrot.slane %v1584, 4
        %v1587 = vrot.slane %v1064, 5
        %v1588 = vsel %vm1525, %v1586, %v1587
        %v1589 = vrot.slane %v1468, 5
        %v1590 = vrot.slane %v1589, 4
        %v1591 = vrot.slane %v1043, 5
        %v1592 = vsel %vm1525, %v1590, %v1591
        %v1593 = vrot.slane %v1591, 4
        %v1594 = vrot.slane %v1065, 5
        %v1595 = vsel %vm1525, %v1593, %v1594
        %v1596 = vrot.slane %v1469, 5
        %v1597 = vrot.slane %v1596, 4
        %v1598 = vrot.slane %v1045, 5
        %v1599 = vsel %vm1525, %v1597, %v1598
        %v1600 = vrot.slane %v1598, 4
        %v1601 = vrot.slane %v1066, 5
        %v1602 = vsel %vm1525, %v1600, %v1601
        %v1603 = vrot.slane %v1470, 5
        %v1604 = vrot.slane %v1603, 4
        %v1605 = vrot.slane %v1047, 5
        %v1606 = vsel %vm1525, %v1604, %v1605
        %v1607 = vrot.slane %v1605, 4
        %v1608 = vrot.slane %v1067, 5
        %v1609 = vsel %vm1525, %v1607, %v1608
        %v1610 = vrot.slane %v1471, 5
        %v1611 = vrot.slane %v1610, 4
        %v1612 = vrot.slane %v1049, 5
        %v1613 = vsel %vm1525, %v1611, %v1612
        %v1614 = vrot.slane %v1612, 4
        %v1615 = vrot.slane %v1068, 5
        %v1616 = vsel %vm1525, %v1614, %v1615
        %v1617 = vrot.slane %v1472, 5
        %v1618 = vrot.slane %v1617, 4
        %v1619 = vrot.slane %v1051, 5
        %v1620 = vsel %vm1525, %v1618, %v1619
        %v1621 = vrot.slane %v1619, 4
        %v1622 = vrot.slane %v1069, 5
        %v1623 = vsel %vm1525, %v1621, %v1622
        %v1624 = vrot.slane %v1473, 5
        %v1625 = vrot.slane %v1624, 4
        %v1626 = vrot.slane %v1053, 5
        %v1627 = vsel %vm1525, %v1625, %v1626
        %v1628 = vrot.slane %v1626, 4
        %v1629 = vrot.slane %v1070, 5
        %v1630 = vsel %vm1525, %v1628, %v1629
        %v1631 = vrot.slane %v1474, 5
        %v1632 = vrot.slane %v1631, 4
        %v1633 = vrot.slane %v1055, 5
        %v1634 = vsel %vm1525, %v1632, %v1633
        %v1635 = vrot.slane %v1633, 4
        %v1636 = vrot.slane %v1071, 5
        %v1637 = vsel %vm1525, %v1635, %v1636
        %v1638 = vld [vmem:[%s909] sm:$0xf]
        %v1639 = vld [vmem:[%s909 + $0x4] sm:$0xf]
        %v1640 = vld [vmem:[%s909 + $0xc] sm:$0xf]
        %v1641 = vld [vmem:[%s909 + $0x10] sm:$0xf]
        %v1642 = vld [vmem:[%s909 + $0x18] sm:$0xf]
        %v1643 = vld [vmem:[%s909 + $0x1c] sm:$0xf]
        %v1644 = vld [vmem:[%s909 + $0x24] sm:$0xf]
        %v1645 = vld [vmem:[%s909 + $0x28] sm:$0xf]
        %v1646 = vld [vmem:[%s909 + $0x30] sm:$0xf]
        %v1647 = vld [vmem:[%s909 + $0x34] sm:$0xf]
        %v1648 = vld [vmem:[%s909 + $0x3c] sm:$0xf]
        %v1649 = vld [vmem:[%s909 + $0x40] sm:$0xf]
        %v1650 = vld [vmem:[%s909 + $0x48] sm:$0xf]
        %v1651 = vld [vmem:[%s909 + $0x4c] sm:$0xf]
        %v1652 = vld [vmem:[%s909 + $0x54] sm:$0xf]
        %v1653 = vld [vmem:[%s909 + $0x58] sm:$0xf]
        %v1654 = vld [vmem:[%s909 + $0x60] sm:$0xf]
        %v1655 = vld [vmem:[%s909 + $0x64] sm:$0xf]
        %v1656 = vld [vmem:[%s909 + $0x6c] sm:$0xf]
        %v1657 = vld [vmem:[%s909 + $0x70] sm:$0xf]
        %v1658 = vld [vmem:[%s909 + $0x78] sm:$0xf]
        %v1659 = vld [vmem:[%s909 + $0x7c] sm:$0xf]
        %v1660 = vld [vmem:[%s909 + $0x84] sm:$0xf]
        %v1661 = vld [vmem:[%s909 + $0x88] sm:$0xf]
        %v1662 = vld [vmem:[%s909 + $0x90] sm:$0xf]
        %v1663 = vld [vmem:[%s909 + $0x94] sm:$0xf]
        %v1664 = vld [vmem:[%s909 + $0x9c] sm:$0xf]
        %v1665 = vld [vmem:[%s909 + $0xa0] sm:$0xf]
        %v1666 = vld [vmem:[%s909 + $0xa8] sm:$0xf]
        %v1667 = vld [vmem:[%s909 + $0xac] sm:$0xf]
        %v1668 = vld [vmem:[%s909 + $0xb4] sm:$0xf]
        %v1669 = vld [vmem:[%s909 + $0xb8] sm:$0xf]
        %v1670 = vld [vmem:[%s909 + $0x8] sm:$0x1]
        %v1671 = vld [vmem:[%s909 + $0x14] sm:$0x1]
        %v1672 = vld [vmem:[%s909 + $0x20] sm:$0x1]
        %v1673 = vld [vmem:[%s909 + $0x2c] sm:$0x1]
        %v1674 = vld [vmem:[%s909 + $0x38] sm:$0x1]
        %v1675 = vld [vmem:[%s909 + $0x44] sm:$0x1]
        %v1676 = vld [vmem:[%s909 + $0x50] sm:$0x1]
        %v1677 = vld [vmem:[%s909 + $0x5c] sm:$0x1]
        %v1678 = vld [vmem:[%s909 + $0x68] sm:$0x1]
        %v1679 = vld [vmem:[%s909 + $0x74] sm:$0x1]
        %v1680 = vld [vmem:[%s909 + $0x80] sm:$0x1]
        %v1681 = vld [vmem:[%s909 + $0x8c] sm:$0x1]
        %v1682 = vld [vmem:[%s909 + $0x98] sm:$0x1]
        %v1683 = vld [vmem:[%s909 + $0xa4] sm:$0x1]
        %v1684 = vld [vmem:[%s909 + $0xb0] sm:$0x1]
        %v1685 = vld [vmem:[%s909 + $0xbc] sm:$0x1]
        %v1687 = vshrl.u32 %v1638, 16
        %v1689 = vrot.slane %v1687, 4
        %v1690 = vshll.u32 %v1638, 16
        %v1692 = vrot.slane %v1690, 5
        %v1693 = vor.u32 %v1689, %v1692
        %v1694 = vrot.slane %v1693, 4
        %v1696 = vshll.u32 %v1639, 16
        %v1698 = vrot.slane %v1696, 5
        %v1699 = vsel %vm1074, %v1694, %v1698
        %v1700 = vshrl.u32 %v1639, 16
        %v1702 = vrot.slane %v1700, 4
        %v1703 = vor.u32 %v1702, %v1698
        %v1704 = vrot.slane %v1703, 4
        %v1706 = vshll.u32 %v1670, 16
        %v1708 = vrot.slane %v1706, 5
        %v1709 = vsel %vm1074, %v1704, %v1708
        %v1711 = vshrl.u32 %v1640, 16
        %v1713 = vrot.slane %v1711, 4
        %v1714 = vshll.u32 %v1640, 16
        %v1716 = vrot.slane %v1714, 5
        %v1717 = vor.u32 %v1713, %v1716
        %v1718 = vrot.slane %v1717, 4
        %v1720 = vshll.u32 %v1641, 16
        %v1722 = vrot.slane %v1720, 5
        %v1723 = vsel %vm1074, %v1718, %v1722
        %v1724 = vshrl.u32 %v1641, 16
        %v1726 = vrot.slane %v1724, 4
        %v1727 = vor.u32 %v1726, %v1722
        %v1728 = vrot.slane %v1727, 4
        %v1730 = vshll.u32 %v1671, 16
        %v1732 = vrot.slane %v1730, 5
        %v1733 = vsel %vm1074, %v1728, %v1732
        %v1735 = vshrl.u32 %v1642, 16
        %v1737 = vrot.slane %v1735, 4
        %v1738 = vshll.u32 %v1642, 16
        %v1740 = vrot.slane %v1738, 5
        %v1741 = vor.u32 %v1737, %v1740
        %v1742 = vrot.slane %v1741, 4
        %v1744 = vshll.u32 %v1643, 16
        %v1746 = vrot.slane %v1744, 5
        %v1747 = vsel %vm1074, %v1742, %v1746
        %v1748 = vshrl.u32 %v1643, 16
        %v1750 = vrot.slane %v1748, 4
        %v1751 = vor.u32 %v1750, %v1746
        %v1752 = vrot.slane %v1751, 4
        %v1754 = vshll.u32 %v1672, 16
        %v1756 = vrot.slane %v1754, 5
        %v1757 = vsel %vm1074, %v1752, %v1756
        %v1759 = vshrl.u32 %v1644, 16
        %v1761 = vrot.slane %v1759, 4
        %v1762 = vshll.u32 %v1644, 16
        %v1764 = vrot.slane %v1762, 5
        %v1765 = vor.u32 %v1761, %v1764
        %v1766 = vrot.slane %v1765, 4
        %v1768 = vshll.u32 %v1645, 16
        %v1770 = vrot.slane %v1768, 5
        %v1771 = vsel %vm1074, %v1766, %v1770
        %v1772 = vshrl.u32 %v1645, 16
        %v1774 = vrot.slane %v1772, 4
        %v1775 = vor.u32 %v1774, %v1770
        %v1776 = vrot.slane %v1775, 4
        %v1778 = vshll.u32 %v1673, 16
        %v1780 = vrot.slane %v1778, 5
        %v1781 = vsel %vm1074, %v1776, %v1780
        %v1783 = vshrl.u32 %v1646, 16
        %v1785 = vrot.slane %v1783, 4
        %v1786 = vshll.u32 %v1646, 16
        %v1788 = vrot.slane %v1786, 5
        %v1789 = vor.u32 %v1785, %v1788
        %v1790 = vrot.slane %v1789, 4
        %v1792 = vshll.u32 %v1647, 16
        %v1794 = vrot.slane %v1792, 5
        %v1795 = vsel %vm1074, %v1790, %v1794
        %v1796 = vshrl.u32 %v1647, 16
        %v1798 = vrot.slane %v1796, 4
        %v1799 = vor.u32 %v1798, %v1794
        %v1800 = vrot.slane %v1799, 4
        %v1802 = vshll.u32 %v1674, 16
        %v1804 = vrot.slane %v1802, 5
        %v1805 = vsel %vm1074, %v1800, %v1804
        %v1807 = vshrl.u32 %v1648, 16
        %v1809 = vrot.slane %v1807, 4
        %v1810 = vshll.u32 %v1648, 16
        %v1812 = vrot.slane %v1810, 5
        %v1813 = vor.u32 %v1809, %v1812
        %v1814 = vrot.slane %v1813, 4
        %v1816 = vshll.u32 %v1649, 16
        %v1818 = vrot.slane %v1816, 5
        %v1819 = vsel %vm1074, %v1814, %v1818
        %v1820 = vshrl.u32 %v1649, 16
        %v1822 = vrot.slane %v1820, 4
        %v1823 = vor.u32 %v1822, %v1818
        %v1824 = vrot.slane %v1823, 4
        %v1826 = vshll.u32 %v1675, 16
        %v1828 = vrot.slane %v1826, 5
        %v1829 = vsel %vm1074, %v1824, %v1828
        %v1831 = vshrl.u32 %v1650, 16
        %v1833 = vrot.slane %v1831, 4
        %v1834 = vshll.u32 %v1650, 16
        %v1836 = vrot.slane %v1834, 5
        %v1837 = vor.u32 %v1833, %v1836
        %v1838 = vrot.slane %v1837, 4
        %v1840 = vshll.u32 %v1651, 16
        %v1842 = vrot.slane %v1840, 5
        %v1843 = vsel %vm1074, %v1838, %v1842
        %v1844 = vshrl.u32 %v1651, 16
        %v1846 = vrot.slane %v1844, 4
        %v1847 = vor.u32 %v1846, %v1842
        %v1848 = vrot.slane %v1847, 4
        %v1850 = vshll.u32 %v1676, 16
        %v1852 = vrot.slane %v1850, 5
        %v1853 = vsel %vm1074, %v1848, %v1852
        %v1855 = vshrl.u32 %v1652, 16
        %v1857 = vrot.slane %v1855, 4
        %v1858 = vshll.u32 %v1652, 16
        %v1860 = vrot.slane %v1858, 5
        %v1861 = vor.u32 %v1857, %v1860
        %v1862 = vrot.slane %v1861, 4
        %v1864 = vshll.u32 %v1653, 16
        %v1866 = vrot.slane %v1864, 5
        %v1867 = vsel %vm1074, %v1862, %v1866
        %v1868 = vshrl.u32 %v1653, 16
        %v1870 = vrot.slane %v1868, 4
        %v1871 = vor.u32 %v1870, %v1866
        %v1872 = vrot.slane %v1871, 4
        %v1874 = vshll.u32 %v1677, 16
        %v1876 = vrot.slane %v1874, 5
        %v1877 = vsel %vm1074, %v1872, %v1876
        %v1879 = vshrl.u32 %v1654, 16
        %v1881 = vrot.slane %v1879, 4
        %v1882 = vshll.u32 %v1654, 16
        %v1884 = vrot.slane %v1882, 5
        %v1885 = vor.u32 %v1881, %v1884
        %v1886 = vrot.slane %v1885, 4
        %v1888 = vshll.u32 %v1655, 16
        %v1890 = vrot.slane %v1888, 5
        %v1891 = vsel %vm1074, %v1886, %v1890
        %v1892 = vshrl.u32 %v1655, 16
        %v1894 = vrot.slane %v1892, 4
        %v1895 = vor.u32 %v1894, %v1890
        %v1896 = vrot.slane %v1895, 4
        %v1898 = vshll.u32 %v1678, 16
        %v1900 = vrot.slane %v1898, 5
        %v1901 = vsel %vm1074, %v1896, %v1900
        %v1903 = vshrl.u32 %v1656, 16
        %v1905 = vrot.slane %v1903, 4
        %v1906 = vshll.u32 %v1656, 16
        %v1908 = vrot.slane %v1906, 5
        %v1909 = vor.u32 %v1905, %v1908
        %v1910 = vrot.slane %v1909, 4
        %v1912 = vshll.u32 %v1657, 16
        %v1914 = vrot.slane %v1912, 5
        %v1915 = vsel %vm1074, %v1910, %v1914
        %v1916 = vshrl.u32 %v1657, 16
        %v1918 = vrot.slane %v1916, 4
        %v1919 = vor.u32 %v1918, %v1914
        %v1920 = vrot.slane %v1919, 4
        %v1922 = vshll.u32 %v1679, 16
        %v1924 = vrot.slane %v1922, 5
        %v1925 = vsel %vm1074, %v1920, %v1924
        %v1927 = vshrl.u32 %v1658, 16
        %v1929 = vrot.slane %v1927, 4
        %v1930 = vshll.u32 %v1658, 16
        %v1932 = vrot.slane %v1930, 5
        %v1933 = vor.u32 %v1929, %v1932
        %v1934 = vrot.slane %v1933, 4
        %v1936 = vshll.u32 %v1659, 16
        %v1938 = vrot.slane %v1936, 5
        %v1939 = vsel %vm1074, %v1934, %v1938
        %v1940 = vshrl.u32 %v1659, 16
        %v1942 = vrot.slane %v1940, 4
        %v1943 = vor.u32 %v1942, %v1938
        %v1944 = vrot.slane %v1943, 4
        %v1946 = vshll.u32 %v1680, 16
        %v1948 = vrot.slane %v1946, 5
        %v1949 = vsel %vm1074, %v1944, %v1948
        %v1951 = vshrl.u32 %v1660, 16
        %v1953 = vrot.slane %v1951, 4
        %v1954 = vshll.u32 %v1660, 16
        %v1956 = vrot.slane %v1954, 5
        %v1957 = vor.u32 %v1953, %v1956
        %v1958 = vrot.slane %v1957, 4
        %v1960 = vshll.u32 %v1661, 16
        %v1962 = vrot.slane %v1960, 5
        %v1963 = vsel %vm1074, %v1958, %v1962
        %v1964 = vshrl.u32 %v1661, 16
        %v1966 = vrot.slane %v1964, 4
        %v1967 = vor.u32 %v1966, %v1962
        %v1968 = vrot.slane %v1967, 4
        %v1970 = vshll.u32 %v1681, 16
        %v1972 = vrot.slane %v1970, 5
        %v1973 = vsel %vm1074, %v1968, %v1972
        %v1975 = vshrl.u32 %v1662, 16
        %v1977 = vrot.slane %v1975, 4
        %v1978 = vshll.u32 %v1662, 16
        %v1980 = vrot.slane %v1978, 5
        %v1981 = vor.u32 %v1977, %v1980
        %v1982 = vrot.slane %v1981, 4
        %v1984 = vshll.u32 %v1663, 16
        %v1986 = vrot.slane %v1984, 5
        %v1987 = vsel %vm1074, %v1982, %v1986
        %v1988 = vshrl.u32 %v1663, 16
        %v1990 = vrot.slane %v1988, 4
        %v1991 = vor.u32 %v1990, %v1986
        %v1992 = vrot.slane %v1991, 4
        %v1994 = vshll.u32 %v1682, 16
        %v1996 = vrot.slane %v1994, 5
        %v1997 = vsel %vm1074, %v1992, %v1996
        %v1999 = vshrl.u32 %v1664, 16
        %v2001 = vrot.slane %v1999, 4
        %v2002 = vshll.u32 %v1664, 16
        %v2004 = vrot.slane %v2002, 5
        %v2005 = vor.u32 %v2001, %v2004
        %v2006 = vrot.slane %v2005, 4
        %v2008 = vshll.u32 %v1665, 16
        %v2010 = vrot.slane %v2008, 5
        %v2011 = vsel %vm1074, %v2006, %v2010
        %v2012 = vshrl.u32 %v1665, 16
        %v2014 = vrot.slane %v2012, 4
        %v2015 = vor.u32 %v2014, %v2010
        %v2016 = vrot.slane %v2015, 4
        %v2018 = vshll.u32 %v1683, 16
        %v2020 = vrot.slane %v2018, 5
        %v2021 = vsel %vm1074, %v2016, %v2020
        %v2023 = vshrl.u32 %v1666, 16
        %v2025 = vrot.slane %v2023, 4
        %v2026 = vshll.u32 %v1666, 16
        %v2028 = vrot.slane %v2026, 5
        %v2029 = vor.u32 %v2025, %v2028
        %v2030 = vrot.slane %v2029, 4
        %v2032 = vshll.u32 %v1667, 16
        %v2034 = vrot.slane %v2032, 5
        %v2035 = vsel %vm1074, %v2030, %v2034
        %v2036 = vshrl.u32 %v1667, 16
        %v2038 = vrot.slane %v2036, 4
        %v2039 = vor.u32 %v2038, %v2034
        %v2040 = vrot.slane %v2039, 4
        %v2042 = vshll.u32 %v1684, 16
        %v2044 = vrot.slane %v2042, 5
        %v2045 = vsel %vm1074, %v2040, %v2044
        %v2047 = vshrl.u32 %v1668, 16
        %v2049 = vrot.slane %v2047, 4
        %v2050 = vshll.u32 %v1668, 16
        %v2052 = vrot.slane %v2050, 5
        %v2053 = vor.u32 %v2049, %v2052
        %v2054 = vrot.slane %v2053, 4
        %v2056 = vshll.u32 %v1669, 16
        %v2058 = vrot.slane %v2056, 5
        %v2059 = vsel %vm1074, %v2054, %v2058
        %v2060 = vshrl.u32 %v1669, 16
        %v2062 = vrot.slane %v2060, 4
        %v2063 = vor.u32 %v2062, %v2058
        %v2064 = vrot.slane %v2063, 4
        %v2066 = vshll.u32 %v1685, 16
        %v2068 = vrot.slane %v2066, 5
        %v2069 = vsel %vm1074, %v2064, %v2068
        %v2070 = vld [vmem:[%s909] sm:$0xe]
        %v2071 = vld [vmem:[%s909 + $0xc] sm:$0xe]
        %v2072 = vld [vmem:[%s909 + $0x18] sm:$0xe]
        %v2073 = vld [vmem:[%s909 + $0x24] sm:$0xe]
        %v2074 = vld [vmem:[%s909 + $0x30] sm:$0xe]
        %v2075 = vld [vmem:[%s909 + $0x3c] sm:$0xe]
        %v2076 = vld [vmem:[%s909 + $0x48] sm:$0xe]
        %v2077 = vld [vmem:[%s909 + $0x54] sm:$0xe]
        %v2078 = vld [vmem:[%s909 + $0x60] sm:$0xe]
        %v2079 = vld [vmem:[%s909 + $0x6c] sm:$0xe]
        %v2080 = vld [vmem:[%s909 + $0x78] sm:$0xe]
        %v2081 = vld [vmem:[%s909 + $0x84] sm:$0xe]
        %v2082 = vld [vmem:[%s909 + $0x90] sm:$0xe]
        %v2083 = vld [vmem:[%s909 + $0x9c] sm:$0xe]
        %v2084 = vld [vmem:[%s909 + $0xa8] sm:$0xe]
        %v2085 = vld [vmem:[%s909 + $0xb4] sm:$0xe]
        %v2134 = vrot.slane %v2070, 5
        %v2135 = vrot.slane %v2134, 4
        %v2136 = vrot.slane %v1639, 5
        %v2137 = vsel %vm1525, %v2135, %v2136
        %v2138 = vrot.slane %v2136, 4
        %v2139 = vrot.slane %v1670, 5
        %v2140 = vsel %vm1525, %v2138, %v2139
        %v2141 = vrot.slane %v2071, 5
        %v2142 = vrot.slane %v2141, 4
        %v2143 = vrot.slane %v1641, 5
        %v2144 = vsel %vm1525, %v2142, %v2143
        %v2145 = vrot.slane %v2143, 4
        %v2146 = vrot.slane %v1671, 5
        %v2147 = vsel %vm1525, %v2145, %v2146
        %v2148 = vrot.slane %v2072, 5
        %v2149 = vrot.slane %v2148, 4
        %v2150 = vrot.slane %v1643, 5
        %v2151 = vsel %vm1525, %v2149, %v2150
        %v2152 = vrot.slane %v2150, 4
        %v2153 = vrot.slane %v1672, 5
        %v2154 = vsel %vm1525, %v2152, %v2153
        %v2155 = vrot.slane %v2073, 5
        %v2156 = vrot.slane %v2155, 4
        %v2157 = vrot.slane %v1645, 5
        %v2158 = vsel %vm1525, %v2156, %v2157
        %v2159 = vrot.slane %v2157, 4
        %v2160 = vrot.slane %v1673, 5
        %v2161 = vsel %vm1525, %v2159, %v2160
        %v2162 = vrot.slane %v2074, 5
        %v2163 = vrot.slane %v2162, 4
        %v2164 = vrot.slane %v1647, 5
        %v2165 = vsel %vm1525, %v2163, %v2164
        %v2166 = vrot.slane %v2164, 4
        %v2167 = vrot.slane %v1674, 5
        %v2168 = vsel %vm1525, %v2166, %v2167
        %v2169 = vrot.slane %v2075, 5
        %v2170 = vrot.slane %v2169, 4
        %v2171 = vrot.slane %v1649, 5
        %v2172 = vsel %vm1525, %v2170, %v2171
        %v2173 = vrot.slane %v2171, 4
        %v2174 = vrot.slane %v1675, 5
        %v2175 = vsel %vm1525, %v2173, %v2174
        %v2176 = vrot.slane %v2076, 5
        %v2177 = vrot.slane %v2176, 4
        %v2178 = vrot.slane %v1651, 5
        %v2179 = vsel %vm1525, %v2177, %v2178
        %v2180 = vrot.slane %v2178, 4
        %v2181 = vrot.slane %v1676, 5
        %v2182 = vsel %vm1525, %v2180, %v2181
        %v2183 = vrot.slane %v2077, 5
        %v2184 = vrot.slane %v2183, 4
        %v2185 = vrot.slane %v1653, 5
        %v2186 = vsel %vm1525, %v2184, %v2185
        %v2187 = vrot.slane %v2185, 4
        %v2188 = vrot.slane %v1677, 5
        %v2189 = vsel %vm1525, %v2187, %v2188
        %v2190 = vrot.slane %v2078, 5
        %v2191 = vrot.slane %v2190, 4
        %v2192 = vrot.slane %v1655, 5
        %v2193 = vsel %vm1525, %v2191, %v2192
        %v2194 = vrot.slane %v2192, 4
        %v2195 = vrot.slane %v1678, 5
        %v2196 = vsel %vm1525, %v2194, %v2195
        %v2197 = vrot.slane %v2079, 5
        %v2198 = vrot.slane %v2197, 4
        %v2199 = vrot.slane %v1657, 5
        %v2200 = vsel %vm1525, %v2198, %v2199
        %v2201 = vrot.slane %v2199, 4
        %v2202 = vrot.slane %v1679, 5
        %v2203 = vsel %vm1525, %v2201, %v2202
        %v2204 = vrot.slane %v2080, 5
        %v2205 = vrot.slane %v2204, 4
        %v2206 = vrot.slane %v1659, 5
        %v2207 = vsel %vm1525, %v2205, %v2206
        %v2208 = vrot.slane %v2206, 4
        %v2209 = vrot.slane %v1680, 5
        %v2210 = vsel %vm1525, %v2208, %v2209
        %v2211 = vrot.slane %v2081, 5
        %v2212 = vrot.slane %v2211, 4
        %v2213 = vrot.slane %v1661, 5
        %v2214 = vsel %vm1525, %v2212, %v2213
        %v2215 = vrot.slane %v2213, 4
        %v2216 = vrot.slane %v1681, 5
        %v2217 = vsel %vm1525, %v2215, %v2216
        %v2218 = vrot.slane %v2082, 5
        %v2219 = vrot.slane %v2218, 4
        %v2220 = vrot.slane %v1663, 5
        %v2221 = vsel %vm1525, %v2219, %v2220
        %v2222 = vrot.slane %v2220, 4
        %v2223 = vrot.slane %v1682, 5
        %v2224 = vsel %vm1525, %v2222, %v2223
        %v2225 = vrot.slane %v2083, 5
        %v2226 = vrot.slane %v2225, 4
        %v2227 = vrot.slane %v1665, 5
        %v2228 = vsel %vm1525, %v2226, %v2227
        %v2229 = vrot.slane %v2227, 4
        %v2230 = vrot.slane %v1683, 5
        %v2231 = vsel %vm1525, %v2229, %v2230
        %v2232 = vrot.slane %v2084, 5
        %v2233 = vrot.slane %v2232, 4
        %v2234 = vrot.slane %v1667, 5
        %v2235 = vsel %vm1525, %v2233, %v2234
        %v2236 = vrot.slane %v2234, 4
        %v2237 = vrot.slane %v1684, 5
        %v2238 = vsel %vm1525, %v2236, %v2237
        %v2239 = vrot.slane %v2085, 5
        %v2240 = vrot.slane %v2239, 4
        %v2241 = vrot.slane %v1669, 5
        %v2242 = vsel %vm1525, %v2240, %v2241
        %v2243 = vrot.slane %v2241, 4
        %v2244 = vrot.slane %v1685, 5
        %v2245 = vsel %vm1525, %v2243, %v2244
        %s2246 = scalar_lea.vmem [#allocation2], 24
        %v2247 = vld [vmem:[%s2246] sm:$0xf]
        %v2248 = vld [vmem:[%s2246 + $0x4] sm:$0xf]
        %v2249 = vld [vmem:[%s2246 + $0xc] sm:$0xf]
        %v2250 = vld [vmem:[%s2246 + $0x10] sm:$0xf]
        %v2251 = vld [vmem:[%s2246 + $0x18] sm:$0xf]
        %v2252 = vld [vmem:[%s2246 + $0x1c] sm:$0xf]
        %v2253 = vld [vmem:[%s2246 + $0x24] sm:$0xf]
        %v2254 = vld [vmem:[%s2246 + $0x28] sm:$0xf]
        %v2255 = vld [vmem:[%s2246 + $0x30] sm:$0xf]
        %v2256 = vld [vmem:[%s2246 + $0x34] sm:$0xf]
        %v2257 = vld [vmem:[%s2246 + $0x3c] sm:$0xf]
        %v2258 = vld [vmem:[%s2246 + $0x40] sm:$0xf]
        %v2259 = vld [vmem:[%s2246 + $0x48] sm:$0xf]
        %v2260 = vld [vmem:[%s2246 + $0x4c] sm:$0xf]
        %v2261 = vld [vmem:[%s2246 + $0x54] sm:$0xf]
        %v2262 = vld [vmem:[%s2246 + $0x58] sm:$0xf]
        %v2263 = vld [vmem:[%s2246 + $0x60] sm:$0xf]
        %v2264 = vld [vmem:[%s2246 + $0x64] sm:$0xf]
        %v2265 = vld [vmem:[%s2246 + $0x6c] sm:$0xf]
        %v2266 = vld [vmem:[%s2246 + $0x70] sm:$0xf]
        %v2267 = vld [vmem:[%s2246 + $0x78] sm:$0xf]
        %v2268 = vld [vmem:[%s2246 + $0x7c] sm:$0xf]
        %v2269 = vld [vmem:[%s2246 + $0x84] sm:$0xf]
        %v2270 = vld [vmem:[%s2246 + $0x88] sm:$0xf]
        %v2271 = vld [vmem:[%s2246 + $0x90] sm:$0xf]
        %v2272 = vld [vmem:[%s2246 + $0x94] sm:$0xf]
        %v2273 = vld [vmem:[%s2246 + $0x9c] sm:$0xf]
        %v2274 = vld [vmem:[%s2246 + $0xa0] sm:$0xf]
        %v2275 = vld [vmem:[%s2246 + $0xa8] sm:$0xf]
        %v2276 = vld [vmem:[%s2246 + $0xac] sm:$0xf]
        %v2277 = vld [vmem:[%s2246 + $0xb4] sm:$0xf]
        %v2278 = vld [vmem:[%s2246 + $0xb8] sm:$0xf]
        %v2279 = vld [vmem:[%s2246 + $0x8] sm:$0x1]
        %v2280 = vld [vmem:[%s2246 + $0x14] sm:$0x1]
        %v2281 = vld [vmem:[%s2246 + $0x20] sm:$0x1]
        %v2282 = vld [vmem:[%s2246 + $0x2c] sm:$0x1]
        %v2283 = vld [vmem:[%s2246 + $0x38] sm:$0x1]
        %v2284 = vld [vmem:[%s2246 + $0x44] sm:$0x1]
        %v2285 = vld [vmem:[%s2246 + $0x50] sm:$0x1]
        %v2286 = vld [vmem:[%s2246 + $0x5c] sm:$0x1]
        %v2287 = vld [vmem:[%s2246 + $0x68] sm:$0x1]
        %v2288 = vld [vmem:[%s2246 + $0x74] sm:$0x1]
        %v2289 = vld [vmem:[%s2246 + $0x80] sm:$0x1]
        %v2290 = vld [vmem:[%s2246 + $0x8c] sm:$0x1]
        %v2291 = vld [vmem:[%s2246 + $0x98] sm:$0x1]
        %v2292 = vld [vmem:[%s2246 + $0xa4] sm:$0x1]
        %v2293 = vld [vmem:[%s2246 + $0xb0] sm:$0x1]
        %v2294 = vld [vmem:[%s2246 + $0xbc] sm:$0x1]
        %v2296 = vshrl.u32 %v2247, 16
        %v2298 = vrot.slane %v2296, 4
        %v2299 = vshll.u32 %v2247, 16
        %v2301 = vrot.slane %v2299, 5
        %v2302 = vor.u32 %v2298, %v2301
        %v2303 = vrot.slane %v2302, 4
        %v2305 = vshll.u32 %v2248, 16
        %v2307 = vrot.slane %v2305, 5
        %v2308 = vsel %vm1074, %v2303, %v2307
        %v2309 = vshrl.u32 %v2248, 16
        %v2311 = vrot.slane %v2309, 4
        %v2312 = vor.u32 %v2311, %v2307
        %v2313 = vrot.slane %v2312, 4
        %v2315 = vshll.u32 %v2279, 16
        %v2317 = vrot.slane %v2315, 5
        %v2318 = vsel %vm1074, %v2313, %v2317
        %v2320 = vshrl.u32 %v2249, 16
        %v2322 = vrot.slane %v2320, 4
        %v2323 = vshll.u32 %v2249, 16
        %v2325 = vrot.slane %v2323, 5
        %v2326 = vor.u32 %v2322, %v2325
        %v2327 = vrot.slane %v2326, 4
        %v2329 = vshll.u32 %v2250, 16
        %v2331 = vrot.slane %v2329, 5
        %v2332 = vsel %vm1074, %v2327, %v2331
        %v2333 = vshrl.u32 %v2250, 16
        %v2335 = vrot.slane %v2333, 4
        %v2336 = vor.u32 %v2335, %v2331
        %v2337 = vrot.slane %v2336, 4
        %v2339 = vshll.u32 %v2280, 16
        %v2341 = vrot.slane %v2339, 5
        %v2342 = vsel %vm1074, %v2337, %v2341
        %v2344 = vshrl.u32 %v2251, 16
        %v2346 = vrot.slane %v2344, 4
        %v2347 = vshll.u32 %v2251, 16
        %v2349 = vrot.slane %v2347, 5
        %v2350 = vor.u32 %v2346, %v2349
        %v2351 = vrot.slane %v2350, 4
        %v2353 = vshll.u32 %v2252, 16
        %v2355 = vrot.slane %v2353, 5
        %v2356 = vsel %vm1074, %v2351, %v2355
        %v2357 = vshrl.u32 %v2252, 16
        %v2359 = vrot.slane %v2357, 4
        %v2360 = vor.u32 %v2359, %v2355
        %v2361 = vrot.slane %v2360, 4
        %v2363 = vshll.u32 %v2281, 16
        %v2365 = vrot.slane %v2363, 5
        %v2366 = vsel %vm1074, %v2361, %v2365
        %v2368 = vshrl.u32 %v2253, 16
        %v2370 = vrot.slane %v2368, 4
        %v2371 = vshll.u32 %v2253, 16
        %v2373 = vrot.slane %v2371, 5
        %v2374 = vor.u32 %v2370, %v2373
        %v2375 = vrot.slane %v2374, 4
        %v2377 = vshll.u32 %v2254, 16
        %v2379 = vrot.slane %v2377, 5
        %v2380 = vsel %vm1074, %v2375, %v2379
        %v2381 = vshrl.u32 %v2254, 16
        %v2383 = vrot.slane %v2381, 4
        %v2384 = vor.u32 %v2383, %v2379
        %v2385 = vrot.slane %v2384, 4
        %v2387 = vshll.u32 %v2282, 16
        %v2389 = vrot.slane %v2387, 5
        %v2390 = vsel %vm1074, %v2385, %v2389
        %v2392 = vshrl.u32 %v2255, 16
        %v2394 = vrot.slane %v2392, 4
        %v2395 = vshll.u32 %v2255, 16
        %v2397 = vrot.slane %v2395, 5
        %v2398 = vor.u32 %v2394, %v2397
        %v2399 = vrot.slane %v2398, 4
        %v2401 = vshll.u32 %v2256, 16
        %v2403 = vrot.slane %v2401, 5
        %v2404 = vsel %vm1074, %v2399, %v2403
        %v2405 = vshrl.u32 %v2256, 16
        %v2407 = vrot.slane %v2405, 4
        %v2408 = vor.u32 %v2407, %v2403
        %v2409 = vrot.slane %v2408, 4
        %v2411 = vshll.u32 %v2283, 16
        %v2413 = vrot.slane %v2411, 5
        %v2414 = vsel %vm1074, %v2409, %v2413
        %v2416 = vshrl.u32 %v2257, 16
        %v2418 = vrot.slane %v2416, 4
        %v2419 = vshll.u32 %v2257, 16
        %v2421 = vrot.slane %v2419, 5
        %v2422 = vor.u32 %v2418, %v2421
        %v2423 = vrot.slane %v2422, 4
        %v2425 = vshll.u32 %v2258, 16
        %v2427 = vrot.slane %v2425, 5
        %v2428 = vsel %vm1074, %v2423, %v2427
        %v2429 = vshrl.u32 %v2258, 16
        %v2431 = vrot.slane %v2429, 4
        %v2432 = vor.u32 %v2431, %v2427
        %v2433 = vrot.slane %v2432, 4
        %v2435 = vshll.u32 %v2284, 16
        %v2437 = vrot.slane %v2435, 5
        %v2438 = vsel %vm1074, %v2433, %v2437
        %v2440 = vshrl.u32 %v2259, 16
        %v2442 = vrot.slane %v2440, 4
        %v2443 = vshll.u32 %v2259, 16
        %v2445 = vrot.slane %v2443, 5
        %v2446 = vor.u32 %v2442, %v2445
        %v2447 = vrot.slane %v2446, 4
        %v2449 = vshll.u32 %v2260, 16
        %v2451 = vrot.slane %v2449, 5
        %v2452 = vsel %vm1074, %v2447, %v2451
        %v2453 = vshrl.u32 %v2260, 16
        %v2455 = vrot.slane %v2453, 4
        %v2456 = vor.u32 %v2455, %v2451
        %v2457 = vrot.slane %v2456, 4
        %v2459 = vshll.u32 %v2285, 16
        %v2461 = vrot.slane %v2459, 5
        %v2462 = vsel %vm1074, %v2457, %v2461
        %v2464 = vshrl.u32 %v2261, 16
        %v2466 = vrot.slane %v2464, 4
        %v2467 = vshll.u32 %v2261, 16
        %v2469 = vrot.slane %v2467, 5
        %v2470 = vor.u32 %v2466, %v2469
        %v2471 = vrot.slane %v2470, 4
        %v2473 = vshll.u32 %v2262, 16
        %v2475 = vrot.slane %v2473, 5
        %v2476 = vsel %vm1074, %v2471, %v2475
        %v2477 = vshrl.u32 %v2262, 16
        %v2479 = vrot.slane %v2477, 4
        %v2480 = vor.u32 %v2479, %v2475
        %v2481 = vrot.slane %v2480, 4
        %v2483 = vshll.u32 %v2286, 16
        %v2485 = vrot.slane %v2483, 5
        %v2486 = vsel %vm1074, %v2481, %v2485
        %v2488 = vshrl.u32 %v2263, 16
        %v2490 = vrot.slane %v2488, 4
        %v2491 = vshll.u32 %v2263, 16
        %v2493 = vrot.slane %v2491, 5
        %v2494 = vor.u32 %v2490, %v2493
        %v2495 = vrot.slane %v2494, 4
        %v2497 = vshll.u32 %v2264, 16
        %v2499 = vrot.slane %v2497, 5
        %v2500 = vsel %vm1074, %v2495, %v2499
        %v2501 = vshrl.u32 %v2264, 16
        %v2503 = vrot.slane %v2501, 4
        %v2504 = vor.u32 %v2503, %v2499
        %v2505 = vrot.slane %v2504, 4
        %v2507 = vshll.u32 %v2287, 16
        %v2509 = vrot.slane %v2507, 5
        %v2510 = vsel %vm1074, %v2505, %v2509
        %v2512 = vshrl.u32 %v2265, 16
        %v2514 = vrot.slane %v2512, 4
        %v2515 = vshll.u32 %v2265, 16
        %v2517 = vrot.slane %v2515, 5
        %v2518 = vor.u32 %v2514, %v2517
        %v2519 = vrot.slane %v2518, 4
        %v2521 = vshll.u32 %v2266, 16
        %v2523 = vrot.slane %v2521, 5
        %v2524 = vsel %vm1074, %v2519, %v2523
        %v2525 = vshrl.u32 %v2266, 16
        %v2527 = vrot.slane %v2525, 4
        %v2528 = vor.u32 %v2527, %v2523
        %v2529 = vrot.slane %v2528, 4
        %v2531 = vshll.u32 %v2288, 16
        %v2533 = vrot.slane %v2531, 5
        %v2534 = vsel %vm1074, %v2529, %v2533
        %v2536 = vshrl.u32 %v2267, 16
        %v2538 = vrot.slane %v2536, 4
        %v2539 = vshll.u32 %v2267, 16
        %v2541 = vrot.slane %v2539, 5
        %v2542 = vor.u32 %v2538, %v2541
        %v2543 = vrot.slane %v2542, 4
        %v2545 = vshll.u32 %v2268, 16
        %v2547 = vrot.slane %v2545, 5
        %v2548 = vsel %vm1074, %v2543, %v2547
        %v2549 = vshrl.u32 %v2268, 16
        %v2551 = vrot.slane %v2549, 4
        %v2552 = vor.u32 %v2551, %v2547
        %v2553 = vrot.slane %v2552, 4
        %v2555 = vshll.u32 %v2289, 16
        %v2557 = vrot.slane %v2555, 5
        %v2558 = vsel %vm1074, %v2553, %v2557
        %v2560 = vshrl.u32 %v2269, 16
        %v2562 = vrot.slane %v2560, 4
        %v2563 = vshll.u32 %v2269, 16
        %v2565 = vrot.slane %v2563, 5
        %v2566 = vor.u32 %v2562, %v2565
        %v2567 = vrot.slane %v2566, 4
        %v2569 = vshll.u32 %v2270, 16
        %v2571 = vrot.slane %v2569, 5
        %v2572 = vsel %vm1074, %v2567, %v2571
        %v2573 = vshrl.u32 %v2270, 16
        %v2575 = vrot.slane %v2573, 4
        %v2576 = vor.u32 %v2575, %v2571
        %v2577 = vrot.slane %v2576, 4
        %v2579 = vshll.u32 %v2290, 16
        %v2581 = vrot.slane %v2579, 5
        %v2582 = vsel %vm1074, %v2577, %v2581
        %v2584 = vshrl.u32 %v2271, 16
        %v2586 = vrot.slane %v2584, 4
        %v2587 = vshll.u32 %v2271, 16
        %v2589 = vrot.slane %v2587, 5
        %v2590 = vor.u32 %v2586, %v2589
        %v2591 = vrot.slane %v2590, 4
        %v2593 = vshll.u32 %v2272, 16
        %v2595 = vrot.slane %v2593, 5
        %v2596 = vsel %vm1074, %v2591, %v2595
        %v2597 = vshrl.u32 %v2272, 16
        %v2599 = vrot.slane %v2597, 4
        %v2600 = vor.u32 %v2599, %v2595
        %v2601 = vrot.slane %v2600, 4
        %v2603 = vshll.u32 %v2291, 16
        %v2605 = vrot.slane %v2603, 5
        %v2606 = vsel %vm1074, %v2601, %v2605
        %v2608 = vshrl.u32 %v2273, 16
        %v2610 = vrot.slane %v2608, 4
        %v2611 = vshll.u32 %v2273, 16
        %v2613 = vrot.slane %v2611, 5
        %v2614 = vor.u32 %v2610, %v2613
        %v2615 = vrot.slane %v2614, 4
        %v2617 = vshll.u32 %v2274, 16
        %v2619 = vrot.slane %v2617, 5
        %v2620 = vsel %vm1074, %v2615, %v2619
        %v2621 = vshrl.u32 %v2274, 16
        %v2623 = vrot.slane %v2621, 4
        %v2624 = vor.u32 %v2623, %v2619
        %v2625 = vrot.slane %v2624, 4
        %v2627 = vshll.u32 %v2292, 16
        %v2629 = vrot.slane %v2627, 5
        %v2630 = vsel %vm1074, %v2625, %v2629
        %v2632 = vshrl.u32 %v2275, 16
        %v2634 = vrot.slane %v2632, 4
        %v2635 = vshll.u32 %v2275, 16
        %v2637 = vrot.slane %v2635, 5
        %v2638 = vor.u32 %v2634, %v2637
        %v2639 = vrot.slane %v2638, 4
        %v2641 = vshll.u32 %v2276, 16
        %v2643 = vrot.slane %v2641, 5
        %v2644 = vsel %vm1074, %v2639, %v2643
        %v2645 = vshrl.u32 %v2276, 16
        %v2647 = vrot.slane %v2645, 4
        %v2648 = vor.u32 %v2647, %v2643
        %v2649 = vrot.slane %v2648, 4
        %v2651 = vshll.u32 %v2293, 16
        %v2653 = vrot.slane %v2651, 5
        %v2654 = vsel %vm1074, %v2649, %v2653
        %v2656 = vshrl.u32 %v2277, 16
        %v2658 = vrot.slane %v2656, 4
        %v2659 = vshll.u32 %v2277, 16
        %v2661 = vrot.slane %v2659, 5
        %v2662 = vor.u32 %v2658, %v2661
        %v2663 = vrot.slane %v2662, 4
        %v2665 = vshll.u32 %v2278, 16
        %v2667 = vrot.slane %v2665, 5
        %v2668 = vsel %vm1074, %v2663, %v2667
        %v2669 = vshrl.u32 %v2278, 16
        %v2671 = vrot.slane %v2669, 4
        %v2672 = vor.u32 %v2671, %v2667
        %v2673 = vrot.slane %v2672, 4
        %v2675 = vshll.u32 %v2294, 16
        %v2677 = vrot.slane %v2675, 5
        %v2678 = vsel %vm1074, %v2673, %v2677
        %v2679 = vld [vmem:[%s2246] sm:$0xe]
        %v2680 = vld [vmem:[%s2246 + $0xc] sm:$0xe]
        %v2681 = vld [vmem:[%s2246 + $0x18] sm:$0xe]
        %v2682 = vld [vmem:[%s2246 + $0x24] sm:$0xe]
        %v2683 = vld [vmem:[%s2246 + $0x30] sm:$0xe]
        %v2684 = vld [vmem:[%s2246 + $0x3c] sm:$0xe]
        %v2685 = vld [vmem:[%s2246 + $0x48] sm:$0xe]
        %v2686 = vld [vmem:[%s2246 + $0x54] sm:$0xe]
        %v2687 = vld [vmem:[%s2246 + $0x60] sm:$0xe]
        %v2688 = vld [vmem:[%s2246 + $0x6c] sm:$0xe]
        %v2689 = vld [vmem:[%s2246 + $0x78] sm:$0xe]
        %v2690 = vld [vmem:[%s2246 + $0x84] sm:$0xe]
        %v2691 = vld [vmem:[%s2246 + $0x90] sm:$0xe]
        %v2692 = vld [vmem:[%s2246 + $0x9c] sm:$0xe]
        %v2693 = vld [vmem:[%s2246 + $0xa8] sm:$0xe]
        %v2694 = vld [vmem:[%s2246 + $0xb4] sm:$0xe]
        %v2743 = vrot.slane %v2679, 5
        %v2744 = vrot.slane %v2743, 4
        %v2745 = vrot.slane %v2248, 5
        %v2746 = vsel %vm1525, %v2744, %v2745
        %v2747 = vrot.slane %v2745, 4
        %v2748 = vrot.slane %v2279, 5
        %v2749 = vsel %vm1525, %v2747, %v2748
        %v2750 = vrot.slane %v2680, 5
        %v2751 = vrot.slane %v2750, 4
        %v2752 = vrot.slane %v2250, 5
        %v2753 = vsel %vm1525, %v2751, %v2752
        %v2754 = vrot.slane %v2752, 4
        %v2755 = vrot.slane %v2280, 5
        %v2756 = vsel %vm1525, %v2754, %v2755
        %v2757 = vrot.slane %v2681, 5
        %v2758 = vrot.slane %v2757, 4
        %v2759 = vrot.slane %v2252, 5
        %v2760 = vsel %vm1525, %v2758, %v2759
        %v2761 = vrot.slane %v2759, 4
        %v2762 = vrot.slane %v2281, 5
        %v2763 = vsel %vm1525, %v2761, %v2762
        %v2764 = vrot.slane %v2682, 5
        %v2765 = vrot.slane %v2764, 4
        %v2766 = vrot.slane %v2254, 5
        %v2767 = vsel %vm1525, %v2765, %v2766
        %v2768 = vrot.slane %v2766, 4
        %v2769 = vrot.slane %v2282, 5
        %v2770 = vsel %vm1525, %v2768, %v2769
        %v2771 = vrot.slane %v2683, 5
        %v2772 = vrot.slane %v2771, 4
        %v2773 = vrot.slane %v2256, 5
        %v2774 = vsel %vm1525, %v2772, %v2773
        %v2775 = vrot.slane %v2773, 4
        %v2776 = vrot.slane %v2283, 5
        %v2777 = vsel %vm1525, %v2775, %v2776
        %v2778 = vrot.slane %v2684, 5
        %v2779 = vrot.slane %v2778, 4
        %v2780 = vrot.slane %v2258, 5
        %v2781 = vsel %vm1525, %v2779, %v2780
        %v2782 = vrot.slane %v2780, 4
        %v2783 = vrot.slane %v2284, 5
        %v2784 = vsel %vm1525, %v2782, %v2783
        %v2785 = vrot.slane %v2685, 5
        %v2786 = vrot.slane %v2785, 4
        %v2787 = vrot.slane %v2260, 5
        %v2788 = vsel %vm1525, %v2786, %v2787
        %v2789 = vrot.slane %v2787, 4
        %v2790 = vrot.slane %v2285, 5
        %v2791 = vsel %vm1525, %v2789, %v2790
        %v2792 = vrot.slane %v2686, 5
        %v2793 = vrot.slane %v2792, 4
        %v2794 = vrot.slane %v2262, 5
        %v2795 = vsel %vm1525, %v2793, %v2794
        %v2796 = vrot.slane %v2794, 4
        %v2797 = vrot.slane %v2286, 5
        %v2798 = vsel %vm1525, %v2796, %v2797
        %v2799 = vrot.slane %v2687, 5
        %v2800 = vrot.slane %v2799, 4
        %v2801 = vrot.slane %v2264, 5
        %v2802 = vsel %vm1525, %v2800, %v2801
        %v2803 = vrot.slane %v2801, 4
        %v2804 = vrot.slane %v2287, 5
        %v2805 = vsel %vm1525, %v2803, %v2804
        %v2806 = vrot.slane %v2688, 5
        %v2807 = vrot.slane %v2806, 4
        %v2808 = vrot.slane %v2266, 5
        %v2809 = vsel %vm1525, %v2807, %v2808
        %v2810 = vrot.slane %v2808, 4
        %v2811 = vrot.slane %v2288, 5
        %v2812 = vsel %vm1525, %v2810, %v2811
        %v2813 = vrot.slane %v2689, 5
        %v2814 = vrot.slane %v2813, 4
        %v2815 = vrot.slane %v2268, 5
        %v2816 = vsel %vm1525, %v2814, %v2815
        %v2817 = vrot.slane %v2815, 4
        %v2818 = vrot.slane %v2289, 5
        %v2819 = vsel %vm1525, %v2817, %v2818
        %v2820 = vrot.slane %v2690, 5
        %v2821 = vrot.slane %v2820, 4
        %v2822 = vrot.slane %v2270, 5
        %v2823 = vsel %vm1525, %v2821, %v2822
        %v2824 = vrot.slane %v2822, 4
        %v2825 = vrot.slane %v2290, 5
        %v2826 = vsel %vm1525, %v2824, %v2825
        %v2827 = vrot.slane %v2691, 5
        %v2828 = vrot.slane %v2827, 4
        %v2829 = vrot.slane %v2272, 5
        %v2830 = vsel %vm1525, %v2828, %v2829
        %v2831 = vrot.slane %v2829, 4
        %v2832 = vrot.slane %v2291, 5
        %v2833 = vsel %vm1525, %v2831, %v2832
        %v2834 = vrot.slane %v2692, 5
        %v2835 = vrot.slane %v2834, 4
        %v2836 = vrot.slane %v2274, 5
        %v2837 = vsel %vm1525, %v2835, %v2836
        %v2838 = vrot.slane %v2836, 4
        %v2839 = vrot.slane %v2292, 5
        %v2840 = vsel %vm1525, %v2838, %v2839
        %v2841 = vrot.slane %v2693, 5
        %v2842 = vrot.slane %v2841, 4
        %v2843 = vrot.slane %v2276, 5
        %v2844 = vsel %vm1525, %v2842, %v2843
        %v2845 = vrot.slane %v2843, 4
        %v2846 = vrot.slane %v2293, 5
        %v2847 = vsel %vm1525, %v2845, %v2846
        %v2848 = vrot.slane %v2694, 5
        %v2849 = vrot.slane %v2848, 4
        %v2850 = vrot.slane %v2278, 5
        %v2851 = vsel %vm1525, %v2849, %v2850
        %v2852 = vrot.slane %v2850, 4
        %v2853 = vrot.slane %v2294, 5
        %v2854 = vsel %vm1525, %v2852, %v2853
        %v2871 = vunpack.c.l.b16 %v1024
        %v2872 = vunpack.c.l.b16 %v1025
        %v2873 = vunpack.c.l.b16 %v1026
        %v2874 = vunpack.c.l.b16 %v1027
        %v2875 = vunpack.c.l.b16 %v1028
        %v2876 = vunpack.c.l.b16 %v1029
        %v2877 = vunpack.c.l.b16 %v1030
        %v2878 = vunpack.c.l.b16 %v1031
        %v2879 = vunpack.c.l.b16 %v1032
        %v2880 = vunpack.c.l.b16 %v1033
        %v2881 = vunpack.c.l.b16 %v1034
        %v2882 = vunpack.c.l.b16 %v1035
        %v2883 = vunpack.c.l.b16 %v1036
        %v2884 = vunpack.c.l.b16 %v1037
        %v2885 = vunpack.c.l.b16 %v1038
        %v2886 = vunpack.c.l.b16 %v1039
        %v2887 = vunpack.c.l.b16 %v1040
        %v2888 = vunpack.c.l.b16 %v1041
        %v2889 = vunpack.c.l.b16 %v1042
        %v2890 = vunpack.c.l.b16 %v1043
        %v2891 = vunpack.c.l.b16 %v1044
        %v2892 = vunpack.c.l.b16 %v1045
        %v2893 = vunpack.c.l.b16 %v1046
        %v2894 = vunpack.c.l.b16 %v1047
        %v2895 = vunpack.c.l.b16 %v1048
        %v2896 = vunpack.c.l.b16 %v1049
        %v2897 = vunpack.c.l.b16 %v1050
        %v2898 = vunpack.c.l.b16 %v1051
        %v2899 = vunpack.c.l.b16 %v1052
        %v2900 = vunpack.c.l.b16 %v1053
        %v2901 = vunpack.c.l.b16 %v1054
        %v2902 = vunpack.c.l.b16 %v1055
        %v2903 = vpack.c.b16 %v2872, %v2871
        %v2904 = vpack.c.b16 %v2874, %v2873
        %v2905 = vpack.c.b16 %v2876, %v2875
        %v2906 = vpack.c.b16 %v2878, %v2877
        %v2907 = vpack.c.b16 %v2880, %v2879
        %v2908 = vpack.c.b16 %v2882, %v2881
        %v2909 = vpack.c.b16 %v2884, %v2883
        %v2910 = vpack.c.b16 %v2886, %v2885
        %v2911 = vpack.c.b16 %v2888, %v2887
        %v2912 = vpack.c.b16 %v2890, %v2889
        %v2913 = vpack.c.b16 %v2892, %v2891
        %v2914 = vpack.c.b16 %v2894, %v2893
        %v2915 = vpack.c.b16 %v2896, %v2895
        %v2916 = vpack.c.b16 %v2898, %v2897
        %v2917 = vpack.c.b16 %v2900, %v2899
        %v2918 = vpack.c.b16 %v2902, %v2901
        %v2919 = vunpack.c.l.b16 %v1088
        %v2920 = vunpack.c.l.b16 %v1098
        %v2921 = vunpack.c.l.b16 %v1112
        %v2922 = vunpack.c.l.b16 %v1122
        %v2923 = vunpack.c.l.b16 %v1136
        %v2924 = vunpack.c.l.b16 %v1146
        %v2925 = vunpack.c.l.b16 %v1160
        %v2926 = vunpack.c.l.b16 %v1170
        %v2927 = vunpack.c.l.b16 %v1184
        %v2928 = vunpack.c.l.b16 %v1194
        %v2929 = vunpack.c.l.b16 %v1208
        %v2930 = vunpack.c.l.b16 %v1218
        %v2931 = vunpack.c.l.b16 %v1232
        %v2932 = vunpack.c.l.b16 %v1242
        %v2933 = vunpack.c.l.b16 %v1256
        %v2934 = vunpack.c.l.b16 %v1266
        %v2935 = vunpack.c.l.b16 %v1280
        %v2936 = vunpack.c.l.b16 %v1290
        %v2937 = vunpack.c.l.b16 %v1304
        %v2938 = vunpack.c.l.b16 %v1314
        %v2939 = vunpack.c.l.b16 %v1328
        %v2940 = vunpack.c.l.b16 %v1338
        %v2941 = vunpack.c.l.b16 %v1352
        %v2942 = vunpack.c.l.b16 %v1362
        %v2943 = vunpack.c.l.b16 %v1376
        %v2944 = vunpack.c.l.b16 %v1386
        %v2945 = vunpack.c.l.b16 %v1400
        %v2946 = vunpack.c.l.b16 %v1410
        %v2947 = vunpack.c.l.b16 %v1424
        %v2948 = vunpack.c.l.b16 %v1434
        %v2949 = vunpack.c.l.b16 %v1448
        %v2950 = vunpack.c.l.b16 %v1458
        %v2951 = vpack.c.b16 %v2920, %v2919
        %v2952 = vpack.c.b16 %v2922, %v2921
        %v2953 = vpack.c.b16 %v2924, %v2923
        %v2954 = vpack.c.b16 %v2926, %v2925
        %v2955 = vpack.c.b16 %v2928, %v2927
        %v2956 = vpack.c.b16 %v2930, %v2929
        %v2957 = vpack.c.b16 %v2932, %v2931
        %v2958 = vpack.c.b16 %v2934, %v2933
        %v2959 = vpack.c.b16 %v2936, %v2935
        %v2960 = vpack.c.b16 %v2938, %v2937
        %v2961 = vpack.c.b16 %v2940, %v2939
        %v2962 = vpack.c.b16 %v2942, %v2941
        %v2963 = vpack.c.b16 %v2944, %v2943
        %v2964 = vpack.c.b16 %v2946, %v2945
        %v2965 = vpack.c.b16 %v2948, %v2947
        %v2966 = vpack.c.b16 %v2950, %v2949
        %2967 = vrot.lane.b32.xlu0 %v2951, 16
        %v2968 = vpop.permute.xlu0 %2967
        %2969 = vrot.lane.b32.xlu0 %v2952, 16
        %v2970 = vpop.permute.xlu0 %2969
        %2971 = vrot.lane.b32.xlu0 %v2953, 16
        %v2972 = vpop.permute.xlu0 %2971
        %2973 = vrot.lane.b32.xlu0 %v2954, 16
        %v2974 = vpop.permute.xlu0 %2973
        %2975 = vrot.lane.b32.xlu0 %v2955, 16
        %v2976 = vpop.permute.xlu0 %2975
        %2977 = vrot.lane.b32.xlu0 %v2956, 16
        %v2978 = vpop.permute.xlu0 %2977
        %2979 = vrot.lane.b32.xlu0 %v2957, 16
        %v2980 = vpop.permute.xlu0 %2979
        %2981 = vrot.lane.b32.xlu0 %v2958, 16
        %v2982 = vpop.permute.xlu0 %2981
        %2983 = vrot.lane.b32.xlu0 %v2959, 16
        %v2984 = vpop.permute.xlu0 %2983
        %2985 = vrot.lane.b32.xlu0 %v2960, 16
        %v2986 = vpop.permute.xlu0 %2985
        %2987 = vrot.lane.b32.xlu0 %v2961, 16
        %v2988 = vpop.permute.xlu0 %2987
        %2989 = vrot.lane.b32.xlu0 %v2962, 16
        %v2990 = vpop.permute.xlu0 %2989
        %2991 = vrot.lane.b32.xlu0 %v2963, 16
        %v2992 = vpop.permute.xlu0 %2991
        %2993 = vrot.lane.b32.xlu0 %v2964, 16
        %v2994 = vpop.permute.xlu0 %2993
        %2995 = vrot.lane.b32.xlu0 %v2965, 16
        %v2996 = vpop.permute.xlu0 %2995
        %2997 = vrot.lane.b32.xlu0 %v2966, 16
        %v2998 = vpop.permute.xlu0 %2997
        %v2999 = vunpack.c.l.b16 %v1529
        %v3000 = vunpack.c.l.b16 %v1532
        %v3001 = vunpack.c.l.b16 %v1536
        %v3002 = vunpack.c.l.b16 %v1539
        %v3003 = vunpack.c.l.b16 %v1543
        %v3004 = vunpack.c.l.b16 %v1546
        %v3005 = vunpack.c.l.b16 %v1550
        %v3006 = vunpack.c.l.b16 %v1553
        %v3007 = vunpack.c.l.b16 %v1557
        %v3008 = vunpack.c.l.b16 %v1560
        %v3009 = vunpack.c.l.b16 %v1564
        %v3010 = vunpack.c.l.b16 %v1567
        %v3011 = vunpack.c.l.b16 %v1571
        %v3012 = vunpack.c.l.b16 %v1574
        %v3013 = vunpack.c.l.b16 %v1578
        %v3014 = vunpack.c.l.b16 %v1581
        %v3015 = vunpack.c.l.b16 %v1585
        %v3016 = vunpack.c.l.b16 %v1588
        %v3017 = vunpack.c.l.b16 %v1592
        %v3018 = vunpack.c.l.b16 %v1595
        %v3019 = vunpack.c.l.b16 %v1599
        %v3020 = vunpack.c.l.b16 %v1602
        %v3021 = vunpack.c.l.b16 %v1606
        %v3022 = vunpack.c.l.b16 %v1609
        %v3023 = vunpack.c.l.b16 %v1613
        %v3024 = vunpack.c.l.b16 %v1616
        %v3025 = vunpack.c.l.b16 %v1620
        %v3026 = vunpack.c.l.b16 %v1623
        %v3027 = vunpack.c.l.b16 %v1627
        %v3028 = vunpack.c.l.b16 %v1630
        %v3029 = vunpack.c.l.b16 %v1634
        %v3030 = vunpack.c.l.b16 %v1637
        %v3031 = vpack.c.b16 %v3000, %v2999
        %v3032 = vpack.c.b16 %v3002, %v3001
        %v3033 = vpack.c.b16 %v3004, %v3003
        %v3034 = vpack.c.b16 %v3006, %v3005
        %v3035 = vpack.c.b16 %v3008, %v3007
        %v3036 = vpack.c.b16 %v3010, %v3009
        %v3037 = vpack.c.b16 %v3012, %v3011
        %v3038 = vpack.c.b16 %v3014, %v3013
        %v3039 = vpack.c.b16 %v3016, %v3015
        %v3040 = vpack.c.b16 %v3018, %v3017
        %v3041 = vpack.c.b16 %v3020, %v3019
        %v3042 = vpack.c.b16 %v3022, %v3021
        %v3043 = vpack.c.b16 %v3024, %v3023
        %v3044 = vpack.c.b16 %v3026, %v3025
        %v3045 = vpack.c.b16 %v3028, %v3027
        %v3046 = vpack.c.b16 %v3030, %v3029
        %3047 = vrot.lane.b32.xlu0 %v3031, 32
        %v3048 = vpop.permute.xlu0 %3047
        %3049 = vrot.lane.b32.xlu0 %v3032, 32
        %v3050 = vpop.permute.xlu0 %3049
        %3051 = vrot.lane.b32.xlu0 %v3033, 32
        %v3052 = vpop.permute.xlu0 %3051
        %3053 = vrot.lane.b32.xlu0 %v3034, 32
        %v3054 = vpop.permute.xlu0 %3053
        %3055 = vrot.lane.b32.xlu0 %v3035, 32
        %v3056 = vpop.permute.xlu0 %3055
        %3057 = vrot.lane.b32.xlu0 %v3036, 32
        %v3058 = vpop.permute.xlu0 %3057
        %3059 = vrot.lane.b32.xlu0 %v3037, 32
        %v3060 = vpop.permute.xlu0 %3059
        %3061 = vrot.lane.b32.xlu0 %v3038, 32
        %v3062 = vpop.permute.xlu0 %3061
        %3063 = vrot.lane.b32.xlu0 %v3039, 32
        %v3064 = vpop.permute.xlu0 %3063
        %3065 = vrot.lane.b32.xlu0 %v3040, 32
        %v3066 = vpop.permute.xlu0 %3065
        %3067 = vrot.lane.b32.xlu0 %v3041, 32
        %v3068 = vpop.permute.xlu0 %3067
        %3069 = vrot.lane.b32.xlu0 %v3042, 32
        %v3070 = vpop.permute.xlu0 %3069
        %3071 = vrot.lane.b32.xlu0 %v3043, 32
        %v3072 = vpop.permute.xlu0 %3071
        %3073 = vrot.lane.b32.xlu0 %v3044, 32
        %v3074 = vpop.permute.xlu0 %3073
        %3075 = vrot.lane.b32.xlu0 %v3045, 32
        %v3076 = vpop.permute.xlu0 %3075
        %3077 = vrot.lane.b32.xlu0 %v3046, 32
        %v3078 = vpop.permute.xlu0 %3077
        %v3095 = vunpack.c.l.b16 %v1638
        %v3096 = vunpack.c.l.b16 %v1639
        %v3097 = vunpack.c.l.b16 %v1640
        %v3098 = vunpack.c.l.b16 %v1641
        %v3099 = vunpack.c.l.b16 %v1642
        %v3100 = vunpack.c.l.b16 %v1643
        %v3101 = vunpack.c.l.b16 %v1644
        %v3102 = vunpack.c.l.b16 %v1645
        %v3103 = vunpack.c.l.b16 %v1646
        %v3104 = vunpack.c.l.b16 %v1647
        %v3105 = vunpack.c.l.b16 %v1648
        %v3106 = vunpack.c.l.b16 %v1649
        %v3107 = vunpack.c.l.b16 %v1650
        %v3108 = vunpack.c.l.b16 %v1651
        %v3109 = vunpack.c.l.b16 %v1652
        %v3110 = vunpack.c.l.b16 %v1653
        %v3111 = vunpack.c.l.b16 %v1654
        %v3112 = vunpack.c.l.b16 %v1655
        %v3113 = vunpack.c.l.b16 %v1656
        %v3114 = vunpack.c.l.b16 %v1657
        %v3115 = vunpack.c.l.b16 %v1658
        %v3116 = vunpack.c.l.b16 %v1659
        %v3117 = vunpack.c.l.b16 %v1660
        %v3118 = vunpack.c.l.b16 %v1661
        %v3119 = vunpack.c.l.b16 %v1662
        %v3120 = vunpack.c.l.b16 %v1663
        %v3121 = vunpack.c.l.b16 %v1664
        %v3122 = vunpack.c.l.b16 %v1665
        %v3123 = vunpack.c.l.b16 %v1666
        %v3124 = vunpack.c.l.b16 %v1667
        %v3125 = vunpack.c.l.b16 %v1668
        %v3126 = vunpack.c.l.b16 %v1669
        %v3127 = vpack.c.b16 %v3096, %v3095
        %v3128 = vpack.c.b16 %v3098, %v3097
        %v3129 = vpack.c.b16 %v3100, %v3099
        %v3130 = vpack.c.b16 %v3102, %v3101
        %v3131 = vpack.c.b16 %v3104, %v3103
        %v3132 = vpack.c.b16 %v3106, %v3105
        %v3133 = vpack.c.b16 %v3108, %v3107
        %v3134 = vpack.c.b16 %v3110, %v3109
        %v3135 = vpack.c.b16 %v3112, %v3111
        %v3136 = vpack.c.b16 %v3114, %v3113
        %v3137 = vpack.c.b16 %v3116, %v3115
        %v3138 = vpack.c.b16 %v3118, %v3117
        %v3139 = vpack.c.b16 %v3120, %v3119
        %v3140 = vpack.c.b16 %v3122, %v3121
        %v3141 = vpack.c.b16 %v3124, %v3123
        %v3142 = vpack.c.b16 %v3126, %v3125
        %3143 = vrot.lane.b32.xlu0 %v3127, 48
        %v3144 = vpop.permute.xlu0 %3143
        %3145 = vrot.lane.b32.xlu0 %v3128, 48
        %v3146 = vpop.permute.xlu0 %3145
        %3147 = vrot.lane.b32.xlu0 %v3129, 48
        %v3148 = vpop.permute.xlu0 %3147
        %3149 = vrot.lane.b32.xlu0 %v3130, 48
        %v3150 = vpop.permute.xlu0 %3149
        %3151 = vrot.lane.b32.xlu0 %v3131, 48
        %v3152 = vpop.permute.xlu0 %3151
        %3153 = vrot.lane.b32.xlu0 %v3132, 48
        %v3154 = vpop.permute.xlu0 %3153
        %3155 = vrot.lane.b32.xlu0 %v3133, 48
        %v3156 = vpop.permute.xlu0 %3155
        %3157 = vrot.lane.b32.xlu0 %v3134, 48
        %v3158 = vpop.permute.xlu0 %3157
        %3159 = vrot.lane.b32.xlu0 %v3135, 48
        %v3160 = vpop.permute.xlu0 %3159
        %3161 = vrot.lane.b32.xlu0 %v3136, 48
        %v3162 = vpop.permute.xlu0 %3161
        %3163 = vrot.lane.b32.xlu0 %v3137, 48
        %v3164 = vpop.permute.xlu0 %3163
        %3165 = vrot.lane.b32.xlu0 %v3138, 48
        %v3166 = vpop.permute.xlu0 %3165
        %3167 = vrot.lane.b32.xlu0 %v3139, 48
        %v3168 = vpop.permute.xlu0 %3167
        %3169 = vrot.lane.b32.xlu0 %v3140, 48
        %v3170 = vpop.permute.xlu0 %3169
        %3171 = vrot.lane.b32.xlu0 %v3141, 48
        %v3172 = vpop.permute.xlu0 %3171
        %3173 = vrot.lane.b32.xlu0 %v3142, 48
        %v3174 = vpop.permute.xlu0 %3173
        %v3175 = vunpack.c.l.b16 %v1699
        %v3176 = vunpack.c.l.b16 %v1709
        %v3177 = vunpack.c.l.b16 %v1723
        %v3178 = vunpack.c.l.b16 %v1733
        %v3179 = vunpack.c.l.b16 %v1747
        %v3180 = vunpack.c.l.b16 %v1757
        %v3181 = vunpack.c.l.b16 %v1771
        %v3182 = vunpack.c.l.b16 %v1781
        %v3183 = vunpack.c.l.b16 %v1795
        %v3184 = vunpack.c.l.b16 %v1805
        %v3185 = vunpack.c.l.b16 %v1819
        %v3186 = vunpack.c.l.b16 %v1829
        %v3187 = vunpack.c.l.b16 %v1843
        %v3188 = vunpack.c.l.b16 %v1853
        %v3189 = vunpack.c.l.b16 %v1867
        %v3190 = vunpack.c.l.b16 %v1877
        %v3191 = vunpack.c.l.b16 %v1891
        %v3192 = vunpack.c.l.b16 %v1901
        %v3193 = vunpack.c.l.b16 %v1915
        %v3194 = vunpack.c.l.b16 %v1925
        %v3195 = vunpack.c.l.b16 %v1939
        %v3196 = vunpack.c.l.b16 %v1949
        %v3197 = vunpack.c.l.b16 %v1963
        %v3198 = vunpack.c.l.b16 %v1973
        %v3199 = vunpack.c.l.b16 %v1987
        %v3200 = vunpack.c.l.b16 %v1997
        %v3201 = vunpack.c.l.b16 %v2011
        %v3202 = vunpack.c.l.b16 %v2021
        %v3203 = vunpack.c.l.b16 %v2035
        %v3204 = vunpack.c.l.b16 %v2045
        %v3205 = vunpack.c.l.b16 %v2059
        %v3206 = vunpack.c.l.b16 %v2069
        %v3207 = vpack.c.b16 %v3176, %v3175
        %v3208 = vpack.c.b16 %v3178, %v3177
        %v3209 = vpack.c.b16 %v3180, %v3179
        %v3210 = vpack.c.b16 %v3182, %v3181
        %v3211 = vpack.c.b16 %v3184, %v3183
        %v3212 = vpack.c.b16 %v3186, %v3185
        %v3213 = vpack.c.b16 %v3188, %v3187
        %v3214 = vpack.c.b16 %v3190, %v3189
        %v3215 = vpack.c.b16 %v3192, %v3191
        %v3216 = vpack.c.b16 %v3194, %v3193
        %v3217 = vpack.c.b16 %v3196, %v3195
        %v3218 = vpack.c.b16 %v3198, %v3197
        %v3219 = vpack.c.b16 %v3200, %v3199
        %v3220 = vpack.c.b16 %v3202, %v3201
        %v3221 = vpack.c.b16 %v3204, %v3203
        %v3222 = vpack.c.b16 %v3206, %v3205
        %3223 = vrot.lane.b32.xlu0 %v3207, 64
        %v3224 = vpop.permute.xlu0 %3223
        %3225 = vrot.lane.b32.xlu0 %v3208, 64
        %v3226 = vpop.permute.xlu0 %3225
        %3227 = vrot.lane.b32.xlu0 %v3209, 64
        %v3228 = vpop.permute.xlu0 %3227
        %3229 = vrot.lane.b32.xlu0 %v3210, 64
        %v3230 = vpop.permute.xlu0 %3229
        %3231 = vrot.lane.b32.xlu0 %v3211, 64
        %v3232 = vpop.permute.xlu0 %3231
        %3233 = vrot.lane.b32.xlu0 %v3212, 64
        %v3234 = vpop.permute.xlu0 %3233
        %3235 = vrot.lane.b32.xlu0 %v3213, 64
        %v3236 = vpop.permute.xlu0 %3235
        %3237 = vrot.lane.b32.xlu0 %v3214, 64
        %v3238 = vpop.permute.xlu0 %3237
        %3239 = vrot.lane.b32.xlu0 %v3215, 64
        %v3240 = vpop.permute.xlu0 %3239
        %3241 = vrot.lane.b32.xlu0 %v3216, 64
        %v3242 = vpop.permute.xlu0 %3241
        %3243 = vrot.lane.b32.xlu0 %v3217, 64
        %v3244 = vpop.permute.xlu0 %3243
        %3245 = vrot.lane.b32.xlu0 %v3218, 64
        %v3246 = vpop.permute.xlu0 %3245
        %3247 = vrot.lane.b32.xlu0 %v3219, 64
        %v3248 = vpop.permute.xlu0 %3247
        %3249 = vrot.lane.b32.xlu0 %v3220, 64
        %v3250 = vpop.permute.xlu0 %3249
        %3251 = vrot.lane.b32.xlu0 %v3221, 64
        %v3252 = vpop.permute.xlu0 %3251
        %3253 = vrot.lane.b32.xlu0 %v3222, 64
        %v3254 = vpop.permute.xlu0 %3253
        %v3255 = vunpack.c.l.b16 %v2137
        %v3256 = vunpack.c.l.b16 %v2140
        %v3257 = vunpack.c.l.b16 %v2144
        %v3258 = vunpack.c.l.b16 %v2147
        %v3259 = vunpack.c.l.b16 %v2151
        %v3260 = vunpack.c.l.b16 %v2154
        %v3261 = vunpack.c.l.b16 %v2158
        %v3262 = vunpack.c.l.b16 %v2161
        %v3263 = vunpack.c.l.b16 %v2165
        %v3264 = vunpack.c.l.b16 %v2168
        %v3265 = vunpack.c.l.b16 %v2172
        %v3266 = vunpack.c.l.b16 %v2175
        %v3267 = vunpack.c.l.b16 %v2179
        %v3268 = vunpack.c.l.b16 %v2182
        %v3269 = vunpack.c.l.b16 %v2186
        %v3270 = vunpack.c.l.b16 %v2189
        %v3271 = vunpack.c.l.b16 %v2193
        %v3272 = vunpack.c.l.b16 %v2196
        %v3273 = vunpack.c.l.b16 %v2200
        %v3274 = vunpack.c.l.b16 %v2203
        %v3275 = vunpack.c.l.b16 %v2207
        %v3276 = vunpack.c.l.b16 %v2210
        %v3277 = vunpack.c.l.b16 %v2214
        %v3278 = vunpack.c.l.b16 %v2217
        %v3279 = vunpack.c.l.b16 %v2221
        %v3280 = vunpack.c.l.b16 %v2224
        %v3281 = vunpack.c.l.b16 %v2228
        %v3282 = vunpack.c.l.b16 %v2231
        %v3283 = vunpack.c.l.b16 %v2235
        %v3284 = vunpack.c.l.b16 %v2238
        %v3285 = vunpack.c.l.b16 %v2242
        %v3286 = vunpack.c.l.b16 %v2245
        %v3287 = vpack.c.b16 %v3256, %v3255
        %v3288 = vpack.c.b16 %v3258, %v3257
        %v3289 = vpack.c.b16 %v3260, %v3259
        %v3290 = vpack.c.b16 %v3262, %v3261
        %v3291 = vpack.c.b16 %v3264, %v3263
        %v3292 = vpack.c.b16 %v3266, %v3265
        %v3293 = vpack.c.b16 %v3268, %v3267
        %v3294 = vpack.c.b16 %v3270, %v3269
        %v3295 = vpack.c.b16 %v3272, %v3271
        %v3296 = vpack.c.b16 %v3274, %v3273
        %v3297 = vpack.c.b16 %v3276, %v3275
        %v3298 = vpack.c.b16 %v3278, %v3277
        %v3299 = vpack.c.b16 %v3280, %v3279
        %v3300 = vpack.c.b16 %v3282, %v3281
        %v3301 = vpack.c.b16 %v3284, %v3283
        %v3302 = vpack.c.b16 %v3286, %v3285
        %3303 = vrot.lane.b32.xlu0 %v3287, 80
        %v3304 = vpop.permute.xlu0 %3303
        %3305 = vrot.lane.b32.xlu0 %v3288, 80
        %v3306 = vpop.permute.xlu0 %3305
        %3307 = vrot.lane.b32.xlu0 %v3289, 80
        %v3308 = vpop.permute.xlu0 %3307
        %3309 = vrot.lane.b32.xlu0 %v3290, 80
        %v3310 = vpop.permute.xlu0 %3309
        %3311 = vrot.lane.b32.xlu0 %v3291, 80
        %v3312 = vpop.permute.xlu0 %3311
        %3313 = vrot.lane.b32.xlu0 %v3292, 80
        %v3314 = vpop.permute.xlu0 %3313
        %3315 = vrot.lane.b32.xlu0 %v3293, 80
        %v3316 = vpop.permute.xlu0 %3315
        %3317 = vrot.lane.b32.xlu0 %v3294, 80
        %v3318 = vpop.permute.xlu0 %3317
        %3319 = vrot.lane.b32.xlu0 %v3295, 80
        %v3320 = vpop.permute.xlu0 %3319
        %3321 = vrot.lane.b32.xlu0 %v3296, 80
        %v3322 = vpop.permute.xlu0 %3321
        %3323 = vrot.lane.b32.xlu0 %v3297, 80
        %v3324 = vpop.permute.xlu0 %3323
        %3325 = vrot.lane.b32.xlu0 %v3298, 80
        %v3326 = vpop.permute.xlu0 %3325
        %3327 = vrot.lane.b32.xlu0 %v3299, 80
        %v3328 = vpop.permute.xlu0 %3327
        %3329 = vrot.lane.b32.xlu0 %v3300, 80
        %v3330 = vpop.permute.xlu0 %3329
        %3331 = vrot.lane.b32.xlu0 %v3301, 80
        %v3332 = vpop.permute.xlu0 %3331
        %3333 = vrot.lane.b32.xlu0 %v3302, 80
        %v3334 = vpop.permute.xlu0 %3333
        %v3351 = vunpack.c.l.b16 %v2247
        %v3352 = vunpack.c.l.b16 %v2248
        %v3353 = vunpack.c.l.b16 %v2249
        %v3354 = vunpack.c.l.b16 %v2250
        %v3355 = vunpack.c.l.b16 %v2251
        %v3356 = vunpack.c.l.b16 %v2252
        %v3357 = vunpack.c.l.b16 %v2253
        %v3358 = vunpack.c.l.b16 %v2254
        %v3359 = vunpack.c.l.b16 %v2255
        %v3360 = vunpack.c.l.b16 %v2256
        %v3361 = vunpack.c.l.b16 %v2257
        %v3362 = vunpack.c.l.b16 %v2258
        %v3363 = vunpack.c.l.b16 %v2259
        %v3364 = vunpack.c.l.b16 %v2260
        %v3365 = vunpack.c.l.b16 %v2261
        %v3366 = vunpack.c.l.b16 %v2262
        %v3367 = vunpack.c.l.b16 %v2263
        %v3368 = vunpack.c.l.b16 %v2264
        %v3369 = vunpack.c.l.b16 %v2265
        %v3370 = vunpack.c.l.b16 %v2266
        %v3371 = vunpack.c.l.b16 %v2267
        %v3372 = vunpack.c.l.b16 %v2268
        %v3373 = vunpack.c.l.b16 %v2269
        %v3374 = vunpack.c.l.b16 %v2270
        %v3375 = vunpack.c.l.b16 %v2271
        %v3376 = vunpack.c.l.b16 %v2272
        %v3377 = vunpack.c.l.b16 %v2273
        %v3378 = vunpack.c.l.b16 %v2274
        %v3379 = vunpack.c.l.b16 %v2275
        %v3380 = vunpack.c.l.b16 %v2276
        %v3381 = vunpack.c.l.b16 %v2277
        %v3382 = vunpack.c.l.b16 %v2278
        %v3383 = vpack.c.b16 %v3352, %v3351
        %v3384 = vpack.c.b16 %v3354, %v3353
        %v3385 = vpack.c.b16 %v3356, %v3355
        %v3386 = vpack.c.b16 %v3358, %v3357
        %v3387 = vpack.c.b16 %v3360, %v3359
        %v3388 = vpack.c.b16 %v3362, %v3361
        %v3389 = vpack.c.b16 %v3364, %v3363
        %v3390 = vpack.c.b16 %v3366, %v3365
        %v3391 = vpack.c.b16 %v3368, %v3367
        %v3392 = vpack.c.b16 %v3370, %v3369
        %v3393 = vpack.c.b16 %v3372, %v3371
        %v3394 = vpack.c.b16 %v3374, %v3373
        %v3395 = vpack.c.b16 %v3376, %v3375
        %v3396 = vpack.c.b16 %v3378, %v3377
        %v3397 = vpack.c.b16 %v3380, %v3379
        %v3398 = vpack.c.b16 %v3382, %v3381
        %3399 = vrot.lane.b32.xlu0 %v3383, 96
        %v3400 = vpop.permute.xlu0 %3399
        %3401 = vrot.lane.b32.xlu0 %v3384, 96
        %v3402 = vpop.permute.xlu0 %3401
        %3403 = vrot.lane.b32.xlu0 %v3385, 96
        %v3404 = vpop.permute.xlu0 %3403
        %3405 = vrot.lane.b32.xlu0 %v3386, 96
        %v3406 = vpop.permute.xlu0 %3405
        %3407 = vrot.lane.b32.xlu0 %v3387, 96
        %v3408 = vpop.permute.xlu0 %3407
        %3409 = vrot.lane.b32.xlu0 %v3388, 96
        %v3410 = vpop.permute.xlu0 %3409
        %3411 = vrot.lane.b32.xlu0 %v3389, 96
        %v3412 = vpop.permute.xlu0 %3411
        %3413 = vrot.lane.b32.xlu0 %v3390, 96
        %v3414 = vpop.permute.xlu0 %3413
        %3415 = vrot.lane.b32.xlu0 %v3391, 96
        %v3416 = vpop.permute.xlu0 %3415
        %3417 = vrot.lane.b32.xlu0 %v3392, 96
        %v3418 = vpop.permute.xlu0 %3417
        %3419 = vrot.lane.b32.xlu0 %v3393, 96
        %v3420 = vpop.permute.xlu0 %3419
        %3421 = vrot.lane.b32.xlu0 %v3394, 96
        %v3422 = vpop.permute.xlu0 %3421
        %3423 = vrot.lane.b32.xlu0 %v3395, 96
        %v3424 = vpop.permute.xlu0 %3423
        %3425 = vrot.lane.b32.xlu0 %v3396, 96
        %v3426 = vpop.permute.xlu0 %3425
        %3427 = vrot.lane.b32.xlu0 %v3397, 96
        %v3428 = vpop.permute.xlu0 %3427
        %3429 = vrot.lane.b32.xlu0 %v3398, 96
        %v3430 = vpop.permute.xlu0 %3429
        %v3431 = vunpack.c.l.b16 %v2308
        %v3432 = vunpack.c.l.b16 %v2318
        %v3433 = vunpack.c.l.b16 %v2332
        %v3434 = vunpack.c.l.b16 %v2342
        %v3435 = vunpack.c.l.b16 %v2356
        %v3436 = vunpack.c.l.b16 %v2366
        %v3437 = vunpack.c.l.b16 %v2380
        %v3438 = vunpack.c.l.b16 %v2390
        %v3439 = vunpack.c.l.b16 %v2404
        %v3440 = vunpack.c.l.b16 %v2414
        %v3441 = vunpack.c.l.b16 %v2428
        %v3442 = vunpack.c.l.b16 %v2438
        %v3443 = vunpack.c.l.b16 %v2452
        %v3444 = vunpack.c.l.b16 %v2462
        %v3445 = vunpack.c.l.b16 %v2476
        %v3446 = vunpack.c.l.b16 %v2486
        %v3447 = vunpack.c.l.b16 %v2500
        %v3448 = vunpack.c.l.b16 %v2510
        %v3449 = vunpack.c.l.b16 %v2524
        %v3450 = vunpack.c.l.b16 %v2534
        %v3451 = vunpack.c.l.b16 %v2548
        %v3452 = vunpack.c.l.b16 %v2558
        %v3453 = vunpack.c.l.b16 %v2572
        %v3454 = vunpack.c.l.b16 %v2582
        %v3455 = vunpack.c.l.b16 %v2596
        %v3456 = vunpack.c.l.b16 %v2606
        %v3457 = vunpack.c.l.b16 %v2620
        %v3458 = vunpack.c.l.b16 %v2630
        %v3459 = vunpack.c.l.b16 %v2644
        %v3460 = vunpack.c.l.b16 %v2654
        %v3461 = vunpack.c.l.b16 %v2668
        %v3462 = vunpack.c.l.b16 %v2678
        %v3463 = vpack.c.b16 %v3432, %v3431
        %v3464 = vpack.c.b16 %v3434, %v3433
        %v3465 = vpack.c.b16 %v3436, %v3435
        %v3466 = vpack.c.b16 %v3438, %v3437
        %v3467 = vpack.c.b16 %v3440, %v3439
        %v3468 = vpack.c.b16 %v3442, %v3441
        %v3469 = vpack.c.b16 %v3444, %v3443
        %v3470 = vpack.c.b16 %v3446, %v3445
        %v3471 = vpack.c.b16 %v3448, %v3447
        %v3472 = vpack.c.b16 %v3450, %v3449
        %v3473 = vpack.c.b16 %v3452, %v3451
        %v3474 = vpack.c.b16 %v3454, %v3453
        %v3475 = vpack.c.b16 %v3456, %v3455
        %v3476 = vpack.c.b16 %v3458, %v3457
        %v3477 = vpack.c.b16 %v3460, %v3459
        %v3478 = vpack.c.b16 %v3462, %v3461
        %3479 = vrot.lane.b32.xlu0 %v3463, 112
        %v3480 = vpop.permute.xlu0 %3479
        %3481 = vrot.lane.b32.xlu0 %v3464, 112
        %v3482 = vpop.permute.xlu0 %3481
        %3483 = vrot.lane.b32.xlu0 %v3465, 112
        %v3484 = vpop.permute.xlu0 %3483
        %3485 = vrot.lane.b32.xlu0 %v3466, 112
        %v3486 = vpop.permute.xlu0 %3485
        %3487 = vrot.lane.b32.xlu0 %v3467, 112
        %v3488 = vpop.permute.xlu0 %3487
        %3489 = vrot.lane.b32.xlu0 %v3468, 112
        %v3490 = vpop.permute.xlu0 %3489
        %3491 = vrot.lane.b32.xlu0 %v3469, 112
        %v3492 = vpop.permute.xlu0 %3491
        %3493 = vrot.lane.b32.xlu0 %v3470, 112
        %v3494 = vpop.permute.xlu0 %3493
        %3495 = vrot.lane.b32.xlu0 %v3471, 112
        %v3496 = vpop.permute.xlu0 %3495
        %3497 = vrot.lane.b32.xlu0 %v3472, 112
        %v3498 = vpop.permute.xlu0 %3497
        %3499 = vrot.lane.b32.xlu0 %v3473, 112
        %v3500 = vpop.permute.xlu0 %3499
        %3501 = vrot.lane.b32.xlu0 %v3474, 112
        %v3502 = vpop.permute.xlu0 %3501
        %3503 = vrot.lane.b32.xlu0 %v3475, 112
        %v3504 = vpop.permute.xlu0 %3503
        %3505 = vrot.lane.b32.xlu0 %v3476, 112
        %v3506 = vpop.permute.xlu0 %3505
        %3507 = vrot.lane.b32.xlu0 %v3477, 112
        %v3508 = vpop.permute.xlu0 %3507
        %3509 = vrot.lane.b32.xlu0 %v3478, 112
        %v3510 = vpop.permute.xlu0 %3509
        %v3511 = vunpack.c.l.b16 %v2746
        %v3512 = vunpack.c.l.b16 %v2749
        %v3513 = vunpack.c.l.b16 %v2753
        %v3514 = vunpack.c.l.b16 %v2756
        %v3515 = vunpack.c.l.b16 %v2760
        %v3516 = vunpack.c.l.b16 %v2763
        %v3517 = vunpack.c.l.b16 %v2767
        %v3518 = vunpack.c.l.b16 %v2770
        %v3519 = vunpack.c.l.b16 %v2774
        %v3520 = vunpack.c.l.b16 %v2777
        %v3521 = vunpack.c.l.b16 %v2781
        %v3522 = vunpack.c.l.b16 %v2784
        %v3523 = vunpack.c.l.b16 %v2788
        %v3524 = vunpack.c.l.b16 %v2791
        %v3525 = vunpack.c.l.b16 %v2795
        %v3526 = vunpack.c.l.b16 %v2798
        %v3527 = vunpack.c.l.b16 %v2802
        %v3528 = vunpack.c.l.b16 %v2805
        %v3529 = vunpack.c.l.b16 %v2809
        %v3530 = vunpack.c.l.b16 %v2812
        %v3531 = vunpack.c.l.b16 %v2816
        %v3532 = vunpack.c.l.b16 %v2819
        %v3533 = vunpack.c.l.b16 %v2823
        %v3534 = vunpack.c.l.b16 %v2826
        %v3535 = vunpack.c.l.b16 %v2830
        %v3536 = vunpack.c.l.b16 %v2833
        %v3537 = vunpack.c.l.b16 %v2837
        %v3538 = vunpack.c.l.b16 %v2840
        %v3539 = vunpack.c.l.b16 %v2844
        %v3540 = vunpack.c.l.b16 %v2847
        %v3541 = vunpack.c.l.b16 %v2851
        %v3542 = vunpack.c.l.b16 %v2854
        %v3543 = vpack.c.b16 %v3512, %v3511
        %v3544 = vpack.c.b16 %v3514, %v3513
        %v3545 = vpack.c.b16 %v3516, %v3515
        %v3546 = vpack.c.b16 %v3518, %v3517
        %v3547 = vpack.c.b16 %v3520, %v3519
        %v3548 = vpack.c.b16 %v3522, %v3521
        %v3549 = vpack.c.b16 %v3524, %v3523
        %v3550 = vpack.c.b16 %v3526, %v3525
        %v3551 = vpack.c.b16 %v3528, %v3527
        %v3552 = vpack.c.b16 %v3530, %v3529
        %v3553 = vpack.c.b16 %v3532, %v3531
        %v3554 = vpack.c.b16 %v3534, %v3533
        %v3555 = vpack.c.b16 %v3536, %v3535
        %v3556 = vpack.c.b16 %v3538, %v3537
        %v3557 = vpack.c.b16 %v3540, %v3539
        %v3558 = vpack.c.b16 %v3542, %v3541
        %vm3559 = vcmask 130048
        %v3562 = vsel %vm3559, %v2903, %v2968
        %v3565 = vsel %vm3559, %v2904, %v2970
        %v3568 = vsel %vm3559, %v2905, %v2972
        %v3571 = vsel %vm3559, %v2906, %v2974
        %v3574 = vsel %vm3559, %v2907, %v2976
        %v3577 = vsel %vm3559, %v2908, %v2978
        %v3580 = vsel %vm3559, %v2909, %v2980
        %v3583 = vsel %vm3559, %v2910, %v2982
        %v3586 = vsel %vm3559, %v2911, %v2984
        %v3589 = vsel %vm3559, %v2912, %v2986
        %v3592 = vsel %vm3559, %v2913, %v2988
        %v3595 = vsel %vm3559, %v2914, %v2990
        %v3598 = vsel %vm3559, %v2915, %v2992
        %v3601 = vsel %vm3559, %v2916, %v2994
        %v3604 = vsel %vm3559, %v2917, %v2996
        %v3607 = vsel %vm3559, %v2918, %v2998
        %vm3608 = vcmask 261120
        %v3610 = vsel %vm3608, %v3562, %v3048
        %v3612 = vsel %vm3608, %v3565, %v3050
        %v3614 = vsel %vm3608, %v3568, %v3052
        %v3616 = vsel %vm3608, %v3571, %v3054
        %v3618 = vsel %vm3608, %v3574, %v3056
        %v3620 = vsel %vm3608, %v3577, %v3058
        %v3622 = vsel %vm3608, %v3580, %v3060
        %v3624 = vsel %vm3608, %v3583, %v3062
        %v3626 = vsel %vm3608, %v3586, %v3064
        %v3628 = vsel %vm3608, %v3589, %v3066
        %v3630 = vsel %vm3608, %v3592, %v3068
        %v3632 = vsel %vm3608, %v3595, %v3070
        %v3634 = vsel %vm3608, %v3598, %v3072
        %v3636 = vsel %vm3608, %v3601, %v3074
        %v3638 = vsel %vm3608, %v3604, %v3076
        %v3640 = vsel %vm3608, %v3607, %v3078
        %vm3641 = vcmask 392192
        %v3643 = vsel %vm3641, %v3610, %v3144
        %v3645 = vsel %vm3641, %v3612, %v3146
        %v3647 = vsel %vm3641, %v3614, %v3148
        %v3649 = vsel %vm3641, %v3616, %v3150
        %v3651 = vsel %vm3641, %v3618, %v3152
        %v3653 = vsel %vm3641, %v3620, %v3154
        %v3655 = vsel %vm3641, %v3622, %v3156
        %v3657 = vsel %vm3641, %v3624, %v3158
        %v3659 = vsel %vm3641, %v3626, %v3160
        %v3661 = vsel %vm3641, %v3628, %v3162
        %v3663 = vsel %vm3641, %v3630, %v3164
        %v3665 = vsel %vm3641, %v3632, %v3166
        %v3667 = vsel %vm3641, %v3634, %v3168
        %v3669 = vsel %vm3641, %v3636, %v3170
        %v3671 = vsel %vm3641, %v3638, %v3172
        %v3673 = vsel %vm3641, %v3640, %v3174
        %vm3674 = vcmask 523264
        %v3676 = vsel %vm3674, %v3643, %v3224
        %v3678 = vsel %vm3674, %v3645, %v3226
        %v3680 = vsel %vm3674, %v3647, %v3228
        %v3682 = vsel %vm3674, %v3649, %v3230
        %v3684 = vsel %vm3674, %v3651, %v3232
        %v3686 = vsel %vm3674, %v3653, %v3234
        %v3688 = vsel %vm3674, %v3655, %v3236
        %v3690 = vsel %vm3674, %v3657, %v3238
        %v3692 = vsel %vm3674, %v3659, %v3240
        %v3694 = vsel %vm3674, %v3661, %v3242
        %v3696 = vsel %vm3674, %v3663, %v3244
        %v3698 = vsel %vm3674, %v3665, %v3246
        %v3700 = vsel %vm3674, %v3667, %v3248
        %v3702 = vsel %vm3674, %v3669, %v3250
        %v3704 = vsel %vm3674, %v3671, %v3252
        %v3706 = vsel %vm3674, %v3673, %v3254
        %vm3707 = vcmask 654336
        %v3709 = vsel %vm3707, %v3676, %v3304
        %v3711 = vsel %vm3707, %v3678, %v3306
        %v3713 = vsel %vm3707, %v3680, %v3308
        %v3715 = vsel %vm3707, %v3682, %v3310
        %v3717 = vsel %vm3707, %v3684, %v3312
        %v3719 = vsel %vm3707, %v3686, %v3314
        %v3721 = vsel %vm3707, %v3688, %v3316
        %v3723 = vsel %vm3707, %v3690, %v3318
        %v3725 = vsel %vm3707, %v3692, %v3320
        %v3727 = vsel %vm3707, %v3694, %v3322
        %v3729 = vsel %vm3707, %v3696, %v3324
        %v3731 = vsel %vm3707, %v3698, %v3326
        %v3733 = vsel %vm3707, %v3700, %v3328
        %v3735 = vsel %vm3707, %v3702, %v3330
        %v3737 = vsel %vm3707, %v3704, %v3332
        %v3739 = vsel %vm3707, %v3706, %v3334
        %vm3740 = vcmask 785408
        %v3742 = vsel %vm3740, %v3709, %v3400
        %v3744 = vsel %vm3740, %v3711, %v3402
        %v3746 = vsel %vm3740, %v3713, %v3404
        %v3748 = vsel %vm3740, %v3715, %v3406
        %v3750 = vsel %vm3740, %v3717, %v3408
        %v3752 = vsel %vm3740, %v3719, %v3410
        %v3754 = vsel %vm3740, %v3721, %v3412
        %v3756 = vsel %vm3740, %v3723, %v3414
        %v3758 = vsel %vm3740, %v3725, %v3416
        %v3760 = vsel %vm3740, %v3727, %v3418
        %v3762 = vsel %vm3740, %v3729, %v3420
        %v3764 = vsel %vm3740, %v3731, %v3422
        %v3766 = vsel %vm3740, %v3733, %v3424
        %v3768 = vsel %vm3740, %v3735, %v3426
        %v3770 = vsel %vm3740, %v3737, %v3428
        %v3772 = vsel %vm3740, %v3739, %v3430
        %vm3773 = vcmask 916480
        %v3775 = vsel %vm3773, %v3742, %v3480
        %v3778 = vsel %vm3773, %v3744, %v3482
        %v3781 = vsel %vm3773, %v3746, %v3484
        %v3784 = vsel %vm3773, %v3748, %v3486
        %v3787 = vsel %vm3773, %v3750, %v3488
        %v3790 = vsel %vm3773, %v3752, %v3490
        %v3793 = vsel %vm3773, %v3754, %v3492
        %v3796 = vsel %vm3773, %v3756, %v3494
        %v3799 = vsel %vm3773, %v3758, %v3496
        %v3802 = vsel %vm3773, %v3760, %v3498
        %v3805 = vsel %vm3773, %v3762, %v3500
        %v3808 = vsel %vm3773, %v3764, %v3502
        %v3811 = vsel %vm3773, %v3766, %v3504
        %v3814 = vsel %vm3773, %v3768, %v3506
        %v3817 = vsel %vm3773, %v3770, %v3508
        %v3820 = vsel %vm3773, %v3772, %v3510
        %v3822 = vld [vmem:[%s1] sm:$0xf]
        %v3823 = vld [vmem:[%s1 + $0x4] sm:$0xf]
        %v3824 = vld [vmem:[%s1 + $0x8] sm:$0xf]
        %v3825 = vld [vmem:[%s1 + $0xc] sm:$0xf]
        %v3826 = vld [vmem:[%s1 + $0x10] sm:$0xf]
        %v3827 = vld [vmem:[%s1 + $0x14] sm:$0xf]
        %v3828 = vld [vmem:[%s1 + $0x18] sm:$0xf]
        %v3829 = vld [vmem:[%s1 + $0x1c] sm:$0xf]
        %v3830 = vld [vmem:[%s1 + $0x20] sm:$0xf]
        %v3831 = vld [vmem:[%s1 + $0x24] sm:$0xf]
        %v3832 = vld [vmem:[%s1 + $0x28] sm:$0xf]
        %v3833 = vld [vmem:[%s1 + $0x2c] sm:$0xf]
        %v3834 = vld [vmem:[%s1 + $0x30] sm:$0xf]
        %v3835 = vld [vmem:[%s1 + $0x34] sm:$0xf]
        %v3836 = vld [vmem:[%s1 + $0x38] sm:$0xf]
        %v3837 = vld [vmem:[%s1 + $0x3c] sm:$0xf]
        %v3838 = vld [vmem:[%s1 + $0x40] sm:$0xf]
        %v3839 = vld [vmem:[%s1 + $0x44] sm:$0xf]
        %v3840 = vld [vmem:[%s2] sm:$0x1]
        %v3842 = vlaneseq
        %v3843 = vshrl.u32 %v3842, 7
        %v3844 = vsub.s32 0, %v3843
        %v3845 = vrot.slane %v3840, %v3844
        %v3865 = vunpack.c.l.b16 %v3822
        %v3866 = vunpack.c.l.b16 %v3823
        %v3867 = vunpack.c.l.b16 %v3824
        %v3868 = vunpack.c.l.b16 %v3825
        %v3869 = vunpack.c.l.b16 %v3826
        %v3870 = vunpack.c.l.b16 %v3827
        %v3871 = vunpack.c.l.b16 %v3828
        %v3872 = vunpack.c.l.b16 %v3829
        %v3873 = vunpack.c.l.b16 %v3830
        %v3874 = vunpack.c.l.b16 %v3831
        %v3875 = vunpack.c.l.b16 %v3832
        %v3876 = vunpack.c.l.b16 %v3833
        %v3877 = vunpack.c.l.b16 %v3834
        %v3878 = vunpack.c.l.b16 %v3835
        %v3879 = vunpack.c.l.b16 %v3836
        %v3880 = vunpack.c.l.b16 %v3837
        %v3881 = vunpack.c.l.b16 %v3838
        %v3882 = vunpack.c.l.b16 %v3839
        %v3883 = vpack.c.b16 %v3866, %v3865
        %v3884 = vpack.c.b16 %v3868, %v3867
        %v3885 = vpack.c.b16 %v3870, %v3869
        %v3886 = vpack.c.b16 %v3872, %v3871
        %v3887 = vpack.c.b16 %v3874, %v3873
        %v3888 = vpack.c.b16 %v3876, %v3875
        %v3889 = vpack.c.b16 %v3878, %v3877
        %v3890 = vpack.c.b16 %v3880, %v3879
        %v3891 = vpack.c.b16 %v3882, %v3881
        %v3902 = vsel %vm3559, %v3543, 0
        %v3905 = vsel %vm3559, %v3544, 0
        %v3908 = vsel %vm3559, %v3545, 0
        %v3911 = vsel %vm3559, %v3546, 0
        %v3914 = vsel %vm3559, %v3547, 0
        %v3917 = vsel %vm3559, %v3548, 0
        %v3920 = vsel %vm3559, %v3549, 0
        %v3923 = vsel %vm3559, %v3550, 0
        %v3926 = vsel %vm3559, %v3551, 0
        %v3929 = vsel %vm3559, %v3552, 0
        %v3932 = vsel %vm3559, %v3553, 0
        %v3935 = vsel %vm3559, %v3554, 0
        %v3938 = vsel %vm3559, %v3555, 0
        %v3941 = vsel %vm3559, %v3556, 0
        %v3944 = vsel %vm3559, %v3557, 0
        %v3947 = vsel %vm3559, %v3558, 0
        %3949 = vmatprep.subr.bf16.mxu0 0
        %3950 = vmatpush1.bf16.msra.mxu0 %v3883
        %3951 = vmatprep.subr.bf16.mxu0 0
        %3952 = vmatpush1.bf16.msra.mxu0 %v3884
        %3953 = vmatprep.subr.bf16.mxu0 0
        %3954 = vmatpush1.bf16.msra.mxu0 %v3885
        %3955 = vmatprep.subr.bf16.mxu0 0
        %3956 = vmatpush1.bf16.msra.mxu0 %v3886
        %3957 = vmatprep.subr.bf16.mxu0 0
        %3958 = vmatpush1.bf16.msra.mxu0 %v3887
        %3959 = vmatprep.subr.bf16.mxu0 0
        %3960 = vmatpush1.bf16.msra.mxu0 %v3888
        %3961 = vmatprep.subr.bf16.mxu0 0
        %3962 = vmatpush1.bf16.msra.mxu0 %v3889
        %3963 = vmatprep.subr.bf16.mxu0 0
        %3964 = vmatpush1.bf16.msra.mxu0 %v3890
        %3965 = vmatprep.subr.bf16.mxu0 0
        %3966 = vmatpush1.bf16.msra.mxu0 %v3891
        %3967 = vmatprep.subr.bf16.mxu0 0
        %3968 = vmatpush1.bf16.msra.mxu0 0
        %3969 = vmatprep.subr.bf16.mxu0 0
        %3970 = vmatpush1.bf16.msra.mxu0 0
        %3971 = vmatprep.subr.bf16.mxu0 0
        %3972 = vmatpush1.bf16.msra.mxu0 0
        %3973 = vmatprep.subr.bf16.mxu0 0
        %3974 = vmatpush1.bf16.msra.mxu0 0
        %3975 = vmatprep.subr.bf16.mxu0 0
        %3976 = vmatpush1.bf16.msra.mxu0 0
        %3977 = vmatprep.subr.bf16.mxu0 0
        %3978 = vmatpush1.bf16.msra.mxu0 0
        %3979 = vmatprep.subr.bf16.mxu0 0
        %3980 = vmatpush1.bf16.msra.mxu0 0
        %3981 = vmatprep.mubr.bf16.mxu0 %v3902
        %3982 = vmatmul.mubr.bf16.gmra.mrb[0].mxu0 %v3775
        %v3983 = vpop.f32.mrb[0].mxu0
        %v3984 = vadd.f32 %v3845, %v3983
        %v3985 = vpop.f32.mrb[0].mxu0
        %v3986 = vpop.f32.mrb[0].mxu0
        %v3987 = vadd.f32 %v3845, %v3986
        %v3988 = vpop.f32.mrb[0].mxu0
        %3989 = vmatprep.mubr.bf16.mxu0 %v3905
        %3990 = vmatmul.mubr.bf16.gmra.mrb[0].mxu0 %v3778
        %v3991 = vpop.f32.mrb[0].mxu0
        %v3992 = vadd.f32 %v3845, %v3991
        %v3993 = vpop.f32.mrb[0].mxu0
        %v3994 = vpop.f32.mrb[0].mxu0
        %v3995 = vadd.f32 %v3845, %v3994
        %v3996 = vpop.f32.mrb[0].mxu0
        %3997 = vmatprep.mubr.bf16.mxu0 %v3908
        %3998 = vmatmul.mubr.bf16.gmra.mrb[0].mxu0 %v3781
        %v3999 = vpop.f32.mrb[0].mxu0
        %v4000 = vadd.f32 %v3845, %v3999
        %v4001 = vpop.f32.mrb[0].mxu0
        %v4002 = vpop.f32.mrb[0].mxu0
        %v4003 = vadd.f32 %v3845, %v4002
        %v4004 = vpop.f32.mrb[0].mxu0
        %4005 = vmatprep.mubr.bf16.mxu0 %v3911
        %4006 = vmatmul.mubr.bf16.gmra.mrb[0].mxu0 %v3784
        %v4007 = vpop.f32.mrb[0].mxu0
        %v4008 = vadd.f32 %v3845, %v4007
        %v4009 = vpop.f32.mrb[0].mxu0
        %v4010 = vpop.f32.mrb[0].mxu0
        %v4011 = vadd.f32 %v3845, %v4010
        %v4012 = vpop.f32.mrb[0].mxu0
        %4013 = vmatprep.mubr.bf16.mxu0 %v3914
        %4014 = vmatmul.mubr.bf16.gmra.mrb[0].mxu0 %v3787
        %v4015 = vpop.f32.mrb[0].mxu0
        %v4016 = vadd.f32 %v3845, %v4015
        %v4017 = vpop.f32.mrb[0].mxu0
        %v4018 = vpop.f32.mrb[0].mxu0
        %v4019 = vadd.f32 %v3845, %v4018
        %v4020 = vpop.f32.mrb[0].mxu0
        %4021 = vmatprep.mubr.bf16.mxu0 %v3917
        %4022 = vmatmul.mubr.bf16.gmra.mrb[0].mxu0 %v3790
        %v4023 = vpop.f32.mrb[0].mxu0
        %v4024 = vadd.f32 %v3845, %v4023
        %v4025 = vpop.f32.mrb[0].mxu0
        %v4026 = vpop.f32.mrb[0].mxu0
        %v4027 = vadd.f32 %v3845, %v4026
        %v4028 = vpop.f32.mrb[0].mxu0
        %4029 = vmatprep.mubr.bf16.mxu0 %v3920
        %4030 = vmatmul.mubr.bf16.gmra.mrb[0].mxu0 %v3793
        %v4031 = vpop.f32.mrb[0].mxu0
        %v4032 = vadd.f32 %v3845, %v4031
        %v4033 = vpop.f32.mrb[0].mxu0
        %v4034 = vpop.f32.mrb[0].mxu0
        %v4035 = vadd.f32 %v3845, %v4034
        %v4036 = vpop.f32.mrb[0].mxu0
        %4037 = vmatprep.mubr.bf16.mxu0 %v3923
        %4038 = vmatmul.mubr.bf16.gmra.mrb[0].mxu0 %v3796
        %v4039 = vpop.f32.mrb[0].mxu0
        %v4040 = vadd.f32 %v3845, %v4039
        %v4041 = vpop.f32.mrb[0].mxu0
        %v4042 = vpop.f32.mrb[0].mxu0
        %v4043 = vadd.f32 %v3845, %v4042
        %v4044 = vpop.f32.mrb[0].mxu0
        %4045 = vmatprep.mubr.bf16.mxu0 %v3926
        %4046 = vmatmul.mubr.bf16.gmra.mrb[0].mxu0 %v3799
        %v4047 = vpop.f32.mrb[0].mxu0
        %v4048 = vadd.f32 %v3845, %v4047
        %v4049 = vpop.f32.mrb[0].mxu0
        %v4050 = vpop.f32.mrb[0].mxu0
        %v4051 = vadd.f32 %v3845, %v4050
        %v4052 = vpop.f32.mrb[0].mxu0
        %4053 = vmatprep.mubr.bf16.mxu0 %v3929
        %4054 = vmatmul.mubr.bf16.gmra.mrb[0].mxu0 %v3802
        %v4055 = vpop.f32.mrb[0].mxu0
        %v4056 = vadd.f32 %v3845, %v4055
        %v4057 = vpop.f32.mrb[0].mxu0
        %v4058 = vpop.f32.mrb[0].mxu0
        %v4059 = vadd.f32 %v3845, %v4058
        %v4060 = vpop.f32.mrb[0].mxu0
        %4061 = vmatprep.mubr.bf16.mxu0 %v3932
        %4062 = vmatmul.mubr.bf16.gmra.mrb[0].mxu0 %v3805
        %v4063 = vpop.f32.mrb[0].mxu0
        %v4064 = vadd.f32 %v3845, %v4063
        %v4065 = vpop.f32.mrb[0].mxu0
        %v4066 = vpop.f32.mrb[0].mxu0
        %v4067 = vadd.f32 %v3845, %v4066
        %v4068 = vpop.f32.mrb[0].mxu0
        %4069 = vmatprep.mubr.bf16.mxu0 %v3935
        %4070 = vmatmul.mubr.bf16.gmra.mrb[0].mxu0 %v3808
        %v4071 = vpop.f32.mrb[0].mxu0
        %v4072 = vadd.f32 %v3845, %v4071
        %v4073 = vpop.f32.mrb[0].mxu0
        %v4074 = vpop.f32.mrb[0].mxu0
        %v4075 = vadd.f32 %v3845, %v4074
        %v4076 = vpop.f32.mrb[0].mxu0
        %4077 = vmatprep.mubr.bf16.mxu0 %v3938
        %4078 = vmatmul.mubr.bf16.gmra.mrb[0].mxu0 %v3811
        %v4079 = vpop.f32.mrb[0].mxu0
        %v4080 = vadd.f32 %v3845, %v4079
        %v4081 = vpop.f32.mrb[0].mxu0
        %v4082 = vpop.f32.mrb[0].mxu0
        %v4083 = vadd.f32 %v3845, %v4082
        %v4084 = vpop.f32.mrb[0].mxu0
        %4085 = vmatprep.mubr.bf16.mxu0 %v3941
        %4086 = vmatmul.mubr.bf16.gmra.mrb[0].mxu0 %v3814
        %v4087 = vpop.f32.mrb[0].mxu0
        %v4088 = vadd.f32 %v3845, %v4087
        %v4089 = vpop.f32.mrb[0].mxu0
        %v4090 = vpop.f32.mrb[0].mxu0
        %v4091 = vadd.f32 %v3845, %v4090
        %v4092 = vpop.f32.mrb[0].mxu0
        %4093 = vmatprep.mubr.bf16.mxu0 %v3944
        %4094 = vmatmul.mubr.bf16.gmra.mrb[0].mxu0 %v3817
        %v4095 = vpop.f32.mrb[0].mxu0
        %v4096 = vadd.f32 %v3845, %v4095
        %v4097 = vpop.f32.mrb[0].mxu0
        %v4098 = vpop.f32.mrb[0].mxu0
        %v4099 = vadd.f32 %v3845, %v4098
        %v4100 = vpop.f32.mrb[0].mxu0
        %4101 = vmatprep.mubr.bf16.mxu0 %v3947
        %4102 = vmatmul.mubr.bf16.gmra.mrb[0].mxu0 %v3820
        %v4103 = vpop.f32.mrb[0].mxu0
        %v4104 = vadd.f32 %v3845, %v4103
        %v4105 = vpop.f32.mrb[0].mxu0
        %v4106 = vpop.f32.mrb[0].mxu0
        %v4107 = vadd.f32 %v3845, %v4106
        %v4108 = vpop.f32.mrb[0].mxu0
        %4109 = vdwg.mxu0
        %vm4110 = vcmp.ge.f32.partialorder %v3984, 0.0
        %vm4111 = vcmp.ge.f32.partialorder %v3987, 0.0
        %vm4112 = vcmp.ge.f32.partialorder %v3992, 0.0
        %vm4113 = vcmp.ge.f32.partialorder %v3995, 0.0
        %vm4114 = vcmp.ge.f32.partialorder %v4000, 0.0
        %vm4115 = vcmp.ge.f32.partialorder %v4003, 0.0
        %vm4116 = vcmp.ge.f32.partialorder %v4008, 0.0
        %vm4117 = vcmp.ge.f32.partialorder %v4011, 0.0
        %vm4118 = vcmp.ge.f32.partialorder %v4016, 0.0
        %vm4119 = vcmp.ge.f32.partialorder %v4019, 0.0
        %vm4120 = vcmp.ge.f32.partialorder %v4024, 0.0
        %vm4121 = vcmp.ge.f32.partialorder %v4027, 0.0
        %vm4122 = vcmp.ge.f32.partialorder %v4032, 0.0
        %vm4123 = vcmp.ge.f32.partialorder %v4035, 0.0
        %vm4124 = vcmp.ge.f32.partialorder %v4040, 0.0
        %vm4125 = vcmp.ge.f32.partialorder %v4043, 0.0
        %vm4126 = vcmp.ge.f32.partialorder %v4048, 0.0
        %vm4127 = vcmp.ge.f32.partialorder %v4051, 0.0
        %vm4128 = vcmp.ge.f32.partialorder %v4056, 0.0
        %vm4129 = vcmp.ge.f32.partialorder %v4059, 0.0
        %vm4130 = vcmp.ge.f32.partialorder %v4064, 0.0
        %vm4131 = vcmp.ge.f32.partialorder %v4067, 0.0
        %vm4132 = vcmp.ge.f32.partialorder %v4072, 0.0
        %vm4133 = vcmp.ge.f32.partialorder %v4075, 0.0
        %vm4134 = vcmp.ge.f32.partialorder %v4080, 0.0
        %vm4135 = vcmp.ge.f32.partialorder %v4083, 0.0
        %vm4136 = vcmp.ge.f32.partialorder %v4088, 0.0
        %vm4137 = vcmp.ge.f32.partialorder %v4091, 0.0
        %vm4138 = vcmp.ge.f32.partialorder %v4096, 0.0
        %vm4139 = vcmp.ge.f32.partialorder %v4099, 0.0
        %vm4140 = vcmp.ge.f32.partialorder %v4104, 0.0
        %vm4141 = vcmp.ge.f32.partialorder %v4107, 0.0
        %v4142 = vmul.f32 %v3984, 0.01
        %v4143 = vmul.f32 %v3987, 0.01
        %v4144 = vmul.f32 %v3992, 0.01
        %v4145 = vmul.f32 %v3995, 0.01
        %v4146 = vmul.f32 %v4000, 0.01
        %v4147 = vmul.f32 %v4003, 0.01
        %v4148 = vmul.f32 %v4008, 0.01
        %v4149 = vmul.f32 %v4011, 0.01
        %v4150 = vmul.f32 %v4016, 0.01
        %v4151 = vmul.f32 %v4019, 0.01
        %v4152 = vmul.f32 %v4024, 0.01
        %v4153 = vmul.f32 %v4027, 0.01
        %v4154 = vmul.f32 %v4032, 0.01
        %v4155 = vmul.f32 %v4035, 0.01
        %v4156 = vmul.f32 %v4040, 0.01
        %v4157 = vmul.f32 %v4043, 0.01
        %v4158 = vmul.f32 %v4048, 0.01
        %v4159 = vmul.f32 %v4051, 0.01
        %v4160 = vmul.f32 %v4056, 0.01
        %v4161 = vmul.f32 %v4059, 0.01
        %v4162 = vmul.f32 %v4064, 0.01
        %v4163 = vmul.f32 %v4067, 0.01
        %v4164 = vmul.f32 %v4072, 0.01
        %v4165 = vmul.f32 %v4075, 0.01
        %v4166 = vmul.f32 %v4080, 0.01
        %v4167 = vmul.f32 %v4083, 0.01
        %v4168 = vmul.f32 %v4088, 0.01
        %v4169 = vmul.f32 %v4091, 0.01
        %v4170 = vmul.f32 %v4096, 0.01
        %v4171 = vmul.f32 %v4099, 0.01
        %v4172 = vmul.f32 %v4104, 0.01
        %v4173 = vmul.f32 %v4107, 0.01
        %v4174 = vsel %vm4110, %v3984, %v4142
        %v4175 = vsel %vm4111, %v3987, %v4143
        %v4176 = vsel %vm4112, %v3992, %v4144
        %v4177 = vsel %vm4113, %v3995, %v4145
        %v4178 = vsel %vm4114, %v4000, %v4146
        %v4179 = vsel %vm4115, %v4003, %v4147
        %v4180 = vsel %vm4116, %v4008, %v4148
        %v4181 = vsel %vm4117, %v4011, %v4149
        %v4182 = vsel %vm4118, %v4016, %v4150
        %v4183 = vsel %vm4119, %v4019, %v4151
        %v4184 = vsel %vm4120, %v4024, %v4152
        %v4185 = vsel %vm4121, %v4027, %v4153
        %v4186 = vsel %vm4122, %v4032, %v4154
        %v4187 = vsel %vm4123, %v4035, %v4155
        %v4188 = vsel %vm4124, %v4040, %v4156
        %v4189 = vsel %vm4125, %v4043, %v4157
        %v4190 = vsel %vm4126, %v4048, %v4158
        %v4191 = vsel %vm4127, %v4051, %v4159
        %v4192 = vsel %vm4128, %v4056, %v4160
        %v4193 = vsel %vm4129, %v4059, %v4161
        %v4194 = vsel %vm4130, %v4064, %v4162
        %v4195 = vsel %vm4131, %v4067, %v4163
        %v4196 = vsel %vm4132, %v4072, %v4164
        %v4197 = vsel %vm4133, %v4075, %v4165
        %v4198 = vsel %vm4134, %v4080, %v4166
        %v4199 = vsel %vm4135, %v4083, %v4167
        %v4200 = vsel %vm4136, %v4088, %v4168
        %v4201 = vsel %vm4137, %v4091, %v4169
        %v4202 = vsel %vm4138, %v4096, %v4170
        %v4203 = vsel %vm4139, %v4099, %v4171
        %v4204 = vsel %vm4140, %v4104, %v4172
        %v4205 = vsel %vm4141, %v4107, %v4173
        %4206 = vst [vmem:[#allocation3] sm:$0xf] 0
        %4207 = vst [vmem:[#allocation3 + $0x4] sm:$0xf] 0
        %4208 = vst [vmem:[#allocation3 + $0x8] sm:$0x1] 0
        %s4209 = scalar_lea.vmem [#allocation3], 204
        %4210 = vst [vmem:[%s4209] sm:$0xf] 0
        %4211 = vst [vmem:[%s4209 + $0x4] sm:$0xf] 0
        %4212 = vst [vmem:[%s4209 + $0x8] sm:$0x1] 0
        %vm4213 = vcmask 1040384
        %vm4214 = vmand %vm4213, %vm249
        %v4215 = vld [vmem:[#allocation3] sm:$0x1]
        %v4216 = vsel %vm4214, 0, %v4215
        %4217 = vst [vmem:[#allocation3] sm:$0x1] %v4216
        %v4218 = vld [vmem:[#allocation3 + $0xc] sm:$0x1]
        %v4219 = vsel %vm4214, 0, %v4218
        %4220 = vst [vmem:[#allocation3 + $0xc] sm:$0x1] %v4219
        %v4221 = vld [vmem:[#allocation3 + $0x18] sm:$0x1]
        %v4222 = vsel %vm4214, 0, %v4221
        %4223 = vst [vmem:[#allocation3 + $0x18] sm:$0x1] %v4222
        %v4224 = vld [vmem:[#allocation3 + $0x24] sm:$0x1]
        %v4225 = vsel %vm4214, 0, %v4224
        %4226 = vst [vmem:[#allocation3 + $0x24] sm:$0x1] %v4225
        %v4227 = vld [vmem:[#allocation3 + $0x30] sm:$0x1]
        %v4228 = vsel %vm4214, 0, %v4227
        %4229 = vst [vmem:[#allocation3 + $0x30] sm:$0x1] %v4228
        %v4230 = vld [vmem:[#allocation3 + $0x3c] sm:$0x1]
        %v4231 = vsel %vm4214, 0, %v4230
        %4232 = vst [vmem:[#allocation3 + $0x3c] sm:$0x1] %v4231
        %v4233 = vld [vmem:[#allocation3 + $0x48] sm:$0x1]
        %v4234 = vsel %vm4214, 0, %v4233
        %4235 = vst [vmem:[#allocation3 + $0x48] sm:$0x1] %v4234
        %v4236 = vld [vmem:[#allocation3 + $0x54] sm:$0x1]
        %v4237 = vsel %vm4214, 0, %v4236
        %4238 = vst [vmem:[#allocation3 + $0x54] sm:$0x1] %v4237
        %v4239 = vld [vmem:[#allocation3 + $0x60] sm:$0x1]
        %v4240 = vsel %vm4214, 0, %v4239
        %4241 = vst [vmem:[#allocation3 + $0x60] sm:$0x1] %v4240
        %v4242 = vld [vmem:[#allocation3 + $0x6c] sm:$0x1]
        %v4243 = vsel %vm4214, 0, %v4242
        %4244 = vst [vmem:[#allocation3 + $0x6c] sm:$0x1] %v4243
        %v4245 = vld [vmem:[#allocation3 + $0x78] sm:$0x1]
        %v4246 = vsel %vm4214, 0, %v4245
        %4247 = vst [vmem:[#allocation3 + $0x78] sm:$0x1] %v4246
        %v4248 = vld [vmem:[#allocation3 + $0x84] sm:$0x1]
        %v4249 = vsel %vm4214, 0, %v4248
        %4250 = vst [vmem:[#allocation3 + $0x84] sm:$0x1] %v4249
        %v4251 = vld [vmem:[#allocation3 + $0x90] sm:$0x1]
        %v4252 = vsel %vm4214, 0, %v4251
        %4253 = vst [vmem:[#allocation3 + $0x90] sm:$0x1] %v4252
        %v4254 = vld [vmem:[#allocation3 + $0x9c] sm:$0x1]
        %v4255 = vsel %vm4214, 0, %v4254
        %4256 = vst [vmem:[#allocation3 + $0x9c] sm:$0x1] %v4255
        %v4257 = vld [vmem:[#allocation3 + $0xa8] sm:$0x1]
        %v4258 = vsel %vm4214, 0, %v4257
        %4259 = vst [vmem:[#allocation3 + $0xa8] sm:$0x1] %v4258
        %v4260 = vld [vmem:[#allocation3 + $0xb4] sm:$0x1]
        %v4261 = vsel %vm4214, 0, %v4260
        %4262 = vst [vmem:[#allocation3 + $0xb4] sm:$0x1] %v4261
        %v4263 = vld [vmem:[#allocation3 + $0xc0] sm:$0x1]
        %v4264 = vsel %vm4214, 0, %v4263
        %4265 = vst [vmem:[#allocation3 + $0xc0] sm:$0x1] %v4264
        %v4266 = vld [vmem:[#allocation3 + $0xcc] sm:$0x1]
        %v4267 = vsel %vm4214, 0, %v4266
        %4268 = vst [vmem:[#allocation3 + $0xcc] sm:$0x1] %v4267
        %vm4269 = vmand %vm4213, %vm305
        %v4270 = vld [vmem:[#allocation3 + $0x8] sm:$0x1]
        %v4271 = vsel %vm4269, 0, %v4270
        %4272 = vst [vmem:[#allocation3 + $0x8] sm:$0x1] %v4271
        %v4273 = vld [vmem:[#allocation3 + $0x14] sm:$0x1]
        %v4274 = vsel %vm4269, 0, %v4273
        %4275 = vst [vmem:[#allocation3 + $0x14] sm:$0x1] %v4274
        %v4276 = vld [vmem:[#allocation3 + $0x20] sm:$0x1]
        %v4277 = vsel %vm4269, 0, %v4276
        %4278 = vst [vmem:[#allocation3 + $0x20] sm:$0x1] %v4277
        %v4279 = vld [vmem:[#allocation3 + $0x2c] sm:$0x1]
        %v4280 = vsel %vm4269, 0, %v4279
        %4281 = vst [vmem:[#allocation3 + $0x2c] sm:$0x1] %v4280
        %v4282 = vld [vmem:[#allocation3 + $0x38] sm:$0x1]
        %v4283 = vsel %vm4269, 0, %v4282
        %4284 = vst [vmem:[#allocation3 + $0x38] sm:$0x1] %v4283
        %v4285 = vld [vmem:[#allocation3 + $0x44] sm:$0x1]
        %v4286 = vsel %vm4269, 0, %v4285
        %4287 = vst [vmem:[#allocation3 + $0x44] sm:$0x1] %v4286
        %v4288 = vld [vmem:[#allocation3 + $0x50] sm:$0x1]
        %v4289 = vsel %vm4269, 0, %v4288
        %4290 = vst [vmem:[#allocation3 + $0x50] sm:$0x1] %v4289
        %v4291 = vld [vmem:[#allocation3 + $0x5c] sm:$0x1]
        %v4292 = vsel %vm4269, 0, %v4291
        %4293 = vst [vmem:[#allocation3 + $0x5c] sm:$0x1] %v4292
        %v4294 = vld [vmem:[#allocation3 + $0x68] sm:$0x1]
        %v4295 = vsel %vm4269, 0, %v4294
        %4296 = vst [vmem:[#allocation3 + $0x68] sm:$0x1] %v4295
        %v4297 = vld [vmem:[#allocation3 + $0x74] sm:$0x1]
        %v4298 = vsel %vm4269, 0, %v4297
        %4299 = vst [vmem:[#allocation3 + $0x74] sm:$0x1] %v4298
        %v4300 = vld [vmem:[#allocation3 + $0x80] sm:$0x1]
        %v4301 = vsel %vm4269, 0, %v4300
        %4302 = vst [vmem:[#allocation3 + $0x80] sm:$0x1] %v4301
        %v4303 = vld [vmem:[#allocation3 + $0x8c] sm:$0x1]
        %v4304 = vsel %vm4269, 0, %v4303
        %4305 = vst [vmem:[#allocation3 + $0x8c] sm:$0x1] %v4304
        %v4306 = vld [vmem:[#allocation3 + $0x98] sm:$0x1]
        %v4307 = vsel %vm4269, 0, %v4306
        %4308 = vst [vmem:[#allocation3 + $0x98] sm:$0x1] %v4307
        %v4309 = vld [vmem:[#allocation3 + $0xa4] sm:$0x1]
        %v4310 = vsel %vm4269, 0, %v4309
        %4311 = vst [vmem:[#allocation3 + $0xa4] sm:$0x1] %v4310
        %v4312 = vld [vmem:[#allocation3 + $0xb0] sm:$0x1]
        %v4313 = vsel %vm4269, 0, %v4312
        %4314 = vst [vmem:[#allocation3 + $0xb0] sm:$0x1] %v4313
        %v4315 = vld [vmem:[#allocation3 + $0xbc] sm:$0x1]
        %v4316 = vsel %vm4269, 0, %v4315
        %4317 = vst [vmem:[#allocation3 + $0xbc] sm:$0x1] %v4316
        %v4318 = vld [vmem:[#allocation3 + $0xc8] sm:$0x1]
        %v4319 = vsel %vm4269, 0, %v4318
        %4320 = vst [vmem:[#allocation3 + $0xc8] sm:$0x1] %v4319
        %v4321 = vld [vmem:[#allocation3 + $0xd4] sm:$0x1]
        %v4322 = vsel %vm4269, 0, %v4321
        %4323 = vst [vmem:[#allocation3 + $0xd4] sm:$0x1] %v4322
        %v4324 = vpack.c.bf16 %v4175, %v4174
        %v4325 = vpack.c.bf16 %v4177, %v4176
        %v4326 = vpack.c.bf16 %v4179, %v4178
        %v4327 = vpack.c.bf16 %v4181, %v4180
        %v4328 = vpack.c.bf16 %v4183, %v4182
        %v4329 = vpack.c.bf16 %v4185, %v4184
        %v4330 = vpack.c.bf16 %v4187, %v4186
        %v4331 = vpack.c.bf16 %v4189, %v4188
        %v4332 = vpack.c.bf16 %v4191, %v4190
        %v4333 = vpack.c.bf16 %v4193, %v4192
        %v4334 = vpack.c.bf16 %v4195, %v4194
        %v4335 = vpack.c.bf16 %v4197, %v4196
        %v4336 = vpack.c.bf16 %v4199, %v4198
        %v4337 = vpack.c.bf16 %v4201, %v4200
        %v4338 = vpack.c.bf16 %v4203, %v4202
        %v4339 = vpack.c.bf16 %v4205, %v4204
        %v4356 = vunpack.c.l.b16 %v4324
        %v4357 = vunpack.c.h.b16 %v4324
        %v4358 = vunpack.c.l.b16 %v4325
        %v4359 = vunpack.c.h.b16 %v4325
        %v4360 = vunpack.c.l.b16 %v4326
        %v4361 = vunpack.c.h.b16 %v4326
        %v4362 = vunpack.c.l.b16 %v4327
        %v4363 = vunpack.c.h.b16 %v4327
        %v4364 = vunpack.c.l.b16 %v4328
        %v4365 = vunpack.c.h.b16 %v4328
        %v4366 = vunpack.c.l.b16 %v4329
        %v4367 = vunpack.c.h.b16 %v4329
        %v4368 = vunpack.c.l.b16 %v4330
        %v4369 = vunpack.c.h.b16 %v4330
        %v4370 = vunpack.c.l.b16 %v4331
        %v4371 = vunpack.c.h.b16 %v4331
        %v4372 = vunpack.c.l.b16 %v4332
        %v4373 = vunpack.c.h.b16 %v4332
        %v4374 = vunpack.c.l.b16 %v4333
        %v4375 = vunpack.c.h.b16 %v4333
        %v4376 = vunpack.c.l.b16 %v4334
        %v4377 = vunpack.c.h.b16 %v4334
        %v4378 = vunpack.c.l.b16 %v4335
        %v4379 = vunpack.c.h.b16 %v4335
        %v4380 = vunpack.c.l.b16 %v4336
        %v4381 = vunpack.c.h.b16 %v4336
        %v4382 = vunpack.c.l.b16 %v4337
        %v4383 = vunpack.c.h.b16 %v4337
        %v4384 = vunpack.c.l.b16 %v4338
        %v4385 = vunpack.c.h.b16 %v4338
        %v4386 = vunpack.c.l.b16 %v4339
        %v4387 = vunpack.c.h.b16 %v4339
        %v4388 = vpack.c.b16 %v4356, %v4356
        %v4389 = vpack.c.b16 %v4357, %v4357
        %v4390 = vpack.c.b16 %v4358, %v4358
        %v4391 = vpack.c.b16 %v4359, %v4359
        %v4392 = vpack.c.b16 %v4360, %v4360
        %v4393 = vpack.c.b16 %v4361, %v4361
        %v4394 = vpack.c.b16 %v4362, %v4362
        %v4395 = vpack.c.b16 %v4363, %v4363
        %v4396 = vpack.c.b16 %v4364, %v4364
        %v4397 = vpack.c.b16 %v4365, %v4365
        %v4398 = vpack.c.b16 %v4366, %v4366
        %v4399 = vpack.c.b16 %v4367, %v4367
        %v4400 = vpack.c.b16 %v4368, %v4368
        %v4401 = vpack.c.b16 %v4369, %v4369
        %v4402 = vpack.c.b16 %v4370, %v4370
        %v4403 = vpack.c.b16 %v4371, %v4371
        %v4404 = vpack.c.b16 %v4372, %v4372
        %v4405 = vpack.c.b16 %v4373, %v4373
        %v4406 = vpack.c.b16 %v4374, %v4374
        %v4407 = vpack.c.b16 %v4375, %v4375
        %v4408 = vpack.c.b16 %v4376, %v4376
        %v4409 = vpack.c.b16 %v4377, %v4377
        %v4410 = vpack.c.b16 %v4378, %v4378
        %v4411 = vpack.c.b16 %v4379, %v4379
        %v4412 = vpack.c.b16 %v4380, %v4380
        %v4413 = vpack.c.b16 %v4381, %v4381
        %v4414 = vpack.c.b16 %v4382, %v4382
        %v4415 = vpack.c.b16 %v4383, %v4383
        %v4416 = vpack.c.b16 %v4384, %v4384
        %v4417 = vpack.c.b16 %v4385, %v4385
        %v4418 = vpack.c.b16 %v4386, %v4386
        %v4419 = vpack.c.b16 %v4387, %v4387
        %v4421 = vshrl.u32 %v4388, 16
        %v4423 = vrot.slane %v4421, 7
        %v4424 = vshll.u32 %v4388, 16
        %v4426 = vor.u32 %v4423, %v4424
        %v4427 = vrot.slane %v4423, 4
        %v4429 = vshrl.u32 %v4389, 16
        %v4431 = vrot.slane %v4429, 7
        %v4432 = vshll.u32 %v4389, 16
        %v4434 = vor.u32 %v4431, %v4432
        %v4435 = vsel %vm588, %v4427, %v4434
        %v4436 = vrot.slane %v4431, 4
        %v4438 = vshrl.u32 %v4390, 16
        %v4440 = vrot.slane %v4438, 7
        %v4441 = vshll.u32 %v4390, 16
        %v4443 = vor.u32 %v4440, %v4441
        %v4444 = vrot.slane %v4440, 4
        %v4446 = vshrl.u32 %v4391, 16
        %v4448 = vrot.slane %v4446, 7
        %v4449 = vshll.u32 %v4391, 16
        %v4451 = vor.u32 %v4448, %v4449
        %v4452 = vsel %vm588, %v4444, %v4451
        %v4453 = vrot.slane %v4448, 4
        %v4455 = vshrl.u32 %v4392, 16
        %v4457 = vrot.slane %v4455, 7
        %v4458 = vshll.u32 %v4392, 16
        %v4460 = vor.u32 %v4457, %v4458
        %v4461 = vrot.slane %v4457, 4
        %v4463 = vshrl.u32 %v4393, 16
        %v4465 = vrot.slane %v4463, 7
        %v4466 = vshll.u32 %v4393, 16
        %v4468 = vor.u32 %v4465, %v4466
        %v4469 = vsel %vm588, %v4461, %v4468
        %v4470 = vrot.slane %v4465, 4
        %v4472 = vshrl.u32 %v4394, 16
        %v4474 = vrot.slane %v4472, 7
        %v4475 = vshll.u32 %v4394, 16
        %v4477 = vor.u32 %v4474, %v4475
        %v4478 = vrot.slane %v4474, 4
        %v4480 = vshrl.u32 %v4395, 16
        %v4482 = vrot.slane %v4480, 7
        %v4483 = vshll.u32 %v4395, 16
        %v4485 = vor.u32 %v4482, %v4483
        %v4486 = vsel %vm588, %v4478, %v4485
        %v4487 = vrot.slane %v4482, 4
        %v4489 = vshrl.u32 %v4396, 16
        %v4491 = vrot.slane %v4489, 7
        %v4492 = vshll.u32 %v4396, 16
        %v4494 = vor.u32 %v4491, %v4492
        %v4495 = vrot.slane %v4491, 4
        %v4497 = vshrl.u32 %v4397, 16
        %v4499 = vrot.slane %v4497, 7
        %v4500 = vshll.u32 %v4397, 16
        %v4502 = vor.u32 %v4499, %v4500
        %v4503 = vsel %vm588, %v4495, %v4502
        %v4504 = vrot.slane %v4499, 4
        %v4506 = vshrl.u32 %v4398, 16
        %v4508 = vrot.slane %v4506, 7
        %v4509 = vshll.u32 %v4398, 16
        %v4511 = vor.u32 %v4508, %v4509
        %v4512 = vrot.slane %v4508, 4
        %v4514 = vshrl.u32 %v4399, 16
        %v4516 = vrot.slane %v4514, 7
        %v4517 = vshll.u32 %v4399, 16
        %v4519 = vor.u32 %v4516, %v4517
        %v4520 = vsel %vm588, %v4512, %v4519
        %v4521 = vrot.slane %v4516, 4
        %v4523 = vshrl.u32 %v4400, 16
        %v4525 = vrot.slane %v4523, 7
        %v4526 = vshll.u32 %v4400, 16
        %v4528 = vor.u32 %v4525, %v4526
        %v4529 = vrot.slane %v4525, 4
        %v4531 = vshrl.u32 %v4401, 16
        %v4533 = vrot.slane %v4531, 7
        %v4534 = vshll.u32 %v4401, 16
        %v4536 = vor.u32 %v4533, %v4534
        %v4537 = vsel %vm588, %v4529, %v4536
        %v4538 = vrot.slane %v4533, 4
        %v4540 = vshrl.u32 %v4402, 16
        %v4542 = vrot.slane %v4540, 7
        %v4543 = vshll.u32 %v4402, 16
        %v4545 = vor.u32 %v4542, %v4543
        %v4546 = vrot.slane %v4542, 4
        %v4548 = vshrl.u32 %v4403, 16
        %v4550 = vrot.slane %v4548, 7
        %v4551 = vshll.u32 %v4403, 16
        %v4553 = vor.u32 %v4550, %v4551
        %v4554 = vsel %vm588, %v4546, %v4553
        %v4555 = vrot.slane %v4550, 4
        %v4557 = vshrl.u32 %v4404, 16
        %v4559 = vrot.slane %v4557, 7
        %v4560 = vshll.u32 %v4404, 16
        %v4562 = vor.u32 %v4559, %v4560
        %v4563 = vrot.slane %v4559, 4
        %v4565 = vshrl.u32 %v4405, 16
        %v4567 = vrot.slane %v4565, 7
        %v4568 = vshll.u32 %v4405, 16
        %v4570 = vor.u32 %v4567, %v4568
        %v4571 = vsel %vm588, %v4563, %v4570
        %v4572 = vrot.slane %v4567, 4
        %v4574 = vshrl.u32 %v4406, 16
        %v4576 = vrot.slane %v4574, 7
        %v4577 = vshll.u32 %v4406, 16
        %v4579 = vor.u32 %v4576, %v4577
        %v4580 = vrot.slane %v4576, 4
        %v4582 = vshrl.u32 %v4407, 16
        %v4584 = vrot.slane %v4582, 7
        %v4585 = vshll.u32 %v4407, 16
        %v4587 = vor.u32 %v4584, %v4585
        %v4588 = vsel %vm588, %v4580, %v4587
        %v4589 = vrot.slane %v4584, 4
        %v4591 = vshrl.u32 %v4408, 16
        %v4593 = vrot.slane %v4591, 7
        %v4594 = vshll.u32 %v4408, 16
        %v4596 = vor.u32 %v4593, %v4594
        %v4597 = vrot.slane %v4593, 4
        %v4599 = vshrl.u32 %v4409, 16
        %v4601 = vrot.slane %v4599, 7
        %v4602 = vshll.u32 %v4409, 16
        %v4604 = vor.u32 %v4601, %v4602
        %v4605 = vsel %vm588, %v4597, %v4604
        %v4606 = vrot.slane %v4601, 4
        %v4608 = vshrl.u32 %v4410, 16
        %v4610 = vrot.slane %v4608, 7
        %v4611 = vshll.u32 %v4410, 16
        %v4613 = vor.u32 %v4610, %v4611
        %v4614 = vrot.slane %v4610, 4
        %v4616 = vshrl.u32 %v4411, 16
        %v4618 = vrot.slane %v4616, 7
        %v4619 = vshll.u32 %v4411, 16
        %v4621 = vor.u32 %v4618, %v4619
        %v4622 = vsel %vm588, %v4614, %v4621
        %v4623 = vrot.slane %v4618, 4
        %v4625 = vshrl.u32 %v4412, 16
        %v4627 = vrot.slane %v4625, 7
        %v4628 = vshll.u32 %v4412, 16
        %v4630 = vor.u32 %v4627, %v4628
        %v4631 = vrot.slane %v4627, 4
        %v4633 = vshrl.u32 %v4413, 16
        %v4635 = vrot.slane %v4633, 7
        %v4636 = vshll.u32 %v4413, 16
        %v4638 = vor.u32 %v4635, %v4636
        %v4639 = vsel %vm588, %v4631, %v4638
        %v4640 = vrot.slane %v4635, 4
        %v4642 = vshrl.u32 %v4414, 16
        %v4644 = vrot.slane %v4642, 7
        %v4645 = vshll.u32 %v4414, 16
        %v4647 = vor.u32 %v4644, %v4645
        %v4648 = vrot.slane %v4644, 4
        %v4650 = vshrl.u32 %v4415, 16
        %v4652 = vrot.slane %v4650, 7
        %v4653 = vshll.u32 %v4415, 16
        %v4655 = vor.u32 %v4652, %v4653
        %v4656 = vsel %vm588, %v4648, %v4655
        %v4657 = vrot.slane %v4652, 4
        %v4659 = vshrl.u32 %v4416, 16
        %v4661 = vrot.slane %v4659, 7
        %v4662 = vshll.u32 %v4416, 16
        %v4664 = vor.u32 %v4661, %v4662
        %v4665 = vrot.slane %v4661, 4
        %v4667 = vshrl.u32 %v4417, 16
        %v4669 = vrot.slane %v4667, 7
        %v4670 = vshll.u32 %v4417, 16
        %v4672 = vor.u32 %v4669, %v4670
        %v4673 = vsel %vm588, %v4665, %v4672
        %v4674 = vrot.slane %v4669, 4
        %v4676 = vshrl.u32 %v4418, 16
        %v4678 = vrot.slane %v4676, 7
        %v4679 = vshll.u32 %v4418, 16
        %v4681 = vor.u32 %v4678, %v4679
        %v4682 = vrot.slane %v4678, 4
        %v4684 = vshrl.u32 %v4419, 16
        %v4686 = vrot.slane %v4684, 7
        %v4687 = vshll.u32 %v4419, 16
        %v4689 = vor.u32 %v4686, %v4687
        %v4690 = vsel %vm588, %v4682, %v4689
        %v4691 = vrot.slane %v4686, 4
        %s4740 = scalar_lea.vmem [#allocation3], 12
        %vm4741 = vcmask 1043456
        %vm4742 = vmand %vm4741, %vm305
        %v4743 = vld [vmem:[%s4740] sm:$0xf]
        %v4744 = vsel %vm4742, %v4426, %v4743
        %4745 = vst [vmem:[%s4740] sm:$0xf] %v4744
        %4746 = vst [vmem:[%s4740 + $0x4] sm:$0xf] %v4435
        %v4747 = vld [vmem:[%s4740 + $0x8] sm:$0x1]
        %v4748 = vsel %vm4214, %v4436, %v4747
        %4749 = vst [vmem:[%s4740 + $0x8] sm:$0x1] %v4748
        %v4750 = vld [vmem:[%s4740 + $0xc] sm:$0xf]
        %v4751 = vsel %vm4742, %v4443, %v4750
        %4752 = vst [vmem:[%s4740 + $0xc] sm:$0xf] %v4751
        %4753 = vst [vmem:[%s4740 + $0x10] sm:$0xf] %v4452
        %v4754 = vld [vmem:[%s4740 + $0x14] sm:$0x1]
        %v4755 = vsel %vm4214, %v4453, %v4754
        %4756 = vst [vmem:[%s4740 + $0x14] sm:$0x1] %v4755
        %v4757 = vld [vmem:[%s4740 + $0x18] sm:$0xf]
        %v4758 = vsel %vm4742, %v4460, %v4757
        %4759 = vst [vmem:[%s4740 + $0x18] sm:$0xf] %v4758
        %4760 = vst [vmem:[%s4740 + $0x1c] sm:$0xf] %v4469
        %v4761 = vld [vmem:[%s4740 + $0x20] sm:$0x1]
        %v4762 = vsel %vm4214, %v4470, %v4761
        %4763 = vst [vmem:[%s4740 + $0x20] sm:$0x1] %v4762
        %v4764 = vld [vmem:[%s4740 + $0x24] sm:$0xf]
        %v4765 = vsel %vm4742, %v4477, %v4764
        %4766 = vst [vmem:[%s4740 + $0x24] sm:$0xf] %v4765
        %4767 = vst [vmem:[%s4740 + $0x28] sm:$0xf] %v4486
        %v4768 = vld [vmem:[%s4740 + $0x2c] sm:$0x1]
        %v4769 = vsel %vm4214, %v4487, %v4768
        %4770 = vst [vmem:[%s4740 + $0x2c] sm:$0x1] %v4769
        %v4771 = vld [vmem:[%s4740 + $0x30] sm:$0xf]
        %v4772 = vsel %vm4742, %v4494, %v4771
        %4773 = vst [vmem:[%s4740 + $0x30] sm:$0xf] %v4772
        %4774 = vst [vmem:[%s4740 + $0x34] sm:$0xf] %v4503
        %v4775 = vld [vmem:[%s4740 + $0x38] sm:$0x1]
        %v4776 = vsel %vm4214, %v4504, %v4775
        %4777 = vst [vmem:[%s4740 + $0x38] sm:$0x1] %v4776
        %v4778 = vld [vmem:[%s4740 + $0x3c] sm:$0xf]
        %v4779 = vsel %vm4742, %v4511, %v4778
        %4780 = vst [vmem:[%s4740 + $0x3c] sm:$0xf] %v4779
        %4781 = vst [vmem:[%s4740 + $0x40] sm:$0xf] %v4520
        %v4782 = vld [vmem:[%s4740 + $0x44] sm:$0x1]
        %v4783 = vsel %vm4214, %v4521, %v4782
        %4784 = vst [vmem:[%s4740 + $0x44] sm:$0x1] %v4783
        %v4785 = vld [vmem:[%s4740 + $0x48] sm:$0xf]
        %v4786 = vsel %vm4742, %v4528, %v4785
        %4787 = vst [vmem:[%s4740 + $0x48] sm:$0xf] %v4786
        %4788 = vst [vmem:[%s4740 + $0x4c] sm:$0xf] %v4537
        %v4789 = vld [vmem:[%s4740 + $0x50] sm:$0x1]
        %v4790 = vsel %vm4214, %v4538, %v4789
        %4791 = vst [vmem:[%s4740 + $0x50] sm:$0x1] %v4790
        %v4792 = vld [vmem:[%s4740 + $0x54] sm:$0xf]
        %v4793 = vsel %vm4742, %v4545, %v4792
        %4794 = vst [vmem:[%s4740 + $0x54] sm:$0xf] %v4793
        %4795 = vst [vmem:[%s4740 + $0x58] sm:$0xf] %v4554
        %v4796 = vld [vmem:[%s4740 + $0x5c] sm:$0x1]
        %v4797 = vsel %vm4214, %v4555, %v4796
        %4798 = vst [vmem:[%s4740 + $0x5c] sm:$0x1] %v4797
        %v4799 = vld [vmem:[%s4740 + $0x60] sm:$0xf]
        %v4800 = vsel %vm4742, %v4562, %v4799
        %4801 = vst [vmem:[%s4740 + $0x60] sm:$0xf] %v4800
        %4802 = vst [vmem:[%s4740 + $0x64] sm:$0xf] %v4571
        %v4803 = vld [vmem:[%s4740 + $0x68] sm:$0x1]
        %v4804 = vsel %vm4214, %v4572, %v4803
        %4805 = vst [vmem:[%s4740 + $0x68] sm:$0x1] %v4804
        %v4806 = vld [vmem:[%s4740 + $0x6c] sm:$0xf]
        %v4807 = vsel %vm4742, %v4579, %v4806
        %4808 = vst [vmem:[%s4740 + $0x6c] sm:$0xf] %v4807
        %4809 = vst [vmem:[%s4740 + $0x70] sm:$0xf] %v4588
        %v4810 = vld [vmem:[%s4740 + $0x74] sm:$0x1]
        %v4811 = vsel %vm4214, %v4589, %v4810
        %4812 = vst [vmem:[%s4740 + $0x74] sm:$0x1] %v4811
        %v4813 = vld [vmem:[%s4740 + $0x78] sm:$0xf]
        %v4814 = vsel %vm4742, %v4596, %v4813
        %4815 = vst [vmem:[%s4740 + $0x78] sm:$0xf] %v4814
        %4816 = vst [vmem:[%s4740 + $0x7c] sm:$0xf] %v4605
        %v4817 = vld [vmem:[%s4740 + $0x80] sm:$0x1]
        %v4818 = vsel %vm4214, %v4606, %v4817
        %4819 = vst [vmem:[%s4740 + $0x80] sm:$0x1] %v4818
        %v4820 = vld [vmem:[%s4740 + $0x84] sm:$0xf]
        %v4821 = vsel %vm4742, %v4613, %v4820
        %4822 = vst [vmem:[%s4740 + $0x84] sm:$0xf] %v4821
        %4823 = vst [vmem:[%s4740 + $0x88] sm:$0xf] %v4622
        %v4824 = vld [vmem:[%s4740 + $0x8c] sm:$0x1]
        %v4825 = vsel %vm4214, %v4623, %v4824
        %4826 = vst [vmem:[%s4740 + $0x8c] sm:$0x1] %v4825
        %v4827 = vld [vmem:[%s4740 + $0x90] sm:$0xf]
        %v4828 = vsel %vm4742, %v4630, %v4827
        %4829 = vst [vmem:[%s4740 + $0x90] sm:$0xf] %v4828
        %4830 = vst [vmem:[%s4740 + $0x94] sm:$0xf] %v4639
        %v4831 = vld [vmem:[%s4740 + $0x98] sm:$0x1]
        %v4832 = vsel %vm4214, %v4640, %v4831
        %4833 = vst [vmem:[%s4740 + $0x98] sm:$0x1] %v4832
        %v4834 = vld [vmem:[%s4740 + $0x9c] sm:$0xf]
        %v4835 = vsel %vm4742, %v4647, %v4834
        %4836 = vst [vmem:[%s4740 + $0x9c] sm:$0xf] %v4835
        %4837 = vst [vmem:[%s4740 + $0xa0] sm:$0xf] %v4656
        %v4838 = vld [vmem:[%s4740 + $0xa4] sm:$0x1]
        %v4839 = vsel %vm4214, %v4657, %v4838
        %4840 = vst [vmem:[%s4740 + $0xa4] sm:$0x1] %v4839
        %v4841 = vld [vmem:[%s4740 + $0xa8] sm:$0xf]
        %v4842 = vsel %vm4742, %v4664, %v4841
        %4843 = vst [vmem:[%s4740 + $0xa8] sm:$0xf] %v4842
        %4844 = vst [vmem:[%s4740 + $0xac] sm:$0xf] %v4673
        %v4845 = vld [vmem:[%s4740 + $0xb0] sm:$0x1]
        %v4846 = vsel %vm4214, %v4674, %v4845
        %4847 = vst [vmem:[%s4740 + $0xb0] sm:$0x1] %v4846
        %v4848 = vld [vmem:[%s4740 + $0xb4] sm:$0xf]
        %v4849 = vsel %vm4742, %v4681, %v4848
        %4850 = vst [vmem:[%s4740 + $0xb4] sm:$0xf] %v4849
        %4851 = vst [vmem:[%s4740 + $0xb8] sm:$0xf] %v4690
        %v4852 = vld [vmem:[%s4740 + $0xbc] sm:$0x1]
        %v4853 = vsel %vm4214, %v4691, %v4852
        %4854 = vst [vmem:[%s4740 + $0xbc] sm:$0x1] %v4853
        %v4855 = vld [vmem:[#allocation3] sm:$0xf]
        %v4856 = vld [vmem:[#allocation3 + $0x4] sm:$0xf]
        %v4857 = vld [vmem:[#allocation3 + $0xc] sm:$0xf]
        %v4858 = vld [vmem:[#allocation3 + $0x10] sm:$0xf]
        %v4859 = vld [vmem:[#allocation3 + $0x18] sm:$0xf]
        %v4860 = vld [vmem:[#allocation3 + $0x1c] sm:$0xf]
        %v4861 = vld [vmem:[#allocation3 + $0x24] sm:$0xf]
        %v4862 = vld [vmem:[#allocation3 + $0x28] sm:$0xf]
        %v4863 = vld [vmem:[#allocation3 + $0x30] sm:$0xf]
        %v4864 = vld [vmem:[#allocation3 + $0x34] sm:$0xf]
        %v4865 = vld [vmem:[#allocation3 + $0x3c] sm:$0xf]
        %v4866 = vld [vmem:[#allocation3 + $0x40] sm:$0xf]
        %v4867 = vld [vmem:[#allocation3 + $0x48] sm:$0xf]
        %v4868 = vld [vmem:[#allocation3 + $0x4c] sm:$0xf]
        %v4869 = vld [vmem:[#allocation3 + $0x54] sm:$0xf]
        %v4870 = vld [vmem:[#allocation3 + $0x58] sm:$0xf]
        %v4871 = vld [vmem:[#allocation3 + $0x60] sm:$0xf]
        %v4872 = vld [vmem:[#allocation3 + $0x64] sm:$0xf]
        %v4873 = vld [vmem:[#allocation3 + $0x6c] sm:$0xf]
        %v4874 = vld [vmem:[#allocation3 + $0x70] sm:$0xf]
        %v4875 = vld [vmem:[#allocation3 + $0x78] sm:$0xf]
        %v4876 = vld [vmem:[#allocation3 + $0x7c] sm:$0xf]
        %v4877 = vld [vmem:[#allocation3 + $0x84] sm:$0xf]
        %v4878 = vld [vmem:[#allocation3 + $0x88] sm:$0xf]
        %v4879 = vld [vmem:[#allocation3 + $0x90] sm:$0xf]
        %v4880 = vld [vmem:[#allocation3 + $0x94] sm:$0xf]
        %v4881 = vld [vmem:[#allocation3 + $0x9c] sm:$0xf]
        %v4882 = vld [vmem:[#allocation3 + $0xa0] sm:$0xf]
        %v4883 = vld [vmem:[#allocation3 + $0xa8] sm:$0xf]
        %v4884 = vld [vmem:[#allocation3 + $0xac] sm:$0xf]
        %v4885 = vld [vmem:[#allocation3 + $0xb4] sm:$0xf]
        %v4886 = vld [vmem:[#allocation3 + $0xb8] sm:$0xf]
        %v4887 = vld [vmem:[#allocation3 + $0x8] sm:$0x1]
        %v4888 = vld [vmem:[#allocation3 + $0x14] sm:$0x1]
        %v4889 = vld [vmem:[#allocation3 + $0x20] sm:$0x1]
        %v4890 = vld [vmem:[#allocation3 + $0x2c] sm:$0x1]
        %v4891 = vld [vmem:[#allocation3 + $0x38] sm:$0x1]
        %v4892 = vld [vmem:[#allocation3 + $0x44] sm:$0x1]
        %v4893 = vld [vmem:[#allocation3 + $0x50] sm:$0x1]
        %v4894 = vld [vmem:[#allocation3 + $0x5c] sm:$0x1]
        %v4895 = vld [vmem:[#allocation3 + $0x68] sm:$0x1]
        %v4896 = vld [vmem:[#allocation3 + $0x74] sm:$0x1]
        %v4897 = vld [vmem:[#allocation3 + $0x80] sm:$0x1]
        %v4898 = vld [vmem:[#allocation3 + $0x8c] sm:$0x1]
        %v4899 = vld [vmem:[#allocation3 + $0x98] sm:$0x1]
        %v4900 = vld [vmem:[#allocation3 + $0xa4] sm:$0x1]
        %v4901 = vld [vmem:[#allocation3 + $0xb0] sm:$0x1]
        %v4902 = vld [vmem:[#allocation3 + $0xbc] sm:$0x1]
        %v4904 = vshrl.u32 %v4855, 16
        %v4906 = vrot.slane %v4904, 4
        %v4907 = vshll.u32 %v4855, 16
        %v4909 = vrot.slane %v4907, 5
        %v4910 = vor.u32 %v4906, %v4909
        %v4911 = vrot.slane %v4910, 4
        %v4913 = vshll.u32 %v4856, 16
        %v4915 = vrot.slane %v4913, 5
        %v4916 = vsel %vm1074, %v4911, %v4915
        %v4917 = vshrl.u32 %v4856, 16
        %v4919 = vrot.slane %v4917, 4
        %v4920 = vor.u32 %v4919, %v4915
        %v4921 = vrot.slane %v4920, 4
        %v4923 = vshll.u32 %v4887, 16
        %v4925 = vrot.slane %v4923, 5
        %v4926 = vsel %vm1074, %v4921, %v4925
        %v4928 = vshrl.u32 %v4857, 16
        %v4930 = vrot.slane %v4928, 4
        %v4931 = vshll.u32 %v4857, 16
        %v4933 = vrot.slane %v4931, 5
        %v4934 = vor.u32 %v4930, %v4933
        %v4935 = vrot.slane %v4934, 4
        %v4937 = vshll.u32 %v4858, 16
        %v4939 = vrot.slane %v4937, 5
        %v4940 = vsel %vm1074, %v4935, %v4939
        %v4941 = vshrl.u32 %v4858, 16
        %v4943 = vrot.slane %v4941, 4
        %v4944 = vor.u32 %v4943, %v4939
        %v4945 = vrot.slane %v4944, 4
        %v4947 = vshll.u32 %v4888, 16
        %v4949 = vrot.slane %v4947, 5
        %v4950 = vsel %vm1074, %v4945, %v4949
        %v4952 = vshrl.u32 %v4859, 16
        %v4954 = vrot.slane %v4952, 4
        %v4955 = vshll.u32 %v4859, 16
        %v4957 = vrot.slane %v4955, 5
        %v4958 = vor.u32 %v4954, %v4957
        %v4959 = vrot.slane %v4958, 4
        %v4961 = vshll.u32 %v4860, 16
        %v4963 = vrot.slane %v4961, 5
        %v4964 = vsel %vm1074, %v4959, %v4963
        %v4965 = vshrl.u32 %v4860, 16
        %v4967 = vrot.slane %v4965, 4
        %v4968 = vor.u32 %v4967, %v4963
        %v4969 = vrot.slane %v4968, 4
        %v4971 = vshll.u32 %v4889, 16
        %v4973 = vrot.slane %v4971, 5
        %v4974 = vsel %vm1074, %v4969, %v4973
        %v4976 = vshrl.u32 %v4861, 16
        %v4978 = vrot.slane %v4976, 4
        %v4979 = vshll.u32 %v4861, 16
        %v4981 = vrot.slane %v4979, 5
        %v4982 = vor.u32 %v4978, %v4981
        %v4983 = vrot.slane %v4982, 4
        %v4985 = vshll.u32 %v4862, 16
        %v4987 = vrot.slane %v4985, 5
        %v4988 = vsel %vm1074, %v4983, %v4987
        %v4989 = vshrl.u32 %v4862, 16
        %v4991 = vrot.slane %v4989, 4
        %v4992 = vor.u32 %v4991, %v4987
        %v4993 = vrot.slane %v4992, 4
        %v4995 = vshll.u32 %v4890, 16
        %v4997 = vrot.slane %v4995, 5
        %v4998 = vsel %vm1074, %v4993, %v4997
        %v5000 = vshrl.u32 %v4863, 16
        %v5002 = vrot.slane %v5000, 4
        %v5003 = vshll.u32 %v4863, 16
        %v5005 = vrot.slane %v5003, 5
        %v5006 = vor.u32 %v5002, %v5005
        %v5007 = vrot.slane %v5006, 4
        %v5009 = vshll.u32 %v4864, 16
        %v5011 = vrot.slane %v5009, 5
        %v5012 = vsel %vm1074, %v5007, %v5011
        %v5013 = vshrl.u32 %v4864, 16
        %v5015 = vrot.slane %v5013, 4
        %v5016 = vor.u32 %v5015, %v5011
        %v5017 = vrot.slane %v5016, 4
        %v5019 = vshll.u32 %v4891, 16
        %v5021 = vrot.slane %v5019, 5
        %v5022 = vsel %vm1074, %v5017, %v5021
        %v5024 = vshrl.u32 %v4865, 16
        %v5026 = vrot.slane %v5024, 4
        %v5027 = vshll.u32 %v4865, 16
        %v5029 = vrot.slane %v5027, 5
        %v5030 = vor.u32 %v5026, %v5029
        %v5031 = vrot.slane %v5030, 4
        %v5033 = vshll.u32 %v4866, 16
        %v5035 = vrot.slane %v5033, 5
        %v5036 = vsel %vm1074, %v5031, %v5035
        %v5037 = vshrl.u32 %v4866, 16
        %v5039 = vrot.slane %v5037, 4
        %v5040 = vor.u32 %v5039, %v5035
        %v5041 = vrot.slane %v5040, 4
        %v5043 = vshll.u32 %v4892, 16
        %v5045 = vrot.slane %v5043, 5
        %v5046 = vsel %vm1074, %v5041, %v5045
        %v5048 = vshrl.u32 %v4867, 16
        %v5050 = vrot.slane %v5048, 4
        %v5051 = vshll.u32 %v4867, 16
        %v5053 = vrot.slane %v5051, 5
        %v5054 = vor.u32 %v5050, %v5053
        %v5055 = vrot.slane %v5054, 4
        %v5057 = vshll.u32 %v4868, 16
        %v5059 = vrot.slane %v5057, 5
        %v5060 = vsel %vm1074, %v5055, %v5059
        %v5061 = vshrl.u32 %v4868, 16
        %v5063 = vrot.slane %v5061, 4
        %v5064 = vor.u32 %v5063, %v5059
        %v5065 = vrot.slane %v5064, 4
        %v5067 = vshll.u32 %v4893, 16
        %v5069 = vrot.slane %v5067, 5
        %v5070 = vsel %vm1074, %v5065, %v5069
        %v5072 = vshrl.u32 %v4869, 16
        %v5074 = vrot.slane %v5072, 4
        %v5075 = vshll.u32 %v4869, 16
        %v5077 = vrot.slane %v5075, 5
        %v5078 = vor.u32 %v5074, %v5077
        %v5079 = vrot.slane %v5078, 4
        %v5081 = vshll.u32 %v4870, 16
        %v5083 = vrot.slane %v5081, 5
        %v5084 = vsel %vm1074, %v5079, %v5083
        %v5085 = vshrl.u32 %v4870, 16
        %v5087 = vrot.slane %v5085, 4
        %v5088 = vor.u32 %v5087, %v5083
        %v5089 = vrot.slane %v5088, 4
        %v5091 = vshll.u32 %v4894, 16
        %v5093 = vrot.slane %v5091, 5
        %v5094 = vsel %vm1074, %v5089, %v5093
        %v5096 = vshrl.u32 %v4871, 16
        %v5098 = vrot.slane %v5096, 4
        %v5099 = vshll.u32 %v4871, 16
        %v5101 = vrot.slane %v5099, 5
        %v5102 = vor.u32 %v5098, %v5101
        %v5103 = vrot.slane %v5102, 4
        %v5105 = vshll.u32 %v4872, 16
        %v5107 = vrot.slane %v5105, 5
        %v5108 = vsel %vm1074, %v5103, %v5107
        %v5109 = vshrl.u32 %v4872, 16
        %v5111 = vrot.slane %v5109, 4
        %v5112 = vor.u32 %v5111, %v5107
        %v5113 = vrot.slane %v5112, 4
        %v5115 = vshll.u32 %v4895, 16
        %v5117 = vrot.slane %v5115, 5
        %v5118 = vsel %vm1074, %v5113, %v5117
        %v5120 = vshrl.u32 %v4873, 16
        %v5122 = vrot.slane %v5120, 4
        %v5123 = vshll.u32 %v4873, 16
        %v5125 = vrot.slane %v5123, 5
        %v5126 = vor.u32 %v5122, %v5125
        %v5127 = vrot.slane %v5126, 4
        %v5129 = vshll.u32 %v4874, 16
        %v5131 = vrot.slane %v5129, 5
        %v5132 = vsel %vm1074, %v5127, %v5131
        %v5133 = vshrl.u32 %v4874, 16
        %v5135 = vrot.slane %v5133, 4
        %v5136 = vor.u32 %v5135, %v5131
        %v5137 = vrot.slane %v5136, 4
        %v5139 = vshll.u32 %v4896, 16
        %v5141 = vrot.slane %v5139, 5
        %v5142 = vsel %vm1074, %v5137, %v5141
        %v5144 = vshrl.u32 %v4875, 16
        %v5146 = vrot.slane %v5144, 4
        %v5147 = vshll.u32 %v4875, 16
        %v5149 = vrot.slane %v5147, 5
        %v5150 = vor.u32 %v5146, %v5149
        %v5151 = vrot.slane %v5150, 4
        %v5153 = vshll.u32 %v4876, 16
        %v5155 = vrot.slane %v5153, 5
        %v5156 = vsel %vm1074, %v5151, %v5155
        %v5157 = vshrl.u32 %v4876, 16
        %v5159 = vrot.slane %v5157, 4
        %v5160 = vor.u32 %v5159, %v5155
        %v5161 = vrot.slane %v5160, 4
        %v5163 = vshll.u32 %v4897, 16
        %v5165 = vrot.slane %v5163, 5
        %v5166 = vsel %vm1074, %v5161, %v5165
        %v5168 = vshrl.u32 %v4877, 16
        %v5170 = vrot.slane %v5168, 4
        %v5171 = vshll.u32 %v4877, 16
        %v5173 = vrot.slane %v5171, 5
        %v5174 = vor.u32 %v5170, %v5173
        %v5175 = vrot.slane %v5174, 4
        %v5177 = vshll.u32 %v4878, 16
        %v5179 = vrot.slane %v5177, 5
        %v5180 = vsel %vm1074, %v5175, %v5179
        %v5181 = vshrl.u32 %v4878, 16
        %v5183 = vrot.slane %v5181, 4
        %v5184 = vor.u32 %v5183, %v5179
        %v5185 = vrot.slane %v5184, 4
        %v5187 = vshll.u32 %v4898, 16
        %v5189 = vrot.slane %v5187, 5
        %v5190 = vsel %vm1074, %v5185, %v5189
        %v5192 = vshrl.u32 %v4879, 16
        %v5194 = vrot.slane %v5192, 4
        %v5195 = vshll.u32 %v4879, 16
        %v5197 = vrot.slane %v5195, 5
        %v5198 = vor.u32 %v5194, %v5197
        %v5199 = vrot.slane %v5198, 4
        %v5201 = vshll.u32 %v4880, 16
        %v5203 = vrot.slane %v5201, 5
        %v5204 = vsel %vm1074, %v5199, %v5203
        %v5205 = vshrl.u32 %v4880, 16
        %v5207 = vrot.slane %v5205, 4
        %v5208 = vor.u32 %v5207, %v5203
        %v5209 = vrot.slane %v5208, 4
        %v5211 = vshll.u32 %v4899, 16
        %v5213 = vrot.slane %v5211, 5
        %v5214 = vsel %vm1074, %v5209, %v5213
        %v5216 = vshrl.u32 %v4881, 16
        %v5218 = vrot.slane %v5216, 4
        %v5219 = vshll.u32 %v4881, 16
        %v5221 = vrot.slane %v5219, 5
        %v5222 = vor.u32 %v5218, %v5221
        %v5223 = vrot.slane %v5222, 4
        %v5225 = vshll.u32 %v4882, 16
        %v5227 = vrot.slane %v5225, 5
        %v5228 = vsel %vm1074, %v5223, %v5227
        %v5229 = vshrl.u32 %v4882, 16
        %v5231 = vrot.slane %v5229, 4
        %v5232 = vor.u32 %v5231, %v5227
        %v5233 = vrot.slane %v5232, 4
        %v5235 = vshll.u32 %v4900, 16
        %v5237 = vrot.slane %v5235, 5
        %v5238 = vsel %vm1074, %v5233, %v5237
        %v5240 = vshrl.u32 %v4883, 16
        %v5242 = vrot.slane %v5240, 4
        %v5243 = vshll.u32 %v4883, 16
        %v5245 = vrot.slane %v5243, 5
        %v5246 = vor.u32 %v5242, %v5245
        %v5247 = vrot.slane %v5246, 4
        %v5249 = vshll.u32 %v4884, 16
        %v5251 = vrot.slane %v5249, 5
        %v5252 = vsel %vm1074, %v5247, %v5251
        %v5253 = vshrl.u32 %v4884, 16
        %v5255 = vrot.slane %v5253, 4
        %v5256 = vor.u32 %v5255, %v5251
        %v5257 = vrot.slane %v5256, 4
        %v5259 = vshll.u32 %v4901, 16
        %v5261 = vrot.slane %v5259, 5
        %v5262 = vsel %vm1074, %v5257, %v5261
        %v5264 = vshrl.u32 %v4885, 16
        %v5266 = vrot.slane %v5264, 4
        %v5267 = vshll.u32 %v4885, 16
        %v5269 = vrot.slane %v5267, 5
        %v5270 = vor.u32 %v5266, %v5269
        %v5271 = vrot.slane %v5270, 4
        %v5273 = vshll.u32 %v4886, 16
        %v5275 = vrot.slane %v5273, 5
        %v5276 = vsel %vm1074, %v5271, %v5275
        %v5277 = vshrl.u32 %v4886, 16
        %v5279 = vrot.slane %v5277, 4
        %v5280 = vor.u32 %v5279, %v5275
        %v5281 = vrot.slane %v5280, 4
        %v5283 = vshll.u32 %v4902, 16
        %v5285 = vrot.slane %v5283, 5
        %v5286 = vsel %vm1074, %v5281, %v5285
        %v5287 = vld [vmem:[#allocation3] sm:$0xe]
        %v5288 = vld [vmem:[#allocation3 + $0xc] sm:$0xe]
        %v5289 = vld [vmem:[#allocation3 + $0x18] sm:$0xe]
        %v5290 = vld [vmem:[#allocation3 + $0x24] sm:$0xe]
        %v5291 = vld [vmem:[#allocation3 + $0x30] sm:$0xe]
        %v5292 = vld [vmem:[#allocation3 + $0x3c] sm:$0xe]
        %v5293 = vld [vmem:[#allocation3 + $0x48] sm:$0xe]
        %v5294 = vld [vmem:[#allocation3 + $0x54] sm:$0xe]
        %v5295 = vld [vmem:[#allocation3 + $0x60] sm:$0xe]
        %v5296 = vld [vmem:[#allocation3 + $0x6c] sm:$0xe]
        %v5297 = vld [vmem:[#allocation3 + $0x78] sm:$0xe]
        %v5298 = vld [vmem:[#allocation3 + $0x84] sm:$0xe]
        %v5299 = vld [vmem:[#allocation3 + $0x90] sm:$0xe]
        %v5300 = vld [vmem:[#allocation3 + $0x9c] sm:$0xe]
        %v5301 = vld [vmem:[#allocation3 + $0xa8] sm:$0xe]
        %v5302 = vld [vmem:[#allocation3 + $0xb4] sm:$0xe]
        %v5351 = vrot.slane %v5287, 5
        %v5352 = vrot.slane %v5351, 4
        %v5353 = vrot.slane %v4856, 5
        %v5354 = vsel %vm1525, %v5352, %v5353
        %v5355 = vrot.slane %v5353, 4
        %v5356 = vrot.slane %v4887, 5
        %v5357 = vsel %vm1525, %v5355, %v5356
        %v5358 = vrot.slane %v5288, 5
        %v5359 = vrot.slane %v5358, 4
        %v5360 = vrot.slane %v4858, 5
        %v5361 = vsel %vm1525, %v5359, %v5360
        %v5362 = vrot.slane %v5360, 4
        %v5363 = vrot.slane %v4888, 5
        %v5364 = vsel %vm1525, %v5362, %v5363
        %v5365 = vrot.slane %v5289, 5
        %v5366 = vrot.slane %v5365, 4
        %v5367 = vrot.slane %v4860, 5
        %v5368 = vsel %vm1525, %v5366, %v5367
        %v5369 = vrot.slane %v5367, 4
        %v5370 = vrot.slane %v4889, 5
        %v5371 = vsel %vm1525, %v5369, %v5370
        %v5372 = vrot.slane %v5290, 5
        %v5373 = vrot.slane %v5372, 4
        %v5374 = vrot.slane %v4862, 5
        %v5375 = vsel %vm1525, %v5373, %v5374
        %v5376 = vrot.slane %v5374, 4
        %v5377 = vrot.slane %v4890, 5
        %v5378 = vsel %vm1525, %v5376, %v5377
        %v5379 = vrot.slane %v5291, 5
        %v5380 = vrot.slane %v5379, 4
        %v5381 = vrot.slane %v4864, 5
        %v5382 = vsel %vm1525, %v5380, %v5381
        %v5383 = vrot.slane %v5381, 4
        %v5384 = vrot.slane %v4891, 5
        %v5385 = vsel %vm1525, %v5383, %v5384
        %v5386 = vrot.slane %v5292, 5
        %v5387 = vrot.slane %v5386, 4
        %v5388 = vrot.slane %v4866, 5
        %v5389 = vsel %vm1525, %v5387, %v5388
        %v5390 = vrot.slane %v5388, 4
        %v5391 = vrot.slane %v4892, 5
        %v5392 = vsel %vm1525, %v5390, %v5391
        %v5393 = vrot.slane %v5293, 5
        %v5394 = vrot.slane %v5393, 4
        %v5395 = vrot.slane %v4868, 5
        %v5396 = vsel %vm1525, %v5394, %v5395
        %v5397 = vrot.slane %v5395, 4
        %v5398 = vrot.slane %v4893, 5
        %v5399 = vsel %vm1525, %v5397, %v5398
        %v5400 = vrot.slane %v5294, 5
        %v5401 = vrot.slane %v5400, 4
        %v5402 = vrot.slane %v4870, 5
        %v5403 = vsel %vm1525, %v5401, %v5402
        %v5404 = vrot.slane %v5402, 4
        %v5405 = vrot.slane %v4894, 5
        %v5406 = vsel %vm1525, %v5404, %v5405
        %v5407 = vrot.slane %v5295, 5
        %v5408 = vrot.slane %v5407, 4
        %v5409 = vrot.slane %v4872, 5
        %v5410 = vsel %vm1525, %v5408, %v5409
        %v5411 = vrot.slane %v5409, 4
        %v5412 = vrot.slane %v4895, 5
        %v5413 = vsel %vm1525, %v5411, %v5412
        %v5414 = vrot.slane %v5296, 5
        %v5415 = vrot.slane %v5414, 4
        %v5416 = vrot.slane %v4874, 5
        %v5417 = vsel %vm1525, %v5415, %v5416
        %v5418 = vrot.slane %v5416, 4
        %v5419 = vrot.slane %v4896, 5
        %v5420 = vsel %vm1525, %v5418, %v5419
        %v5421 = vrot.slane %v5297, 5
        %v5422 = vrot.slane %v5421, 4
        %v5423 = vrot.slane %v4876, 5
        %v5424 = vsel %vm1525, %v5422, %v5423
        %v5425 = vrot.slane %v5423, 4
        %v5426 = vrot.slane %v4897, 5
        %v5427 = vsel %vm1525, %v5425, %v5426
        %v5428 = vrot.slane %v5298, 5
        %v5429 = vrot.slane %v5428, 4
        %v5430 = vrot.slane %v4878, 5
        %v5431 = vsel %vm1525, %v5429, %v5430
        %v5432 = vrot.slane %v5430, 4
        %v5433 = vrot.slane %v4898, 5
        %v5434 = vsel %vm1525, %v5432, %v5433
        %v5435 = vrot.slane %v5299, 5
        %v5436 = vrot.slane %v5435, 4
        %v5437 = vrot.slane %v4880, 5
        %v5438 = vsel %vm1525, %v5436, %v5437
        %v5439 = vrot.slane %v5437, 4
        %v5440 = vrot.slane %v4899, 5
        %v5441 = vsel %vm1525, %v5439, %v5440
        %v5442 = vrot.slane %v5300, 5
        %v5443 = vrot.slane %v5442, 4
        %v5444 = vrot.slane %v4882, 5
        %v5445 = vsel %vm1525, %v5443, %v5444
        %v5446 = vrot.slane %v5444, 4
        %v5447 = vrot.slane %v4900, 5
        %v5448 = vsel %vm1525, %v5446, %v5447
        %v5449 = vrot.slane %v5301, 5
        %v5450 = vrot.slane %v5449, 4
        %v5451 = vrot.slane %v4884, 5
        %v5452 = vsel %vm1525, %v5450, %v5451
        %v5453 = vrot.slane %v5451, 4
        %v5454 = vrot.slane %v4901, 5
        %v5455 = vsel %vm1525, %v5453, %v5454
        %v5456 = vrot.slane %v5302, 5
        %v5457 = vrot.slane %v5456, 4
        %v5458 = vrot.slane %v4886, 5
        %v5459 = vsel %vm1525, %v5457, %v5458
        %v5460 = vrot.slane %v5458, 4
        %v5461 = vrot.slane %v4902, 5
        %v5462 = vsel %vm1525, %v5460, %v5461
        %v5479 = vunpack.c.l.b16 %v4855
        %v5480 = vunpack.c.l.b16 %v4856
        %v5481 = vunpack.c.l.b16 %v4857
        %v5482 = vunpack.c.l.b16 %v4858
        %v5483 = vunpack.c.l.b16 %v4859
        %v5484 = vunpack.c.l.b16 %v4860
        %v5485 = vunpack.c.l.b16 %v4861
        %v5486 = vunpack.c.l.b16 %v4862
        %v5487 = vunpack.c.l.b16 %v4863
        %v5488 = vunpack.c.l.b16 %v4864
        %v5489 = vunpack.c.l.b16 %v4865
        %v5490 = vunpack.c.l.b16 %v4866
        %v5491 = vunpack.c.l.b16 %v4867
        %v5492 = vunpack.c.l.b16 %v4868
        %v5493 = vunpack.c.l.b16 %v4869
        %v5494 = vunpack.c.l.b16 %v4870
        %v5495 = vunpack.c.l.b16 %v4871
        %v5496 = vunpack.c.l.b16 %v4872
        %v5497 = vunpack.c.l.b16 %v4873
        %v5498 = vunpack.c.l.b16 %v4874
        %v5499 = vunpack.c.l.b16 %v4875
        %v5500 = vunpack.c.l.b16 %v4876
        %v5501 = vunpack.c.l.b16 %v4877
        %v5502 = vunpack.c.l.b16 %v4878
        %v5503 = vunpack.c.l.b16 %v4879
        %v5504 = vunpack.c.l.b16 %v4880
        %v5505 = vunpack.c.l.b16 %v4881
        %v5506 = vunpack.c.l.b16 %v4882
        %v5507 = vunpack.c.l.b16 %v4883
        %v5508 = vunpack.c.l.b16 %v4884
        %v5509 = vunpack.c.l.b16 %v4885
        %v5510 = vunpack.c.l.b16 %v4886
        %v5511 = vpack.c.b16 %v5480, %v5479
        %v5512 = vpack.c.b16 %v5482, %v5481
        %v5513 = vpack.c.b16 %v5484, %v5483
        %v5514 = vpack.c.b16 %v5486, %v5485
        %v5515 = vpack.c.b16 %v5488, %v5487
        %v5516 = vpack.c.b16 %v5490, %v5489
        %v5517 = vpack.c.b16 %v5492, %v5491
        %v5518 = vpack.c.b16 %v5494, %v5493
        %v5519 = vpack.c.b16 %v5496, %v5495
        %v5520 = vpack.c.b16 %v5498, %v5497
        %v5521 = vpack.c.b16 %v5500, %v5499
        %v5522 = vpack.c.b16 %v5502, %v5501
        %v5523 = vpack.c.b16 %v5504, %v5503
        %v5524 = vpack.c.b16 %v5506, %v5505
        %v5525 = vpack.c.b16 %v5508, %v5507
        %v5526 = vpack.c.b16 %v5510, %v5509
        %v5543 = vunpack.c.l.b16 %v4916
        %v5544 = vunpack.c.l.b16 %v4926
        %v5545 = vunpack.c.l.b16 %v4940
        %v5546 = vunpack.c.l.b16 %v4950
        %v5547 = vunpack.c.l.b16 %v4964
        %v5548 = vunpack.c.l.b16 %v4974
        %v5549 = vunpack.c.l.b16 %v4988
        %v5550 = vunpack.c.l.b16 %v4998
        %v5551 = vunpack.c.l.b16 %v5012
        %v5552 = vunpack.c.l.b16 %v5022
        %v5553 = vunpack.c.l.b16 %v5036
        %v5554 = vunpack.c.l.b16 %v5046
        %v5555 = vunpack.c.l.b16 %v5060
        %v5556 = vunpack.c.l.b16 %v5070
        %v5557 = vunpack.c.l.b16 %v5084
        %v5558 = vunpack.c.l.b16 %v5094
        %v5559 = vunpack.c.l.b16 %v5108
        %v5560 = vunpack.c.l.b16 %v5118
        %v5561 = vunpack.c.l.b16 %v5132
        %v5562 = vunpack.c.l.b16 %v5142
        %v5563 = vunpack.c.l.b16 %v5156
        %v5564 = vunpack.c.l.b16 %v5166
        %v5565 = vunpack.c.l.b16 %v5180
        %v5566 = vunpack.c.l.b16 %v5190
        %v5567 = vunpack.c.l.b16 %v5204
        %v5568 = vunpack.c.l.b16 %v5214
        %v5569 = vunpack.c.l.b16 %v5228
        %v5570 = vunpack.c.l.b16 %v5238
        %v5571 = vunpack.c.l.b16 %v5252
        %v5572 = vunpack.c.l.b16 %v5262
        %v5573 = vunpack.c.l.b16 %v5276
        %v5574 = vunpack.c.l.b16 %v5286
        %v5575 = vpack.c.b16 %v5544, %v5543
        %v5576 = vpack.c.b16 %v5546, %v5545
        %v5577 = vpack.c.b16 %v5548, %v5547
        %v5578 = vpack.c.b16 %v5550, %v5549
        %v5579 = vpack.c.b16 %v5552, %v5551
        %v5580 = vpack.c.b16 %v5554, %v5553
        %v5581 = vpack.c.b16 %v5556, %v5555
        %v5582 = vpack.c.b16 %v5558, %v5557
        %v5583 = vpack.c.b16 %v5560, %v5559
        %v5584 = vpack.c.b16 %v5562, %v5561
        %v5585 = vpack.c.b16 %v5564, %v5563
        %v5586 = vpack.c.b16 %v5566, %v5565
        %v5587 = vpack.c.b16 %v5568, %v5567
        %v5588 = vpack.c.b16 %v5570, %v5569
        %v5589 = vpack.c.b16 %v5572, %v5571
        %v5590 = vpack.c.b16 %v5574, %v5573
        %v5607 = vunpack.c.l.b16 %v5354
        %v5608 = vunpack.c.l.b16 %v5357
        %v5609 = vunpack.c.l.b16 %v5361
        %v5610 = vunpack.c.l.b16 %v5364
        %v5611 = vunpack.c.l.b16 %v5368
        %v5612 = vunpack.c.l.b16 %v5371
        %v5613 = vunpack.c.l.b16 %v5375
        %v5614 = vunpack.c.l.b16 %v5378
        %v5615 = vunpack.c.l.b16 %v5382
        %v5616 = vunpack.c.l.b16 %v5385
        %v5617 = vunpack.c.l.b16 %v5389
        %v5618 = vunpack.c.l.b16 %v5392
        %v5619 = vunpack.c.l.b16 %v5396
        %v5620 = vunpack.c.l.b16 %v5399
        %v5621 = vunpack.c.l.b16 %v5403
        %v5622 = vunpack.c.l.b16 %v5406
        %v5623 = vunpack.c.l.b16 %v5410
        %v5624 = vunpack.c.l.b16 %v5413
        %v5625 = vunpack.c.l.b16 %v5417
        %v5626 = vunpack.c.l.b16 %v5420
        %v5627 = vunpack.c.l.b16 %v5424
        %v5628 = vunpack.c.l.b16 %v5427
        %v5629 = vunpack.c.l.b16 %v5431
        %v5630 = vunpack.c.l.b16 %v5434
        %v5631 = vunpack.c.l.b16 %v5438
        %v5632 = vunpack.c.l.b16 %v5441
        %v5633 = vunpack.c.l.b16 %v5445
        %v5634 = vunpack.c.l.b16 %v5448
        %v5635 = vunpack.c.l.b16 %v5452
        %v5636 = vunpack.c.l.b16 %v5455
        %v5637 = vunpack.c.l.b16 %v5459
        %v5638 = vunpack.c.l.b16 %v5462
        %v5639 = vpack.c.b16 %v5608, %v5607
        %v5640 = vpack.c.b16 %v5610, %v5609
        %v5641 = vpack.c.b16 %v5612, %v5611
        %v5642 = vpack.c.b16 %v5614, %v5613
        %v5643 = vpack.c.b16 %v5616, %v5615
        %v5644 = vpack.c.b16 %v5618, %v5617
        %v5645 = vpack.c.b16 %v5620, %v5619
        %v5646 = vpack.c.b16 %v5622, %v5621
        %v5647 = vpack.c.b16 %v5624, %v5623
        %v5648 = vpack.c.b16 %v5626, %v5625
        %v5649 = vpack.c.b16 %v5628, %v5627
        %v5650 = vpack.c.b16 %v5630, %v5629
        %v5651 = vpack.c.b16 %v5632, %v5631
        %v5652 = vpack.c.b16 %v5634, %v5633
        %v5653 = vpack.c.b16 %v5636, %v5635
        %v5654 = vpack.c.b16 %v5638, %v5637
        %v5671 = vld [vmem:[#allocation4] sm:$0xf]
        %v5672 = vld [vmem:[#allocation4 + $0x4] sm:$0xf]
        %v5673 = vld [vmem:[#allocation4 + $0x8] sm:$0xf]
        %v5674 = vld [vmem:[#allocation4 + $0xc] sm:$0xf]
        %v5675 = vld [vmem:[#allocation4 + $0x10] sm:$0xf]
        %v5676 = vld [vmem:[#allocation4 + $0x14] sm:$0xf]
        %v5677 = vld [vmem:[#allocation4 + $0x18] sm:$0xf]
        %v5678 = vld [vmem:[#allocation4 + $0x1c] sm:$0xf]
        %v5679 = vld [vmem:[#allocation4 + $0x20] sm:$0xf]
        %v5680 = vld [vmem:[#allocation4 + $0x24] sm:$0xf]
        %v5681 = vld [vmem:[#allocation4 + $0x28] sm:$0xf]
        %v5682 = vld [vmem:[#allocation4 + $0x2c] sm:$0xf]
        %v5683 = vld [vmem:[#allocation4 + $0x30] sm:$0xf]
        %v5684 = vld [vmem:[#allocation4 + $0x34] sm:$0xf]
        %v5685 = vld [vmem:[#allocation4 + $0x38] sm:$0xf]
        %v5686 = vld [vmem:[#allocation4 + $0x3c] sm:$0xf]
        %v5687 = vld [vmem:[#allocation4 + $0x40] sm:$0xf]
        %v5688 = vld [vmem:[#allocation4 + $0x44] sm:$0xf]
        %v5689 = vld [vmem:[#allocation4 + $0x48] sm:$0xf]
        %v5690 = vld [vmem:[#allocation4 + $0x4c] sm:$0xf]
        %v5691 = vld [vmem:[#allocation4 + $0x50] sm:$0xf]
        %v5692 = vld [vmem:[#allocation4 + $0x54] sm:$0xf]
        %v5693 = vld [vmem:[#allocation4 + $0x58] sm:$0xf]
        %v5694 = vld [vmem:[#allocation4 + $0x5c] sm:$0xf]
        %v5695 = vld [vmem:[#allocation4 + $0x60] sm:$0xf]
        %v5696 = vld [vmem:[#allocation4 + $0x64] sm:$0xf]
        %v5697 = vld [vmem:[#allocation4 + $0x68] sm:$0xf]
        %v5698 = vld [vmem:[#allocation4 + $0x6c] sm:$0xf]
        %v5699 = vld [vmem:[#allocation4 + $0x70] sm:$0xf]
        %v5700 = vld [vmem:[#allocation4 + $0x74] sm:$0xf]
        %v5701 = vld [vmem:[#allocation4 + $0x78] sm:$0xf]
        %v5702 = vld [vmem:[#allocation4 + $0x7c] sm:$0xf]
        %v5703 = vld [vmem:[#allocation4 + $0x80] sm:$0xf]
        %v5704 = vld [vmem:[#allocation4 + $0x84] sm:$0xf]
        %v5705 = vld [vmem:[#allocation4 + $0x88] sm:$0xf]
        %v5706 = vld [vmem:[#allocation4 + $0x8c] sm:$0xf]
        %v5707 = vld [vmem:[#allocation4 + $0x90] sm:$0xf]
        %v5708 = vld [vmem:[#allocation4 + $0x94] sm:$0xf]
        %v5709 = vld [vmem:[#allocation4 + $0x98] sm:$0xf]
        %v5710 = vld [vmem:[#allocation4 + $0x9c] sm:$0xf]
        %v5711 = vld [vmem:[#allocation4 + $0xa0] sm:$0xf]
        %v5712 = vld [vmem:[#allocation4 + $0xa4] sm:$0xf]
        %v5713 = vld [vmem:[#allocation4 + $0xa8] sm:$0xf]
        %v5714 = vld [vmem:[#allocation4 + $0xac] sm:$0xf]
        %v5715 = vld [vmem:[#allocation4 + $0xb0] sm:$0xf]
        %v5716 = vld [vmem:[#allocation4 + $0xb4] sm:$0xf]
        %v5717 = vld [vmem:[#allocation4 + $0xb8] sm:$0xf]
        %v5718 = vld [vmem:[#allocation4 + $0xbc] sm:$0xf]
        %v5719 = vld [vmem:[%s4740] sm:$0xf]
        %v5720 = vld [vmem:[%s4740 + $0x4] sm:$0xf]
        %v5721 = vld [vmem:[%s4740 + $0xc] sm:$0xf]
        %v5722 = vld [vmem:[%s4740 + $0x10] sm:$0xf]
        %v5723 = vld [vmem:[%s4740 + $0x18] sm:$0xf]
        %v5724 = vld [vmem:[%s4740 + $0x1c] sm:$0xf]
        %v5725 = vld [vmem:[%s4740 + $0x24] sm:$0xf]
        %v5726 = vld [vmem:[%s4740 + $0x28] sm:$0xf]
        %v5727 = vld [vmem:[%s4740 + $0x30] sm:$0xf]
        %v5728 = vld [vmem:[%s4740 + $0x34] sm:$0xf]
        %v5729 = vld [vmem:[%s4740 + $0x3c] sm:$0xf]
        %v5730 = vld [vmem:[%s4740 + $0x40] sm:$0xf]
        %v5731 = vld [vmem:[%s4740 + $0x48] sm:$0xf]
        %v5732 = vld [vmem:[%s4740 + $0x4c] sm:$0xf]
        %v5733 = vld [vmem:[%s4740 + $0x54] sm:$0xf]
        %v5734 = vld [vmem:[%s4740 + $0x58] sm:$0xf]
        %v5735 = vld [vmem:[%s4740 + $0x60] sm:$0xf]
        %v5736 = vld [vmem:[%s4740 + $0x64] sm:$0xf]
        %v5737 = vld [vmem:[%s4740 + $0x6c] sm:$0xf]
        %v5738 = vld [vmem:[%s4740 + $0x70] sm:$0xf]
        %v5739 = vld [vmem:[%s4740 + $0x78] sm:$0xf]
        %v5740 = vld [vmem:[%s4740 + $0x7c] sm:$0xf]
        %v5741 = vld [vmem:[%s4740 + $0x84] sm:$0xf]
        %v5742 = vld [vmem:[%s4740 + $0x88] sm:$0xf]
        %v5743 = vld [vmem:[%s4740 + $0x90] sm:$0xf]
        %v5744 = vld [vmem:[%s4740 + $0x94] sm:$0xf]
        %v5745 = vld [vmem:[%s4740 + $0x9c] sm:$0xf]
        %v5746 = vld [vmem:[%s4740 + $0xa0] sm:$0xf]
        %v5747 = vld [vmem:[%s4740 + $0xa8] sm:$0xf]
        %v5748 = vld [vmem:[%s4740 + $0xac] sm:$0xf]
        %v5749 = vld [vmem:[%s4740 + $0xb4] sm:$0xf]
        %v5750 = vld [vmem:[%s4740 + $0xb8] sm:$0xf]
        %v5751 = vld [vmem:[%s4740 + $0x8] sm:$0x1]
        %v5752 = vld [vmem:[%s4740 + $0x14] sm:$0x1]
        %v5753 = vld [vmem:[%s4740 + $0x20] sm:$0x1]
        %v5754 = vld [vmem:[%s4740 + $0x2c] sm:$0x1]
        %v5755 = vld [vmem:[%s4740 + $0x38] sm:$0x1]
        %v5756 = vld [vmem:[%s4740 + $0x44] sm:$0x1]
        %v5757 = vld [vmem:[%s4740 + $0x50] sm:$0x1]
        %v5758 = vld [vmem:[%s4740 + $0x5c] sm:$0x1]
        %v5759 = vld [vmem:[%s4740 + $0x68] sm:$0x1]
        %v5760 = vld [vmem:[%s4740 + $0x74] sm:$0x1]
        %v5761 = vld [vmem:[%s4740 + $0x80] sm:$0x1]
        %v5762 = vld [vmem:[%s4740 + $0x8c] sm:$0x1]
        %v5763 = vld [vmem:[%s4740 + $0x98] sm:$0x1]
        %v5764 = vld [vmem:[%s4740 + $0xa4] sm:$0x1]
        %v5765 = vld [vmem:[%s4740 + $0xb0] sm:$0x1]
        %v5766 = vld [vmem:[%s4740 + $0xbc] sm:$0x1]
        %v5768 = vshrl.u32 %v5719, 16
        %v5770 = vrot.slane %v5768, 4
        %v5771 = vshll.u32 %v5719, 16
        %v5773 = vrot.slane %v5771, 5
        %v5774 = vor.u32 %v5770, %v5773
        %v5775 = vrot.slane %v5774, 4
        %v5777 = vshll.u32 %v5720, 16
        %v5779 = vrot.slane %v5777, 5
        %v5780 = vsel %vm1074, %v5775, %v5779
        %v5781 = vshrl.u32 %v5720, 16
        %v5783 = vrot.slane %v5781, 4
        %v5784 = vor.u32 %v5783, %v5779
        %v5785 = vrot.slane %v5784, 4
        %v5787 = vshll.u32 %v5751, 16
        %v5789 = vrot.slane %v5787, 5
        %v5790 = vsel %vm1074, %v5785, %v5789
        %v5792 = vshrl.u32 %v5721, 16
        %v5794 = vrot.slane %v5792, 4
        %v5795 = vshll.u32 %v5721, 16
        %v5797 = vrot.slane %v5795, 5
        %v5798 = vor.u32 %v5794, %v5797
        %v5799 = vrot.slane %v5798, 4
        %v5801 = vshll.u32 %v5722, 16
        %v5803 = vrot.slane %v5801, 5
        %v5804 = vsel %vm1074, %v5799, %v5803
        %v5805 = vshrl.u32 %v5722, 16
        %v5807 = vrot.slane %v5805, 4
        %v5808 = vor.u32 %v5807, %v5803
        %v5809 = vrot.slane %v5808, 4
        %v5811 = vshll.u32 %v5752, 16
        %v5813 = vrot.slane %v5811, 5
        %v5814 = vsel %vm1074, %v5809, %v5813
        %v5816 = vshrl.u32 %v5723, 16
        %v5818 = vrot.slane %v5816, 4
        %v5819 = vshll.u32 %v5723, 16
        %v5821 = vrot.slane %v5819, 5
        %v5822 = vor.u32 %v5818, %v5821
        %v5823 = vrot.slane %v5822, 4
        %v5825 = vshll.u32 %v5724, 16
        %v5827 = vrot.slane %v5825, 5
        %v5828 = vsel %vm1074, %v5823, %v5827
        %v5829 = vshrl.u32 %v5724, 16
        %v5831 = vrot.slane %v5829, 4
        %v5832 = vor.u32 %v5831, %v5827
        %v5833 = vrot.slane %v5832, 4
        %v5835 = vshll.u32 %v5753, 16
        %v5837 = vrot.slane %v5835, 5
        %v5838 = vsel %vm1074, %v5833, %v5837
        %v5840 = vshrl.u32 %v5725, 16
        %v5842 = vrot.slane %v5840, 4
        %v5843 = vshll.u32 %v5725, 16
        %v5845 = vrot.slane %v5843, 5
        %v5846 = vor.u32 %v5842, %v5845
        %v5847 = vrot.slane %v5846, 4
        %v5849 = vshll.u32 %v5726, 16
        %v5851 = vrot.slane %v5849, 5
        %v5852 = vsel %vm1074, %v5847, %v5851
        %v5853 = vshrl.u32 %v5726, 16
        %v5855 = vrot.slane %v5853, 4
        %v5856 = vor.u32 %v5855, %v5851
        %v5857 = vrot.slane %v5856, 4
        %v5859 = vshll.u32 %v5754, 16
        %v5861 = vrot.slane %v5859, 5
        %v5862 = vsel %vm1074, %v5857, %v5861
        %v5864 = vshrl.u32 %v5727, 16
        %v5866 = vrot.slane %v5864, 4
        %v5867 = vshll.u32 %v5727, 16
        %v5869 = vrot.slane %v5867, 5
        %v5870 = vor.u32 %v5866, %v5869
        %v5871 = vrot.slane %v5870, 4
        %v5873 = vshll.u32 %v5728, 16
        %v5875 = vrot.slane %v5873, 5
        %v5876 = vsel %vm1074, %v5871, %v5875
        %v5877 = vshrl.u32 %v5728, 16
        %v5879 = vrot.slane %v5877, 4
        %v5880 = vor.u32 %v5879, %v5875
        %v5881 = vrot.slane %v5880, 4
        %v5883 = vshll.u32 %v5755, 16
        %v5885 = vrot.slane %v5883, 5
        %v5886 = vsel %vm1074, %v5881, %v5885
        %v5888 = vshrl.u32 %v5729, 16
        %v5890 = vrot.slane %v5888, 4
        %v5891 = vshll.u32 %v5729, 16
        %v5893 = vrot.slane %v5891, 5
        %v5894 = vor.u32 %v5890, %v5893
        %v5895 = vrot.slane %v5894, 4
        %v5897 = vshll.u32 %v5730, 16
        %v5899 = vrot.slane %v5897, 5
        %v5900 = vsel %vm1074, %v5895, %v5899
        %v5901 = vshrl.u32 %v5730, 16
        %v5903 = vrot.slane %v5901, 4
        %v5904 = vor.u32 %v5903, %v5899
        %v5905 = vrot.slane %v5904, 4
        %v5907 = vshll.u32 %v5756, 16
        %v5909 = vrot.slane %v5907, 5
        %v5910 = vsel %vm1074, %v5905, %v5909
        %v5912 = vshrl.u32 %v5731, 16
        %v5914 = vrot.slane %v5912, 4
        %v5915 = vshll.u32 %v5731, 16
        %v5917 = vrot.slane %v5915, 5
        %v5918 = vor.u32 %v5914, %v5917
        %v5919 = vrot.slane %v5918, 4
        %v5921 = vshll.u32 %v5732, 16
        %v5923 = vrot.slane %v5921, 5
        %v5924 = vsel %vm1074, %v5919, %v5923
        %v5925 = vshrl.u32 %v5732, 16
        %v5927 = vrot.slane %v5925, 4
        %v5928 = vor.u32 %v5927, %v5923
        %v5929 = vrot.slane %v5928, 4
        %v5931 = vshll.u32 %v5757, 16
        %v5933 = vrot.slane %v5931, 5
        %v5934 = vsel %vm1074, %v5929, %v5933
        %v5936 = vshrl.u32 %v5733, 16
        %v5938 = vrot.slane %v5936, 4
        %v5939 = vshll.u32 %v5733, 16
        %v5941 = vrot.slane %v5939, 5
        %v5942 = vor.u32 %v5938, %v5941
        %v5943 = vrot.slane %v5942, 4
        %v5945 = vshll.u32 %v5734, 16
        %v5947 = vrot.slane %v5945, 5
        %v5948 = vsel %vm1074, %v5943, %v5947
        %v5949 = vshrl.u32 %v5734, 16
        %v5951 = vrot.slane %v5949, 4
        %v5952 = vor.u32 %v5951, %v5947
        %v5953 = vrot.slane %v5952, 4
        %v5955 = vshll.u32 %v5758, 16
        %v5957 = vrot.slane %v5955, 5
        %v5958 = vsel %vm1074, %v5953, %v5957
        %v5960 = vshrl.u32 %v5735, 16
        %v5962 = vrot.slane %v5960, 4
        %v5963 = vshll.u32 %v5735, 16
        %v5965 = vrot.slane %v5963, 5
        %v5966 = vor.u32 %v5962, %v5965
        %v5967 = vrot.slane %v5966, 4
        %v5969 = vshll.u32 %v5736, 16
        %v5971 = vrot.slane %v5969, 5
        %v5972 = vsel %vm1074, %v5967, %v5971
        %v5973 = vshrl.u32 %v5736, 16
        %v5975 = vrot.slane %v5973, 4
        %v5976 = vor.u32 %v5975, %v5971
        %v5977 = vrot.slane %v5976, 4
        %v5979 = vshll.u32 %v5759, 16
        %v5981 = vrot.slane %v5979, 5
        %v5982 = vsel %vm1074, %v5977, %v5981
        %v5984 = vshrl.u32 %v5737, 16
        %v5986 = vrot.slane %v5984, 4
        %v5987 = vshll.u32 %v5737, 16
        %v5989 = vrot.slane %v5987, 5
        %v5990 = vor.u32 %v5986, %v5989
        %v5991 = vrot.slane %v5990, 4
        %v5993 = vshll.u32 %v5738, 16
        %v5995 = vrot.slane %v5993, 5
        %v5996 = vsel %vm1074, %v5991, %v5995
        %v5997 = vshrl.u32 %v5738, 16
        %v5999 = vrot.slane %v5997, 4
        %v6000 = vor.u32 %v5999, %v5995
        %v6001 = vrot.slane %v6000, 4
        %v6003 = vshll.u32 %v5760, 16
        %v6005 = vrot.slane %v6003, 5
        %v6006 = vsel %vm1074, %v6001, %v6005
        %v6008 = vshrl.u32 %v5739, 16
        %v6010 = vrot.slane %v6008, 4
        %v6011 = vshll.u32 %v5739, 16
        %v6013 = vrot.slane %v6011, 5
        %v6014 = vor.u32 %v6010, %v6013
        %v6015 = vrot.slane %v6014, 4
        %v6017 = vshll.u32 %v5740, 16
        %v6019 = vrot.slane %v6017, 5
        %v6020 = vsel %vm1074, %v6015, %v6019
        %v6021 = vshrl.u32 %v5740, 16
        %v6023 = vrot.slane %v6021, 4
        %v6024 = vor.u32 %v6023, %v6019
        %v6025 = vrot.slane %v6024, 4
        %v6027 = vshll.u32 %v5761, 16
        %v6029 = vrot.slane %v6027, 5
        %v6030 = vsel %vm1074, %v6025, %v6029
        %v6032 = vshrl.u32 %v5741, 16
        %v6034 = vrot.slane %v6032, 4
        %v6035 = vshll.u32 %v5741, 16
        %v6037 = vrot.slane %v6035, 5
        %v6038 = vor.u32 %v6034, %v6037
        %v6039 = vrot.slane %v6038, 4
        %v6041 = vshll.u32 %v5742, 16
        %v6043 = vrot.slane %v6041, 5
        %v6044 = vsel %vm1074, %v6039, %v6043
        %v6045 = vshrl.u32 %v5742, 16
        %v6047 = vrot.slane %v6045, 4
        %v6048 = vor.u32 %v6047, %v6043
        %v6049 = vrot.slane %v6048, 4
        %v6051 = vshll.u32 %v5762, 16
        %v6053 = vrot.slane %v6051, 5
        %v6054 = vsel %vm1074, %v6049, %v6053
        %v6056 = vshrl.u32 %v5743, 16
        %v6058 = vrot.slane %v6056, 4
        %v6059 = vshll.u32 %v5743, 16
        %v6061 = vrot.slane %v6059, 5
        %v6062 = vor.u32 %v6058, %v6061
        %v6063 = vrot.slane %v6062, 4
        %v6065 = vshll.u32 %v5744, 16
        %v6067 = vrot.slane %v6065, 5
        %v6068 = vsel %vm1074, %v6063, %v6067
        %v6069 = vshrl.u32 %v5744, 16
        %v6071 = vrot.slane %v6069, 4
        %v6072 = vor.u32 %v6071, %v6067
        %v6073 = vrot.slane %v6072, 4
        %v6075 = vshll.u32 %v5763, 16
        %v6077 = vrot.slane %v6075, 5
        %v6078 = vsel %vm1074, %v6073, %v6077
        %v6080 = vshrl.u32 %v5745, 16
        %v6082 = vrot.slane %v6080, 4
        %v6083 = vshll.u32 %v5745, 16
        %v6085 = vrot.slane %v6083, 5
        %v6086 = vor.u32 %v6082, %v6085
        %v6087 = vrot.slane %v6086, 4
        %v6089 = vshll.u32 %v5746, 16
        %v6091 = vrot.slane %v6089, 5
        %v6092 = vsel %vm1074, %v6087, %v6091
        %v6093 = vshrl.u32 %v5746, 16
        %v6095 = vrot.slane %v6093, 4
        %v6096 = vor.u32 %v6095, %v6091
        %v6097 = vrot.slane %v6096, 4
        %v6099 = vshll.u32 %v5764, 16
        %v6101 = vrot.slane %v6099, 5
        %v6102 = vsel %vm1074, %v6097, %v6101
        %v6104 = vshrl.u32 %v5747, 16
        %v6106 = vrot.slane %v6104, 4
        %v6107 = vshll.u32 %v5747, 16
        %v6109 = vrot.slane %v6107, 5
        %v6110 = vor.u32 %v6106, %v6109
        %v6111 = vrot.slane %v6110, 4
        %v6113 = vshll.u32 %v5748, 16
        %v6115 = vrot.slane %v6113, 5
        %v6116 = vsel %vm1074, %v6111, %v6115
        %v6117 = vshrl.u32 %v5748, 16
        %v6119 = vrot.slane %v6117, 4
        %v6120 = vor.u32 %v6119, %v6115
        %v6121 = vrot.slane %v6120, 4
        %v6123 = vshll.u32 %v5765, 16
        %v6125 = vrot.slane %v6123, 5
        %v6126 = vsel %vm1074, %v6121, %v6125
        %v6128 = vshrl.u32 %v5749, 16
        %v6130 = vrot.slane %v6128, 4
        %v6131 = vshll.u32 %v5749, 16
        %v6133 = vrot.slane %v6131, 5
        %v6134 = vor.u32 %v6130, %v6133
        %v6135 = vrot.slane %v6134, 4
        %v6137 = vshll.u32 %v5750, 16
        %v6139 = vrot.slane %v6137, 5
        %v6140 = vsel %vm1074, %v6135, %v6139
        %v6141 = vshrl.u32 %v5750, 16
        %v6143 = vrot.slane %v6141, 4
        %v6144 = vor.u32 %v6143, %v6139
        %v6145 = vrot.slane %v6144, 4
        %v6147 = vshll.u32 %v5766, 16
        %v6149 = vrot.slane %v6147, 5
        %v6150 = vsel %vm1074, %v6145, %v6149
        %v6151 = vld [vmem:[%s4740] sm:$0xe]
        %v6152 = vld [vmem:[%s4740 + $0xc] sm:$0xe]
        %v6153 = vld [vmem:[%s4740 + $0x18] sm:$0xe]
        %v6154 = vld [vmem:[%s4740 + $0x24] sm:$0xe]
        %v6155 = vld [vmem:[%s4740 + $0x30] sm:$0xe]
        %v6156 = vld [vmem:[%s4740 + $0x3c] sm:$0xe]
        %v6157 = vld [vmem:[%s4740 + $0x48] sm:$0xe]
        %v6158 = vld [vmem:[%s4740 + $0x54] sm:$0xe]
        %v6159 = vld [vmem:[%s4740 + $0x60] sm:$0xe]
        %v6160 = vld [vmem:[%s4740 + $0x6c] sm:$0xe]
        %v6161 = vld [vmem:[%s4740 + $0x78] sm:$0xe]
        %v6162 = vld [vmem:[%s4740 + $0x84] sm:$0xe]
        %v6163 = vld [vmem:[%s4740 + $0x90] sm:$0xe]
        %v6164 = vld [vmem:[%s4740 + $0x9c] sm:$0xe]
        %v6165 = vld [vmem:[%s4740 + $0xa8] sm:$0xe]
        %v6166 = vld [vmem:[%s4740 + $0xb4] sm:$0xe]
        %v6215 = vrot.slane %v6151, 5
        %v6216 = vrot.slane %v6215, 4
        %v6217 = vrot.slane %v5720, 5
        %v6218 = vsel %vm1525, %v6216, %v6217
        %v6219 = vrot.slane %v6217, 4
        %v6220 = vrot.slane %v5751, 5
        %v6221 = vsel %vm1525, %v6219, %v6220
        %v6222 = vrot.slane %v6152, 5
        %v6223 = vrot.slane %v6222, 4
        %v6224 = vrot.slane %v5722, 5
        %v6225 = vsel %vm1525, %v6223, %v6224
        %v6226 = vrot.slane %v6224, 4
        %v6227 = vrot.slane %v5752, 5
        %v6228 = vsel %vm1525, %v6226, %v6227
        %v6229 = vrot.slane %v6153, 5
        %v6230 = vrot.slane %v6229, 4
        %v6231 = vrot.slane %v5724, 5
        %v6232 = vsel %vm1525, %v6230, %v6231
        %v6233 = vrot.slane %v6231, 4
        %v6234 = vrot.slane %v5753, 5
        %v6235 = vsel %vm1525, %v6233, %v6234
        %v6236 = vrot.slane %v6154, 5
        %v6237 = vrot.slane %v6236, 4
        %v6238 = vrot.slane %v5726, 5
        %v6239 = vsel %vm1525, %v6237, %v6238
        %v6240 = vrot.slane %v6238, 4
        %v6241 = vrot.slane %v5754, 5
        %v6242 = vsel %vm1525, %v6240, %v6241
        %v6243 = vrot.slane %v6155, 5
        %v6244 = vrot.slane %v6243, 4
        %v6245 = vrot.slane %v5728, 5
        %v6246 = vsel %vm1525, %v6244, %v6245
        %v6247 = vrot.slane %v6245, 4
        %v6248 = vrot.slane %v5755, 5
        %v6249 = vsel %vm1525, %v6247, %v6248
        %v6250 = vrot.slane %v6156, 5
        %v6251 = vrot.slane %v6250, 4
        %v6252 = vrot.slane %v5730, 5
        %v6253 = vsel %vm1525, %v6251, %v6252
        %v6254 = vrot.slane %v6252, 4
        %v6255 = vrot.slane %v5756, 5
        %v6256 = vsel %vm1525, %v6254, %v6255
        %v6257 = vrot.slane %v6157, 5
        %v6258 = vrot.slane %v6257, 4
        %v6259 = vrot.slane %v5732, 5
        %v6260 = vsel %vm1525, %v6258, %v6259
        %v6261 = vrot.slane %v6259, 4
        %v6262 = vrot.slane %v5757, 5
        %v6263 = vsel %vm1525, %v6261, %v6262
        %v6264 = vrot.slane %v6158, 5
        %v6265 = vrot.slane %v6264, 4
        %v6266 = vrot.slane %v5734, 5
        %v6267 = vsel %vm1525, %v6265, %v6266
        %v6268 = vrot.slane %v6266, 4
        %v6269 = vrot.slane %v5758, 5
        %v6270 = vsel %vm1525, %v6268, %v6269
        %v6271 = vrot.slane %v6159, 5
        %v6272 = vrot.slane %v6271, 4
        %v6273 = vrot.slane %v5736, 5
        %v6274 = vsel %vm1525, %v6272, %v6273
        %v6275 = vrot.slane %v6273, 4
        %v6276 = vrot.slane %v5759, 5
        %v6277 = vsel %vm1525, %v6275, %v6276
        %v6278 = vrot.slane %v6160, 5
        %v6279 = vrot.slane %v6278, 4
        %v6280 = vrot.slane %v5738, 5
        %v6281 = vsel %vm1525, %v6279, %v6280
        %v6282 = vrot.slane %v6280, 4
        %v6283 = vrot.slane %v5760, 5
        %v6284 = vsel %vm1525, %v6282, %v6283
        %v6285 = vrot.slane %v6161, 5
        %v6286 = vrot.slane %v6285, 4
        %v6287 = vrot.slane %v5740, 5
        %v6288 = vsel %vm1525, %v6286, %v6287
        %v6289 = vrot.slane %v6287, 4
        %v6290 = vrot.slane %v5761, 5
        %v6291 = vsel %vm1525, %v6289, %v6290
        %v6292 = vrot.slane %v6162, 5
        %v6293 = vrot.slane %v6292, 4
        %v6294 = vrot.slane %v5742, 5
        %v6295 = vsel %vm1525, %v6293, %v6294
        %v6296 = vrot.slane %v6294, 4
        %v6297 = vrot.slane %v5762, 5
        %v6298 = vsel %vm1525, %v6296, %v6297
        %v6299 = vrot.slane %v6163, 5
        %v6300 = vrot.slane %v6299, 4
        %v6301 = vrot.slane %v5744, 5
        %v6302 = vsel %vm1525, %v6300, %v6301
        %v6303 = vrot.slane %v6301, 4
        %v6304 = vrot.slane %v5763, 5
        %v6305 = vsel %vm1525, %v6303, %v6304
        %v6306 = vrot.slane %v6164, 5
        %v6307 = vrot.slane %v6306, 4
        %v6308 = vrot.slane %v5746, 5
        %v6309 = vsel %vm1525, %v6307, %v6308
        %v6310 = vrot.slane %v6308, 4
        %v6311 = vrot.slane %v5764, 5
        %v6312 = vsel %vm1525, %v6310, %v6311
        %v6313 = vrot.slane %v6165, 5
        %v6314 = vrot.slane %v6313, 4
        %v6315 = vrot.slane %v5748, 5
        %v6316 = vsel %vm1525, %v6314, %v6315
        %v6317 = vrot.slane %v6315, 4
        %v6318 = vrot.slane %v5765, 5
        %v6319 = vsel %vm1525, %v6317, %v6318
        %v6320 = vrot.slane %v6166, 5
        %v6321 = vrot.slane %v6320, 4
        %v6322 = vrot.slane %v5750, 5
        %v6323 = vsel %vm1525, %v6321, %v6322
        %v6324 = vrot.slane %v6322, 4
        %v6325 = vrot.slane %v5766, 5
        %v6326 = vsel %vm1525, %v6324, %v6325
        %v6343 = vunpack.c.l.b16 %v5719
        %v6344 = vunpack.c.l.b16 %v5720
        %v6345 = vunpack.c.l.b16 %v5721
        %v6346 = vunpack.c.l.b16 %v5722
        %v6347 = vunpack.c.l.b16 %v5723
        %v6348 = vunpack.c.l.b16 %v5724
        %v6349 = vunpack.c.l.b16 %v5725
        %v6350 = vunpack.c.l.b16 %v5726
        %v6351 = vunpack.c.l.b16 %v5727
        %v6352 = vunpack.c.l.b16 %v5728
        %v6353 = vunpack.c.l.b16 %v5729
        %v6354 = vunpack.c.l.b16 %v5730
        %v6355 = vunpack.c.l.b16 %v5731
        %v6356 = vunpack.c.l.b16 %v5732
        %v6357 = vunpack.c.l.b16 %v5733
        %v6358 = vunpack.c.l.b16 %v5734
        %v6359 = vunpack.c.l.b16 %v5735
        %v6360 = vunpack.c.l.b16 %v5736
        %v6361 = vunpack.c.l.b16 %v5737
        %v6362 = vunpack.c.l.b16 %v5738
        %v6363 = vunpack.c.l.b16 %v5739
        %v6364 = vunpack.c.l.b16 %v5740
        %v6365 = vunpack.c.l.b16 %v5741
        %v6366 = vunpack.c.l.b16 %v5742
        %v6367 = vunpack.c.l.b16 %v5743
        %v6368 = vunpack.c.l.b16 %v5744
        %v6369 = vunpack.c.l.b16 %v5745
        %v6370 = vunpack.c.l.b16 %v5746
        %v6371 = vunpack.c.l.b16 %v5747
        %v6372 = vunpack.c.l.b16 %v5748
        %v6373 = vunpack.c.l.b16 %v5749
        %v6374 = vunpack.c.l.b16 %v5750
        %v6375 = vpack.c.b16 %v6344, %v6343
        %v6376 = vpack.c.b16 %v6346, %v6345
        %v6377 = vpack.c.b16 %v6348, %v6347
        %v6378 = vpack.c.b16 %v6350, %v6349
        %v6379 = vpack.c.b16 %v6352, %v6351
        %v6380 = vpack.c.b16 %v6354, %v6353
        %v6381 = vpack.c.b16 %v6356, %v6355
        %v6382 = vpack.c.b16 %v6358, %v6357
        %v6383 = vpack.c.b16 %v6360, %v6359
        %v6384 = vpack.c.b16 %v6362, %v6361
        %v6385 = vpack.c.b16 %v6364, %v6363
        %v6386 = vpack.c.b16 %v6366, %v6365
        %v6387 = vpack.c.b16 %v6368, %v6367
        %v6388 = vpack.c.b16 %v6370, %v6369
        %v6389 = vpack.c.b16 %v6372, %v6371
        %v6390 = vpack.c.b16 %v6374, %v6373
        %v6407 = vunpack.c.l.b16 %v5780
        %v6408 = vunpack.c.l.b16 %v5790
        %v6409 = vunpack.c.l.b16 %v5804
        %v6410 = vunpack.c.l.b16 %v5814
        %v6411 = vunpack.c.l.b16 %v5828
        %v6412 = vunpack.c.l.b16 %v5838
        %v6413 = vunpack.c.l.b16 %v5852
        %v6414 = vunpack.c.l.b16 %v5862
        %v6415 = vunpack.c.l.b16 %v5876
        %v6416 = vunpack.c.l.b16 %v5886
        %v6417 = vunpack.c.l.b16 %v5900
        %v6418 = vunpack.c.l.b16 %v5910
        %v6419 = vunpack.c.l.b16 %v5924
        %v6420 = vunpack.c.l.b16 %v5934
        %v6421 = vunpack.c.l.b16 %v5948
        %v6422 = vunpack.c.l.b16 %v5958
        %v6423 = vunpack.c.l.b16 %v5972
        %v6424 = vunpack.c.l.b16 %v5982
        %v6425 = vunpack.c.l.b16 %v5996
        %v6426 = vunpack.c.l.b16 %v6006
        %v6427 = vunpack.c.l.b16 %v6020
        %v6428 = vunpack.c.l.b16 %v6030
        %v6429 = vunpack.c.l.b16 %v6044
        %v6430 = vunpack.c.l.b16 %v6054
        %v6431 = vunpack.c.l.b16 %v6068
        %v6432 = vunpack.c.l.b16 %v6078
        %v6433 = vunpack.c.l.b16 %v6092
        %v6434 = vunpack.c.l.b16 %v6102
        %v6435 = vunpack.c.l.b16 %v6116
        %v6436 = vunpack.c.l.b16 %v6126
        %v6437 = vunpack.c.l.b16 %v6140
        %v6438 = vunpack.c.l.b16 %v6150
        %v6439 = vpack.c.b16 %v6408, %v6407
        %v6440 = vpack.c.b16 %v6410, %v6409
        %v6441 = vpack.c.b16 %v6412, %v6411
        %v6442 = vpack.c.b16 %v6414, %v6413
        %v6443 = vpack.c.b16 %v6416, %v6415
        %v6444 = vpack.c.b16 %v6418, %v6417
        %v6445 = vpack.c.b16 %v6420, %v6419
        %v6446 = vpack.c.b16 %v6422, %v6421
        %v6447 = vpack.c.b16 %v6424, %v6423
        %v6448 = vpack.c.b16 %v6426, %v6425
        %v6449 = vpack.c.b16 %v6428, %v6427
        %v6450 = vpack.c.b16 %v6430, %v6429
        %v6451 = vpack.c.b16 %v6432, %v6431
        %v6452 = vpack.c.b16 %v6434, %v6433
        %v6453 = vpack.c.b16 %v6436, %v6435
        %v6454 = vpack.c.b16 %v6438, %v6437
        %v6471 = vunpack.c.l.b16 %v6218
        %v6472 = vunpack.c.l.b16 %v6221
        %v6473 = vunpack.c.l.b16 %v6225
        %v6474 = vunpack.c.l.b16 %v6228
        %v6475 = vunpack.c.l.b16 %v6232
        %v6476 = vunpack.c.l.b16 %v6235
        %v6477 = vunpack.c.l.b16 %v6239
        %v6478 = vunpack.c.l.b16 %v6242
        %v6479 = vunpack.c.l.b16 %v6246
        %v6480 = vunpack.c.l.b16 %v6249
        %v6481 = vunpack.c.l.b16 %v6253
        %v6482 = vunpack.c.l.b16 %v6256
        %v6483 = vunpack.c.l.b16 %v6260
        %v6484 = vunpack.c.l.b16 %v6263
        %v6485 = vunpack.c.l.b16 %v6267
        %v6486 = vunpack.c.l.b16 %v6270
        %v6487 = vunpack.c.l.b16 %v6274
        %v6488 = vunpack.c.l.b16 %v6277
        %v6489 = vunpack.c.l.b16 %v6281
        %v6490 = vunpack.c.l.b16 %v6284
        %v6491 = vunpack.c.l.b16 %v6288
        %v6492 = vunpack.c.l.b16 %v6291
        %v6493 = vunpack.c.l.b16 %v6295
        %v6494 = vunpack.c.l.b16 %v6298
        %v6495 = vunpack.c.l.b16 %v6302
        %v6496 = vunpack.c.l.b16 %v6305
        %v6497 = vunpack.c.l.b16 %v6309
        %v6498 = vunpack.c.l.b16 %v6312
        %v6499 = vunpack.c.l.b16 %v6316
        %v6500 = vunpack.c.l.b16 %v6319
        %v6501 = vunpack.c.l.b16 %v6323
        %v6502 = vunpack.c.l.b16 %v6326
        %v6503 = vpack.c.b16 %v6472, %v6471
        %v6504 = vpack.c.b16 %v6474, %v6473
        %v6505 = vpack.c.b16 %v6476, %v6475
        %v6506 = vpack.c.b16 %v6478, %v6477
        %v6507 = vpack.c.b16 %v6480, %v6479
        %v6508 = vpack.c.b16 %v6482, %v6481
        %v6509 = vpack.c.b16 %v6484, %v6483
        %v6510 = vpack.c.b16 %v6486, %v6485
        %v6511 = vpack.c.b16 %v6488, %v6487
        %v6512 = vpack.c.b16 %v6490, %v6489
        %v6513 = vpack.c.b16 %v6492, %v6491
        %v6514 = vpack.c.b16 %v6494, %v6493
        %v6515 = vpack.c.b16 %v6496, %v6495
        %v6516 = vpack.c.b16 %v6498, %v6497
        %v6517 = vpack.c.b16 %v6500, %v6499
        %v6518 = vpack.c.b16 %v6502, %v6501
        %v6535 = vld [vmem:[#allocation4 + $0xc0] sm:$0xf]
        %v6536 = vld [vmem:[#allocation4 + $0xc4] sm:$0xf]
        %v6537 = vld [vmem:[#allocation4 + $0xc8] sm:$0xf]
        %v6538 = vld [vmem:[#allocation4 + $0xcc] sm:$0xf]
        %v6539 = vld [vmem:[#allocation4 + $0xd0] sm:$0xf]
        %v6540 = vld [vmem:[#allocation4 + $0xd4] sm:$0xf]
        %v6541 = vld [vmem:[#allocation4 + $0xd8] sm:$0xf]
        %v6542 = vld [vmem:[#allocation4 + $0xdc] sm:$0xf]
        %v6543 = vld [vmem:[#allocation4 + $0xe0] sm:$0xf]
        %v6544 = vld [vmem:[#allocation4 + $0xe4] sm:$0xf]
        %v6545 = vld [vmem:[#allocation4 + $0xe8] sm:$0xf]
        %v6546 = vld [vmem:[#allocation4 + $0xec] sm:$0xf]
        %v6547 = vld [vmem:[#allocation4 + $0xf0] sm:$0xf]
        %v6548 = vld [vmem:[#allocation4 + $0xf4] sm:$0xf]
        %v6549 = vld [vmem:[#allocation4 + $0xf8] sm:$0xf]
        %v6550 = vld [vmem:[#allocation4 + $0xfc] sm:$0xf]
        %v6551 = vld [vmem:[#allocation4 + $0x100] sm:$0xf]
        %v6552 = vld [vmem:[#allocation4 + $0x104] sm:$0xf]
        %v6553 = vld [vmem:[#allocation4 + $0x108] sm:$0xf]
        %v6554 = vld [vmem:[#allocation4 + $0x10c] sm:$0xf]
        %v6555 = vld [vmem:[#allocation4 + $0x110] sm:$0xf]
        %v6556 = vld [vmem:[#allocation4 + $0x114] sm:$0xf]
        %v6557 = vld [vmem:[#allocation4 + $0x118] sm:$0xf]
        %v6558 = vld [vmem:[#allocation4 + $0x11c] sm:$0xf]
        %v6559 = vld [vmem:[#allocation4 + $0x120] sm:$0xf]
        %v6560 = vld [vmem:[#allocation4 + $0x124] sm:$0xf]
        %v6561 = vld [vmem:[#allocation4 + $0x128] sm:$0xf]
        %v6562 = vld [vmem:[#allocation4 + $0x12c] sm:$0xf]
        %v6563 = vld [vmem:[#allocation4 + $0x130] sm:$0xf]
        %v6564 = vld [vmem:[#allocation4 + $0x134] sm:$0xf]
        %v6565 = vld [vmem:[#allocation4 + $0x138] sm:$0xf]
        %v6566 = vld [vmem:[#allocation4 + $0x13c] sm:$0xf]
        %v6567 = vld [vmem:[#allocation4 + $0x140] sm:$0xf]
        %v6568 = vld [vmem:[#allocation4 + $0x144] sm:$0xf]
        %v6569 = vld [vmem:[#allocation4 + $0x148] sm:$0xf]
        %v6570 = vld [vmem:[#allocation4 + $0x14c] sm:$0xf]
        %v6571 = vld [vmem:[#allocation4 + $0x150] sm:$0xf]
        %v6572 = vld [vmem:[#allocation4 + $0x154] sm:$0xf]
        %v6573 = vld [vmem:[#allocation4 + $0x158] sm:$0xf]
        %v6574 = vld [vmem:[#allocation4 + $0x15c] sm:$0xf]
        %v6575 = vld [vmem:[#allocation4 + $0x160] sm:$0xf]
        %v6576 = vld [vmem:[#allocation4 + $0x164] sm:$0xf]
        %v6577 = vld [vmem:[#allocation4 + $0x168] sm:$0xf]
        %v6578 = vld [vmem:[#allocation4 + $0x16c] sm:$0xf]
        %v6579 = vld [vmem:[#allocation4 + $0x170] sm:$0xf]
        %v6580 = vld [vmem:[#allocation4 + $0x174] sm:$0xf]
        %v6581 = vld [vmem:[#allocation4 + $0x178] sm:$0xf]
        %v6582 = vld [vmem:[#allocation4 + $0x17c] sm:$0xf]
        %v6631 = vunpack.c.l.b16 %v6535
        %v6632 = vunpack.c.l.b16 %v6536
        %v6633 = vunpack.c.l.b16 %v6537
        %v6634 = vunpack.c.l.b16 %v6538
        %v6635 = vunpack.c.l.b16 %v6539
        %v6636 = vunpack.c.l.b16 %v6540
        %v6637 = vunpack.c.l.b16 %v6541
        %v6638 = vunpack.c.l.b16 %v6542
        %v6639 = vunpack.c.l.b16 %v6543
        %v6640 = vunpack.c.l.b16 %v6544
        %v6641 = vunpack.c.l.b16 %v6545
        %v6642 = vunpack.c.l.b16 %v6546
        %v6643 = vunpack.c.l.b16 %v6547
        %v6644 = vunpack.c.l.b16 %v6548
        %v6645 = vunpack.c.l.b16 %v6549
        %v6646 = vunpack.c.l.b16 %v6550
        %v6647 = vunpack.c.l.b16 %v6551
        %v6648 = vunpack.c.l.b16 %v6552
        %v6649 = vunpack.c.l.b16 %v6553
        %v6650 = vunpack.c.l.b16 %v6554
        %v6651 = vunpack.c.l.b16 %v6555
        %v6652 = vunpack.c.l.b16 %v6556
        %v6653 = vunpack.c.l.b16 %v6557
        %v6654 = vunpack.c.l.b16 %v6558
        %v6655 = vunpack.c.l.b16 %v6559
        %v6656 = vunpack.c.l.b16 %v6560
        %v6657 = vunpack.c.l.b16 %v6561
        %v6658 = vunpack.c.l.b16 %v6562
        %v6659 = vunpack.c.l.b16 %v6563
        %v6660 = vunpack.c.l.b16 %v6564
        %v6661 = vunpack.c.l.b16 %v6565
        %v6662 = vunpack.c.l.b16 %v6566
        %v6663 = vunpack.c.l.b16 %v6567
        %v6664 = vunpack.c.l.b16 %v6568
        %v6665 = vunpack.c.l.b16 %v6569
        %v6666 = vunpack.c.l.b16 %v6570
        %v6667 = vunpack.c.l.b16 %v6571
        %v6668 = vunpack.c.l.b16 %v6572
        %v6669 = vunpack.c.l.b16 %v6573
        %v6670 = vunpack.c.l.b16 %v6574
        %v6671 = vunpack.c.l.b16 %v6575
        %v6672 = vunpack.c.l.b16 %v6576
        %v6673 = vunpack.c.l.b16 %v6577
        %v6674 = vunpack.c.l.b16 %v6578
        %v6675 = vunpack.c.l.b16 %v6579
        %v6676 = vunpack.c.l.b16 %v6580
        %v6677 = vunpack.c.l.b16 %v6581
        %v6678 = vunpack.c.l.b16 %v6582
        %v6679 = vpack.c.b16 %v6632, %v6631
        %v6680 = vpack.c.b16 %v6634, %v6633
        %v6681 = vpack.c.b16 %v6636, %v6635
        %v6682 = vpack.c.b16 %v6638, %v6637
        %v6683 = vpack.c.b16 %v6640, %v6639
        %v6684 = vpack.c.b16 %v6642, %v6641
        %v6685 = vpack.c.b16 %v6644, %v6643
        %v6686 = vpack.c.b16 %v6646, %v6645
        %v6687 = vpack.c.b16 %v6648, %v6647
        %v6688 = vpack.c.b16 %v6650, %v6649
        %v6689 = vpack.c.b16 %v6652, %v6651
        %v6690 = vpack.c.b16 %v6654, %v6653
        %v6691 = vpack.c.b16 %v6656, %v6655
        %v6692 = vpack.c.b16 %v6658, %v6657
        %v6693 = vpack.c.b16 %v6660, %v6659
        %v6694 = vpack.c.b16 %v6662, %v6661
        %v6695 = vpack.c.b16 %v6664, %v6663
        %v6696 = vpack.c.b16 %v6666, %v6665
        %v6697 = vpack.c.b16 %v6668, %v6667
        %v6698 = vpack.c.b16 %v6670, %v6669
        %v6699 = vpack.c.b16 %v6672, %v6671
        %v6700 = vpack.c.b16 %v6674, %v6673
        %v6701 = vpack.c.b16 %v6676, %v6675
        %v6702 = vpack.c.b16 %v6678, %v6677
        %6727 = vmatprep.subr.bf16.mxu0 0
        %6728 = vmatpush1.bf16.msra.mxu0 %v6679
        %6729 = vmatprep.subr.bf16.mxu0 0
        %6730 = vmatpush1.bf16.msra.mxu0 %v6680
        %6731 = vmatprep.subr.bf16.mxu0 0
        %6732 = vmatpush1.bf16.msra.mxu0 %v6681
        %6733 = vmatprep.subr.bf16.mxu0 0
        %6734 = vmatpush1.bf16.msra.mxu0 %v6682
        %6735 = vmatprep.subr.bf16.mxu0 0
        %6736 = vmatpush1.bf16.msra.mxu0 %v6683
        %6737 = vmatprep.subr.bf16.mxu0 0
        %6738 = vmatpush1.bf16.msra.mxu0 %v6684
        %6739 = vmatprep.subr.bf16.mxu0 0
        %6740 = vmatpush1.bf16.msra.mxu0 %v6685
        %6741 = vmatprep.subr.bf16.mxu0 0
        %6742 = vmatpush1.bf16.msra.mxu0 %v6686
        %6743 = vmatprep.subr.bf16.mxu0 0
        %6744 = vmatpush1.bf16.msra.mxu0 %v6687
        %6745 = vmatprep.subr.bf16.mxu0 0
        %6746 = vmatpush1.bf16.msra.mxu0 %v6688
        %6747 = vmatprep.subr.bf16.mxu0 0
        %6748 = vmatpush1.bf16.msra.mxu0 %v6689
        %6749 = vmatprep.subr.bf16.mxu0 0
        %6750 = vmatpush1.bf16.msra.mxu0 %v6690
        %6751 = vmatprep.subr.bf16.mxu0 0
        %6752 = vmatpush1.bf16.msra.mxu0 %v6691
        %6753 = vmatprep.subr.bf16.mxu0 0
        %6754 = vmatpush1.bf16.msra.mxu0 %v6692
        %6755 = vmatprep.subr.bf16.mxu0 0
        %6756 = vmatpush1.bf16.msra.mxu0 %v6693
        %6757 = vmatprep.subr.bf16.mxu0 0
        %6758 = vmatpush1.bf16.msra.mxu0 %v6694
        %6759 = vmatprep.mubr.bf16.mxu0 %v6439
        %6760 = vmatmul.mubr.bf16.gmra.mrb[0].mxu0 %v6375
        %v6761 = vpop.f32.mrb[0].mxu0
        %v6762 = vadd.f32 0.0, %v6761
        %v6763 = vpop.f32.mrb[0].mxu0
        %v6764 = vpop.f32.mrb[0].mxu0
        %v6765 = vadd.f32 0.0, %v6764
        %v6766 = vpop.f32.mrb[0].mxu0
        %6767 = vmatprep.mubr.bf16.mxu0 %v6440
        %6768 = vmatmul.mubr.bf16.gmra.mrb[0].mxu0 %v6376
        %v6769 = vpop.f32.mrb[0].mxu0
        %v6770 = vadd.f32 0.0, %v6769
        %v6771 = vpop.f32.mrb[0].mxu0
        %v6772 = vpop.f32.mrb[0].mxu0
        %v6773 = vadd.f32 0.0, %v6772
        %v6774 = vpop.f32.mrb[0].mxu0
        %6775 = vmatprep.mubr.bf16.mxu0 %v6441
        %6776 = vmatmul.mubr.bf16.gmra.mrb[0].mxu0 %v6377
        %v6777 = vpop.f32.mrb[0].mxu0
        %v6778 = vadd.f32 0.0, %v6777
        %v6779 = vpop.f32.mrb[0].mxu0
        %v6780 = vpop.f32.mrb[0].mxu0
        %v6781 = vadd.f32 0.0, %v6780
        %v6782 = vpop.f32.mrb[0].mxu0
        %6783 = vmatprep.mubr.bf16.mxu0 %v6442
        %6784 = vmatmul.mubr.bf16.gmra.mrb[0].mxu0 %v6378
        %v6785 = vpop.f32.mrb[0].mxu0
        %v6786 = vadd.f32 0.0, %v6785
        %v6787 = vpop.f32.mrb[0].mxu0
        %v6788 = vpop.f32.mrb[0].mxu0
        %v6789 = vadd.f32 0.0, %v6788
        %v6790 = vpop.f32.mrb[0].mxu0
        %6791 = vmatprep.mubr.bf16.mxu0 %v6443
        %6792 = vmatmul.mubr.bf16.gmra.mrb[0].mxu0 %v6379
        %v6793 = vpop.f32.mrb[0].mxu0
        %v6794 = vadd.f32 0.0, %v6793
        %v6795 = vpop.f32.mrb[0].mxu0
        %v6796 = vpop.f32.mrb[0].mxu0
        %v6797 = vadd.f32 0.0, %v6796
        %v6798 = vpop.f32.mrb[0].mxu0
        %6799 = vmatprep.mubr.bf16.mxu0 %v6444
        %6800 = vmatmul.mubr.bf16.gmra.mrb[0].mxu0 %v6380
        %v6801 = vpop.f32.mrb[0].mxu0
        %v6802 = vadd.f32 0.0, %v6801
        %v6803 = vpop.f32.mrb[0].mxu0
        %v6804 = vpop.f32.mrb[0].mxu0
        %v6805 = vadd.f32 0.0, %v6804
        %v6806 = vpop.f32.mrb[0].mxu0
        %6807 = vmatprep.mubr.bf16.mxu0 %v6445
        %6808 = vmatmul.mubr.bf16.gmra.mrb[0].mxu0 %v6381
        %v6809 = vpop.f32.mrb[0].mxu0
        %v6810 = vadd.f32 0.0, %v6809
        %v6811 = vpop.f32.mrb[0].mxu0
        %v6812 = vpop.f32.mrb[0].mxu0
        %v6813 = vadd.f32 0.0, %v6812
        %v6814 = vpop.f32.mrb[0].mxu0
        %6815 = vmatprep.mubr.bf16.mxu0 %v6446
        %6816 = vmatmul.mubr.bf16.gmra.mrb[0].mxu0 %v6382
        %v6817 = vpop.f32.mrb[0].mxu0
        %v6818 = vadd.f32 0.0, %v6817
        %v6819 = vpop.f32.mrb[0].mxu0
        %v6820 = vpop.f32.mrb[0].mxu0
        %v6821 = vadd.f32 0.0, %v6820
        %v6822 = vpop.f32.mrb[0].mxu0
        %6823 = vmatprep.mubr.bf16.mxu0 %v6447
        %6824 = vmatmul.mubr.bf16.gmra.mrb[0].mxu0 %v6383
        %v6825 = vpop.f32.mrb[0].mxu0
        %v6826 = vadd.f32 0.0, %v6825
        %v6827 = vpop.f32.mrb[0].mxu0
        %v6828 = vpop.f32.mrb[0].mxu0
        %v6829 = vadd.f32 0.0, %v6828
        %v6830 = vpop.f32.mrb[0].mxu0
        %6831 = vmatprep.mubr.bf16.mxu0 %v6448
        %6832 = vmatmul.mubr.bf16.gmra.mrb[0].mxu0 %v6384
        %v6833 = vpop.f32.mrb[0].mxu0
        %v6834 = vadd.f32 0.0, %v6833
        %v6835 = vpop.f32.mrb[0].mxu0
        %v6836 = vpop.f32.mrb[0].mxu0
        %v6837 = vadd.f32 0.0, %v6836
        %v6838 = vpop.f32.mrb[0].mxu0
        %6839 = vmatprep.mubr.bf16.mxu0 %v6449
        %6840 = vmatmul.mubr.bf16.gmra.mrb[0].mxu0 %v6385
        %v6841 = vpop.f32.mrb[0].mxu0
        %v6842 = vadd.f32 0.0, %v6841
        %v6843 = vpop.f32.mrb[0].mxu0
        %v6844 = vpop.f32.mrb[0].mxu0
        %v6845 = vadd.f32 0.0, %v6844
        %v6846 = vpop.f32.mrb[0].mxu0
        %6847 = vmatprep.mubr.bf16.mxu0 %v6450
        %6848 = vmatmul.mubr.bf16.gmra.mrb[0].mxu0 %v6386
        %v6849 = vpop.f32.mrb[0].mxu0
        %v6850 = vadd.f32 0.0, %v6849
        %v6851 = vpop.f32.mrb[0].mxu0
        %v6852 = vpop.f32.mrb[0].mxu0
        %v6853 = vadd.f32 0.0, %v6852
        %v6854 = vpop.f32.mrb[0].mxu0
        %6855 = vmatprep.mubr.bf16.mxu0 %v6451
        %6856 = vmatmul.mubr.bf16.gmra.mrb[0].mxu0 %v6387
        %v6857 = vpop.f32.mrb[0].mxu0
        %v6858 = vadd.f32 0.0, %v6857
        %v6859 = vpop.f32.mrb[0].mxu0
        %v6860 = vpop.f32.mrb[0].mxu0
        %v6861 = vadd.f32 0.0, %v6860
        %v6862 = vpop.f32.mrb[0].mxu0
        %6863 = vmatprep.mubr.bf16.mxu0 %v6452
        %6864 = vmatmul.mubr.bf16.gmra.mrb[0].mxu0 %v6388
        %v6865 = vpop.f32.mrb[0].mxu0
        %v6866 = vadd.f32 0.0, %v6865
        %v6867 = vpop.f32.mrb[0].mxu0
        %v6868 = vpop.f32.mrb[0].mxu0
        %v6869 = vadd.f32 0.0, %v6868
        %v6870 = vpop.f32.mrb[0].mxu0
        %6871 = vmatprep.mubr.bf16.mxu0 %v6453
        %6872 = vmatmul.mubr.bf16.gmra.mrb[0].mxu0 %v6389
        %v6873 = vpop.f32.mrb[0].mxu0
        %v6874 = vadd.f32 0.0, %v6873
        %v6875 = vpop.f32.mrb[0].mxu0
        %v6876 = vpop.f32.mrb[0].mxu0
        %v6877 = vadd.f32 0.0, %v6876
        %v6878 = vpop.f32.mrb[0].mxu0
        %6879 = vmatprep.mubr.bf16.mxu0 %v6454
        %6880 = vmatmul.mubr.bf16.gmra.mrb[0].mxu0 %v6390
        %v6881 = vpop.f32.mrb[0].mxu0
        %v6882 = vpop.f32.mrb[0].mxu0
        %v6883 = vpop.f32.mrb[0].mxu0
        %v6884 = vpop.f32.mrb[0].mxu0
        %6885 = vdwg.mxu0
        %6886 = vmatprep.subr.bf16.mxu0 0
        %6887 = vmatpush1.bf16.msra.mxu0 %v6695
        %6888 = vmatprep.subr.bf16.mxu0 0
        %6889 = vmatpush1.bf16.msra.mxu0 %v6696
        %6890 = vmatprep.subr.bf16.mxu0 0
        %6891 = vmatpush1.bf16.msra.mxu0 %v6697
        %6892 = vmatprep.subr.bf16.mxu0 0
        %6893 = vmatpush1.bf16.msra.mxu0 %v6698
        %6894 = vmatprep.subr.bf16.mxu0 0
        %6895 = vmatpush1.bf16.msra.mxu0 %v6699
        %6896 = vmatprep.subr.bf16.mxu0 0
        %6897 = vmatpush1.bf16.msra.mxu0 %v6700
        %6898 = vmatprep.subr.bf16.mxu0 0
        %6899 = vmatpush1.bf16.msra.mxu0 %v6701
        %6900 = vmatprep.subr.bf16.mxu0 0
        %6901 = vmatpush1.bf16.msra.mxu0 %v6702
        %6902 = vmatprep.subr.bf16.mxu0 0
        %6903 = vmatpush1.bf16.msra.mxu0 0
        %6904 = vmatprep.subr.bf16.mxu0 0
        %6905 = vmatpush1.bf16.msra.mxu0 0
        %6906 = vmatprep.subr.bf16.mxu0 0
        %6907 = vmatpush1.bf16.msra.mxu0 0
        %6908 = vmatprep.subr.bf16.mxu0 0
        %6909 = vmatpush1.bf16.msra.mxu0 0
        %6910 = vmatprep.subr.bf16.mxu0 0
        %6911 = vmatpush1.bf16.msra.mxu0 0
        %6912 = vmatprep.subr.bf16.mxu0 0
        %6913 = vmatpush1.bf16.msra.mxu0 0
        %6914 = vmatprep.subr.bf16.mxu0 0
        %6915 = vmatpush1.bf16.msra.mxu0 0
        %6916 = vmatprep.subr.bf16.mxu0 0
        %6917 = vmatpush1.bf16.msra.mxu0 0
        %6918 = vmatprep.mubr.bf16.mxu0 0
        %6919 = vmatmul.mubr.bf16.gmra.mrb[0].mxu0 %v6503
        %v6920 = vpop.f32.mrb[0].mxu0
        %v6921 = vadd.f32 %v6762, %v6920
        %v6922 = vpop.f32.mrb[0].mxu0
        %v6923 = vpop.f32.mrb[0].mxu0
        %v6924 = vadd.f32 %v6765, %v6923
        %v6925 = vpop.f32.mrb[0].mxu0
        %6926 = vmatprep.mubr.bf16.mxu0 0
        %6927 = vmatmul.mubr.bf16.gmra.mrb[0].mxu0 %v6504
        %v6928 = vpop.f32.mrb[0].mxu0
        %v6929 = vadd.f32 %v6770, %v6928
        %v6930 = vpop.f32.mrb[0].mxu0
        %v6931 = vpop.f32.mrb[0].mxu0
        %v6932 = vadd.f32 %v6773, %v6931
        %v6933 = vpop.f32.mrb[0].mxu0
        %6934 = vmatprep.mubr.bf16.mxu0 0
        %6935 = vmatmul.mubr.bf16.gmra.mrb[0].mxu0 %v6505
        %v6936 = vpop.f32.mrb[0].mxu0
        %v6937 = vadd.f32 %v6778, %v6936
        %v6938 = vpop.f32.mrb[0].mxu0
        %v6939 = vpop.f32.mrb[0].mxu0
        %v6940 = vadd.f32 %v6781, %v6939
        %v6941 = vpop.f32.mrb[0].mxu0
        %6942 = vmatprep.mubr.bf16.mxu0 0
        %6943 = vmatmul.mubr.bf16.gmra.mrb[0].mxu0 %v6506
        %v6944 = vpop.f32.mrb[0].mxu0
        %v6945 = vadd.f32 %v6786, %v6944
        %v6946 = vpop.f32.mrb[0].mxu0
        %v6947 = vpop.f32.mrb[0].mxu0
        %v6948 = vadd.f32 %v6789, %v6947
        %v6949 = vpop.f32.mrb[0].mxu0
        %6950 = vmatprep.mubr.bf16.mxu0 0
        %6951 = vmatmul.mubr.bf16.gmra.mrb[0].mxu0 %v6507
        %v6952 = vpop.f32.mrb[0].mxu0
        %v6953 = vadd.f32 %v6794, %v6952
        %v6954 = vpop.f32.mrb[0].mxu0
        %v6955 = vpop.f32.mrb[0].mxu0
        %v6956 = vadd.f32 %v6797, %v6955
        %v6957 = vpop.f32.mrb[0].mxu0
        %6958 = vmatprep.mubr.bf16.mxu0 0
        %6959 = vmatmul.mubr.bf16.gmra.mrb[0].mxu0 %v6508
        %v6960 = vpop.f32.mrb[0].mxu0
        %v6961 = vadd.f32 %v6802, %v6960
        %v6962 = vpop.f32.mrb[0].mxu0
        %v6963 = vpop.f32.mrb[0].mxu0
        %v6964 = vadd.f32 %v6805, %v6963
        %v6965 = vpop.f32.mrb[0].mxu0
        %6966 = vmatprep.mubr.bf16.mxu0 0
        %6967 = vmatmul.mubr.bf16.gmra.mrb[0].mxu0 %v6509
        %v6968 = vpop.f32.mrb[0].mxu0
        %v6969 = vadd.f32 %v6810, %v6968
        %v6970 = vpop.f32.mrb[0].mxu0
        %v6971 = vpop.f32.mrb[0].mxu0
        %v6972 = vadd.f32 %v6813, %v6971
        %v6973 = vpop.f32.mrb[0].mxu0
        %6974 = vmatprep.mubr.bf16.mxu0 0
        %6975 = vmatmul.mubr.bf16.gmra.mrb[0].mxu0 %v6510
        %v6976 = vpop.f32.mrb[0].mxu0
        %v6977 = vadd.f32 %v6818, %v6976
        %v6978 = vpop.f32.mrb[0].mxu0
        %v6979 = vpop.f32.mrb[0].mxu0
        %v6980 = vadd.f32 %v6821, %v6979
        %v6981 = vpop.f32.mrb[0].mxu0
        %6982 = vmatprep.mubr.bf16.mxu0 0
        %6983 = vmatmul.mubr.bf16.gmra.mrb[0].mxu0 %v6511
        %v6984 = vpop.f32.mrb[0].mxu0
        %v6985 = vadd.f32 %v6826, %v6984
        %v6986 = vpop.f32.mrb[0].mxu0
        %v6987 = vpop.f32.mrb[0].mxu0
        %v6988 = vadd.f32 %v6829, %v6987
        %v6989 = vpop.f32.mrb[0].mxu0
        %6990 = vmatprep.mubr.bf16.mxu0 0
        %6991 = vmatmul.mubr.bf16.gmra.mrb[0].mxu0 %v6512
        %v6992 = vpop.f32.mrb[0].mxu0
        %v6993 = vadd.f32 %v6834, %v6992
        %v6994 = vpop.f32.mrb[0].mxu0
        %v6995 = vpop.f32.mrb[0].mxu0
        %v6996 = vadd.f32 %v6837, %v6995
        %v6997 = vpop.f32.mrb[0].mxu0
        %6998 = vmatprep.mubr.bf16.mxu0 0
        %6999 = vmatmul.mubr.bf16.gmra.mrb[0].mxu0 %v6513
        %v7000 = vpop.f32.mrb[0].mxu0
        %v7001 = vadd.f32 %v6842, %v7000
        %v7002 = vpop.f32.mrb[0].mxu0
        %v7003 = vpop.f32.mrb[0].mxu0
        %v7004 = vadd.f32 %v6845, %v7003
        %v7005 = vpop.f32.mrb[0].mxu0
        %7006 = vmatprep.mubr.bf16.mxu0 0
        %7007 = vmatmul.mubr.bf16.gmra.mrb[0].mxu0 %v6514
        %v7008 = vpop.f32.mrb[0].mxu0
        %v7009 = vadd.f32 %v6850, %v7008
        %v7010 = vpop.f32.mrb[0].mxu0
        %v7011 = vpop.f32.mrb[0].mxu0
        %v7012 = vadd.f32 %v6853, %v7011
        %v7013 = vpop.f32.mrb[0].mxu0
        %7014 = vmatprep.mubr.bf16.mxu0 0
        %7015 = vmatmul.mubr.bf16.gmra.mrb[0].mxu0 %v6515
        %v7016 = vpop.f32.mrb[0].mxu0
        %v7017 = vadd.f32 %v6858, %v7016
        %v7018 = vpop.f32.mrb[0].mxu0
        %v7019 = vpop.f32.mrb[0].mxu0
        %v7020 = vadd.f32 %v6861, %v7019
        %v7021 = vpop.f32.mrb[0].mxu0
        %7022 = vmatprep.mubr.bf16.mxu0 0
        %7023 = vmatmul.mubr.bf16.gmra.mrb[0].mxu0 %v6516
        %v7024 = vpop.f32.mrb[0].mxu0
        %v7025 = vadd.f32 %v6866, %v7024
        %v7026 = vpop.f32.mrb[0].mxu0
        %v7027 = vpop.f32.mrb[0].mxu0
        %v7028 = vadd.f32 %v6869, %v7027
        %v7029 = vpop.f32.mrb[0].mxu0
        %7030 = vmatprep.mubr.bf16.mxu0 0
        %7031 = vmatmul.mubr.bf16.gmra.mrb[0].mxu0 %v6517
        %v7032 = vpop.f32.mrb[0].mxu0
        %v7033 = vadd.f32 %v6874, %v7032
        %v7034 = vpop.f32.mrb[0].mxu0
        %v7035 = vpop.f32.mrb[0].mxu0
        %v7036 = vadd.f32 %v6877, %v7035
        %v7037 = vpop.f32.mrb[0].mxu0
        %7038 = vmatprep.mubr.bf16.mxu0 0
        %7039 = vmatmul.mubr.bf16.gmra.mrb[0].mxu0 %v6518
        %v7040 = vpop.f32.mrb[0].mxu0
        %v7041 = vpop.f32.mrb[0].mxu0
        %v7042 = vpop.f32.mrb[0].mxu0
        %v7043 = vpop.f32.mrb[0].mxu0
        %7044 = vdwg.mxu0
        %v7093 = vunpack.c.l.b16 %v5671
        %v7094 = vunpack.c.l.b16 %v5672
        %v7095 = vunpack.c.l.b16 %v5673
        %v7096 = vunpack.c.l.b16 %v5674
        %v7097 = vunpack.c.l.b16 %v5675
        %v7098 = vunpack.c.l.b16 %v5676
        %v7099 = vunpack.c.l.b16 %v5677
        %v7100 = vunpack.c.l.b16 %v5678
        %v7101 = vunpack.c.l.b16 %v5679
        %v7102 = vunpack.c.l.b16 %v5680
        %v7103 = vunpack.c.l.b16 %v5681
        %v7104 = vunpack.c.l.b16 %v5682
        %v7105 = vunpack.c.l.b16 %v5683
        %v7106 = vunpack.c.l.b16 %v5684
        %v7107 = vunpack.c.l.b16 %v5685
        %v7108 = vunpack.c.l.b16 %v5686
        %v7109 = vunpack.c.l.b16 %v5687
        %v7110 = vunpack.c.l.b16 %v5688
        %v7111 = vunpack.c.l.b16 %v5689
        %v7112 = vunpack.c.l.b16 %v5690
        %v7113 = vunpack.c.l.b16 %v5691
        %v7114 = vunpack.c.l.b16 %v5692
        %v7115 = vunpack.c.l.b16 %v5693
        %v7116 = vunpack.c.l.b16 %v5694
        %v7117 = vunpack.c.l.b16 %v5695
        %v7118 = vunpack.c.l.b16 %v5696
        %v7119 = vunpack.c.l.b16 %v5697
        %v7120 = vunpack.c.l.b16 %v5698
        %v7121 = vunpack.c.l.b16 %v5699
        %v7122 = vunpack.c.l.b16 %v5700
        %v7123 = vunpack.c.l.b16 %v5701
        %v7124 = vunpack.c.l.b16 %v5702
        %v7125 = vunpack.c.l.b16 %v5703
        %v7126 = vunpack.c.l.b16 %v5704
        %v7127 = vunpack.c.l.b16 %v5705
        %v7128 = vunpack.c.l.b16 %v5706
        %v7129 = vunpack.c.l.b16 %v5707
        %v7130 = vunpack.c.l.b16 %v5708
        %v7131 = vunpack.c.l.b16 %v5709
        %v7132 = vunpack.c.l.b16 %v5710
        %v7133 = vunpack.c.l.b16 %v5711
        %v7134 = vunpack.c.l.b16 %v5712
        %v7135 = vunpack.c.l.b16 %v5713
        %v7136 = vunpack.c.l.b16 %v5714
        %v7137 = vunpack.c.l.b16 %v5715
        %v7138 = vunpack.c.l.b16 %v5716
        %v7139 = vunpack.c.l.b16 %v5717
        %v7140 = vunpack.c.l.b16 %v5718
        %v7141 = vpack.c.b16 %v7094, %v7093
        %v7142 = vpack.c.b16 %v7096, %v7095
        %v7143 = vpack.c.b16 %v7098, %v7097
        %v7144 = vpack.c.b16 %v7100, %v7099
        %v7145 = vpack.c.b16 %v7102, %v7101
        %v7146 = vpack.c.b16 %v7104, %v7103
        %v7147 = vpack.c.b16 %v7106, %v7105
        %v7148 = vpack.c.b16 %v7108, %v7107
        %v7149 = vpack.c.b16 %v7110, %v7109
        %v7150 = vpack.c.b16 %v7112, %v7111
        %v7151 = vpack.c.b16 %v7114, %v7113
        %v7152 = vpack.c.b16 %v7116, %v7115
        %v7153 = vpack.c.b16 %v7118, %v7117
        %v7154 = vpack.c.b16 %v7120, %v7119
        %v7155 = vpack.c.b16 %v7122, %v7121
        %v7156 = vpack.c.b16 %v7124, %v7123
        %v7157 = vpack.c.b16 %v7126, %v7125
        %v7158 = vpack.c.b16 %v7128, %v7127
        %v7159 = vpack.c.b16 %v7130, %v7129
        %v7160 = vpack.c.b16 %v7132, %v7131
        %v7161 = vpack.c.b16 %v7134, %v7133
        %v7162 = vpack.c.b16 %v7136, %v7135
        %v7163 = vpack.c.b16 %v7138, %v7137
        %v7164 = vpack.c.b16 %v7140, %v7139
        %7189 = vmatprep.subr.bf16.mxu0 0
        %7190 = vmatpush1.bf16.msra.mxu0 %v7141
        %7191 = vmatprep.subr.bf16.mxu0 0
        %7192 = vmatpush1.bf16.msra.mxu0 %v7142
        %7193 = vmatprep.subr.bf16.mxu0 0
        %7194 = vmatpush1.bf16.msra.mxu0 %v7143
        %7195 = vmatprep.subr.bf16.mxu0 0
        %7196 = vmatpush1.bf16.msra.mxu0 %v7144
        %7197 = vmatprep.subr.bf16.mxu0 0
        %7198 = vmatpush1.bf16.msra.mxu0 %v7145
        %7199 = vmatprep.subr.bf16.mxu0 0
        %7200 = vmatpush1.bf16.msra.mxu0 %v7146
        %7201 = vmatprep.subr.bf16.mxu0 0
        %7202 = vmatpush1.bf16.msra.mxu0 %v7147
        %7203 = vmatprep.subr.bf16.mxu0 0
        %7204 = vmatpush1.bf16.msra.mxu0 %v7148
        %7205 = vmatprep.subr.bf16.mxu0 0
        %7206 = vmatpush1.bf16.msra.mxu0 %v7149
        %7207 = vmatprep.subr.bf16.mxu0 0
        %7208 = vmatpush1.bf16.msra.mxu0 %v7150
        %7209 = vmatprep.subr.bf16.mxu0 0
        %7210 = vmatpush1.bf16.msra.mxu0 %v7151
        %7211 = vmatprep.subr.bf16.mxu0 0
        %7212 = vmatpush1.bf16.msra.mxu0 %v7152
        %7213 = vmatprep.subr.bf16.mxu0 0
        %7214 = vmatpush1.bf16.msra.mxu0 %v7153
        %7215 = vmatprep.subr.bf16.mxu0 0
        %7216 = vmatpush1.bf16.msra.mxu0 %v7154
        %7217 = vmatprep.subr.bf16.mxu0 0
        %7218 = vmatpush1.bf16.msra.mxu0 %v7155
        %7219 = vmatprep.subr.bf16.mxu0 0
        %7220 = vmatpush1.bf16.msra.mxu0 %v7156
        %7221 = vmatprep.mubr.bf16.mxu0 %v5575
        %7222 = vmatmul.mubr.bf16.gmra.mrb[0].mxu0 %v5511
        %v7223 = vpop.f32.mrb[0].mxu0
        %v7224 = vadd.f32 %v6921, %v7223
        %v7225 = vpop.f32.mrb[0].mxu0
        %v7226 = vpop.f32.mrb[0].mxu0
        %v7227 = vadd.f32 %v6924, %v7226
        %v7228 = vpop.f32.mrb[0].mxu0
        %7229 = vmatprep.mubr.bf16.mxu0 %v5576
        %7230 = vmatmul.mubr.bf16.gmra.mrb[0].mxu0 %v5512
        %v7231 = vpop.f32.mrb[0].mxu0
        %v7232 = vadd.f32 %v6929, %v7231
        %v7233 = vpop.f32.mrb[0].mxu0
        %v7234 = vpop.f32.mrb[0].mxu0
        %v7235 = vadd.f32 %v6932, %v7234
        %v7236 = vpop.f32.mrb[0].mxu0
        %7237 = vmatprep.mubr.bf16.mxu0 %v5577
        %7238 = vmatmul.mubr.bf16.gmra.mrb[0].mxu0 %v5513
        %v7239 = vpop.f32.mrb[0].mxu0
        %v7240 = vadd.f32 %v6937, %v7239
        %v7241 = vpop.f32.mrb[0].mxu0
        %v7242 = vpop.f32.mrb[0].mxu0
        %v7243 = vadd.f32 %v6940, %v7242
        %v7244 = vpop.f32.mrb[0].mxu0
        %7245 = vmatprep.mubr.bf16.mxu0 %v5578
        %7246 = vmatmul.mubr.bf16.gmra.mrb[0].mxu0 %v5514
        %v7247 = vpop.f32.mrb[0].mxu0
        %v7248 = vadd.f32 %v6945, %v7247
        %v7249 = vpop.f32.mrb[0].mxu0
        %v7250 = vpop.f32.mrb[0].mxu0
        %v7251 = vadd.f32 %v6948, %v7250
        %v7252 = vpop.f32.mrb[0].mxu0
        %7253 = vmatprep.mubr.bf16.mxu0 %v5579
        %7254 = vmatmul.mubr.bf16.gmra.mrb[0].mxu0 %v5515
        %v7255 = vpop.f32.mrb[0].mxu0
        %v7256 = vadd.f32 %v6953, %v7255
        %v7257 = vpop.f32.mrb[0].mxu0
        %v7258 = vpop.f32.mrb[0].mxu0
        %v7259 = vadd.f32 %v6956, %v7258
        %v7260 = vpop.f32.mrb[0].mxu0
        %7261 = vmatprep.mubr.bf16.mxu0 %v5580
        %7262 = vmatmul.mubr.bf16.gmra.mrb[0].mxu0 %v5516
        %v7263 = vpop.f32.mrb[0].mxu0
        %v7264 = vadd.f32 %v6961, %v7263
        %v7265 = vpop.f32.mrb[0].mxu0
        %v7266 = vpop.f32.mrb[0].mxu0
        %v7267 = vadd.f32 %v6964, %v7266
        %v7268 = vpop.f32.mrb[0].mxu0
        %7269 = vmatprep.mubr.bf16.mxu0 %v5581
        %7270 = vmatmul.mubr.bf16.gmra.mrb[0].mxu0 %v5517
        %v7271 = vpop.f32.mrb[0].mxu0
        %v7272 = vadd.f32 %v6969, %v7271
        %v7273 = vpop.f32.mrb[0].mxu0
        %v7274 = vpop.f32.mrb[0].mxu0
        %v7275 = vadd.f32 %v6972, %v7274
        %v7276 = vpop.f32.mrb[0].mxu0
        %7277 = vmatprep.mubr.bf16.mxu0 %v5582
        %7278 = vmatmul.mubr.bf16.gmra.mrb[0].mxu0 %v5518
        %v7279 = vpop.f32.mrb[0].mxu0
        %v7280 = vadd.f32 %v6977, %v7279
        %v7281 = vpop.f32.mrb[0].mxu0
        %v7282 = vpop.f32.mrb[0].mxu0
        %v7283 = vadd.f32 %v6980, %v7282
        %v7284 = vpop.f32.mrb[0].mxu0
        %7285 = vmatprep.mubr.bf16.mxu0 %v5583
        %7286 = vmatmul.mubr.bf16.gmra.mrb[0].mxu0 %v5519
        %v7287 = vpop.f32.mrb[0].mxu0
        %v7288 = vadd.f32 %v6985, %v7287
        %v7289 = vpop.f32.mrb[0].mxu0
        %v7290 = vpop.f32.mrb[0].mxu0
        %v7291 = vadd.f32 %v6988, %v7290
        %v7292 = vpop.f32.mrb[0].mxu0
        %7293 = vmatprep.mubr.bf16.mxu0 %v5584
        %7294 = vmatmul.mubr.bf16.gmra.mrb[0].mxu0 %v5520
        %v7295 = vpop.f32.mrb[0].mxu0
        %v7296 = vadd.f32 %v6993, %v7295
        %v7297 = vpop.f32.mrb[0].mxu0
        %v7298 = vpop.f32.mrb[0].mxu0
        %v7299 = vadd.f32 %v6996, %v7298
        %v7300 = vpop.f32.mrb[0].mxu0
        %7301 = vmatprep.mubr.bf16.mxu0 %v5585
        %7302 = vmatmul.mubr.bf16.gmra.mrb[0].mxu0 %v5521
        %v7303 = vpop.f32.mrb[0].mxu0
        %v7304 = vadd.f32 %v7001, %v7303
        %v7305 = vpop.f32.mrb[0].mxu0
        %v7306 = vpop.f32.mrb[0].mxu0
        %v7307 = vadd.f32 %v7004, %v7306
        %v7308 = vpop.f32.mrb[0].mxu0
        %7309 = vmatprep.mubr.bf16.mxu0 %v5586
        %7310 = vmatmul.mubr.bf16.gmra.mrb[0].mxu0 %v5522
        %v7311 = vpop.f32.mrb[0].mxu0
        %v7312 = vadd.f32 %v7009, %v7311
        %v7313 = vpop.f32.mrb[0].mxu0
        %v7314 = vpop.f32.mrb[0].mxu0
        %v7315 = vadd.f32 %v7012, %v7314
        %v7316 = vpop.f32.mrb[0].mxu0
        %7317 = vmatprep.mubr.bf16.mxu0 %v5587
        %7318 = vmatmul.mubr.bf16.gmra.mrb[0].mxu0 %v5523
        %v7319 = vpop.f32.mrb[0].mxu0
        %v7320 = vadd.f32 %v7017, %v7319
        %v7321 = vpop.f32.mrb[0].mxu0
        %v7322 = vpop.f32.mrb[0].mxu0
        %v7323 = vadd.f32 %v7020, %v7322
        %v7324 = vpop.f32.mrb[0].mxu0
        %7325 = vmatprep.mubr.bf16.mxu0 %v5588
        %7326 = vmatmul.mubr.bf16.gmra.mrb[0].mxu0 %v5524
        %v7327 = vpop.f32.mrb[0].mxu0
        %v7328 = vadd.f32 %v7025, %v7327
        %v7329 = vpop.f32.mrb[0].mxu0
        %v7330 = vpop.f32.mrb[0].mxu0
        %v7331 = vadd.f32 %v7028, %v7330
        %v7332 = vpop.f32.mrb[0].mxu0
        %7333 = vmatprep.mubr.bf16.mxu0 %v5589
        %7334 = vmatmul.mubr.bf16.gmra.mrb[0].mxu0 %v5525
        %v7335 = vpop.f32.mrb[0].mxu0
        %v7336 = vadd.f32 %v7033, %v7335
        %v7337 = vpop.f32.mrb[0].mxu0
        %v7338 = vpop.f32.mrb[0].mxu0
        %v7339 = vadd.f32 %v7036, %v7338
        %v7340 = vpop.f32.mrb[0].mxu0
        %7341 = vmatprep.mubr.bf16.mxu0 %v5590
        %7342 = vmatmul.mubr.bf16.gmra.mrb[0].mxu0 %v5526
        %v7343 = vpop.f32.mrb[0].mxu0
        %v7344 = vpop.f32.mrb[0].mxu0
        %v7345 = vpop.f32.mrb[0].mxu0
        %v7346 = vpop.f32.mrb[0].mxu0
        %7347 = vdwg.mxu0
        %7348 = vmatprep.subr.bf16.mxu0 0
        %7349 = vmatpush1.bf16.msra.mxu0 %v7157
        %7350 = vmatprep.subr.bf16.mxu0 0
        %7351 = vmatpush1.bf16.msra.mxu0 %v7158
        %7352 = vmatprep.subr.bf16.mxu0 0
        %7353 = vmatpush1.bf16.msra.mxu0 %v7159
        %7354 = vmatprep.subr.bf16.mxu0 0
        %7355 = vmatpush1.bf16.msra.mxu0 %v7160
        %7356 = vmatprep.subr.bf16.mxu0 0
        %7357 = vmatpush1.bf16.msra.mxu0 %v7161
        %7358 = vmatprep.subr.bf16.mxu0 0
        %7359 = vmatpush1.bf16.msra.mxu0 %v7162
        %7360 = vmatprep.subr.bf16.mxu0 0
        %7361 = vmatpush1.bf16.msra.mxu0 %v7163
        %7362 = vmatprep.subr.bf16.mxu0 0
        %7363 = vmatpush1.bf16.msra.mxu0 %v7164
        %7364 = vmatprep.subr.bf16.mxu0 0
        %7365 = vmatpush1.bf16.msra.mxu0 0
        %7366 = vmatprep.subr.bf16.mxu0 0
        %7367 = vmatpush1.bf16.msra.mxu0 0
        %7368 = vmatprep.subr.bf16.mxu0 0
        %7369 = vmatpush1.bf16.msra.mxu0 0
        %7370 = vmatprep.subr.bf16.mxu0 0
        %7371 = vmatpush1.bf16.msra.mxu0 0
        %7372 = vmatprep.subr.bf16.mxu0 0
        %7373 = vmatpush1.bf16.msra.mxu0 0
        %7374 = vmatprep.subr.bf16.mxu0 0
        %7375 = vmatpush1.bf16.msra.mxu0 0
        %7376 = vmatprep.subr.bf16.mxu0 0
        %7377 = vmatpush1.bf16.msra.mxu0 0
        %7378 = vmatprep.subr.bf16.mxu0 0
        %7379 = vmatpush1.bf16.msra.mxu0 0
        %7380 = vmatprep.mubr.bf16.mxu0 0
        %7381 = vmatmul.mubr.bf16.gmra.mrb[0].mxu0 %v5639
        %v7382 = vpop.f32.mrb[0].mxu0
        %v7383 = vadd.f32 %v7224, %v7382
        %v7384 = vpop.f32.mrb[0].mxu0
        %v7385 = vpop.f32.mrb[0].mxu0
        %v7386 = vadd.f32 %v7227, %v7385
        %v7387 = vpop.f32.mrb[0].mxu0
        %7388 = vmatprep.mubr.bf16.mxu0 0
        %7389 = vmatmul.mubr.bf16.gmra.mrb[0].mxu0 %v5640
        %v7390 = vpop.f32.mrb[0].mxu0
        %v7391 = vadd.f32 %v7232, %v7390
        %v7392 = vpop.f32.mrb[0].mxu0
        %v7393 = vpop.f32.mrb[0].mxu0
        %v7394 = vadd.f32 %v7235, %v7393
        %v7395 = vpop.f32.mrb[0].mxu0
        %7396 = vmatprep.mubr.bf16.mxu0 0
        %7397 = vmatmul.mubr.bf16.gmra.mrb[0].mxu0 %v5641
        %v7398 = vpop.f32.mrb[0].mxu0
        %v7399 = vadd.f32 %v7240, %v7398
        %v7400 = vpop.f32.mrb[0].mxu0
        %v7401 = vpop.f32.mrb[0].mxu0
        %v7402 = vadd.f32 %v7243, %v7401
        %v7403 = vpop.f32.mrb[0].mxu0
        %7404 = vmatprep.mubr.bf16.mxu0 0
        %7405 = vmatmul.mubr.bf16.gmra.mrb[0].mxu0 %v5642
        %v7406 = vpop.f32.mrb[0].mxu0
        %v7407 = vadd.f32 %v7248, %v7406
        %v7408 = vpop.f32.mrb[0].mxu0
        %v7409 = vpop.f32.mrb[0].mxu0
        %v7410 = vadd.f32 %v7251, %v7409
        %v7411 = vpop.f32.mrb[0].mxu0
        %7412 = vmatprep.mubr.bf16.mxu0 0
        %7413 = vmatmul.mubr.bf16.gmra.mrb[0].mxu0 %v5643
        %v7414 = vpop.f32.mrb[0].mxu0
        %v7415 = vadd.f32 %v7256, %v7414
        %v7416 = vpop.f32.mrb[0].mxu0
        %v7417 = vpop.f32.mrb[0].mxu0
        %v7418 = vadd.f32 %v7259, %v7417
        %v7419 = vpop.f32.mrb[0].mxu0
        %7420 = vmatprep.mubr.bf16.mxu0 0
        %7421 = vmatmul.mubr.bf16.gmra.mrb[0].mxu0 %v5644
        %v7422 = vpop.f32.mrb[0].mxu0
        %v7423 = vadd.f32 %v7264, %v7422
        %v7424 = vpop.f32.mrb[0].mxu0
        %v7425 = vpop.f32.mrb[0].mxu0
        %v7426 = vadd.f32 %v7267, %v7425
        %v7427 = vpop.f32.mrb[0].mxu0
        %7428 = vmatprep.mubr.bf16.mxu0 0
        %7429 = vmatmul.mubr.bf16.gmra.mrb[0].mxu0 %v5645
        %v7430 = vpop.f32.mrb[0].mxu0
        %v7431 = vadd.f32 %v7272, %v7430
        %v7432 = vpop.f32.mrb[0].mxu0
        %v7433 = vpop.f32.mrb[0].mxu0
        %v7434 = vadd.f32 %v7275, %v7433
        %v7435 = vpop.f32.mrb[0].mxu0
        %7436 = vmatprep.mubr.bf16.mxu0 0
        %7437 = vmatmul.mubr.bf16.gmra.mrb[0].mxu0 %v5646
        %v7438 = vpop.f32.mrb[0].mxu0
        %v7439 = vadd.f32 %v7280, %v7438
        %v7440 = vpop.f32.mrb[0].mxu0
        %v7441 = vpop.f32.mrb[0].mxu0
        %v7442 = vadd.f32 %v7283, %v7441
        %v7443 = vpop.f32.mrb[0].mxu0
        %7444 = vmatprep.mubr.bf16.mxu0 0
        %7445 = vmatmul.mubr.bf16.gmra.mrb[0].mxu0 %v5647
        %v7446 = vpop.f32.mrb[0].mxu0
        %v7447 = vadd.f32 %v7288, %v7446
        %v7448 = vpop.f32.mrb[0].mxu0
        %v7449 = vpop.f32.mrb[0].mxu0
        %v7450 = vadd.f32 %v7291, %v7449
        %v7451 = vpop.f32.mrb[0].mxu0
        %7452 = vmatprep.mubr.bf16.mxu0 0
        %7453 = vmatmul.mubr.bf16.gmra.mrb[0].mxu0 %v5648
        %v7454 = vpop.f32.mrb[0].mxu0
        %v7455 = vadd.f32 %v7296, %v7454
        %v7456 = vpop.f32.mrb[0].mxu0
        %v7457 = vpop.f32.mrb[0].mxu0
        %v7458 = vadd.f32 %v7299, %v7457
        %v7459 = vpop.f32.mrb[0].mxu0
        %7460 = vmatprep.mubr.bf16.mxu0 0
        %7461 = vmatmul.mubr.bf16.gmra.mrb[0].mxu0 %v5649
        %v7462 = vpop.f32.mrb[0].mxu0
        %v7463 = vadd.f32 %v7304, %v7462
        %v7464 = vpop.f32.mrb[0].mxu0
        %v7465 = vpop.f32.mrb[0].mxu0
        %v7466 = vadd.f32 %v7307, %v7465
        %v7467 = vpop.f32.mrb[0].mxu0
        %7468 = vmatprep.mubr.bf16.mxu0 0
        %7469 = vmatmul.mubr.bf16.gmra.mrb[0].mxu0 %v5650
        %v7470 = vpop.f32.mrb[0].mxu0
        %v7471 = vadd.f32 %v7312, %v7470
        %v7472 = vpop.f32.mrb[0].mxu0
        %v7473 = vpop.f32.mrb[0].mxu0
        %v7474 = vadd.f32 %v7315, %v7473
        %v7475 = vpop.f32.mrb[0].mxu0
        %7476 = vmatprep.mubr.bf16.mxu0 0
        %7477 = vmatmul.mubr.bf16.gmra.mrb[0].mxu0 %v5651
        %v7478 = vpop.f32.mrb[0].mxu0
        %v7479 = vadd.f32 %v7320, %v7478
        %v7480 = vpop.f32.mrb[0].mxu0
        %v7481 = vpop.f32.mrb[0].mxu0
        %v7482 = vadd.f32 %v7323, %v7481
        %v7483 = vpop.f32.mrb[0].mxu0
        %7484 = vmatprep.mubr.bf16.mxu0 0
        %7485 = vmatmul.mubr.bf16.gmra.mrb[0].mxu0 %v5652
        %v7486 = vpop.f32.mrb[0].mxu0
        %v7487 = vadd.f32 %v7328, %v7486
        %v7488 = vpop.f32.mrb[0].mxu0
        %v7489 = vpop.f32.mrb[0].mxu0
        %v7490 = vadd.f32 %v7331, %v7489
        %v7491 = vpop.f32.mrb[0].mxu0
        %7492 = vmatprep.mubr.bf16.mxu0 0
        %7493 = vmatmul.mubr.bf16.gmra.mrb[0].mxu0 %v5653
        %v7494 = vpop.f32.mrb[0].mxu0
        %v7495 = vadd.f32 %v7336, %v7494
        %v7496 = vpop.f32.mrb[0].mxu0
        %v7497 = vpop.f32.mrb[0].mxu0
        %v7498 = vadd.f32 %v7339, %v7497
        %v7499 = vpop.f32.mrb[0].mxu0
        %7500 = vmatprep.mubr.bf16.mxu0 0
        %7501 = vmatmul.mubr.bf16.gmra.mrb[0].mxu0 %v5654
        %v7502 = vpop.f32.mrb[0].mxu0
        %v7503 = vpop.f32.mrb[0].mxu0
        %v7504 = vpop.f32.mrb[0].mxu0
        %v7505 = vpop.f32.mrb[0].mxu0
        %7506 = vdwg.mxu0
        %s7507 = scalar_lea.vmem [#allocation3], 24
        %v7508 = vld [vmem:[%s7507] sm:$0xf]
        %v7509 = vld [vmem:[%s7507 + $0x4] sm:$0xf]
        %v7510 = vld [vmem:[%s7507 + $0xc] sm:$0xf]
        %v7511 = vld [vmem:[%s7507 + $0x10] sm:$0xf]
        %v7512 = vld [vmem:[%s7507 + $0x18] sm:$0xf]
        %v7513 = vld [vmem:[%s7507 + $0x1c] sm:$0xf]
        %v7514 = vld [vmem:[%s7507 + $0x24] sm:$0xf]
        %v7515 = vld [vmem:[%s7507 + $0x28] sm:$0xf]
        %v7516 = vld [vmem:[%s7507 + $0x30] sm:$0xf]
        %v7517 = vld [vmem:[%s7507 + $0x34] sm:$0xf]
        %v7518 = vld [vmem:[%s7507 + $0x3c] sm:$0xf]
        %v7519 = vld [vmem:[%s7507 + $0x40] sm:$0xf]
        %v7520 = vld [vmem:[%s7507 + $0x48] sm:$0xf]
        %v7521 = vld [vmem:[%s7507 + $0x4c] sm:$0xf]
        %v7522 = vld [vmem:[%s7507 + $0x54] sm:$0xf]
        %v7523 = vld [vmem:[%s7507 + $0x58] sm:$0xf]
        %v7524 = vld [vmem:[%s7507 + $0x60] sm:$0xf]
        %v7525 = vld [vmem:[%s7507 + $0x64] sm:$0xf]
        %v7526 = vld [vmem:[%s7507 + $0x6c] sm:$0xf]
        %v7527 = vld [vmem:[%s7507 + $0x70] sm:$0xf]
        %v7528 = vld [vmem:[%s7507 + $0x78] sm:$0xf]
        %v7529 = vld [vmem:[%s7507 + $0x7c] sm:$0xf]
        %v7530 = vld [vmem:[%s7507 + $0x84] sm:$0xf]
        %v7531 = vld [vmem:[%s7507 + $0x88] sm:$0xf]
        %v7532 = vld [vmem:[%s7507 + $0x90] sm:$0xf]
        %v7533 = vld [vmem:[%s7507 + $0x94] sm:$0xf]
        %v7534 = vld [vmem:[%s7507 + $0x9c] sm:$0xf]
        %v7535 = vld [vmem:[%s7507 + $0xa0] sm:$0xf]
        %v7536 = vld [vmem:[%s7507 + $0xa8] sm:$0xf]
        %v7537 = vld [vmem:[%s7507 + $0xac] sm:$0xf]
        %v7538 = vld [vmem:[%s7507 + $0xb4] sm:$0xf]
        %v7539 = vld [vmem:[%s7507 + $0xb8] sm:$0xf]
        %v7540 = vld [vmem:[%s7507 + $0x8] sm:$0x1]
        %v7541 = vld [vmem:[%s7507 + $0x14] sm:$0x1]
        %v7542 = vld [vmem:[%s7507 + $0x20] sm:$0x1]
        %v7543 = vld [vmem:[%s7507 + $0x2c] sm:$0x1]
        %v7544 = vld [vmem:[%s7507 + $0x38] sm:$0x1]
        %v7545 = vld [vmem:[%s7507 + $0x44] sm:$0x1]
        %v7546 = vld [vmem:[%s7507 + $0x50] sm:$0x1]
        %v7547 = vld [vmem:[%s7507 + $0x5c] sm:$0x1]
        %v7548 = vld [vmem:[%s7507 + $0x68] sm:$0x1]
        %v7549 = vld [vmem:[%s7507 + $0x74] sm:$0x1]
        %v7550 = vld [vmem:[%s7507 + $0x80] sm:$0x1]
        %v7551 = vld [vmem:[%s7507 + $0x8c] sm:$0x1]
        %v7552 = vld [vmem:[%s7507 + $0x98] sm:$0x1]
        %v7553 = vld [vmem:[%s7507 + $0xa4] sm:$0x1]
        %v7554 = vld [vmem:[%s7507 + $0xb0] sm:$0x1]
        %v7555 = vld [vmem:[%s7507 + $0xbc] sm:$0x1]
        %v7557 = vshrl.u32 %v7508, 16
        %v7559 = vrot.slane %v7557, 4
        %v7560 = vshll.u32 %v7508, 16
        %v7562 = vrot.slane %v7560, 5
        %v7563 = vor.u32 %v7559, %v7562
        %v7564 = vrot.slane %v7563, 4
        %v7566 = vshll.u32 %v7509, 16
        %v7568 = vrot.slane %v7566, 5
        %v7569 = vsel %vm1074, %v7564, %v7568
        %v7570 = vshrl.u32 %v7509, 16
        %v7572 = vrot.slane %v7570, 4
        %v7573 = vor.u32 %v7572, %v7568
        %v7574 = vrot.slane %v7573, 4
        %v7576 = vshll.u32 %v7540, 16
        %v7578 = vrot.slane %v7576, 5
        %v7579 = vsel %vm1074, %v7574, %v7578
        %v7581 = vshrl.u32 %v7510, 16
        %v7583 = vrot.slane %v7581, 4
        %v7584 = vshll.u32 %v7510, 16
        %v7586 = vrot.slane %v7584, 5
        %v7587 = vor.u32 %v7583, %v7586
        %v7588 = vrot.slane %v7587, 4
        %v7590 = vshll.u32 %v7511, 16
        %v7592 = vrot.slane %v7590, 5
        %v7593 = vsel %vm1074, %v7588, %v7592
        %v7594 = vshrl.u32 %v7511, 16
        %v7596 = vrot.slane %v7594, 4
        %v7597 = vor.u32 %v7596, %v7592
        %v7598 = vrot.slane %v7597, 4
        %v7600 = vshll.u32 %v7541, 16
        %v7602 = vrot.slane %v7600, 5
        %v7603 = vsel %vm1074, %v7598, %v7602
        %v7605 = vshrl.u32 %v7512, 16
        %v7607 = vrot.slane %v7605, 4
        %v7608 = vshll.u32 %v7512, 16
        %v7610 = vrot.slane %v7608, 5
        %v7611 = vor.u32 %v7607, %v7610
        %v7612 = vrot.slane %v7611, 4
        %v7614 = vshll.u32 %v7513, 16
        %v7616 = vrot.slane %v7614, 5
        %v7617 = vsel %vm1074, %v7612, %v7616
        %v7618 = vshrl.u32 %v7513, 16
        %v7620 = vrot.slane %v7618, 4
        %v7621 = vor.u32 %v7620, %v7616
        %v7622 = vrot.slane %v7621, 4
        %v7624 = vshll.u32 %v7542, 16
        %v7626 = vrot.slane %v7624, 5
        %v7627 = vsel %vm1074, %v7622, %v7626
        %v7629 = vshrl.u32 %v7514, 16
        %v7631 = vrot.slane %v7629, 4
        %v7632 = vshll.u32 %v7514, 16
        %v7634 = vrot.slane %v7632, 5
        %v7635 = vor.u32 %v7631, %v7634
        %v7636 = vrot.slane %v7635, 4
        %v7638 = vshll.u32 %v7515, 16
        %v7640 = vrot.slane %v7638, 5
        %v7641 = vsel %vm1074, %v7636, %v7640
        %v7642 = vshrl.u32 %v7515, 16
        %v7644 = vrot.slane %v7642, 4
        %v7645 = vor.u32 %v7644, %v7640
        %v7646 = vrot.slane %v7645, 4
        %v7648 = vshll.u32 %v7543, 16
        %v7650 = vrot.slane %v7648, 5
        %v7651 = vsel %vm1074, %v7646, %v7650
        %v7653 = vshrl.u32 %v7516, 16
        %v7655 = vrot.slane %v7653, 4
        %v7656 = vshll.u32 %v7516, 16
        %v7658 = vrot.slane %v7656, 5
        %v7659 = vor.u32 %v7655, %v7658
        %v7660 = vrot.slane %v7659, 4
        %v7662 = vshll.u32 %v7517, 16
        %v7664 = vrot.slane %v7662, 5
        %v7665 = vsel %vm1074, %v7660, %v7664
        %v7666 = vshrl.u32 %v7517, 16
        %v7668 = vrot.slane %v7666, 4
        %v7669 = vor.u32 %v7668, %v7664
        %v7670 = vrot.slane %v7669, 4
        %v7672 = vshll.u32 %v7544, 16
        %v7674 = vrot.slane %v7672, 5
        %v7675 = vsel %vm1074, %v7670, %v7674
        %v7677 = vshrl.u32 %v7518, 16
        %v7679 = vrot.slane %v7677, 4
        %v7680 = vshll.u32 %v7518, 16
        %v7682 = vrot.slane %v7680, 5
        %v7683 = vor.u32 %v7679, %v7682
        %v7684 = vrot.slane %v7683, 4
        %v7686 = vshll.u32 %v7519, 16
        %v7688 = vrot.slane %v7686, 5
        %v7689 = vsel %vm1074, %v7684, %v7688
        %v7690 = vshrl.u32 %v7519, 16
        %v7692 = vrot.slane %v7690, 4
        %v7693 = vor.u32 %v7692, %v7688
        %v7694 = vrot.slane %v7693, 4
        %v7696 = vshll.u32 %v7545, 16
        %v7698 = vrot.slane %v7696, 5
        %v7699 = vsel %vm1074, %v7694, %v7698
        %v7701 = vshrl.u32 %v7520, 16
        %v7703 = vrot.slane %v7701, 4
        %v7704 = vshll.u32 %v7520, 16
        %v7706 = vrot.slane %v7704, 5
        %v7707 = vor.u32 %v7703, %v7706
        %v7708 = vrot.slane %v7707, 4
        %v7710 = vshll.u32 %v7521, 16
        %v7712 = vrot.slane %v7710, 5
        %v7713 = vsel %vm1074, %v7708, %v7712
        %v7714 = vshrl.u32 %v7521, 16
        %v7716 = vrot.slane %v7714, 4
        %v7717 = vor.u32 %v7716, %v7712
        %v7718 = vrot.slane %v7717, 4
        %v7720 = vshll.u32 %v7546, 16
        %v7722 = vrot.slane %v7720, 5
        %v7723 = vsel %vm1074, %v7718, %v7722
        %v7725 = vshrl.u32 %v7522, 16
        %v7727 = vrot.slane %v7725, 4
        %v7728 = vshll.u32 %v7522, 16
        %v7730 = vrot.slane %v7728, 5
        %v7731 = vor.u32 %v7727, %v7730
        %v7732 = vrot.slane %v7731, 4
        %v7734 = vshll.u32 %v7523, 16
        %v7736 = vrot.slane %v7734, 5
        %v7737 = vsel %vm1074, %v7732, %v7736
        %v7738 = vshrl.u32 %v7523, 16
        %v7740 = vrot.slane %v7738, 4
        %v7741 = vor.u32 %v7740, %v7736
        %v7742 = vrot.slane %v7741, 4
        %v7744 = vshll.u32 %v7547, 16
        %v7746 = vrot.slane %v7744, 5
        %v7747 = vsel %vm1074, %v7742, %v7746
        %v7749 = vshrl.u32 %v7524, 16
        %v7751 = vrot.slane %v7749, 4
        %v7752 = vshll.u32 %v7524, 16
        %v7754 = vrot.slane %v7752, 5
        %v7755 = vor.u32 %v7751, %v7754
        %v7756 = vrot.slane %v7755, 4
        %v7758 = vshll.u32 %v7525, 16
        %v7760 = vrot.slane %v7758, 5
        %v7761 = vsel %vm1074, %v7756, %v7760
        %v7762 = vshrl.u32 %v7525, 16
        %v7764 = vrot.slane %v7762, 4
        %v7765 = vor.u32 %v7764, %v7760
        %v7766 = vrot.slane %v7765, 4
        %v7768 = vshll.u32 %v7548, 16
        %v7770 = vrot.slane %v7768, 5
        %v7771 = vsel %vm1074, %v7766, %v7770
        %v7773 = vshrl.u32 %v7526, 16
        %v7775 = vrot.slane %v7773, 4
        %v7776 = vshll.u32 %v7526, 16
        %v7778 = vrot.slane %v7776, 5
        %v7779 = vor.u32 %v7775, %v7778
        %v7780 = vrot.slane %v7779, 4
        %v7782 = vshll.u32 %v7527, 16
        %v7784 = vrot.slane %v7782, 5
        %v7785 = vsel %vm1074, %v7780, %v7784
        %v7786 = vshrl.u32 %v7527, 16
        %v7788 = vrot.slane %v7786, 4
        %v7789 = vor.u32 %v7788, %v7784
        %v7790 = vrot.slane %v7789, 4
        %v7792 = vshll.u32 %v7549, 16
        %v7794 = vrot.slane %v7792, 5
        %v7795 = vsel %vm1074, %v7790, %v7794
        %v7797 = vshrl.u32 %v7528, 16
        %v7799 = vrot.slane %v7797, 4
        %v7800 = vshll.u32 %v7528, 16
        %v7802 = vrot.slane %v7800, 5
        %v7803 = vor.u32 %v7799, %v7802
        %v7804 = vrot.slane %v7803, 4
        %v7806 = vshll.u32 %v7529, 16
        %v7808 = vrot.slane %v7806, 5
        %v7809 = vsel %vm1074, %v7804, %v7808
        %v7810 = vshrl.u32 %v7529, 16
        %v7812 = vrot.slane %v7810, 4
        %v7813 = vor.u32 %v7812, %v7808
        %v7814 = vrot.slane %v7813, 4
        %v7816 = vshll.u32 %v7550, 16
        %v7818 = vrot.slane %v7816, 5
        %v7819 = vsel %vm1074, %v7814, %v7818
        %v7821 = vshrl.u32 %v7530, 16
        %v7823 = vrot.slane %v7821, 4
        %v7824 = vshll.u32 %v7530, 16
        %v7826 = vrot.slane %v7824, 5
        %v7827 = vor.u32 %v7823, %v7826
        %v7828 = vrot.slane %v7827, 4
        %v7830 = vshll.u32 %v7531, 16
        %v7832 = vrot.slane %v7830, 5
        %v7833 = vsel %vm1074, %v7828, %v7832
        %v7834 = vshrl.u32 %v7531, 16
        %v7836 = vrot.slane %v7834, 4
        %v7837 = vor.u32 %v7836, %v7832
        %v7838 = vrot.slane %v7837, 4
        %v7840 = vshll.u32 %v7551, 16
        %v7842 = vrot.slane %v7840, 5
        %v7843 = vsel %vm1074, %v7838, %v7842
        %v7845 = vshrl.u32 %v7532, 16
        %v7847 = vrot.slane %v7845, 4
        %v7848 = vshll.u32 %v7532, 16
        %v7850 = vrot.slane %v7848, 5
        %v7851 = vor.u32 %v7847, %v7850
        %v7852 = vrot.slane %v7851, 4
        %v7854 = vshll.u32 %v7533, 16
        %v7856 = vrot.slane %v7854, 5
        %v7857 = vsel %vm1074, %v7852, %v7856
        %v7858 = vshrl.u32 %v7533, 16
        %v7860 = vrot.slane %v7858, 4
        %v7861 = vor.u32 %v7860, %v7856
        %v7862 = vrot.slane %v7861, 4
        %v7864 = vshll.u32 %v7552, 16
        %v7866 = vrot.slane %v7864, 5
        %v7867 = vsel %vm1074, %v7862, %v7866
        %v7869 = vshrl.u32 %v7534, 16
        %v7871 = vrot.slane %v7869, 4
        %v7872 = vshll.u32 %v7534, 16
        %v7874 = vrot.slane %v7872, 5
        %v7875 = vor.u32 %v7871, %v7874
        %v7876 = vrot.slane %v7875, 4
        %v7878 = vshll.u32 %v7535, 16
        %v7880 = vrot.slane %v7878, 5
        %v7881 = vsel %vm1074, %v7876, %v7880
        %v7882 = vshrl.u32 %v7535, 16
        %v7884 = vrot.slane %v7882, 4
        %v7885 = vor.u32 %v7884, %v7880
        %v7886 = vrot.slane %v7885, 4
        %v7888 = vshll.u32 %v7553, 16
        %v7890 = vrot.slane %v7888, 5
        %v7891 = vsel %vm1074, %v7886, %v7890
        %v7893 = vshrl.u32 %v7536, 16
        %v7895 = vrot.slane %v7893, 4
        %v7896 = vshll.u32 %v7536, 16
        %v7898 = vrot.slane %v7896, 5
        %v7899 = vor.u32 %v7895, %v7898
        %v7900 = vrot.slane %v7899, 4
        %v7902 = vshll.u32 %v7537, 16
        %v7904 = vrot.slane %v7902, 5
        %v7905 = vsel %vm1074, %v7900, %v7904
        %v7906 = vshrl.u32 %v7537, 16
        %v7908 = vrot.slane %v7906, 4
        %v7909 = vor.u32 %v7908, %v7904
        %v7910 = vrot.slane %v7909, 4
        %v7912 = vshll.u32 %v7554, 16
        %v7914 = vrot.slane %v7912, 5
        %v7915 = vsel %vm1074, %v7910, %v7914
        %v7917 = vshrl.u32 %v7538, 16
        %v7919 = vrot.slane %v7917, 4
        %v7920 = vshll.u32 %v7538, 16
        %v7922 = vrot.slane %v7920, 5
        %v7923 = vor.u32 %v7919, %v7922
        %v7924 = vrot.slane %v7923, 4
        %v7926 = vshll.u32 %v7539, 16
        %v7928 = vrot.slane %v7926, 5
        %v7929 = vsel %vm1074, %v7924, %v7928
        %v7930 = vshrl.u32 %v7539, 16
        %v7932 = vrot.slane %v7930, 4
        %v7933 = vor.u32 %v7932, %v7928
        %v7934 = vrot.slane %v7933, 4
        %v7936 = vshll.u32 %v7555, 16
        %v7938 = vrot.slane %v7936, 5
        %v7939 = vsel %vm1074, %v7934, %v7938
        %v7940 = vld [vmem:[%s7507] sm:$0xe]
        %v7941 = vld [vmem:[%s7507 + $0xc] sm:$0xe]
        %v7942 = vld [vmem:[%s7507 + $0x18] sm:$0xe]
        %v7943 = vld [vmem:[%s7507 + $0x24] sm:$0xe]
        %v7944 = vld [vmem:[%s7507 + $0x30] sm:$0xe]
        %v7945 = vld [vmem:[%s7507 + $0x3c] sm:$0xe]
        %v7946 = vld [vmem:[%s7507 + $0x48] sm:$0xe]
        %v7947 = vld [vmem:[%s7507 + $0x54] sm:$0xe]
        %v7948 = vld [vmem:[%s7507 + $0x60] sm:$0xe]
        %v7949 = vld [vmem:[%s7507 + $0x6c] sm:$0xe]
        %v7950 = vld [vmem:[%s7507 + $0x78] sm:$0xe]
        %v7951 = vld [vmem:[%s7507 + $0x84] sm:$0xe]
        %v7952 = vld [vmem:[%s7507 + $0x90] sm:$0xe]
        %v7953 = vld [vmem:[%s7507 + $0x9c] sm:$0xe]
        %v7954 = vld [vmem:[%s7507 + $0xa8] sm:$0xe]
        %v7955 = vld [vmem:[%s7507 + $0xb4] sm:$0xe]
        %v8004 = vrot.slane %v7940, 5
        %v8005 = vrot.slane %v8004, 4
        %v8006 = vrot.slane %v7509, 5
        %v8007 = vsel %vm1525, %v8005, %v8006
        %v8008 = vrot.slane %v8006, 4
        %v8009 = vrot.slane %v7540, 5
        %v8010 = vsel %vm1525, %v8008, %v8009
        %v8011 = vrot.slane %v7941, 5
        %v8012 = vrot.slane %v8011, 4
        %v8013 = vrot.slane %v7511, 5
        %v8014 = vsel %vm1525, %v8012, %v8013
        %v8015 = vrot.slane %v8013, 4
        %v8016 = vrot.slane %v7541, 5
        %v8017 = vsel %vm1525, %v8015, %v8016
        %v8018 = vrot.slane %v7942, 5
        %v8019 = vrot.slane %v8018, 4
        %v8020 = vrot.slane %v7513, 5
        %v8021 = vsel %vm1525, %v8019, %v8020
        %v8022 = vrot.slane %v8020, 4
        %v8023 = vrot.slane %v7542, 5
        %v8024 = vsel %vm1525, %v8022, %v8023
        %v8025 = vrot.slane %v7943, 5
        %v8026 = vrot.slane %v8025, 4
        %v8027 = vrot.slane %v7515, 5
        %v8028 = vsel %vm1525, %v8026, %v8027
        %v8029 = vrot.slane %v8027, 4
        %v8030 = vrot.slane %v7543, 5
        %v8031 = vsel %vm1525, %v8029, %v8030
        %v8032 = vrot.slane %v7944, 5
        %v8033 = vrot.slane %v8032, 4
        %v8034 = vrot.slane %v7517, 5
        %v8035 = vsel %vm1525, %v8033, %v8034
        %v8036 = vrot.slane %v8034, 4
        %v8037 = vrot.slane %v7544, 5
        %v8038 = vsel %vm1525, %v8036, %v8037
        %v8039 = vrot.slane %v7945, 5
        %v8040 = vrot.slane %v8039, 4
        %v8041 = vrot.slane %v7519, 5
        %v8042 = vsel %vm1525, %v8040, %v8041
        %v8043 = vrot.slane %v8041, 4
        %v8044 = vrot.slane %v7545, 5
        %v8045 = vsel %vm1525, %v8043, %v8044
        %v8046 = vrot.slane %v7946, 5
        %v8047 = vrot.slane %v8046, 4
        %v8048 = vrot.slane %v7521, 5
        %v8049 = vsel %vm1525, %v8047, %v8048
        %v8050 = vrot.slane %v8048, 4
        %v8051 = vrot.slane %v7546, 5
        %v8052 = vsel %vm1525, %v8050, %v8051
        %v8053 = vrot.slane %v7947, 5
        %v8054 = vrot.slane %v8053, 4
        %v8055 = vrot.slane %v7523, 5
        %v8056 = vsel %vm1525, %v8054, %v8055
        %v8057 = vrot.slane %v8055, 4
        %v8058 = vrot.slane %v7547, 5
        %v8059 = vsel %vm1525, %v8057, %v8058
        %v8060 = vrot.slane %v7948, 5
        %v8061 = vrot.slane %v8060, 4
        %v8062 = vrot.slane %v7525, 5
        %v8063 = vsel %vm1525, %v8061, %v8062
        %v8064 = vrot.slane %v8062, 4
        %v8065 = vrot.slane %v7548, 5
        %v8066 = vsel %vm1525, %v8064, %v8065
        %v8067 = vrot.slane %v7949, 5
        %v8068 = vrot.slane %v8067, 4
        %v8069 = vrot.slane %v7527, 5
        %v8070 = vsel %vm1525, %v8068, %v8069
        %v8071 = vrot.slane %v8069, 4
        %v8072 = vrot.slane %v7549, 5
        %v8073 = vsel %vm1525, %v8071, %v8072
        %v8074 = vrot.slane %v7950, 5
        %v8075 = vrot.slane %v8074, 4
        %v8076 = vrot.slane %v7529, 5
        %v8077 = vsel %vm1525, %v8075, %v8076
        %v8078 = vrot.slane %v8076, 4
        %v8079 = vrot.slane %v7550, 5
        %v8080 = vsel %vm1525, %v8078, %v8079
        %v8081 = vrot.slane %v7951, 5
        %v8082 = vrot.slane %v8081, 4
        %v8083 = vrot.slane %v7531, 5
        %v8084 = vsel %vm1525, %v8082, %v8083
        %v8085 = vrot.slane %v8083, 4
        %v8086 = vrot.slane %v7551, 5
        %v8087 = vsel %vm1525, %v8085, %v8086
        %v8088 = vrot.slane %v7952, 5
        %v8089 = vrot.slane %v8088, 4
        %v8090 = vrot.slane %v7533, 5
        %v8091 = vsel %vm1525, %v8089, %v8090
        %v8092 = vrot.slane %v8090, 4
        %v8093 = vrot.slane %v7552, 5
        %v8094 = vsel %vm1525, %v8092, %v8093
        %v8095 = vrot.slane %v7953, 5
        %v8096 = vrot.slane %v8095, 4
        %v8097 = vrot.slane %v7535, 5
        %v8098 = vsel %vm1525, %v8096, %v8097
        %v8099 = vrot.slane %v8097, 4
        %v8100 = vrot.slane %v7553, 5
        %v8101 = vsel %vm1525, %v8099, %v8100
        %v8102 = vrot.slane %v7954, 5
        %v8103 = vrot.slane %v8102, 4
        %v8104 = vrot.slane %v7537, 5
        %v8105 = vsel %vm1525, %v8103, %v8104
        %v8106 = vrot.slane %v8104, 4
        %v8107 = vrot.slane %v7554, 5
        %v8108 = vsel %vm1525, %v8106, %v8107
        %v8109 = vrot.slane %v7955, 5
        %v8110 = vrot.slane %v8109, 4
        %v8111 = vrot.slane %v7539, 5
        %v8112 = vsel %vm1525, %v8110, %v8111
        %v8113 = vrot.slane %v8111, 4
        %v8114 = vrot.slane %v7555, 5
        %v8115 = vsel %vm1525, %v8113, %v8114
        %v8132 = vunpack.c.l.b16 %v7508
        %v8133 = vunpack.c.l.b16 %v7509
        %v8134 = vunpack.c.l.b16 %v7510
        %v8135 = vunpack.c.l.b16 %v7511
        %v8136 = vunpack.c.l.b16 %v7512
        %v8137 = vunpack.c.l.b16 %v7513
        %v8138 = vunpack.c.l.b16 %v7514
        %v8139 = vunpack.c.l.b16 %v7515
        %v8140 = vunpack.c.l.b16 %v7516
        %v8141 = vunpack.c.l.b16 %v7517
        %v8142 = vunpack.c.l.b16 %v7518
        %v8143 = vunpack.c.l.b16 %v7519
        %v8144 = vunpack.c.l.b16 %v7520
        %v8145 = vunpack.c.l.b16 %v7521
        %v8146 = vunpack.c.l.b16 %v7522
        %v8147 = vunpack.c.l.b16 %v7523
        %v8148 = vunpack.c.l.b16 %v7524
        %v8149 = vunpack.c.l.b16 %v7525
        %v8150 = vunpack.c.l.b16 %v7526
        %v8151 = vunpack.c.l.b16 %v7527
        %v8152 = vunpack.c.l.b16 %v7528
        %v8153 = vunpack.c.l.b16 %v7529
        %v8154 = vunpack.c.l.b16 %v7530
        %v8155 = vunpack.c.l.b16 %v7531
        %v8156 = vunpack.c.l.b16 %v7532
        %v8157 = vunpack.c.l.b16 %v7533
        %v8158 = vunpack.c.l.b16 %v7534
        %v8159 = vunpack.c.l.b16 %v7535
        %v8160 = vunpack.c.l.b16 %v7536
        %v8161 = vunpack.c.l.b16 %v7537
        %v8162 = vunpack.c.l.b16 %v7538
        %v8163 = vunpack.c.l.b16 %v7539
        %v8164 = vpack.c.b16 %v8133, %v8132
        %v8165 = vpack.c.b16 %v8135, %v8134
        %v8166 = vpack.c.b16 %v8137, %v8136
        %v8167 = vpack.c.b16 %v8139, %v8138
        %v8168 = vpack.c.b16 %v8141, %v8140
        %v8169 = vpack.c.b16 %v8143, %v8142
        %v8170 = vpack.c.b16 %v8145, %v8144
        %v8171 = vpack.c.b16 %v8147, %v8146
        %v8172 = vpack.c.b16 %v8149, %v8148
        %v8173 = vpack.c.b16 %v8151, %v8150
        %v8174 = vpack.c.b16 %v8153, %v8152
        %v8175 = vpack.c.b16 %v8155, %v8154
        %v8176 = vpack.c.b16 %v8157, %v8156
        %v8177 = vpack.c.b16 %v8159, %v8158
        %v8178 = vpack.c.b16 %v8161, %v8160
        %v8179 = vpack.c.b16 %v8163, %v8162
        %v8196 = vunpack.c.l.b16 %v7569
        %v8197 = vunpack.c.l.b16 %v7579
        %v8198 = vunpack.c.l.b16 %v7593
        %v8199 = vunpack.c.l.b16 %v7603
        %v8200 = vunpack.c.l.b16 %v7617
        %v8201 = vunpack.c.l.b16 %v7627
        %v8202 = vunpack.c.l.b16 %v7641
        %v8203 = vunpack.c.l.b16 %v7651
        %v8204 = vunpack.c.l.b16 %v7665
        %v8205 = vunpack.c.l.b16 %v7675
        %v8206 = vunpack.c.l.b16 %v7689
        %v8207 = vunpack.c.l.b16 %v7699
        %v8208 = vunpack.c.l.b16 %v7713
        %v8209 = vunpack.c.l.b16 %v7723
        %v8210 = vunpack.c.l.b16 %v7737
        %v8211 = vunpack.c.l.b16 %v7747
        %v8212 = vunpack.c.l.b16 %v7761
        %v8213 = vunpack.c.l.b16 %v7771
        %v8214 = vunpack.c.l.b16 %v7785
        %v8215 = vunpack.c.l.b16 %v7795
        %v8216 = vunpack.c.l.b16 %v7809
        %v8217 = vunpack.c.l.b16 %v7819
        %v8218 = vunpack.c.l.b16 %v7833
        %v8219 = vunpack.c.l.b16 %v7843
        %v8220 = vunpack.c.l.b16 %v7857
        %v8221 = vunpack.c.l.b16 %v7867
        %v8222 = vunpack.c.l.b16 %v7881
        %v8223 = vunpack.c.l.b16 %v7891
        %v8224 = vunpack.c.l.b16 %v7905
        %v8225 = vunpack.c.l.b16 %v7915
        %v8226 = vunpack.c.l.b16 %v7929
        %v8227 = vunpack.c.l.b16 %v7939
        %v8228 = vpack.c.b16 %v8197, %v8196
        %v8229 = vpack.c.b16 %v8199, %v8198
        %v8230 = vpack.c.b16 %v8201, %v8200
        %v8231 = vpack.c.b16 %v8203, %v8202
        %v8232 = vpack.c.b16 %v8205, %v8204
        %v8233 = vpack.c.b16 %v8207, %v8206
        %v8234 = vpack.c.b16 %v8209, %v8208
        %v8235 = vpack.c.b16 %v8211, %v8210
        %v8236 = vpack.c.b16 %v8213, %v8212
        %v8237 = vpack.c.b16 %v8215, %v8214
        %v8238 = vpack.c.b16 %v8217, %v8216
        %v8239 = vpack.c.b16 %v8219, %v8218
        %v8240 = vpack.c.b16 %v8221, %v8220
        %v8241 = vpack.c.b16 %v8223, %v8222
        %v8242 = vpack.c.b16 %v8225, %v8224
        %v8243 = vpack.c.b16 %v8227, %v8226
        %v8260 = vunpack.c.l.b16 %v8007
        %v8261 = vunpack.c.l.b16 %v8010
        %v8262 = vunpack.c.l.b16 %v8014
        %v8263 = vunpack.c.l.b16 %v8017
        %v8264 = vunpack.c.l.b16 %v8021
        %v8265 = vunpack.c.l.b16 %v8024
        %v8266 = vunpack.c.l.b16 %v8028
        %v8267 = vunpack.c.l.b16 %v8031
        %v8268 = vunpack.c.l.b16 %v8035
        %v8269 = vunpack.c.l.b16 %v8038
        %v8270 = vunpack.c.l.b16 %v8042
        %v8271 = vunpack.c.l.b16 %v8045
        %v8272 = vunpack.c.l.b16 %v8049
        %v8273 = vunpack.c.l.b16 %v8052
        %v8274 = vunpack.c.l.b16 %v8056
        %v8275 = vunpack.c.l.b16 %v8059
        %v8276 = vunpack.c.l.b16 %v8063
        %v8277 = vunpack.c.l.b16 %v8066
        %v8278 = vunpack.c.l.b16 %v8070
        %v8279 = vunpack.c.l.b16 %v8073
        %v8280 = vunpack.c.l.b16 %v8077
        %v8281 = vunpack.c.l.b16 %v8080
        %v8282 = vunpack.c.l.b16 %v8084
        %v8283 = vunpack.c.l.b16 %v8087
        %v8284 = vunpack.c.l.b16 %v8091
        %v8285 = vunpack.c.l.b16 %v8094
        %v8286 = vunpack.c.l.b16 %v8098
        %v8287 = vunpack.c.l.b16 %v8101
        %v8288 = vunpack.c.l.b16 %v8105
        %v8289 = vunpack.c.l.b16 %v8108
        %v8290 = vunpack.c.l.b16 %v8112
        %v8291 = vunpack.c.l.b16 %v8115
        %v8292 = vpack.c.b16 %v8261, %v8260
        %v8293 = vpack.c.b16 %v8263, %v8262
        %v8294 = vpack.c.b16 %v8265, %v8264
        %v8295 = vpack.c.b16 %v8267, %v8266
        %v8296 = vpack.c.b16 %v8269, %v8268
        %v8297 = vpack.c.b16 %v8271, %v8270
        %v8298 = vpack.c.b16 %v8273, %v8272
        %v8299 = vpack.c.b16 %v8275, %v8274
        %v8300 = vpack.c.b16 %v8277, %v8276
        %v8301 = vpack.c.b16 %v8279, %v8278
        %v8302 = vpack.c.b16 %v8281, %v8280
        %v8303 = vpack.c.b16 %v8283, %v8282
        %v8304 = vpack.c.b16 %v8285, %v8284
        %v8305 = vpack.c.b16 %v8287, %v8286
        %v8306 = vpack.c.b16 %v8289, %v8288
        %v8307 = vpack.c.b16 %v8291, %v8290
        %v8324 = vld [vmem:[#allocation4 + $0x180] sm:$0xf]
        %v8325 = vld [vmem:[#allocation4 + $0x184] sm:$0xf]
        %v8326 = vld [vmem:[#allocation4 + $0x188] sm:$0xf]
        %v8327 = vld [vmem:[#allocation4 + $0x18c] sm:$0xf]
        %v8328 = vld [vmem:[#allocation4 + $0x190] sm:$0xf]
        %v8329 = vld [vmem:[#allocation4 + $0x194] sm:$0xf]
        %v8330 = vld [vmem:[#allocation4 + $0x198] sm:$0xf]
        %v8331 = vld [vmem:[#allocation4 + $0x19c] sm:$0xf]
        %v8332 = vld [vmem:[#allocation4 + $0x1a0] sm:$0xf]
        %v8333 = vld [vmem:[#allocation4 + $0x1a4] sm:$0xf]
        %v8334 = vld [vmem:[#allocation4 + $0x1a8] sm:$0xf]
        %v8335 = vld [vmem:[#allocation4 + $0x1ac] sm:$0xf]
        %v8336 = vld [vmem:[#allocation4 + $0x1b0] sm:$0xf]
        %v8337 = vld [vmem:[#allocation4 + $0x1b4] sm:$0xf]
        %v8338 = vld [vmem:[#allocation4 + $0x1b8] sm:$0xf]
        %v8339 = vld [vmem:[#allocation4 + $0x1bc] sm:$0xf]
        %v8340 = vld [vmem:[#allocation4 + $0x1c0] sm:$0xf]
        %v8341 = vld [vmem:[#allocation4 + $0x1c4] sm:$0xf]
        %v8342 = vld [vmem:[#allocation4 + $0x1c8] sm:$0xf]
        %v8343 = vld [vmem:[#allocation4 + $0x1cc] sm:$0xf]
        %v8344 = vld [vmem:[#allocation4 + $0x1d0] sm:$0xf]
        %v8345 = vld [vmem:[#allocation4 + $0x1d4] sm:$0xf]
        %v8346 = vld [vmem:[#allocation4 + $0x1d8] sm:$0xf]
        %v8347 = vld [vmem:[#allocation4 + $0x1dc] sm:$0xf]
        %v8348 = vld [vmem:[#allocation4 + $0x1e0] sm:$0xf]
        %v8349 = vld [vmem:[#allocation4 + $0x1e4] sm:$0xf]
        %v8350 = vld [vmem:[#allocation4 + $0x1e8] sm:$0xf]
        %v8351 = vld [vmem:[#allocation4 + $0x1ec] sm:$0xf]
        %v8352 = vld [vmem:[#allocation4 + $0x1f0] sm:$0xf]
        %v8353 = vld [vmem:[#allocation4 + $0x1f4] sm:$0xf]
        %v8354 = vld [vmem:[#allocation4 + $0x1f8] sm:$0xf]
        %v8355 = vld [vmem:[#allocation4 + $0x1fc] sm:$0xf]
        %v8356 = vld [vmem:[#allocation4 + $0x200] sm:$0xf]
        %v8357 = vld [vmem:[#allocation4 + $0x204] sm:$0xf]
        %v8358 = vld [vmem:[#allocation4 + $0x208] sm:$0xf]
        %v8359 = vld [vmem:[#allocation4 + $0x20c] sm:$0xf]
        %v8360 = vld [vmem:[#allocation4 + $0x210] sm:$0xf]
        %v8361 = vld [vmem:[#allocation4 + $0x214] sm:$0xf]
        %v8362 = vld [vmem:[#allocation4 + $0x218] sm:$0xf]
        %v8363 = vld [vmem:[#allocation4 + $0x21c] sm:$0xf]
        %v8364 = vld [vmem:[#allocation4 + $0x220] sm:$0xf]
        %v8365 = vld [vmem:[#allocation4 + $0x224] sm:$0xf]
        %v8366 = vld [vmem:[#allocation4 + $0x228] sm:$0xf]
        %v8367 = vld [vmem:[#allocation4 + $0x22c] sm:$0xf]
        %v8368 = vld [vmem:[#allocation4 + $0x230] sm:$0xf]
        %v8369 = vld [vmem:[#allocation4 + $0x234] sm:$0xf]
        %v8370 = vld [vmem:[#allocation4 + $0x238] sm:$0xf]
        %v8371 = vld [vmem:[#allocation4 + $0x23c] sm:$0xf]
        %v8420 = vunpack.c.l.b16 %v8324
        %v8421 = vunpack.c.l.b16 %v8325
        %v8422 = vunpack.c.l.b16 %v8326
        %v8423 = vunpack.c.l.b16 %v8327
        %v8424 = vunpack.c.l.b16 %v8328
        %v8425 = vunpack.c.l.b16 %v8329
        %v8426 = vunpack.c.l.b16 %v8330
        %v8427 = vunpack.c.l.b16 %v8331
        %v8428 = vunpack.c.l.b16 %v8332
        %v8429 = vunpack.c.l.b16 %v8333
        %v8430 = vunpack.c.l.b16 %v8334
        %v8431 = vunpack.c.l.b16 %v8335
        %v8432 = vunpack.c.l.b16 %v8336
        %v8433 = vunpack.c.l.b16 %v8337
        %v8434 = vunpack.c.l.b16 %v8338
        %v8435 = vunpack.c.l.b16 %v8339
        %v8436 = vunpack.c.l.b16 %v8340
        %v8437 = vunpack.c.l.b16 %v8341
        %v8438 = vunpack.c.l.b16 %v8342
        %v8439 = vunpack.c.l.b16 %v8343
        %v8440 = vunpack.c.l.b16 %v8344
        %v8441 = vunpack.c.l.b16 %v8345
        %v8442 = vunpack.c.l.b16 %v8346
        %v8443 = vunpack.c.l.b16 %v8347
        %v8444 = vunpack.c.l.b16 %v8348
        %v8445 = vunpack.c.l.b16 %v8349
        %v8446 = vunpack.c.l.b16 %v8350
        %v8447 = vunpack.c.l.b16 %v8351
        %v8448 = vunpack.c.l.b16 %v8352
        %v8449 = vunpack.c.l.b16 %v8353
        %v8450 = vunpack.c.l.b16 %v8354
        %v8451 = vunpack.c.l.b16 %v8355
        %v8452 = vunpack.c.l.b16 %v8356
        %v8453 = vunpack.c.l.b16 %v8357
        %v8454 = vunpack.c.l.b16 %v8358
        %v8455 = vunpack.c.l.b16 %v8359
        %v8456 = vunpack.c.l.b16 %v8360
        %v8457 = vunpack.c.l.b16 %v8361
        %v8458 = vunpack.c.l.b16 %v8362
        %v8459 = vunpack.c.l.b16 %v8363
        %v8460 = vunpack.c.l.b16 %v8364
        %v8461 = vunpack.c.l.b16 %v8365
        %v8462 = vunpack.c.l.b16 %v8366
        %v8463 = vunpack.c.l.b16 %v8367
        %v8464 = vunpack.c.l.b16 %v8368
        %v8465 = vunpack.c.l.b16 %v8369
        %v8466 = vunpack.c.l.b16 %v8370
        %v8467 = vunpack.c.l.b16 %v8371
        %v8468 = vpack.c.b16 %v8421, %v8420
        %v8469 = vpack.c.b16 %v8423, %v8422
        %v8470 = vpack.c.b16 %v8425, %v8424
        %v8471 = vpack.c.b16 %v8427, %v8426
        %v8472 = vpack.c.b16 %v8429, %v8428
        %v8473 = vpack.c.b16 %v8431, %v8430
        %v8474 = vpack.c.b16 %v8433, %v8432
        %v8475 = vpack.c.b16 %v8435, %v8434
        %v8476 = vpack.c.b16 %v8437, %v8436
        %v8477 = vpack.c.b16 %v8439, %v8438
        %v8478 = vpack.c.b16 %v8441, %v8440
        %v8479 = vpack.c.b16 %v8443, %v8442
        %v8480 = vpack.c.b16 %v8445, %v8444
        %v8481 = vpack.c.b16 %v8447, %v8446
        %v8482 = vpack.c.b16 %v8449, %v8448
        %v8483 = vpack.c.b16 %v8451, %v8450
        %v8484 = vpack.c.b16 %v8453, %v8452
        %v8485 = vpack.c.b16 %v8455, %v8454
        %v8486 = vpack.c.b16 %v8457, %v8456
        %v8487 = vpack.c.b16 %v8459, %v8458
        %v8488 = vpack.c.b16 %v8461, %v8460
        %v8489 = vpack.c.b16 %v8463, %v8462
        %v8490 = vpack.c.b16 %v8465, %v8464
        %v8491 = vpack.c.b16 %v8467, %v8466
        %8516 = vmatprep.subr.bf16.mxu0 0
        %8517 = vmatpush1.bf16.msra.mxu0 %v8468
        %8518 = vmatprep.subr.bf16.mxu0 0
        %8519 = vmatpush1.bf16.msra.mxu0 %v8469
        %8520 = vmatprep.subr.bf16.mxu0 0
        %8521 = vmatpush1.bf16.msra.mxu0 %v8470
        %8522 = vmatprep.subr.bf16.mxu0 0
        %8523 = vmatpush1.bf16.msra.mxu0 %v8471
        %8524 = vmatprep.subr.bf16.mxu0 0
        %8525 = vmatpush1.bf16.msra.mxu0 %v8472
        %8526 = vmatprep.subr.bf16.mxu0 0
        %8527 = vmatpush1.bf16.msra.mxu0 %v8473
        %8528 = vmatprep.subr.bf16.mxu0 0
        %8529 = vmatpush1.bf16.msra.mxu0 %v8474
        %8530 = vmatprep.subr.bf16.mxu0 0
        %8531 = vmatpush1.bf16.msra.mxu0 %v8475
        %8532 = vmatprep.subr.bf16.mxu0 0
        %8533 = vmatpush1.bf16.msra.mxu0 %v8476
        %8534 = vmatprep.subr.bf16.mxu0 0
        %8535 = vmatpush1.bf16.msra.mxu0 %v8477
        %8536 = vmatprep.subr.bf16.mxu0 0
        %8537 = vmatpush1.bf16.msra.mxu0 %v8478
        %8538 = vmatprep.subr.bf16.mxu0 0
        %8539 = vmatpush1.bf16.msra.mxu0 %v8479
        %8540 = vmatprep.subr.bf16.mxu0 0
        %8541 = vmatpush1.bf16.msra.mxu0 %v8480
        %8542 = vmatprep.subr.bf16.mxu0 0
        %8543 = vmatpush1.bf16.msra.mxu0 %v8481
        %8544 = vmatprep.subr.bf16.mxu0 0
        %8545 = vmatpush1.bf16.msra.mxu0 %v8482
        %8546 = vmatprep.subr.bf16.mxu0 0
        %8547 = vmatpush1.bf16.msra.mxu0 %v8483
        %8548 = vmatprep.mubr.bf16.mxu0 %v8228
        %8549 = vmatmul.mubr.bf16.gmra.mrb[0].mxu0 %v8164
        %v8550 = vpop.f32.mrb[0].mxu0
        %v8551 = vadd.f32 0.0, %v8550
        %v8552 = vpop.f32.mrb[0].mxu0
        %v8553 = vpop.f32.mrb[0].mxu0
        %v8554 = vadd.f32 0.0, %v8553
        %v8555 = vpop.f32.mrb[0].mxu0
        %8556 = vmatprep.mubr.bf16.mxu0 %v8229
        %8557 = vmatmul.mubr.bf16.gmra.mrb[0].mxu0 %v8165
        %v8558 = vpop.f32.mrb[0].mxu0
        %v8559 = vadd.f32 0.0, %v8558
        %v8560 = vpop.f32.mrb[0].mxu0
        %v8561 = vpop.f32.mrb[0].mxu0
        %v8562 = vadd.f32 0.0, %v8561
        %v8563 = vpop.f32.mrb[0].mxu0
        %8564 = vmatprep.mubr.bf16.mxu0 %v8230
        %8565 = vmatmul.mubr.bf16.gmra.mrb[0].mxu0 %v8166
        %v8566 = vpop.f32.mrb[0].mxu0
        %v8567 = vadd.f32 0.0, %v8566
        %v8568 = vpop.f32.mrb[0].mxu0
        %v8569 = vpop.f32.mrb[0].mxu0
        %v8570 = vadd.f32 0.0, %v8569
        %v8571 = vpop.f32.mrb[0].mxu0
        %8572 = vmatprep.mubr.bf16.mxu0 %v8231
        %8573 = vmatmul.mubr.bf16.gmra.mrb[0].mxu0 %v8167
        %v8574 = vpop.f32.mrb[0].mxu0
        %v8575 = vadd.f32 0.0, %v8574
        %v8576 = vpop.f32.mrb[0].mxu0
        %v8577 = vpop.f32.mrb[0].mxu0
        %v8578 = vadd.f32 0.0, %v8577
        %v8579 = vpop.f32.mrb[0].mxu0
        %8580 = vmatprep.mubr.bf16.mxu0 %v8232
        %8581 = vmatmul.mubr.bf16.gmra.mrb[0].mxu0 %v8168
        %v8582 = vpop.f32.mrb[0].mxu0
        %v8583 = vadd.f32 0.0, %v8582
        %v8584 = vpop.f32.mrb[0].mxu0
        %v8585 = vpop.f32.mrb[0].mxu0
        %v8586 = vadd.f32 0.0, %v8585
        %v8587 = vpop.f32.mrb[0].mxu0
        %8588 = vmatprep.mubr.bf16.mxu0 %v8233
        %8589 = vmatmul.mubr.bf16.gmra.mrb[0].mxu0 %v8169
        %v8590 = vpop.f32.mrb[0].mxu0
        %v8591 = vadd.f32 0.0, %v8590
        %v8592 = vpop.f32.mrb[0].mxu0
        %v8593 = vpop.f32.mrb[0].mxu0
        %v8594 = vadd.f32 0.0, %v8593
        %v8595 = vpop.f32.mrb[0].mxu0
        %8596 = vmatprep.mubr.bf16.mxu0 %v8234
        %8597 = vmatmul.mubr.bf16.gmra.mrb[0].mxu0 %v8170
        %v8598 = vpop.f32.mrb[0].mxu0
        %v8599 = vadd.f32 0.0, %v8598
        %v8600 = vpop.f32.mrb[0].mxu0
        %v8601 = vpop.f32.mrb[0].mxu0
        %v8602 = vadd.f32 0.0, %v8601
        %v8603 = vpop.f32.mrb[0].mxu0
        %8604 = vmatprep.mubr.bf16.mxu0 %v8235
        %8605 = vmatmul.mubr.bf16.gmra.mrb[0].mxu0 %v8171
        %v8606 = vpop.f32.mrb[0].mxu0
        %v8607 = vadd.f32 0.0, %v8606
        %v8608 = vpop.f32.mrb[0].mxu0
        %v8609 = vpop.f32.mrb[0].mxu0
        %v8610 = vadd.f32 0.0, %v8609
        %v8611 = vpop.f32.mrb[0].mxu0
        %8612 = vmatprep.mubr.bf16.mxu0 %v8236
        %8613 = vmatmul.mubr.bf16.gmra.mrb[0].mxu0 %v8172
        %v8614 = vpop.f32.mrb[0].mxu0
        %v8615 = vadd.f32 0.0, %v8614
        %v8616 = vpop.f32.mrb[0].mxu0
        %v8617 = vpop.f32.mrb[0].mxu0
        %v8618 = vadd.f32 0.0, %v8617
        %v8619 = vpop.f32.mrb[0].mxu0
        %8620 = vmatprep.mubr.bf16.mxu0 %v8237
        %8621 = vmatmul.mubr.bf16.gmra.mrb[0].mxu0 %v8173
        %v8622 = vpop.f32.mrb[0].mxu0
        %v8623 = vadd.f32 0.0, %v8622
        %v8624 = vpop.f32.mrb[0].mxu0
        %v8625 = vpop.f32.mrb[0].mxu0
        %v8626 = vadd.f32 0.0, %v8625
        %v8627 = vpop.f32.mrb[0].mxu0
        %8628 = vmatprep.mubr.bf16.mxu0 %v8238
        %8629 = vmatmul.mubr.bf16.gmra.mrb[0].mxu0 %v8174
        %v8630 = vpop.f32.mrb[0].mxu0
        %v8631 = vadd.f32 0.0, %v8630
        %v8632 = vpop.f32.mrb[0].mxu0
        %v8633 = vpop.f32.mrb[0].mxu0
        %v8634 = vadd.f32 0.0, %v8633
        %v8635 = vpop.f32.mrb[0].mxu0
        %8636 = vmatprep.mubr.bf16.mxu0 %v8239
        %8637 = vmatmul.mubr.bf16.gmra.mrb[0].mxu0 %v8175
        %v8638 = vpop.f32.mrb[0].mxu0
        %v8639 = vadd.f32 0.0, %v8638
        %v8640 = vpop.f32.mrb[0].mxu0
        %v8641 = vpop.f32.mrb[0].mxu0
        %v8642 = vadd.f32 0.0, %v8641
        %v8643 = vpop.f32.mrb[0].mxu0
        %8644 = vmatprep.mubr.bf16.mxu0 %v8240
        %8645 = vmatmul.mubr.bf16.gmra.mrb[0].mxu0 %v8176
        %v8646 = vpop.f32.mrb[0].mxu0
        %v8647 = vadd.f32 0.0, %v8646
        %v8648 = vpop.f32.mrb[0].mxu0
        %v8649 = vpop.f32.mrb[0].mxu0
        %v8650 = vadd.f32 0.0, %v8649
        %v8651 = vpop.f32.mrb[0].mxu0
        %8652 = vmatprep.mubr.bf16.mxu0 %v8241
        %8653 = vmatmul.mubr.bf16.gmra.mrb[0].mxu0 %v8177
        %v8654 = vpop.f32.mrb[0].mxu0
        %v8655 = vadd.f32 0.0, %v8654
        %v8656 = vpop.f32.mrb[0].mxu0
        %v8657 = vpop.f32.mrb[0].mxu0
        %v8658 = vadd.f32 0.0, %v8657
        %v8659 = vpop.f32.mrb[0].mxu0
        %8660 = vmatprep.mubr.bf16.mxu0 %v8242
        %8661 = vmatmul.mubr.bf16.gmra.mrb[0].mxu0 %v8178
        %v8662 = vpop.f32.mrb[0].mxu0
        %v8663 = vadd.f32 0.0, %v8662
        %v8664 = vpop.f32.mrb[0].mxu0
        %v8665 = vpop.f32.mrb[0].mxu0
        %v8666 = vadd.f32 0.0, %v8665
        %v8667 = vpop.f32.mrb[0].mxu0
        %8668 = vmatprep.mubr.bf16.mxu0 %v8243
        %8669 = vmatmul.mubr.bf16.gmra.mrb[0].mxu0 %v8179
        %v8670 = vpop.f32.mrb[0].mxu0
        %v8671 = vpop.f32.mrb[0].mxu0
        %v8672 = vpop.f32.mrb[0].mxu0
        %v8673 = vpop.f32.mrb[0].mxu0
        %8674 = vdwg.mxu0
        %8675 = vmatprep.subr.bf16.mxu0 0
        %8676 = vmatpush1.bf16.msra.mxu0 %v8484
        %8677 = vmatprep.subr.bf16.mxu0 0
        %8678 = vmatpush1.bf16.msra.mxu0 %v8485
        %8679 = vmatprep.subr.bf16.mxu0 0
        %8680 = vmatpush1.bf16.msra.mxu0 %v8486
        %8681 = vmatprep.subr.bf16.mxu0 0
        %8682 = vmatpush1.bf16.msra.mxu0 %v8487
        %8683 = vmatprep.subr.bf16.mxu0 0
        %8684 = vmatpush1.bf16.msra.mxu0 %v8488
        %8685 = vmatprep.subr.bf16.mxu0 0
        %8686 = vmatpush1.bf16.msra.mxu0 %v8489
        %8687 = vmatprep.subr.bf16.mxu0 0
        %8688 = vmatpush1.bf16.msra.mxu0 %v8490
        %8689 = vmatprep.subr.bf16.mxu0 0
        %8690 = vmatpush1.bf16.msra.mxu0 %v8491
        %8691 = vmatprep.subr.bf16.mxu0 0
        %8692 = vmatpush1.bf16.msra.mxu0 0
        %8693 = vmatprep.subr.bf16.mxu0 0
        %8694 = vmatpush1.bf16.msra.mxu0 0
        %8695 = vmatprep.subr.bf16.mxu0 0
        %8696 = vmatpush1.bf16.msra.mxu0 0
        %8697 = vmatprep.subr.bf16.mxu0 0
        %8698 = vmatpush1.bf16.msra.mxu0 0
        %8699 = vmatprep.subr.bf16.mxu0 0
        %8700 = vmatpush1.bf16.msra.mxu0 0
        %8701 = vmatprep.subr.bf16.mxu0 0
        %8702 = vmatpush1.bf16.msra.mxu0 0
        %8703 = vmatprep.subr.bf16.mxu0 0
        %8704 = vmatpush1.bf16.msra.mxu0 0
        %8705 = vmatprep.subr.bf16.mxu0 0
        %8706 = vmatpush1.bf16.msra.mxu0 0
        %8707 = vmatprep.mubr.bf16.mxu0 0
        %8708 = vmatmul.mubr.bf16.gmra.mrb[0].mxu0 %v8292
        %v8709 = vpop.f32.mrb[0].mxu0
        %v8710 = vadd.f32 %v8551, %v8709
        %v8711 = vpop.f32.mrb[0].mxu0
        %v8712 = vpop.f32.mrb[0].mxu0
        %v8713 = vadd.f32 %v8554, %v8712
        %v8714 = vpop.f32.mrb[0].mxu0
        %8715 = vmatprep.mubr.bf16.mxu0 0
        %8716 = vmatmul.mubr.bf16.gmra.mrb[0].mxu0 %v8293
        %v8717 = vpop.f32.mrb[0].mxu0
        %v8718 = vadd.f32 %v8559, %v8717
        %v8719 = vpop.f32.mrb[0].mxu0
        %v8720 = vpop.f32.mrb[0].mxu0
        %v8721 = vadd.f32 %v8562, %v8720
        %v8722 = vpop.f32.mrb[0].mxu0
        %8723 = vmatprep.mubr.bf16.mxu0 0
        %8724 = vmatmul.mubr.bf16.gmra.mrb[0].mxu0 %v8294
        %v8725 = vpop.f32.mrb[0].mxu0
        %v8726 = vadd.f32 %v8567, %v8725
        %v8727 = vpop.f32.mrb[0].mxu0
        %v8728 = vpop.f32.mrb[0].mxu0
        %v8729 = vadd.f32 %v8570, %v8728
        %v8730 = vpop.f32.mrb[0].mxu0
        %8731 = vmatprep.mubr.bf16.mxu0 0
        %8732 = vmatmul.mubr.bf16.gmra.mrb[0].mxu0 %v8295
        %v8733 = vpop.f32.mrb[0].mxu0
        %v8734 = vadd.f32 %v8575, %v8733
        %v8735 = vpop.f32.mrb[0].mxu0
        %v8736 = vpop.f32.mrb[0].mxu0
        %v8737 = vadd.f32 %v8578, %v8736
        %v8738 = vpop.f32.mrb[0].mxu0
        %8739 = vmatprep.mubr.bf16.mxu0 0
        %8740 = vmatmul.mubr.bf16.gmra.mrb[0].mxu0 %v8296
        %v8741 = vpop.f32.mrb[0].mxu0
        %v8742 = vadd.f32 %v8583, %v8741
        %v8743 = vpop.f32.mrb[0].mxu0
        %v8744 = vpop.f32.mrb[0].mxu0
        %v8745 = vadd.f32 %v8586, %v8744
        %v8746 = vpop.f32.mrb[0].mxu0
        %8747 = vmatprep.mubr.bf16.mxu0 0
        %8748 = vmatmul.mubr.bf16.gmra.mrb[0].mxu0 %v8297
        %v8749 = vpop.f32.mrb[0].mxu0
        %v8750 = vadd.f32 %v8591, %v8749
        %v8751 = vpop.f32.mrb[0].mxu0
        %v8752 = vpop.f32.mrb[0].mxu0
        %v8753 = vadd.f32 %v8594, %v8752
        %v8754 = vpop.f32.mrb[0].mxu0
        %8755 = vmatprep.mubr.bf16.mxu0 0
        %8756 = vmatmul.mubr.bf16.gmra.mrb[0].mxu0 %v8298
        %v8757 = vpop.f32.mrb[0].mxu0
        %v8758 = vadd.f32 %v8599, %v8757
        %v8759 = vpop.f32.mrb[0].mxu0
        %v8760 = vpop.f32.mrb[0].mxu0
        %v8761 = vadd.f32 %v8602, %v8760
        %v8762 = vpop.f32.mrb[0].mxu0
        %8763 = vmatprep.mubr.bf16.mxu0 0
        %8764 = vmatmul.mubr.bf16.gmra.mrb[0].mxu0 %v8299
        %v8765 = vpop.f32.mrb[0].mxu0
        %v8766 = vadd.f32 %v8607, %v8765
        %v8767 = vpop.f32.mrb[0].mxu0
        %v8768 = vpop.f32.mrb[0].mxu0
        %v8769 = vadd.f32 %v8610, %v8768
        %v8770 = vpop.f32.mrb[0].mxu0
        %8771 = vmatprep.mubr.bf16.mxu0 0
        %8772 = vmatmul.mubr.bf16.gmra.mrb[0].mxu0 %v8300
        %v8773 = vpop.f32.mrb[0].mxu0
        %v8774 = vadd.f32 %v8615, %v8773
        %v8775 = vpop.f32.mrb[0].mxu0
        %v8776 = vpop.f32.mrb[0].mxu0
        %v8777 = vadd.f32 %v8618, %v8776
        %v8778 = vpop.f32.mrb[0].mxu0
        %8779 = vmatprep.mubr.bf16.mxu0 0
        %8780 = vmatmul.mubr.bf16.gmra.mrb[0].mxu0 %v8301
        %v8781 = vpop.f32.mrb[0].mxu0
        %v8782 = vadd.f32 %v8623, %v8781
        %v8783 = vpop.f32.mrb[0].mxu0
        %v8784 = vpop.f32.mrb[0].mxu0
        %v8785 = vadd.f32 %v8626, %v8784
        %v8786 = vpop.f32.mrb[0].mxu0
        %8787 = vmatprep.mubr.bf16.mxu0 0
        %8788 = vmatmul.mubr.bf16.gmra.mrb[0].mxu0 %v8302
        %v8789 = vpop.f32.mrb[0].mxu0
        %v8790 = vadd.f32 %v8631, %v8789
        %v8791 = vpop.f32.mrb[0].mxu0
        %v8792 = vpop.f32.mrb[0].mxu0
        %v8793 = vadd.f32 %v8634, %v8792
        %v8794 = vpop.f32.mrb[0].mxu0
        %8795 = vmatprep.mubr.bf16.mxu0 0
        %8796 = vmatmul.mubr.bf16.gmra.mrb[0].mxu0 %v8303
        %v8797 = vpop.f32.mrb[0].mxu0
        %v8798 = vadd.f32 %v8639, %v8797
        %v8799 = vpop.f32.mrb[0].mxu0
        %v8800 = vpop.f32.mrb[0].mxu0
        %v8801 = vadd.f32 %v8642, %v8800
        %v8802 = vpop.f32.mrb[0].mxu0
        %8803 = vmatprep.mubr.bf16.mxu0 0
        %8804 = vmatmul.mubr.bf16.gmra.mrb[0].mxu0 %v8304
        %v8805 = vpop.f32.mrb[0].mxu0
        %v8806 = vadd.f32 %v8647, %v8805
        %v8807 = vpop.f32.mrb[0].mxu0
        %v8808 = vpop.f32.mrb[0].mxu0
        %v8809 = vadd.f32 %v8650, %v8808
        %v8810 = vpop.f32.mrb[0].mxu0
        %8811 = vmatprep.mubr.bf16.mxu0 0
        %8812 = vmatmul.mubr.bf16.gmra.mrb[0].mxu0 %v8305
        %v8813 = vpop.f32.mrb[0].mxu0
        %v8814 = vadd.f32 %v8655, %v8813
        %v8815 = vpop.f32.mrb[0].mxu0
        %v8816 = vpop.f32.mrb[0].mxu0
        %v8817 = vadd.f32 %v8658, %v8816
        %v8818 = vpop.f32.mrb[0].mxu0
        %8819 = vmatprep.mubr.bf16.mxu0 0
        %8820 = vmatmul.mubr.bf16.gmra.mrb[0].mxu0 %v8306
        %v8821 = vpop.f32.mrb[0].mxu0
        %v8822 = vadd.f32 %v8663, %v8821
        %v8823 = vpop.f32.mrb[0].mxu0
        %v8824 = vpop.f32.mrb[0].mxu0
        %v8825 = vadd.f32 %v8666, %v8824
        %v8826 = vpop.f32.mrb[0].mxu0
        %8827 = vmatprep.mubr.bf16.mxu0 0
        %8828 = vmatmul.mubr.bf16.gmra.mrb[0].mxu0 %v8307
        %v8829 = vpop.f32.mrb[0].mxu0
        %v8830 = vpop.f32.mrb[0].mxu0
        %v8831 = vpop.f32.mrb[0].mxu0
        %v8832 = vpop.f32.mrb[0].mxu0
        %8833 = vdwg.mxu0
        %v8834 = vadd.f32 %v7383, %v8710
        %v8835 = vadd.f32 %v7386, %v8713
        %v8836 = vadd.f32 %v7391, %v8718
        %v8837 = vadd.f32 %v7394, %v8721
        %v8838 = vadd.f32 %v7399, %v8726
        %v8839 = vadd.f32 %v7402, %v8729
        %v8840 = vadd.f32 %v7407, %v8734
        %v8841 = vadd.f32 %v7410, %v8737
        %v8842 = vadd.f32 %v7415, %v8742
        %v8843 = vadd.f32 %v7418, %v8745
        %v8844 = vadd.f32 %v7423, %v8750
        %v8845 = vadd.f32 %v7426, %v8753
        %v8846 = vadd.f32 %v7431, %v8758
        %v8847 = vadd.f32 %v7434, %v8761
        %v8848 = vadd.f32 %v7439, %v8766
        %v8849 = vadd.f32 %v7442, %v8769
        %v8850 = vadd.f32 %v7447, %v8774
        %v8851 = vadd.f32 %v7450, %v8777
        %v8852 = vadd.f32 %v7455, %v8782
        %v8853 = vadd.f32 %v7458, %v8785
        %v8854 = vadd.f32 %v7463, %v8790
        %v8855 = vadd.f32 %v7466, %v8793
        %v8856 = vadd.f32 %v7471, %v8798
        %v8857 = vadd.f32 %v7474, %v8801
        %v8858 = vadd.f32 %v7479, %v8806
        %v8859 = vadd.f32 %v7482, %v8809
        %v8860 = vadd.f32 %v7487, %v8814
        %v8861 = vadd.f32 %v7490, %v8817
        %v8862 = vadd.f32 %v7495, %v8822
        %v8863 = vadd.f32 %v7498, %v8825
        %v8864 = vld [vmem:[%s4] sm:$0x1]
        %v8866 = vlaneseq
        %v8867 = vshrl.u32 %v8866, 7
        %v8868 = vsub.s32 0, %v8867
        %v8869 = vrot.slane %v8864, %v8868
        %v8871 = vadd.f32 %v8834, %v8869
        %v8872 = vadd.f32 %v8835, %v8869
        %v8873 = vadd.f32 %v8836, %v8869
        %v8874 = vadd.f32 %v8837, %v8869
        %v8875 = vadd.f32 %v8838, %v8869
        %v8876 = vadd.f32 %v8839, %v8869
        %v8877 = vadd.f32 %v8840, %v8869
        %v8878 = vadd.f32 %v8841, %v8869
        %v8879 = vadd.f32 %v8842, %v8869
        %v8880 = vadd.f32 %v8843, %v8869
        %v8881 = vadd.f32 %v8844, %v8869
        %v8882 = vadd.f32 %v8845, %v8869
        %v8883 = vadd.f32 %v8846, %v8869
        %v8884 = vadd.f32 %v8847, %v8869
        %v8885 = vadd.f32 %v8848, %v8869
        %v8886 = vadd.f32 %v8849, %v8869
        %v8887 = vadd.f32 %v8850, %v8869
        %v8888 = vadd.f32 %v8851, %v8869
        %v8889 = vadd.f32 %v8852, %v8869
        %v8890 = vadd.f32 %v8853, %v8869
        %v8891 = vadd.f32 %v8854, %v8869
        %v8892 = vadd.f32 %v8855, %v8869
        %v8893 = vadd.f32 %v8856, %v8869
        %v8894 = vadd.f32 %v8857, %v8869
        %v8895 = vadd.f32 %v8858, %v8869
        %v8896 = vadd.f32 %v8859, %v8869
        %v8897 = vadd.f32 %v8860, %v8869
        %v8898 = vadd.f32 %v8861, %v8869
        %v8899 = vadd.f32 %v8862, %v8869
        %v8900 = vadd.f32 %v8863, %v8869
        %vm8901 = vcmp.ge.f32.partialorder %v8871, 0.0
        %vm8902 = vcmp.ge.f32.partialorder %v8872, 0.0
        %vm8903 = vcmp.ge.f32.partialorder %v8873, 0.0
        %vm8904 = vcmp.ge.f32.partialorder %v8874, 0.0
        %vm8905 = vcmp.ge.f32.partialorder %v8875, 0.0
        %vm8906 = vcmp.ge.f32.partialorder %v8876, 0.0
        %vm8907 = vcmp.ge.f32.partialorder %v8877, 0.0
        %vm8908 = vcmp.ge.f32.partialorder %v8878, 0.0
        %vm8909 = vcmp.ge.f32.partialorder %v8879, 0.0
        %vm8910 = vcmp.ge.f32.partialorder %v8880, 0.0
        %vm8911 = vcmp.ge.f32.partialorder %v8881, 0.0
        %vm8912 = vcmp.ge.f32.partialorder %v8882, 0.0
        %vm8913 = vcmp.ge.f32.partialorder %v8883, 0.0
        %vm8914 = vcmp.ge.f32.partialorder %v8884, 0.0
        %vm8915 = vcmp.ge.f32.partialorder %v8885, 0.0
        %vm8916 = vcmp.ge.f32.partialorder %v8886, 0.0
        %vm8917 = vcmp.ge.f32.partialorder %v8887, 0.0
        %vm8918 = vcmp.ge.f32.partialorder %v8888, 0.0
        %vm8919 = vcmp.ge.f32.partialorder %v8889, 0.0
        %vm8920 = vcmp.ge.f32.partialorder %v8890, 0.0
        %vm8921 = vcmp.ge.f32.partialorder %v8891, 0.0
        %vm8922 = vcmp.ge.f32.partialorder %v8892, 0.0
        %vm8923 = vcmp.ge.f32.partialorder %v8893, 0.0
        %vm8924 = vcmp.ge.f32.partialorder %v8894, 0.0
        %vm8925 = vcmp.ge.f32.partialorder %v8895, 0.0
        %vm8926 = vcmp.ge.f32.partialorder %v8896, 0.0
        %vm8927 = vcmp.ge.f32.partialorder %v8897, 0.0
        %vm8928 = vcmp.ge.f32.partialorder %v8898, 0.0
        %vm8929 = vcmp.ge.f32.partialorder %v8899, 0.0
        %vm8930 = vcmp.ge.f32.partialorder %v8900, 0.0
        %v8931 = vmul.f32 %v8871, 0.01
        %v8932 = vmul.f32 %v8872, 0.01
        %v8933 = vmul.f32 %v8873, 0.01
        %v8934 = vmul.f32 %v8874, 0.01
        %v8935 = vmul.f32 %v8875, 0.01
        %v8936 = vmul.f32 %v8876, 0.01
        %v8937 = vmul.f32 %v8877, 0.01
        %v8938 = vmul.f32 %v8878, 0.01
        %v8939 = vmul.f32 %v8879, 0.01
        %v8940 = vmul.f32 %v8880, 0.01
        %v8941 = vmul.f32 %v8881, 0.01
        %v8942 = vmul.f32 %v8882, 0.01
        %v8943 = vmul.f32 %v8883, 0.01
        %v8944 = vmul.f32 %v8884, 0.01
        %v8945 = vmul.f32 %v8885, 0.01
        %v8946 = vmul.f32 %v8886, 0.01
        %v8947 = vmul.f32 %v8887, 0.01
        %v8948 = vmul.f32 %v8888, 0.01
        %v8949 = vmul.f32 %v8889, 0.01
        %v8950 = vmul.f32 %v8890, 0.01
        %v8951 = vmul.f32 %v8891, 0.01
        %v8952 = vmul.f32 %v8892, 0.01
        %v8953 = vmul.f32 %v8893, 0.01
        %v8954 = vmul.f32 %v8894, 0.01
        %v8955 = vmul.f32 %v8895, 0.01
        %v8956 = vmul.f32 %v8896, 0.01
        %v8957 = vmul.f32 %v8897, 0.01
        %v8958 = vmul.f32 %v8898, 0.01
        %v8959 = vmul.f32 %v8899, 0.01
        %v8960 = vmul.f32 %v8900, 0.01
        %v8961 = vsel %vm8901, %v8871, %v8931
        %v8962 = vsel %vm8902, %v8872, %v8932
        %v8963 = vsel %vm8903, %v8873, %v8933
        %v8964 = vsel %vm8904, %v8874, %v8934
        %v8965 = vsel %vm8905, %v8875, %v8935
        %v8966 = vsel %vm8906, %v8876, %v8936
        %v8967 = vsel %vm8907, %v8877, %v8937
        %v8968 = vsel %vm8908, %v8878, %v8938
        %v8969 = vsel %vm8909, %v8879, %v8939
        %v8970 = vsel %vm8910, %v8880, %v8940
        %v8971 = vsel %vm8911, %v8881, %v8941
        %v8972 = vsel %vm8912, %v8882, %v8942
        %v8973 = vsel %vm8913, %v8883, %v8943
        %v8974 = vsel %vm8914, %v8884, %v8944
        %v8975 = vsel %vm8915, %v8885, %v8945
        %v8976 = vsel %vm8916, %v8886, %v8946
        %v8977 = vsel %vm8917, %v8887, %v8947
        %v8978 = vsel %vm8918, %v8888, %v8948
        %v8979 = vsel %vm8919, %v8889, %v8949
        %v8980 = vsel %vm8920, %v8890, %v8950
        %v8981 = vsel %vm8921, %v8891, %v8951
        %v8982 = vsel %vm8922, %v8892, %v8952
        %v8983 = vsel %vm8923, %v8893, %v8953
        %v8984 = vsel %vm8924, %v8894, %v8954
        %v8985 = vsel %vm8925, %v8895, %v8955
        %v8986 = vsel %vm8926, %v8896, %v8956
        %v8987 = vsel %vm8927, %v8897, %v8957
        %v8988 = vsel %vm8928, %v8898, %v8958
        %v8989 = vsel %vm8929, %v8899, %v8959
        %v8990 = vsel %vm8930, %v8900, %v8960
        %v8991 = vmax.f32 %v8961, %v8963
        %v8992 = vmax.f32 %v8991, %v8965
        %v8993 = vmax.f32 %v8962, %v8964
        %v8994 = vmax.f32 %v8993, %v8966
        %v8995 = vmax.f32 %v8967, %v8969
        %v8996 = vmax.f32 %v8995, %v8971
        %v8997 = vmax.f32 %v8968, %v8970
        %v8998 = vmax.f32 %v8997, %v8972
        %v8999 = vmax.f32 %v8973, %v8975
        %v9000 = vmax.f32 %v8999, %v8977
        %v9001 = vmax.f32 %v8974, %v8976
        %v9002 = vmax.f32 %v9001, %v8978
        %v9003 = vmax.f32 %v8979, %v8981
        %v9004 = vmax.f32 %v9003, %v8983
        %v9005 = vmax.f32 %v8980, %v8982
        %v9006 = vmax.f32 %v9005, %v8984
        %v9007 = vmax.f32 %v8985, %v8987
        %v9008 = vmax.f32 %v9007, %v8989
        %v9009 = vmax.f32 %v8986, %v8988
        %v9010 = vmax.f32 %v9009, %v8990
        %v9021 = vcombine.high %v8992, %v8992
        %v9023 = vunpack.c.l.s4 1983009808
        %v9024 = vunpack.c.0.s8 %v9023
        %v9025 = vlaneseq
        %v9026 = vshrl.u32 %v9025, 7
        %v9027 = vsub.s32 %v9024, %v9026
        %v9028 = vrot.slane %v8992, %v9027
        %v9030 = vunpack.c.l.s4 1983009808
        %v9031 = vunpack.c.0.s8 %v9030
        %v9032 = vlaneseq
        %v9033 = vshrl.u32 %v9032, 7
        %v9034 = vsub.s32 %v9031, %v9033
        %v9035 = vrot.slane %v9021, %v9034
        %v9036 = vcombine.high %v9028, %v9028
        %v9037 = vcombine.high %v9035, %v9035
        %v9038 = vcombine.high %v8994, %v8994
        %v9040 = vunpack.c.l.s4 1983009808
        %v9041 = vunpack.c.0.s8 %v9040
        %v9042 = vlaneseq
        %v9043 = vshrl.u32 %v9042, 7
        %v9044 = vsub.s32 %v9041, %v9043
        %v9045 = vrot.slane %v8994, %v9044
        %v9047 = vunpack.c.l.s4 1983009808
        %v9048 = vunpack.c.0.s8 %v9047
        %v9049 = vlaneseq
        %v9050 = vshrl.u32 %v9049, 7
        %v9051 = vsub.s32 %v9048, %v9050
        %v9052 = vrot.slane %v9038, %v9051
        %v9053 = vcombine.high %v9045, %v9045
        %v9054 = vcombine.high %v9052, %v9052
        %v9055 = vcombine.high %v8996, %v8996
        %v9057 = vunpack.c.l.s4 1983009808
        %v9058 = vunpack.c.0.s8 %v9057
        %v9059 = vlaneseq
        %v9060 = vshrl.u32 %v9059, 7
        %v9061 = vsub.s32 %v9058, %v9060
        %v9062 = vrot.slane %v8996, %v9061
        %v9064 = vunpack.c.l.s4 1983009808
        %v9065 = vunpack.c.0.s8 %v9064
        %v9066 = vlaneseq
        %v9067 = vshrl.u32 %v9066, 7
        %v9068 = vsub.s32 %v9065, %v9067
        %v9069 = vrot.slane %v9055, %v9068
        %v9070 = vcombine.high %v9062, %v9062
        %v9071 = vcombine.high %v9069, %v9069
        %v9072 = vcombine.high %v8998, %v8998
        %v9074 = vunpack.c.l.s4 1983009808
        %v9075 = vunpack.c.0.s8 %v9074
        %v9076 = vlaneseq
        %v9077 = vshrl.u32 %v9076, 7
        %v9078 = vsub.s32 %v9075, %v9077
        %v9079 = vrot.slane %v8998, %v9078
        %v9081 = vunpack.c.l.s4 1983009808
        %v9082 = vunpack.c.0.s8 %v9081
        %v9083 = vlaneseq
        %v9084 = vshrl.u32 %v9083, 7
        %v9085 = vsub.s32 %v9082, %v9084
        %v9086 = vrot.slane %v9072, %v9085
        %v9087 = vcombine.high %v9079, %v9079
        %v9088 = vcombine.high %v9086, %v9086
        %v9089 = vcombine.high %v9000, %v9000
        %v9091 = vunpack.c.l.s4 1983009808
        %v9092 = vunpack.c.0.s8 %v9091
        %v9093 = vlaneseq
        %v9094 = vshrl.u32 %v9093, 7
        %v9095 = vsub.s32 %v9092, %v9094
        %v9096 = vrot.slane %v9000, %v9095
        %v9098 = vunpack.c.l.s4 1983009808
        %v9099 = vunpack.c.0.s8 %v9098
        %v9100 = vlaneseq
        %v9101 = vshrl.u32 %v9100, 7
        %v9102 = vsub.s32 %v9099, %v9101
        %v9103 = vrot.slane %v9089, %v9102
        %v9104 = vcombine.high %v9096, %v9096
        %v9105 = vcombine.high %v9103, %v9103
        %v9106 = vcombine.high %v9002, %v9002
        %v9108 = vunpack.c.l.s4 1983009808
        %v9109 = vunpack.c.0.s8 %v9108
        %v9110 = vlaneseq
        %v9111 = vshrl.u32 %v9110, 7
        %v9112 = vsub.s32 %v9109, %v9111
        %v9113 = vrot.slane %v9002, %v9112
        %v9115 = vunpack.c.l.s4 1983009808
        %v9116 = vunpack.c.0.s8 %v9115
        %v9117 = vlaneseq
        %v9118 = vshrl.u32 %v9117, 7
        %v9119 = vsub.s32 %v9116, %v9118
        %v9120 = vrot.slane %v9106, %v9119
        %v9121 = vcombine.high %v9113, %v9113
        %v9122 = vcombine.high %v9120, %v9120
        %v9123 = vcombine.high %v9004, %v9004
        %v9125 = vunpack.c.l.s4 1983009808
        %v9126 = vunpack.c.0.s8 %v9125
        %v9127 = vlaneseq
        %v9128 = vshrl.u32 %v9127, 7
        %v9129 = vsub.s32 %v9126, %v9128
        %v9130 = vrot.slane %v9004, %v9129
        %v9132 = vunpack.c.l.s4 1983009808
        %v9133 = vunpack.c.0.s8 %v9132
        %v9134 = vlaneseq
        %v9135 = vshrl.u32 %v9134, 7
        %v9136 = vsub.s32 %v9133, %v9135
        %v9137 = vrot.slane %v9123, %v9136
        %v9138 = vcombine.high %v9130, %v9130
        %v9139 = vcombine.high %v9137, %v9137
        %v9140 = vcombine.high %v9006, %v9006
        %v9142 = vunpack.c.l.s4 1983009808
        %v9143 = vunpack.c.0.s8 %v9142
        %v9144 = vlaneseq
        %v9145 = vshrl.u32 %v9144, 7
        %v9146 = vsub.s32 %v9143, %v9145
        %v9147 = vrot.slane %v9006, %v9146
        %v9149 = vunpack.c.l.s4 1983009808
        %v9150 = vunpack.c.0.s8 %v9149
        %v9151 = vlaneseq
        %v9152 = vshrl.u32 %v9151, 7
        %v9153 = vsub.s32 %v9150, %v9152
        %v9154 = vrot.slane %v9140, %v9153
        %v9155 = vcombine.high %v9147, %v9147
        %v9156 = vcombine.high %v9154, %v9154
        %v9157 = vcombine.high %v9008, %v9008
        %v9159 = vunpack.c.l.s4 1983009808
        %v9160 = vunpack.c.0.s8 %v9159
        %v9161 = vlaneseq
        %v9162 = vshrl.u32 %v9161, 7
        %v9163 = vsub.s32 %v9160, %v9162
        %v9164 = vrot.slane %v9008, %v9163
        %v9166 = vunpack.c.l.s4 1983009808
        %v9167 = vunpack.c.0.s8 %v9166
        %v9168 = vlaneseq
        %v9169 = vshrl.u32 %v9168, 7
        %v9170 = vsub.s32 %v9167, %v9169
        %v9171 = vrot.slane %v9157, %v9170
        %v9172 = vcombine.high %v9164, %v9164
        %v9173 = vcombine.high %v9171, %v9171
        %v9174 = vcombine.high %v9010, %v9010
        %v9176 = vunpack.c.l.s4 1983009808
        %v9177 = vunpack.c.0.s8 %v9176
        %v9178 = vlaneseq
        %v9179 = vshrl.u32 %v9178, 7
        %v9180 = vsub.s32 %v9177, %v9179
        %v9181 = vrot.slane %v9010, %v9180
        %v9183 = vunpack.c.l.s4 1983009808
        %v9184 = vunpack.c.0.s8 %v9183
        %v9185 = vlaneseq
        %v9186 = vshrl.u32 %v9185, 7
        %v9187 = vsub.s32 %v9184, %v9186
        %v9188 = vrot.slane %v9174, %v9187
        %v9189 = vcombine.high %v9181, %v9181
        %v9190 = vcombine.high %v9188, %v9188
        %v9231 = vrot.slane %v9028, 7
        %v9232 = vrot.slane %v9231, 2
        %v9233 = vrot.slane %v9036, 7
        %v9234 = vrot.slane %v9233, 2
        %v9235 = vrot.slane %v9035, 7
        %v9236 = vrot.slane %v9235, 2
        %v9237 = vrot.slane %v9037, 7
        %v9238 = vrot.slane %v9237, 2
        %v9239 = vrot.slane %v9045, 7
        %v9240 = vrot.slane %v9239, 2
        %v9241 = vrot.slane %v9053, 7
        %v9242 = vrot.slane %v9241, 2
        %v9243 = vrot.slane %v9052, 7
        %v9244 = vrot.slane %v9243, 2
        %v9245 = vrot.slane %v9054, 7
        %v9246 = vrot.slane %v9245, 2
        %v9247 = vrot.slane %v9062, 7
        %v9248 = vrot.slane %v9247, 2
        %v9249 = vrot.slane %v9070, 7
        %v9250 = vrot.slane %v9249, 2
        %v9251 = vrot.slane %v9069, 7
        %v9252 = vrot.slane %v9251, 2
        %v9253 = vrot.slane %v9071, 7
        %v9254 = vrot.slane %v9253, 2
        %v9255 = vrot.slane %v9079, 7
        %v9256 = vrot.slane %v9255, 2
        %v9257 = vrot.slane %v9087, 7
        %v9258 = vrot.slane %v9257, 2
        %v9259 = vrot.slane %v9086, 7
        %v9260 = vrot.slane %v9259, 2
        %v9261 = vrot.slane %v9088, 7
        %v9262 = vrot.slane %v9261, 2
        %v9263 = vrot.slane %v9096, 7
        %v9264 = vrot.slane %v9263, 2
        %v9265 = vrot.slane %v9104, 7
        %v9266 = vrot.slane %v9265, 2
        %v9267 = vrot.slane %v9103, 7
        %v9268 = vrot.slane %v9267, 2
        %v9269 = vrot.slane %v9105, 7
        %v9270 = vrot.slane %v9269, 2
        %v9271 = vrot.slane %v9113, 7
        %v9272 = vrot.slane %v9271, 2
        %v9273 = vrot.slane %v9121, 7
        %v9274 = vrot.slane %v9273, 2
        %v9275 = vrot.slane %v9120, 7
        %v9276 = vrot.slane %v9275, 2
        %v9277 = vrot.slane %v9122, 7
        %v9278 = vrot.slane %v9277, 2
        %v9279 = vrot.slane %v9130, 7
        %v9280 = vrot.slane %v9279, 2
        %v9281 = vrot.slane %v9138, 7
        %v9282 = vrot.slane %v9281, 2
        %v9283 = vrot.slane %v9137, 7
        %v9284 = vrot.slane %v9283, 2
        %v9285 = vrot.slane %v9139, 7
        %v9286 = vrot.slane %v9285, 2
        %v9287 = vrot.slane %v9147, 7
        %v9288 = vrot.slane %v9287, 2
        %v9289 = vrot.slane %v9155, 7
        %v9290 = vrot.slane %v9289, 2
        %v9291 = vrot.slane %v9154, 7
        %v9292 = vrot.slane %v9291, 2
        %v9293 = vrot.slane %v9156, 7
        %v9294 = vrot.slane %v9293, 2
        %v9295 = vrot.slane %v9164, 7
        %v9296 = vrot.slane %v9295, 2
        %v9297 = vrot.slane %v9172, 7
        %v9298 = vrot.slane %v9297, 2
        %v9299 = vrot.slane %v9171, 7
        %v9300 = vrot.slane %v9299, 2
        %v9301 = vrot.slane %v9173, 7
        %v9302 = vrot.slane %v9301, 2
        %v9303 = vrot.slane %v9181, 7
        %v9304 = vrot.slane %v9303, 2
        %v9305 = vrot.slane %v9189, 7
        %v9306 = vrot.slane %v9305, 2
        %v9307 = vrot.slane %v9188, 7
        %v9308 = vrot.slane %v9307, 2
        %v9309 = vrot.slane %v9190, 7
        %v9310 = vrot.slane %v9309, 2
        %v9351 = vmax.f32 %v9028, %v9232
        %v9352 = vmax.f32 %v9036, %v9234
        %v9353 = vmax.f32 %v9035, %v9236
        %v9354 = vmax.f32 %v9037, %v9238
        %v9355 = vmax.f32 %v9045, %v9240
        %v9356 = vmax.f32 %v9053, %v9242
        %v9357 = vmax.f32 %v9052, %v9244
        %v9358 = vmax.f32 %v9054, %v9246
        %v9359 = vmax.f32 %v9062, %v9248
        %v9360 = vmax.f32 %v9070, %v9250
        %v9361 = vmax.f32 %v9069, %v9252
        %v9362 = vmax.f32 %v9071, %v9254
        %v9363 = vmax.f32 %v9079, %v9256
        %v9364 = vmax.f32 %v9087, %v9258
        %v9365 = vmax.f32 %v9086, %v9260
        %v9366 = vmax.f32 %v9088, %v9262
        %v9367 = vmax.f32 %v9096, %v9264
        %v9368 = vmax.f32 %v9104, %v9266
        %v9369 = vmax.f32 %v9103, %v9268
        %v9370 = vmax.f32 %v9105, %v9270
        %v9371 = vmax.f32 %v9113, %v9272
        %v9372 = vmax.f32 %v9121, %v9274
        %v9373 = vmax.f32 %v9120, %v9276
        %v9374 = vmax.f32 %v9122, %v9278
        %v9375 = vmax.f32 %v9130, %v9280
        %v9376 = vmax.f32 %v9138, %v9282
        %v9377 = vmax.f32 %v9137, %v9284
        %v9378 = vmax.f32 %v9139, %v9286
        %v9379 = vmax.f32 %v9147, %v9288
        %v9380 = vmax.f32 %v9155, %v9290
        %v9381 = vmax.f32 %v9154, %v9292
        %v9382 = vmax.f32 %v9156, %v9294
        %v9383 = vmax.f32 %v9164, %v9296
        %v9384 = vmax.f32 %v9172, %v9298
        %v9385 = vmax.f32 %v9171, %v9300
        %v9386 = vmax.f32 %v9173, %v9302
        %v9387 = vmax.f32 %v9181, %v9304
        %v9388 = vmax.f32 %v9189, %v9306
        %v9389 = vmax.f32 %v9188, %v9308
        %v9390 = vmax.f32 %v9190, %v9310
        %v9391 = vpack.c.bf16 %v9351, %v9351
        %v9392 = vpack.c.bf16 %v9352, %v9352
        %v9393 = vpack.c.bf16 %v9353, %v9353
        %v9394 = vpack.c.bf16 %v9354, %v9354
        %v9395 = vpack.c.bf16 %v9355, %v9355
        %v9396 = vpack.c.bf16 %v9356, %v9356
        %v9397 = vpack.c.bf16 %v9357, %v9357
        %v9398 = vpack.c.bf16 %v9358, %v9358
        %v9399 = vpack.c.bf16 %v9359, %v9359
        %v9400 = vpack.c.bf16 %v9360, %v9360
        %v9401 = vpack.c.bf16 %v9361, %v9361
        %v9402 = vpack.c.bf16 %v9362, %v9362
        %v9403 = vpack.c.bf16 %v9363, %v9363
        %v9404 = vpack.c.bf16 %v9364, %v9364
        %v9405 = vpack.c.bf16 %v9365, %v9365
        %v9406 = vpack.c.bf16 %v9366, %v9366
        %v9407 = vpack.c.bf16 %v9367, %v9367
        %v9408 = vpack.c.bf16 %v9368, %v9368
        %v9409 = vpack.c.bf16 %v9369, %v9369
        %v9410 = vpack.c.bf16 %v9370, %v9370
        %v9411 = vpack.c.bf16 %v9371, %v9371
        %v9412 = vpack.c.bf16 %v9372, %v9372
        %v9413 = vpack.c.bf16 %v9373, %v9373
        %v9414 = vpack.c.bf16 %v9374, %v9374
        %v9415 = vpack.c.bf16 %v9375, %v9375
        %v9416 = vpack.c.bf16 %v9376, %v9376
        %v9417 = vpack.c.bf16 %v9377, %v9377
        %v9418 = vpack.c.bf16 %v9378, %v9378
        %v9419 = vpack.c.bf16 %v9379, %v9379
        %v9420 = vpack.c.bf16 %v9380, %v9380
        %v9421 = vpack.c.bf16 %v9381, %v9381
        %v9422 = vpack.c.bf16 %v9382, %v9382
        %v9423 = vpack.c.bf16 %v9383, %v9383
        %v9424 = vpack.c.bf16 %v9384, %v9384
        %v9425 = vpack.c.bf16 %v9385, %v9385
        %v9426 = vpack.c.bf16 %v9386, %v9386
        %v9427 = vpack.c.bf16 %v9387, %v9387
        %v9428 = vpack.c.bf16 %v9388, %v9388
        %v9429 = vpack.c.bf16 %v9389, %v9389
        %v9430 = vpack.c.bf16 %v9390, %v9390
        %v9471 = vunpack.c.l.b16 %v9391
        %v9472 = vunpack.c.l.b16 %v9392
        %v9473 = vunpack.c.l.b16 %v9393
        %v9474 = vunpack.c.l.b16 %v9394
        %v9475 = vunpack.c.l.b16 %v9395
        %v9476 = vunpack.c.l.b16 %v9396
        %v9477 = vunpack.c.l.b16 %v9397
        %v9478 = vunpack.c.l.b16 %v9398
        %v9479 = vunpack.c.l.b16 %v9399
        %v9480 = vunpack.c.l.b16 %v9400
        %v9481 = vunpack.c.l.b16 %v9401
        %v9482 = vunpack.c.l.b16 %v9402
        %v9483 = vunpack.c.l.b16 %v9403
        %v9484 = vunpack.c.l.b16 %v9404
        %v9485 = vunpack.c.l.b16 %v9405
        %v9486 = vunpack.c.l.b16 %v9406
        %v9487 = vunpack.c.l.b16 %v9407
        %v9488 = vunpack.c.l.b16 %v9408
        %v9489 = vunpack.c.l.b16 %v9409
        %v9490 = vunpack.c.l.b16 %v9410
        %v9491 = vunpack.c.l.b16 %v9411
        %v9492 = vunpack.c.l.b16 %v9412
        %v9493 = vunpack.c.l.b16 %v9413
        %v9494 = vunpack.c.l.b16 %v9414
        %v9495 = vunpack.c.l.b16 %v9415
        %v9496 = vunpack.c.l.b16 %v9416
        %v9497 = vunpack.c.l.b16 %v9417
        %v9498 = vunpack.c.l.b16 %v9418
        %v9499 = vunpack.c.l.b16 %v9419
        %v9500 = vunpack.c.l.b16 %v9420
        %v9501 = vunpack.c.l.b16 %v9421
        %v9502 = vunpack.c.l.b16 %v9422
        %v9503 = vunpack.c.l.b16 %v9423
        %v9504 = vunpack.c.l.b16 %v9424
        %v9505 = vunpack.c.l.b16 %v9425
        %v9506 = vunpack.c.l.b16 %v9426
        %v9507 = vunpack.c.l.b16 %v9427
        %v9508 = vunpack.c.l.b16 %v9428
        %v9509 = vunpack.c.l.b16 %v9429
        %v9510 = vunpack.c.l.b16 %v9430
        %v9511 = vpack.c.b16 %v9471, %v9471
        %v9512 = vpack.c.b16 %v9472, %v9472
        %v9513 = vpack.c.b16 %v9473, %v9473
        %v9514 = vpack.c.b16 %v9474, %v9474
        %v9515 = vpack.c.b16 %v9475, %v9475
        %v9516 = vpack.c.b16 %v9476, %v9476
        %v9517 = vpack.c.b16 %v9477, %v9477
        %v9518 = vpack.c.b16 %v9478, %v9478
        %v9519 = vpack.c.b16 %v9479, %v9479
        %v9520 = vpack.c.b16 %v9480, %v9480
        %v9521 = vpack.c.b16 %v9481, %v9481
        %v9522 = vpack.c.b16 %v9482, %v9482
        %v9523 = vpack.c.b16 %v9483, %v9483
        %v9524 = vpack.c.b16 %v9484, %v9484
        %v9525 = vpack.c.b16 %v9485, %v9485
        %v9526 = vpack.c.b16 %v9486, %v9486
        %v9527 = vpack.c.b16 %v9487, %v9487
        %v9528 = vpack.c.b16 %v9488, %v9488
        %v9529 = vpack.c.b16 %v9489, %v9489
        %v9530 = vpack.c.b16 %v9490, %v9490
        %v9531 = vpack.c.b16 %v9491, %v9491
        %v9532 = vpack.c.b16 %v9492, %v9492
        %v9533 = vpack.c.b16 %v9493, %v9493
        %v9534 = vpack.c.b16 %v9494, %v9494
        %v9535 = vpack.c.b16 %v9495, %v9495
        %v9536 = vpack.c.b16 %v9496, %v9496
        %v9537 = vpack.c.b16 %v9497, %v9497
        %v9538 = vpack.c.b16 %v9498, %v9498
        %v9539 = vpack.c.b16 %v9499, %v9499
        %v9540 = vpack.c.b16 %v9500, %v9500
        %v9541 = vpack.c.b16 %v9501, %v9501
        %v9542 = vpack.c.b16 %v9502, %v9502
        %v9543 = vpack.c.b16 %v9503, %v9503
        %v9544 = vpack.c.b16 %v9504, %v9504
        %v9545 = vpack.c.b16 %v9505, %v9505
        %v9546 = vpack.c.b16 %v9506, %v9506
        %v9547 = vpack.c.b16 %v9507, %v9507
        %v9548 = vpack.c.b16 %v9508, %v9508
        %v9549 = vpack.c.b16 %v9509, %v9509
        %v9550 = vpack.c.b16 %v9510, %v9510
        %v9551 = vunpack.c.l.b16 %v9511
        %v9552 = vunpack.c.l.b16 %v9512
        %v9553 = vunpack.c.l.b16 %v9513
        %v9554 = vunpack.c.l.b16 %v9514
        %v9555 = vunpack.c.l.b16 %v9515
        %v9556 = vunpack.c.l.b16 %v9516
        %v9557 = vunpack.c.l.b16 %v9517
        %v9558 = vunpack.c.l.b16 %v9518
        %v9559 = vunpack.c.l.b16 %v9519
        %v9560 = vunpack.c.l.b16 %v9520
        %v9561 = vunpack.c.l.b16 %v9521
        %v9562 = vunpack.c.l.b16 %v9522
        %v9563 = vunpack.c.l.b16 %v9523
        %v9564 = vunpack.c.l.b16 %v9524
        %v9565 = vunpack.c.l.b16 %v9525
        %v9566 = vunpack.c.l.b16 %v9526
        %v9567 = vunpack.c.l.b16 %v9527
        %v9568 = vunpack.c.l.b16 %v9528
        %v9569 = vunpack.c.l.b16 %v9529
        %v9570 = vunpack.c.l.b16 %v9530
        %v9571 = vunpack.c.l.b16 %v9531
        %v9572 = vunpack.c.l.b16 %v9532
        %v9573 = vunpack.c.l.b16 %v9533
        %v9574 = vunpack.c.l.b16 %v9534
        %v9575 = vunpack.c.l.b16 %v9535
        %v9576 = vunpack.c.l.b16 %v9536
        %v9577 = vunpack.c.l.b16 %v9537
        %v9578 = vunpack.c.l.b16 %v9538
        %v9579 = vunpack.c.l.b16 %v9539
        %v9580 = vunpack.c.l.b16 %v9540
        %v9581 = vunpack.c.l.b16 %v9541
        %v9582 = vunpack.c.l.b16 %v9542
        %v9583 = vunpack.c.l.b16 %v9543
        %v9584 = vunpack.c.l.b16 %v9544
        %v9585 = vunpack.c.l.b16 %v9545
        %v9586 = vunpack.c.l.b16 %v9546
        %v9587 = vunpack.c.l.b16 %v9547
        %v9588 = vunpack.c.l.b16 %v9548
        %v9589 = vunpack.c.l.b16 %v9549
        %v9590 = vunpack.c.l.b16 %v9550
        %v9591 = vrot.slane %v9552, 7
        %vm9592 = vcmask 1041409
        %v9593 = vsel %vm9592, %v9591, %v9551
        %v9594 = vrot.slane %v9553, 6
        %vm9595 = vcmask 1042434
        %v9596 = vsel %vm9595, %v9594, %v9593
        %v9597 = vrot.slane %v9554, 5
        %vm9598 = vcmask 1043459
        %v9599 = vsel %vm9598, %v9597, %v9596
        %v9600 = vrot.slane %v9555, 4
        %vm9601 = vcmask 1044484
        %v9602 = vsel %vm9601, %v9600, %v9599
        %v9603 = vrot.slane %v9556, 3
        %vm9604 = vcmask 1045509
        %v9605 = vsel %vm9604, %v9603, %v9602
        %v9606 = vrot.slane %v9557, 2
        %vm9607 = vcmask 1046534
        %v9608 = vsel %vm9607, %v9606, %v9605
        %v9609 = vrot.slane %v9558, 1
        %vm9610 = vcmask 1047559
        %v9611 = vsel %vm9610, %v9609, %v9608
        %v9612 = vrot.slane %v9560, 7
        %v9613 = vsel %vm9592, %v9612, %v9559
        %v9614 = vrot.slane %v9561, 6
        %v9615 = vsel %vm9595, %v9614, %v9613
        %v9616 = vrot.slane %v9562, 5
        %v9617 = vsel %vm9598, %v9616, %v9615
        %v9618 = vrot.slane %v9563, 4
        %v9619 = vsel %vm9601, %v9618, %v9617
        %v9620 = vrot.slane %v9564, 3
        %v9621 = vsel %vm9604, %v9620, %v9619
        %v9622 = vrot.slane %v9565, 2
        %v9623 = vsel %vm9607, %v9622, %v9621
        %v9624 = vrot.slane %v9566, 1
        %v9625 = vsel %vm9610, %v9624, %v9623
        %v9626 = vrot.slane %v9568, 7
        %v9627 = vsel %vm9592, %v9626, %v9567
        %v9628 = vrot.slane %v9569, 6
        %v9629 = vsel %vm9595, %v9628, %v9627
        %v9630 = vrot.slane %v9570, 5
        %v9631 = vsel %vm9598, %v9630, %v9629
        %v9632 = vrot.slane %v9571, 4
        %v9633 = vsel %vm9601, %v9632, %v9631
        %v9634 = vrot.slane %v9572, 3
        %v9635 = vsel %vm9604, %v9634, %v9633
        %v9636 = vrot.slane %v9573, 2
        %v9637 = vsel %vm9607, %v9636, %v9635
        %v9638 = vrot.slane %v9574, 1
        %v9639 = vsel %vm9610, %v9638, %v9637
        %v9640 = vrot.slane %v9576, 7
        %v9641 = vsel %vm9592, %v9640, %v9575
        %v9642 = vrot.slane %v9577, 6
        %v9643 = vsel %vm9595, %v9642, %v9641
        %v9644 = vrot.slane %v9578, 5
        %v9645 = vsel %vm9598, %v9644, %v9643
        %v9646 = vrot.slane %v9579, 4
        %v9647 = vsel %vm9601, %v9646, %v9645
        %v9648 = vrot.slane %v9580, 3
        %v9649 = vsel %vm9604, %v9648, %v9647
        %v9650 = vrot.slane %v9581, 2
        %v9651 = vsel %vm9607, %v9650, %v9649
        %v9652 = vrot.slane %v9582, 1
        %v9653 = vsel %vm9610, %v9652, %v9651
        %v9654 = vrot.slane %v9584, 7
        %v9655 = vsel %vm9592, %v9654, %v9583
        %v9656 = vrot.slane %v9585, 6
        %v9657 = vsel %vm9595, %v9656, %v9655
        %v9658 = vrot.slane %v9586, 5
        %v9659 = vsel %vm9598, %v9658, %v9657
        %v9660 = vrot.slane %v9587, 4
        %v9661 = vsel %vm9601, %v9660, %v9659
        %v9662 = vrot.slane %v9588, 3
        %v9663 = vsel %vm9604, %v9662, %v9661
        %v9664 = vrot.slane %v9589, 2
        %v9665 = vsel %vm9607, %v9664, %v9663
        %v9666 = vrot.slane %v9590, 1
        %v9667 = vsel %vm9610, %v9666, %v9665
        %v9668 = vpack.c.b16 %v9611, %v9611
        %v9669 = vpack.c.b16 %v9625, %v9625
        %v9670 = vpack.c.b16 %v9639, %v9639
        %v9671 = vpack.c.b16 %v9653, %v9653
        %v9672 = vpack.c.b16 %v9667, %v9667
        %9678 = vst [vmem:[%s232] sm:$0xf] %v9668
        %9679 = vst [vmem:[%s232 + $0x4] sm:$0xf] %v9669
        %9680 = vst [vmem:[%s232 + $0x8] sm:$0xf] %v9670
        %9681 = vst [vmem:[%s232 + $0xc] sm:$0xf] %v9671
        %9682 = vst [vmem:[%s232 + $0x10] sm:$0xf] %v9672
        %s9683 = sand.u32 %s138, 1
        %s9684 = scalar_lea.sflag [#allocation6], %s9683
        %s9685 = sand.u32 %s138, 1
        %s9686 = smul.addr %s9685, 20
        %s9687 = scalar_lea.vmem [#allocation7], %s9686
        // Predicated region
        $region45: #{tpu_custom_call.1} parent=39 // pred_check
          %p9688 = pneg %p148
        $region46: #{tpu_custom_call.1} parent=39 // pred_check_branch
          %9690 = sbr.rel (%p9688) target = $region48
        $region47: #{tpu_custom_call.1} parent=39 // pred_region
          %s9692 = ssub.s32 320, 320
          %9693 = vsyncadd %s9684, %s9692
          %s9694 = smul.addr %s20, 5
          %s9695 = smul.addr %s9694, 64
          %s9696 = scalar_lea.hbm %s5, %s9695
          %s9697 = sshll.u32 %s9687, 4
          %s9698 = int_to_ptr.vmem [resolvable:$true] %s9697
          %9703 = dma.vmem_to_hbm [thread:$0]  %s9698, 320, %s9696, %s9684, 64, 64, 4
        $region48: #{tpu_custom_call.1} parent=39 // pred_fallthru
          _
      $region40: #{tpu_custom_call.1} parent=5 // pred_fallthru
        _
      %p9704 = scmp.le.s32.totalorder 2, %s15
      // Predicated region
      $region49: #{tpu_custom_call.1} parent=5 // pred_check
        %p9705 = pneg %p9704
      $region50: #{tpu_custom_call.1} parent=5 // pred_check_branch
        %9707 = sbr.rel (%p9705) target = $region52
      $region51: #{tpu_custom_call.1} parent=5 // pred_region
        %s9708 = ssub.s32 %s15, 2
        // Predicated region
        $region53: #{tpu_custom_call.1} parent=51 // pred_check
          %p9709 = pneg %p154
        $region54: #{tpu_custom_call.1} parent=51 // pred_check_branch
          %9711 = sbr.rel (%p9709) target = $region56
        $region55: #{tpu_custom_call.1} parent=51 // pred_region
          %s9712 = sand.u32 %s139, 1
          %s9713 = scalar_lea.sflag [#allocation6], %s9712
          %s9714 = sand.u32 %s139, 1
          %s9715 = smul.addr %s9714, 20
          %s9716 = scalar_lea.vmem [#allocation7], %s9715
          %9717 = dma.done %s9713, 320
        $region56: #{tpu_custom_call.1} parent=51 // pred_fallthru
          _
      $region52: #{tpu_custom_call.1} parent=5 // pred_fallthru
        _
    $region6: #{tpu_custom_call.1} parent=1 // loop_footer
      %s19 = sadd.s32 1, %s15
    $region7: #{tpu_custom_call.1} parent=1 // loop_footer_branch
      %14 = sbr.rel target = $region3
    $region8: #{tpu_custom_call.1} parent=1 // loop_exit
      _
    %9718 = vsyncpa [#allocation5], 1
    %s9719 = scalar_lea.sflag [#allocation5], 1
    %9720 = vsyncpa %s9719, 1
    %9721 = vsyncpa [#allocation6], 1
    %s9722 = scalar_lea.sflag [#allocation6], 1
    %9723 = vsyncpa %s9722, 1

</llo_original>
